<compile_context>
chip_gen: v6e
topology: v6e:2x2x1
jax: 0.10.0
libtpu: 0.0.40
codegen_flags: <defaults>
</compile_context>

<pallas_src>
import functools

import jax
import jax.numpy as jnp
import numpy as np
from jax.experimental import pallas as pl
from jax.experimental.pallas import tpu as pltpu

EPS = 1e-5


# ---------------------------------------------------------------------------
# Fused Pallas kernel: full M5 forward for one batch element per grid step.
# ---------------------------------------------------------------------------
def m5_fused_kernel(x_ref, w1_ref, s1_ref, w2_ref, s2_ref, w3_ref, s3_ref,
                    w4_ref, s4_ref, w5_ref, s5_ref, fcw_ref, fcb_ref, o_ref,
                    *, pools):
    f32 = jnp.float32

    def conv_shift_relu(x, w_ref, s_ref):
        # Valid stride-1 Conv1d on the VMEM-resident activation, as one matmul:
        #   z = x @ W_all   with W_all[cin, k*Cout + co] = w[co, cin, k] * bn_scale[co]
        #   y[l, :] = sum_k z[l + k, k*Cout:(k+1)*Cout]
        # then the folded BN shift and ReLU.
        cout = s_ref.shape[1]
        k = w_ref.shape[1] // cout
        lo = x.shape[0] - k + 1
        z = jnp.dot(x, w_ref[...], preferred_element_type=f32)      # (Lin, K*Cout)
        y = z[0:lo, 0:cout]
        for t in range(1, k):
            y = y + z[t:t + lo, t * cout:(t + 1) * cout]
        return jnp.maximum(y + s_ref[...], 0.0)

    def maxpool(y, pool):
        # MaxPool1d(pool) with floor truncation: windowed running max over `pool`
        # shifted contiguous slices, then downsample rows with a one-hot selection
        # matmul (exact in fp32).
        length = y.shape[0]
        lp = length // pool
        lm = length - pool + 1
        m = y[0:lm, :]
        for j in range(1, pool):
            m = jnp.maximum(m, y[j:j + lm, :])
        rows = jax.lax.broadcasted_iota(jnp.int32, (lp, lm), 0)
        cols = jax.lax.broadcasted_iota(jnp.int32, (lp, lm), 1)
        sel = (cols == rows * pool).astype(f32)
        return jnp.dot(sel, m, preferred_element_type=f32)

    # conv1 (stride 16, K=49) was re-expressed as a stride-1 conv with a 4-row
    # kernel over the (rows, 16*Cin) strided-reshaped input, so it goes through
    # the exact same routine as conv2..5 -- no im2col inflation anywhere.
    x = conv_shift_relu(x_ref[0], w1_ref, s1_ref)
    x = maxpool(x, pools[0])
    x = conv_shift_relu(x, w2_ref, s2_ref)
    x = maxpool(x, pools[1])
    x = conv_shift_relu(x, w3_ref, s3_ref)
    x = maxpool(x, pools[2])
    x = conv_shift_relu(x, w4_ref, s4_ref)
    x = maxpool(x, pools[3])
    x = conv_shift_relu(x, w5_ref, s5_ref)

    g = jnp.mean(x, axis=0, keepdims=True)          # AdaptiveAvgPool1d(1) -> (1, C)
    # TODO(synk): nn.Dropout is identity in eval mode; training-mode RNG dropout not implemented.
    o_ref[0] = jnp.dot(g, fcw_ref[...], preferred_element_type=f32) + fcb_ref[...]


# ---------------------------------------------------------------------------
# JAX glue
# ---------------------------------------------------------------------------
def m5_forward(x_ncl, params, head):
    """x_ncl: (B, n_input, L) PyTorch NCL layout -> (B, n_output) logits."""
    B, Cin, L = x_ncl.shape
    p0 = params[0]
    k1, stride = p0['k'], p0['stride']
    k_rows = -(-k1 // stride)                       # 4 row-kernel for K=49, S=16
    L1 = (L - k1) // stride + 1
    rows = L1 + k_rows - 1
    need = rows * stride

    x_cl = jnp.transpose(x_ncl, (0, 2, 1)).astype(jnp.float32)      # (B, L, Cin)
    if need <= L:
        x_cl = x_cl[:, :need, :]                    # surplus samples never reach a valid window
    else:
        x_cl = jnp.pad(x_cl, ((0, 0), (0, need - L), (0, 0)))       # pad is never read by valid windows
    xr = x_cl.reshape(B, rows, stride * Cin)        # feature index = s*Cin + c (free reshape)

    n_out = head['fcw'].shape[1]
    weight_args = []
    for p in params:
        weight_args += [p['w_kernel'], p['shift']]
    weight_args += [head['fcw'], head['fcb']]

    def whole(a):       # full-array block, constant index -> DMA'd once, stays VMEM-resident
        return pl.BlockSpec(a.shape, lambda b: (0,) * a.ndim)

    in_specs = [pl.BlockSpec((1, rows, stride * Cin), lambda b: (b, 0, 0))]
    in_specs += [whole(a) for a in weight_args]

    pools = tuple(p['pool'] for p in params[:-1])   # (4, 2, 2, 2)

    out = pl.pallas_call(
        functools.partial(m5_fused_kernel, pools=pools),
        grid=(B,),
        in_specs=in_specs,
        out_specs=pl.BlockSpec((1, 1, n_out), lambda b: (b, 0, 0)),
        out_shape=jax.ShapeDtypeStruct((B, 1, n_out), jnp.float32),
        compiler_params=pltpu.CompilerParams(dimension_semantics=("parallel",)),
    )(xr, *weight_args)
    return out.reshape(B, n_out)


# ---------------------------------------------------------------------------
# Deterministic parameter init (shapes from M5.__init__, n_input=1, n_output=2,
# n_channel=16).  Eval-mode BN is folded: scale into the conv weight, shift kept.
# ---------------------------------------------------------------------------
def init_params(key, n_input=1, n_output=2, n_channel=16):
    cfg = [  # (Cin, Cout, K, stride, pool)
        (n_input,       n_channel,     49, 16, 4),
        (n_channel,     2 * n_channel, 49, 1,  2),
        (2 * n_channel, 4 * n_channel, 7,  1,  2),
        (4 * n_channel, 2 * n_channel, 5,  1,  2),
        (2 * n_channel, 1 * n_channel, 3,  1,  None),
    ]
    params = []
    for (cin, cout, k, stride, pool) in cfg:
        key, kw, kb, kg, kbe, km, kv = jax.random.split(key, 7)
        w = jax.random.normal(kw, (cout, cin, k), jnp.float32) / np.sqrt(cin * k)
        b = 0.1 * jax.random.normal(kb, (cout,), jnp.float32)
        gamma = jax.random.uniform(kg, (cout,), jnp.float32, 0.8, 1.2)
        beta = 0.1 * jax.random.normal(kbe, (cout,), jnp.float32)
        rmean = 0.1 * jax.random.normal(km, (cout,), jnp.float32)
        rvar = jax.random.uniform(kv, (cout,), jnp.float32, 0.5, 1.5)
        scale = gamma / jnp.sqrt(rvar + EPS)
        shift = scale * (b - rmean) + beta
        w_scaled = w * scale[:, None, None]          # fold BN scale into the conv weight
        if stride > 1:
            # Stride-S conv re-expressed as a stride-1 conv over the (rows, S*cin)
            # strided-reshaped input:  W[s*cin + c, d*cout + co] = w[co, c, S*d + s]
            k_rows = -(-k // stride)
            wp = jnp.zeros((cout, cin, k_rows * stride), jnp.float32)
            wp = wp.at[:, :, :k].set(w_scaled)
            wp = wp.reshape(cout, cin, k_rows, stride)               # [co, c, d, s]
            w_kernel = jnp.transpose(wp, (3, 1, 2, 0)).reshape(stride * cin, k_rows * cout)
        else:
            # In-kernel conv: W_all[cin, k*cout + co] = w[co, cin, k] * scale[co]
            w_kernel = jnp.transpose(w_scaled, (1, 2, 0)).reshape(cin, k * cout)
        params.append(dict(
            w=w, b=b, gamma=gamma, beta=beta, rmean=rmean, rvar=rvar,
            w_kernel=w_kernel, shift=shift.reshape(1, cout),
            k=k, stride=stride, pool=pool))
    key, kfw, kfb = jax.random.split(key, 3)
    fcw = jax.random.normal(kfw, (n_output, n_channel), jnp.float32) / np.sqrt(n_channel)
    fcb = 0.1 * jax.random.normal(kfb, (n_output,), jnp.float32)
    head = dict(fcw=jnp.transpose(fcw), fcb=fcb.reshape(1, n_output))
    return params, head


# ---------------------------------------------------------------------------
# Pure-JAX reference (NCL, mirrors the PyTorch forward exactly) for validation.
# ---------------------------------------------------------------------------
def m5_forward_ref(x, params, head):
    for p in params:
        y = jax.lax.conv_general_dilated(
            x, p['w'], window_strides=(p['stride'],), padding='VALID',
            dimension_numbers=('NCH', 'OIH', 'NCH'))
        y = y + p['b'][None, :, None]
        y = (p['gamma'][None, :, None] * (y - p['rmean'][None, :, None])
             / jnp.sqrt(p['rvar'][None, :, None] + EPS) + p['beta'][None, :, None])
        y = jnp.maximum(y, 0.0)
        if p['pool'] is not None:
            B, C, L = y.shape
            Lp = L // p['pool']
            y = y[:, :, :Lp * p['pool']].reshape(B, C, Lp, p['pool']).max(axis=-1)
        x = y
    g = jnp.mean(x, axis=-1)                      # AdaptiveAvgPool1d(1) + flatten
    return g @ head['fcw'] + head['fcb']          # dropout = identity (eval)


if __name__ == "__main__":
    key = jax.random.PRNGKey(0)
    kparam, kx = jax.random.split(key)
    params, head = init_params(kparam)

    # (batch=2, n_input=1, L=8000): smallest "natural" audio-like length that
    # survives the conv/pool stack (needs L >= 6433).
    x = jax.random.normal(kx, (2, 1, 8000), jnp.float32)

    fwd = jax.jit(functools.partial(m5_forward, params=params, head=head))
    out = jax.block_until_ready(fwd(x))

    assert out.shape == (2, 2), out.shape
    assert bool(jnp.all(jnp.isfinite(out)))

    ref = m5_forward_ref(x, params, head)
    np.testing.assert_allclose(np.asarray(out), np.asarray(ref),
                               rtol=5e-2, atol=5e-2)
    print("KERNEL_OK")
</pallas_src>

<mosaic_0001>
module attributes {stable_mosaic.version = 11 : i64} {
  func.func @m5_fused_kernel(%arg0: i32, %arg1: memref<1x500x16xf32, #tpu.memory_space<vmem>>, %arg2: memref<16x64xf32, #tpu.memory_space<vmem>>, %arg3: memref<1x16xf32, #tpu.memory_space<vmem>>, %arg4: memref<16x1568xf32, #tpu.memory_space<vmem>>, %arg5: memref<1x32xf32, #tpu.memory_space<vmem>>, %arg6: memref<32x448xf32, #tpu.memory_space<vmem>>, %arg7: memref<1x64xf32, #tpu.memory_space<vmem>>, %arg8: memref<64x160xf32, #tpu.memory_space<vmem>>, %arg9: memref<1x32xf32, #tpu.memory_space<vmem>>, %arg10: memref<32x48xf32, #tpu.memory_space<vmem>>, %arg11: memref<1x16xf32, #tpu.memory_space<vmem>>, %arg12: memref<16x2xf32, #tpu.memory_space<vmem>>, %arg13: memref<1x2xf32, #tpu.memory_space<vmem>>, %arg14: memref<1x1x2xf32, #tpu.memory_space<vmem>>) attributes {dimension_semantics = [#tpu.dimension_semantics<parallel>], iteration_bounds = array<i64: 2>, scalar_prefetch = 0 : i64, scratch_operands = 0 : i64, tpu.core_type = #tpu.core_type<tc>, window_params = [{transform_indices = @transform_0, window_bounds = array<i64: 1, 500, 16>}, {pipeline_mode = #tpu.pipeline_mode<synchronous>, transform_indices = @transform_1, window_bounds = array<i64: 16, 64>}, {pipeline_mode = #tpu.pipeline_mode<synchronous>, transform_indices = @transform_2, window_bounds = array<i64: 1, 16>}, {pipeline_mode = #tpu.pipeline_mode<synchronous>, transform_indices = @transform_3, window_bounds = array<i64: 16, 1568>}, {pipeline_mode = #tpu.pipeline_mode<synchronous>, transform_indices = @transform_4, window_bounds = array<i64: 1, 32>}, {pipeline_mode = #tpu.pipeline_mode<synchronous>, transform_indices = @transform_5, window_bounds = array<i64: 32, 448>}, {pipeline_mode = #tpu.pipeline_mode<synchronous>, transform_indices = @transform_6, window_bounds = array<i64: 1, 64>}, {pipeline_mode = #tpu.pipeline_mode<synchronous>, transform_indices = @transform_7, window_bounds = array<i64: 64, 160>}, {pipeline_mode = #tpu.pipeline_mode<synchronous>, transform_indices = @transform_8, window_bounds = array<i64: 1, 32>}, {pipeline_mode = #tpu.pipeline_mode<synchronous>, transform_indices = @transform_9, window_bounds = array<i64: 32, 48>}, {pipeline_mode = #tpu.pipeline_mode<synchronous>, transform_indices = @transform_10, window_bounds = array<i64: 1, 16>}, {pipeline_mode = #tpu.pipeline_mode<synchronous>, transform_indices = @transform_11, window_bounds = array<i64: 16, 2>}, {pipeline_mode = #tpu.pipeline_mode<synchronous>, transform_indices = @transform_12, window_bounds = array<i64: 1, 2>}, {transform_indices = @transform_13, window_bounds = array<i64: 1, 1, 2>}]} {
    %c0 = arith.constant 0 : index
    %c0_0 = arith.constant 0 : index
    %c0_1 = arith.constant 0 : index
    %0 = vector.load %arg1[%c0, %c0_0, %c0_1] : memref<1x500x16xf32, #tpu.memory_space<vmem>>, vector<1x500x16xf32>
    %1 = vector.shape_cast %0 : vector<1x500x16xf32> to vector<500x16xf32>
    %c0_2 = arith.constant 0 : index
    %c0_3 = arith.constant 0 : index
    %2 = vector.load %arg2[%c0_2, %c0_3] : memref<16x64xf32, #tpu.memory_space<vmem>>, vector<16x64xf32>
    %cst = arith.constant dense<0.000000e+00> : vector<500x64xf32>
    %3 = tpu.matmul %1, %2, %cst {dimension_numbers = #tpu.dot_dimension_numbers<[1], [0], [0], [1], [0, 0, 1, 1], [], []>} : vector<500x16xf32>, vector<16x64xf32>, vector<500x64xf32> -> vector<500x64xf32>
    %4 = vector.extract_strided_slice %3 {offsets = [0, 0], sizes = [497, 16], strides = [1, 1]} : vector<500x64xf32> to vector<497x16xf32>
    %5 = vector.extract_strided_slice %3 {offsets = [1, 16], sizes = [497, 16], strides = [1, 1]} : vector<500x64xf32> to vector<497x16xf32>
    %6 = arith.addf %4, %5 : vector<497x16xf32>
    %7 = vector.extract_strided_slice %3 {offsets = [2, 32], sizes = [497, 16], strides = [1, 1]} : vector<500x64xf32> to vector<497x16xf32>
    %8 = arith.addf %6, %7 : vector<497x16xf32>
    %9 = vector.extract_strided_slice %3 {offsets = [3, 48], sizes = [497, 16], strides = [1, 1]} : vector<500x64xf32> to vector<497x16xf32>
    %10 = arith.addf %8, %9 : vector<497x16xf32>
    %c0_4 = arith.constant 0 : index
    %c0_5 = arith.constant 0 : index
    %11 = vector.load %arg3[%c0_4, %c0_5] : memref<1x16xf32, #tpu.memory_space<vmem>>, vector<1x16xf32>
    %12 = vector.broadcast %11 : vector<1x16xf32> to vector<497x16xf32>
    %13 = arith.addf %10, %12 : vector<497x16xf32>
    %cst_6 = arith.constant 0.000000e+00 : f32
    %14 = vector.broadcast %cst_6 : f32 to vector<497x16xf32>
    %15 = arith.maximumf %13, %14 : vector<497x16xf32>
    %16 = vector.extract_strided_slice %15 {offsets = [0, 0], sizes = [494, 16], strides = [1, 1]} : vector<497x16xf32> to vector<494x16xf32>
    %17 = vector.extract_strided_slice %15 {offsets = [1, 0], sizes = [494, 16], strides = [1, 1]} : vector<497x16xf32> to vector<494x16xf32>
    %18 = arith.maximumf %16, %17 : vector<494x16xf32>
    %19 = vector.extract_strided_slice %15 {offsets = [2, 0], sizes = [494, 16], strides = [1, 1]} : vector<497x16xf32> to vector<494x16xf32>
    %20 = arith.maximumf %18, %19 : vector<494x16xf32>
    %21 = vector.extract_strided_slice %15 {offsets = [3, 0], sizes = [494, 16], strides = [1, 1]} : vector<497x16xf32> to vector<494x16xf32>
    %22 = arith.maximumf %20, %21 : vector<494x16xf32>
    %23 = tpu.iota {dimensions = array<i32: 0>} : vector<124x494xi32>
    %24 = tpu.iota {dimensions = array<i32: 1>} : vector<124x494xi32>
    %c4_i32 = arith.constant 4 : i32
    %25 = vector.broadcast %c4_i32 : i32 to vector<124x494xi32>
    %26 = arith.muli %23, %25 : vector<124x494xi32>
    %27 = arith.cmpi eq, %24, %26 : vector<124x494xi32>
    %28 = arith.extui %27 : vector<124x494xi1> to vector<124x494xi32>
    %29 = arith.sitofp %28 : vector<124x494xi32> to vector<124x494xf32>
    %cst_7 = arith.constant dense<0.000000e+00> : vector<124x16xf32>
    %30 = tpu.matmul %29, %22, %cst_7 {dimension_numbers = #tpu.dot_dimension_numbers<[1], [0], [0], [1], [0, 0, 1, 1], [], []>} : vector<124x494xf32>, vector<494x16xf32>, vector<124x16xf32> -> vector<124x16xf32>
    %c0_8 = arith.constant 0 : index
    %c0_9 = arith.constant 0 : index
    %31 = vector.load %arg4[%c0_8, %c0_9] : memref<16x1568xf32, #tpu.memory_space<vmem>>, vector<16x1568xf32>
    %cst_10 = arith.constant dense<0.000000e+00> : vector<124x1568xf32>
    %32 = tpu.matmul %30, %31, %cst_10 {dimension_numbers = #tpu.dot_dimension_numbers<[1], [0], [0], [1], [0, 0, 1, 1], [], []>} : vector<124x16xf32>, vector<16x1568xf32>, vector<124x1568xf32> -> vector<124x1568xf32>
    %33 = vector.extract_strided_slice %32 {offsets = [0, 0], sizes = [76, 32], strides = [1, 1]} : vector<124x1568xf32> to vector<76x32xf32>
    %34 = vector.extract_strided_slice %32 {offsets = [1, 32], sizes = [76, 32], strides = [1, 1]} : vector<124x1568xf32> to vector<76x32xf32>
    %35 = arith.addf %33, %34 : vector<76x32xf32>
    %36 = vector.extract_strided_slice %32 {offsets = [2, 64], sizes = [76, 32], strides = [1, 1]} : vector<124x1568xf32> to vector<76x32xf32>
    %37 = arith.addf %35, %36 : vector<76x32xf32>
    %38 = vector.extract_strided_slice %32 {offsets = [3, 96], sizes = [76, 32], strides = [1, 1]} : vector<124x1568xf32> to vector<76x32xf32>
    %39 = arith.addf %37, %38 : vector<76x32xf32>
    %40 = vector.extract_strided_slice %32 {offsets = [4, 128], sizes = [76, 32], strides = [1, 1]} : vector<124x1568xf32> to vector<76x32xf32>
    %41 = arith.addf %39, %40 : vector<76x32xf32>
    %42 = vector.extract_strided_slice %32 {offsets = [5, 160], sizes = [76, 32], strides = [1, 1]} : vector<124x1568xf32> to vector<76x32xf32>
    %43 = arith.addf %41, %42 : vector<76x32xf32>
    %44 = vector.extract_strided_slice %32 {offsets = [6, 192], sizes = [76, 32], strides = [1, 1]} : vector<124x1568xf32> to vector<76x32xf32>
    %45 = arith.addf %43, %44 : vector<76x32xf32>
    %46 = vector.extract_strided_slice %32 {offsets = [7, 224], sizes = [76, 32], strides = [1, 1]} : vector<124x1568xf32> to vector<76x32xf32>
    %47 = arith.addf %45, %46 : vector<76x32xf32>
    %48 = vector.extract_strided_slice %32 {offsets = [8, 256], sizes = [76, 32], strides = [1, 1]} : vector<124x1568xf32> to vector<76x32xf32>
    %49 = arith.addf %47, %48 : vector<76x32xf32>
    %50 = vector.extract_strided_slice %32 {offsets = [9, 288], sizes = [76, 32], strides = [1, 1]} : vector<124x1568xf32> to vector<76x32xf32>
    %51 = arith.addf %49, %50 : vector<76x32xf32>
    %52 = vector.extract_strided_slice %32 {offsets = [10, 320], sizes = [76, 32], strides = [1, 1]} : vector<124x1568xf32> to vector<76x32xf32>
    %53 = arith.addf %51, %52 : vector<76x32xf32>
    %54 = vector.extract_strided_slice %32 {offsets = [11, 352], sizes = [76, 32], strides = [1, 1]} : vector<124x1568xf32> to vector<76x32xf32>
    %55 = arith.addf %53, %54 : vector<76x32xf32>
    %56 = vector.extract_strided_slice %32 {offsets = [12, 384], sizes = [76, 32], strides = [1, 1]} : vector<124x1568xf32> to vector<76x32xf32>
    %57 = arith.addf %55, %56 : vector<76x32xf32>
    %58 = vector.extract_strided_slice %32 {offsets = [13, 416], sizes = [76, 32], strides = [1, 1]} : vector<124x1568xf32> to vector<76x32xf32>
    %59 = arith.addf %57, %58 : vector<76x32xf32>
    %60 = vector.extract_strided_slice %32 {offsets = [14, 448], sizes = [76, 32], strides = [1, 1]} : vector<124x1568xf32> to vector<76x32xf32>
    %61 = arith.addf %59, %60 : vector<76x32xf32>
    %62 = vector.extract_strided_slice %32 {offsets = [15, 480], sizes = [76, 32], strides = [1, 1]} : vector<124x1568xf32> to vector<76x32xf32>
    %63 = arith.addf %61, %62 : vector<76x32xf32>
    %64 = vector.extract_strided_slice %32 {offsets = [16, 512], sizes = [76, 32], strides = [1, 1]} : vector<124x1568xf32> to vector<76x32xf32>
    %65 = arith.addf %63, %64 : vector<76x32xf32>
    %66 = vector.extract_strided_slice %32 {offsets = [17, 544], sizes = [76, 32], strides = [1, 1]} : vector<124x1568xf32> to vector<76x32xf32>
    %67 = arith.addf %65, %66 : vector<76x32xf32>
    %68 = vector.extract_strided_slice %32 {offsets = [18, 576], sizes = [76, 32], strides = [1, 1]} : vector<124x1568xf32> to vector<76x32xf32>
    %69 = arith.addf %67, %68 : vector<76x32xf32>
    %70 = vector.extract_strided_slice %32 {offsets = [19, 608], sizes = [76, 32], strides = [1, 1]} : vector<124x1568xf32> to vector<76x32xf32>
    %71 = arith.addf %69, %70 : vector<76x32xf32>
    %72 = vector.extract_strided_slice %32 {offsets = [20, 640], sizes = [76, 32], strides = [1, 1]} : vector<124x1568xf32> to vector<76x32xf32>
    %73 = arith.addf %71, %72 : vector<76x32xf32>
    %74 = vector.extract_strided_slice %32 {offsets = [21, 672], sizes = [76, 32], strides = [1, 1]} : vector<124x1568xf32> to vector<76x32xf32>
    %75 = arith.addf %73, %74 : vector<76x32xf32>
    %76 = vector.extract_strided_slice %32 {offsets = [22, 704], sizes = [76, 32], strides = [1, 1]} : vector<124x1568xf32> to vector<76x32xf32>
    %77 = arith.addf %75, %76 : vector<76x32xf32>
    %78 = vector.extract_strided_slice %32 {offsets = [23, 736], sizes = [76, 32], strides = [1, 1]} : vector<124x1568xf32> to vector<76x32xf32>
    %79 = arith.addf %77, %78 : vector<76x32xf32>
    %80 = vector.extract_strided_slice %32 {offsets = [24, 768], sizes = [76, 32], strides = [1, 1]} : vector<124x1568xf32> to vector<76x32xf32>
    %81 = arith.addf %79, %80 : vector<76x32xf32>
    %82 = vector.extract_strided_slice %32 {offsets = [25, 800], sizes = [76, 32], strides = [1, 1]} : vector<124x1568xf32> to vector<76x32xf32>
    %83 = arith.addf %81, %82 : vector<76x32xf32>
    %84 = vector.extract_strided_slice %32 {offsets = [26, 832], sizes = [76, 32], strides = [1, 1]} : vector<124x1568xf32> to vector<76x32xf32>
    %85 = arith.addf %83, %84 : vector<76x32xf32>
    %86 = vector.extract_strided_slice %32 {offsets = [27, 864], sizes = [76, 32], strides = [1, 1]} : vector<124x1568xf32> to vector<76x32xf32>
    %87 = arith.addf %85, %86 : vector<76x32xf32>
    %88 = vector.extract_strided_slice %32 {offsets = [28, 896], sizes = [76, 32], strides = [1, 1]} : vector<124x1568xf32> to vector<76x32xf32>
    %89 = arith.addf %87, %88 : vector<76x32xf32>
    %90 = vector.extract_strided_slice %32 {offsets = [29, 928], sizes = [76, 32], strides = [1, 1]} : vector<124x1568xf32> to vector<76x32xf32>
    %91 = arith.addf %89, %90 : vector<76x32xf32>
    %92 = vector.extract_strided_slice %32 {offsets = [30, 960], sizes = [76, 32], strides = [1, 1]} : vector<124x1568xf32> to vector<76x32xf32>
    %93 = arith.addf %91, %92 : vector<76x32xf32>
    %94 = vector.extract_strided_slice %32 {offsets = [31, 992], sizes = [76, 32], strides = [1, 1]} : vector<124x1568xf32> to vector<76x32xf32>
    %95 = arith.addf %93, %94 : vector<76x32xf32>
    %96 = vector.extract_strided_slice %32 {offsets = [32, 1024], sizes = [76, 32], strides = [1, 1]} : vector<124x1568xf32> to vector<76x32xf32>
    %97 = arith.addf %95, %96 : vector<76x32xf32>
    %98 = vector.extract_strided_slice %32 {offsets = [33, 1056], sizes = [76, 32], strides = [1, 1]} : vector<124x1568xf32> to vector<76x32xf32>
    %99 = arith.addf %97, %98 : vector<76x32xf32>
    %100 = vector.extract_strided_slice %32 {offsets = [34, 1088], sizes = [76, 32], strides = [1, 1]} : vector<124x1568xf32> to vector<76x32xf32>
    %101 = arith.addf %99, %100 : vector<76x32xf32>
    %102 = vector.extract_strided_slice %32 {offsets = [35, 1120], sizes = [76, 32], strides = [1, 1]} : vector<124x1568xf32> to vector<76x32xf32>
    %103 = arith.addf %101, %102 : vector<76x32xf32>
    %104 = vector.extract_strided_slice %32 {offsets = [36, 1152], sizes = [76, 32], strides = [1, 1]} : vector<124x1568xf32> to vector<76x32xf32>
    %105 = arith.addf %103, %104 : vector<76x32xf32>
    %106 = vector.extract_strided_slice %32 {offsets = [37, 1184], sizes = [76, 32], strides = [1, 1]} : vector<124x1568xf32> to vector<76x32xf32>
    %107 = arith.addf %105, %106 : vector<76x32xf32>
    %108 = vector.extract_strided_slice %32 {offsets = [38, 1216], sizes = [76, 32], strides = [1, 1]} : vector<124x1568xf32> to vector<76x32xf32>
    %109 = arith.addf %107, %108 : vector<76x32xf32>
    %110 = vector.extract_strided_slice %32 {offsets = [39, 1248], sizes = [76, 32], strides = [1, 1]} : vector<124x1568xf32> to vector<76x32xf32>
    %111 = arith.addf %109, %110 : vector<76x32xf32>
    %112 = vector.extract_strided_slice %32 {offsets = [40, 1280], sizes = [76, 32], strides = [1, 1]} : vector<124x1568xf32> to vector<76x32xf32>
    %113 = arith.addf %111, %112 : vector<76x32xf32>
    %114 = vector.extract_strided_slice %32 {offsets = [41, 1312], sizes = [76, 32], strides = [1, 1]} : vector<124x1568xf32> to vector<76x32xf32>
    %115 = arith.addf %113, %114 : vector<76x32xf32>
    %116 = vector.extract_strided_slice %32 {offsets = [42, 1344], sizes = [76, 32], strides = [1, 1]} : vector<124x1568xf32> to vector<76x32xf32>
    %117 = arith.addf %115, %116 : vector<76x32xf32>
    %118 = vector.extract_strided_slice %32 {offsets = [43, 1376], sizes = [76, 32], strides = [1, 1]} : vector<124x1568xf32> to vector<76x32xf32>
    %119 = arith.addf %117, %118 : vector<76x32xf32>
    %120 = vector.extract_strided_slice %32 {offsets = [44, 1408], sizes = [76, 32], strides = [1, 1]} : vector<124x1568xf32> to vector<76x32xf32>
    %121 = arith.addf %119, %120 : vector<76x32xf32>
    %122 = vector.extract_strided_slice %32 {offsets = [45, 1440], sizes = [76, 32], strides = [1, 1]} : vector<124x1568xf32> to vector<76x32xf32>
    %123 = arith.addf %121, %122 : vector<76x32xf32>
    %124 = vector.extract_strided_slice %32 {offsets = [46, 1472], sizes = [76, 32], strides = [1, 1]} : vector<124x1568xf32> to vector<76x32xf32>
    %125 = arith.addf %123, %124 : vector<76x32xf32>
    %126 = vector.extract_strided_slice %32 {offsets = [47, 1504], sizes = [76, 32], strides = [1, 1]} : vector<124x1568xf32> to vector<76x32xf32>
    %127 = arith.addf %125, %126 : vector<76x32xf32>
    %128 = vector.extract_strided_slice %32 {offsets = [48, 1536], sizes = [76, 32], strides = [1, 1]} : vector<124x1568xf32> to vector<76x32xf32>
    %129 = arith.addf %127, %128 : vector<76x32xf32>
    %c0_11 = arith.constant 0 : index
    %c0_12 = arith.constant 0 : index
    %130 = vector.load %arg5[%c0_11, %c0_12] : memref<1x32xf32, #tpu.memory_space<vmem>>, vector<1x32xf32>
    %131 = vector.broadcast %130 : vector<1x32xf32> to vector<76x32xf32>
    %132 = arith.addf %129, %131 : vector<76x32xf32>
    %cst_13 = arith.constant 0.000000e+00 : f32
    %133 = vector.broadcast %cst_13 : f32 to vector<76x32xf32>
    %134 = arith.maximumf %132, %133 : vector<76x32xf32>
    %135 = vector.extract_strided_slice %134 {offsets = [0, 0], sizes = [75, 32], strides = [1, 1]} : vector<76x32xf32> to vector<75x32xf32>
    %136 = vector.extract_strided_slice %134 {offsets = [1, 0], sizes = [75, 32], strides = [1, 1]} : vector<76x32xf32> to vector<75x32xf32>
    %137 = arith.maximumf %135, %136 : vector<75x32xf32>
    %138 = tpu.iota {dimensions = array<i32: 0>} : vector<38x75xi32>
    %139 = tpu.iota {dimensions = array<i32: 1>} : vector<38x75xi32>
    %c2_i32 = arith.constant 2 : i32
    %140 = vector.broadcast %c2_i32 : i32 to vector<38x75xi32>
    %141 = arith.muli %138, %140 : vector<38x75xi32>
    %142 = arith.cmpi eq, %139, %141 : vector<38x75xi32>
    %143 = arith.extui %142 : vector<38x75xi1> to vector<38x75xi32>
    %144 = arith.sitofp %143 : vector<38x75xi32> to vector<38x75xf32>
    %cst_14 = arith.constant dense<0.000000e+00> : vector<38x32xf32>
    %145 = tpu.matmul %144, %137, %cst_14 {dimension_numbers = #tpu.dot_dimension_numbers<[1], [0], [0], [1], [0, 0, 1, 1], [], []>} : vector<38x75xf32>, vector<75x32xf32>, vector<38x32xf32> -> vector<38x32xf32>
    %c0_15 = arith.constant 0 : index
    %c0_16 = arith.constant 0 : index
    %146 = vector.load %arg6[%c0_15, %c0_16] : memref<32x448xf32, #tpu.memory_space<vmem>>, vector<32x448xf32>
    %cst_17 = arith.constant dense<0.000000e+00> : vector<38x448xf32>
    %147 = tpu.matmul %145, %146, %cst_17 {dimension_numbers = #tpu.dot_dimension_numbers<[1], [0], [0], [1], [0, 0, 1, 1], [], []>} : vector<38x32xf32>, vector<32x448xf32>, vector<38x448xf32> -> vector<38x448xf32>
    %148 = vector.extract_strided_slice %147 {offsets = [0, 0], sizes = [32, 64], strides = [1, 1]} : vector<38x448xf32> to vector<32x64xf32>
    %149 = vector.extract_strided_slice %147 {offsets = [1, 64], sizes = [32, 64], strides = [1, 1]} : vector<38x448xf32> to vector<32x64xf32>
    %150 = arith.addf %148, %149 : vector<32x64xf32>
    %151 = vector.extract_strided_slice %147 {offsets = [2, 128], sizes = [32, 64], strides = [1, 1]} : vector<38x448xf32> to vector<32x64xf32>
    %152 = arith.addf %150, %151 : vector<32x64xf32>
    %153 = vector.extract_strided_slice %147 {offsets = [3, 192], sizes = [32, 64], strides = [1, 1]} : vector<38x448xf32> to vector<32x64xf32>
    %154 = arith.addf %152, %153 : vector<32x64xf32>
    %155 = vector.extract_strided_slice %147 {offsets = [4, 256], sizes = [32, 64], strides = [1, 1]} : vector<38x448xf32> to vector<32x64xf32>
    %156 = arith.addf %154, %155 : vector<32x64xf32>
    %157 = vector.extract_strided_slice %147 {offsets = [5, 320], sizes = [32, 64], strides = [1, 1]} : vector<38x448xf32> to vector<32x64xf32>
    %158 = arith.addf %156, %157 : vector<32x64xf32>
    %159 = vector.extract_strided_slice %147 {offsets = [6, 384], sizes = [32, 64], strides = [1, 1]} : vector<38x448xf32> to vector<32x64xf32>
    %160 = arith.addf %158, %159 : vector<32x64xf32>
    %c0_18 = arith.constant 0 : index
    %c0_19 = arith.constant 0 : index
    %161 = vector.load %arg7[%c0_18, %c0_19] : memref<1x64xf32, #tpu.memory_space<vmem>>, vector<1x64xf32>
    %162 = vector.broadcast %161 : vector<1x64xf32> to vector<32x64xf32>
    %163 = arith.addf %160, %162 : vector<32x64xf32>
    %cst_20 = arith.constant 0.000000e+00 : f32
    %164 = vector.broadcast %cst_20 : f32 to vector<32x64xf32>
    %165 = arith.maximumf %163, %164 : vector<32x64xf32>
    %166 = vector.extract_strided_slice %165 {offsets = [0, 0], sizes = [31, 64], strides = [1, 1]} : vector<32x64xf32> to vector<31x64xf32>
    %167 = vector.extract_strided_slice %165 {offsets = [1, 0], sizes = [31, 64], strides = [1, 1]} : vector<32x64xf32> to vector<31x64xf32>
    %168 = arith.maximumf %166, %167 : vector<31x64xf32>
    %169 = tpu.iota {dimensions = array<i32: 0>} : vector<16x31xi32>
    %170 = tpu.iota {dimensions = array<i32: 1>} : vector<16x31xi32>
    %c2_i32_21 = arith.constant 2 : i32
    %171 = vector.broadcast %c2_i32_21 : i32 to vector<16x31xi32>
    %172 = arith.muli %169, %171 : vector<16x31xi32>
    %173 = arith.cmpi eq, %170, %172 : vector<16x31xi32>
    %174 = arith.extui %173 : vector<16x31xi1> to vector<16x31xi32>
    %175 = arith.sitofp %174 : vector<16x31xi32> to vector<16x31xf32>
    %cst_22 = arith.constant dense<0.000000e+00> : vector<16x64xf32>
    %176 = tpu.matmul %175, %168, %cst_22 {dimension_numbers = #tpu.dot_dimension_numbers<[1], [0], [0], [1], [0, 0, 1, 1], [], []>} : vector<16x31xf32>, vector<31x64xf32>, vector<16x64xf32> -> vector<16x64xf32>
    %c0_23 = arith.constant 0 : index
    %c0_24 = arith.constant 0 : index
    %177 = vector.load %arg8[%c0_23, %c0_24] : memref<64x160xf32, #tpu.memory_space<vmem>>, vector<64x160xf32>
    %cst_25 = arith.constant dense<0.000000e+00> : vector<16x160xf32>
    %178 = tpu.matmul %176, %177, %cst_25 {dimension_numbers = #tpu.dot_dimension_numbers<[1], [0], [0], [1], [0, 0, 1, 1], [], []>} : vector<16x64xf32>, vector<64x160xf32>, vector<16x160xf32> -> vector<16x160xf32>
    %179 = vector.extract_strided_slice %178 {offsets = [0, 0], sizes = [12, 32], strides = [1, 1]} : vector<16x160xf32> to vector<12x32xf32>
    %180 = vector.extract_strided_slice %178 {offsets = [1, 32], sizes = [12, 32], strides = [1, 1]} : vector<16x160xf32> to vector<12x32xf32>
    %181 = arith.addf %179, %180 : vector<12x32xf32>
    %182 = vector.extract_strided_slice %178 {offsets = [2, 64], sizes = [12, 32], strides = [1, 1]} : vector<16x160xf32> to vector<12x32xf32>
    %183 = arith.addf %181, %182 : vector<12x32xf32>
    %184 = vector.extract_strided_slice %178 {offsets = [3, 96], sizes = [12, 32], strides = [1, 1]} : vector<16x160xf32> to vector<12x32xf32>
    %185 = arith.addf %183, %184 : vector<12x32xf32>
    %186 = vector.extract_strided_slice %178 {offsets = [4, 128], sizes = [12, 32], strides = [1, 1]} : vector<16x160xf32> to vector<12x32xf32>
    %187 = arith.addf %185, %186 : vector<12x32xf32>
    %c0_26 = arith.constant 0 : index
    %c0_27 = arith.constant 0 : index
    %188 = vector.load %arg9[%c0_26, %c0_27] : memref<1x32xf32, #tpu.memory_space<vmem>>, vector<1x32xf32>
    %189 = vector.broadcast %188 : vector<1x32xf32> to vector<12x32xf32>
    %190 = arith.addf %187, %189 : vector<12x32xf32>
    %cst_28 = arith.constant 0.000000e+00 : f32
    %191 = vector.broadcast %cst_28 : f32 to vector<12x32xf32>
    %192 = arith.maximumf %190, %191 : vector<12x32xf32>
    %193 = vector.extract_strided_slice %192 {offsets = [0, 0], sizes = [11, 32], strides = [1, 1]} : vector<12x32xf32> to vector<11x32xf32>
    %194 = vector.extract_strided_slice %192 {offsets = [1, 0], sizes = [11, 32], strides = [1, 1]} : vector<12x32xf32> to vector<11x32xf32>
    %195 = arith.maximumf %193, %194 : vector<11x32xf32>
    %196 = tpu.iota {dimensions = array<i32: 0>} : vector<6x11xi32>
    %197 = tpu.iota {dimensions = array<i32: 1>} : vector<6x11xi32>
    %c2_i32_29 = arith.constant 2 : i32
    %198 = vector.broadcast %c2_i32_29 : i32 to vector<6x11xi32>
    %199 = arith.muli %196, %198 : vector<6x11xi32>
    %200 = arith.cmpi eq, %197, %199 : vector<6x11xi32>
    %201 = arith.extui %200 : vector<6x11xi1> to vector<6x11xi32>
    %202 = arith.sitofp %201 : vector<6x11xi32> to vector<6x11xf32>
    %cst_30 = arith.constant dense<0.000000e+00> : vector<6x32xf32>
    %203 = tpu.matmul %202, %195, %cst_30 {dimension_numbers = #tpu.dot_dimension_numbers<[1], [0], [0], [1], [0, 0, 1, 1], [], []>} : vector<6x11xf32>, vector<11x32xf32>, vector<6x32xf32> -> vector<6x32xf32>
    %c0_31 = arith.constant 0 : index
    %c0_32 = arith.constant 0 : index
    %204 = vector.load %arg10[%c0_31, %c0_32] : memref<32x48xf32, #tpu.memory_space<vmem>>, vector<32x48xf32>
    %cst_33 = arith.constant dense<0.000000e+00> : vector<6x48xf32>
    %205 = tpu.matmul %203, %204, %cst_33 {dimension_numbers = #tpu.dot_dimension_numbers<[1], [0], [0], [1], [0, 0, 1, 1], [], []>} : vector<6x32xf32>, vector<32x48xf32>, vector<6x48xf32> -> vector<6x48xf32>
    %206 = vector.extract_strided_slice %205 {offsets = [0, 0], sizes = [4, 16], strides = [1, 1]} : vector<6x48xf32> to vector<4x16xf32>
    %207 = vector.extract_strided_slice %205 {offsets = [1, 16], sizes = [4, 16], strides = [1, 1]} : vector<6x48xf32> to vector<4x16xf32>
    %208 = arith.addf %206, %207 : vector<4x16xf32>
    %209 = vector.extract_strided_slice %205 {offsets = [2, 32], sizes = [4, 16], strides = [1, 1]} : vector<6x48xf32> to vector<4x16xf32>
    %210 = arith.addf %208, %209 : vector<4x16xf32>
    %c0_34 = arith.constant 0 : index
    %c0_35 = arith.constant 0 : index
    %211 = vector.load %arg11[%c0_34, %c0_35] : memref<1x16xf32, #tpu.memory_space<vmem>>, vector<1x16xf32>
    %212 = vector.broadcast %211 : vector<1x16xf32> to vector<4x16xf32>
    %213 = arith.addf %210, %212 : vector<4x16xf32>
    %cst_36 = arith.constant 0.000000e+00 : f32
    %214 = vector.broadcast %cst_36 : f32 to vector<4x16xf32>
    %215 = arith.maximumf %213, %214 : vector<4x16xf32>
    %cst_37 = arith.constant dense<0.000000e+00> : vector<16xf32>
    %216 = vector.multi_reduction <add>, %215, %cst_37 [0] : vector<4x16xf32> to vector<16xf32>
    %217 = vector.shape_cast %216 : vector<16xf32> to vector<1x16xf32>
    %cst_38 = arith.constant 4.000000e+00 : f32
    %218 = vector.broadcast %cst_38 : f32 to vector<1x16xf32>
    %219 = arith.divf %217, %218 : vector<1x16xf32>
    %c0_39 = arith.constant 0 : index
    %c0_40 = arith.constant 0 : index
    %220 = vector.load %arg12[%c0_39, %c0_40] : memref<16x2xf32, #tpu.memory_space<vmem>>, vector<16x2xf32>
    %cst_41 = arith.constant dense<0.000000e+00> : vector<1x2xf32>
    %221 = tpu.matmul %219, %220, %cst_41 {dimension_numbers = #tpu.dot_dimension_numbers<[1], [0], [0], [1], [0, 0, 1, 1], [], []>} : vector<1x16xf32>, vector<16x2xf32>, vector<1x2xf32> -> vector<1x2xf32>
    %c0_42 = arith.constant 0 : index
    %c0_43 = arith.constant 0 : index
    %222 = vector.load %arg13[%c0_42, %c0_43] : memref<1x2xf32, #tpu.memory_space<vmem>>, vector<1x2xf32>
    %223 = arith.addf %221, %222 : vector<1x2xf32>
    %c0_44 = arith.constant 0 : index
    %c0_45 = arith.constant 0 : index
    %c0_46 = arith.constant 0 : index
    %224 = vector.load %arg14[%c0_44, %c0_45, %c0_46] : memref<1x1x2xf32, #tpu.memory_space<vmem>>, vector<1x1x2xf32>
    %225 = vector.shape_cast %224 : vector<1x1x2xf32> to vector<1x2xf32>
    %226 = vector.shape_cast %223 : vector<1x2xf32> to vector<1x1x2xf32>
    tpu.vector_store %arg14[%c0_44, %c0_45, %c0_46], %226 {strides = array<i32>} : memref<1x1x2xf32, #tpu.memory_space<vmem>>, vector<1x1x2xf32>,
    return
  }
  func.func @transform_0(%arg0: i32) -> (i32, i32, i32) {
    %c0_i32 = arith.constant 0 : i32
    %c0_i32_0 = arith.constant 0 : i32
    %c0_i32_1 = arith.constant 0 : i32
    return %arg0, %c0_i32, %c0_i32_0 : i32, i32, i32
  }
  func.func @transform_1(%arg0: i32) -> (i32, i32) {
    %c0_i32 = arith.constant 0 : i32
    %c0_i32_0 = arith.constant 0 : i32
    %c0_i32_1 = arith.constant 0 : i32
    return %c0_i32, %c0_i32_0 : i32, i32
  }
  func.func @transform_2(%arg0: i32) -> (i32, i32) {
    %c0_i32 = arith.constant 0 : i32
    %c0_i32_0 = arith.constant 0 : i32
    %c0_i32_1 = arith.constant 0 : i32
    return %c0_i32, %c0_i32_0 : i32, i32
  }
  func.func @transform_3(%arg0: i32) -> (i32, i32) {
    %c0_i32 = arith.constant 0 : i32
    %c0_i32_0 = arith.constant 0 : i32
    %c0_i32_1 = arith.constant 0 : i32
    return %c0_i32, %c0_i32_0 : i32, i32
  }
  func.func @transform_4(%arg0: i32) -> (i32, i32) {
    %c0_i32 = arith.constant 0 : i32
    %c0_i32_0 = arith.constant 0 : i32
    %c0_i32_1 = arith.constant 0 : i32
    return %c0_i32, %c0_i32_0 : i32, i32
  }
  func.func @transform_5(%arg0: i32) -> (i32, i32) {
    %c0_i32 = arith.constant 0 : i32
    %c0_i32_0 = arith.constant 0 : i32
    %c0_i32_1 = arith.constant 0 : i32
    return %c0_i32, %c0_i32_0 : i32, i32
  }
  func.func @transform_6(%arg0: i32) -> (i32, i32) {
    %c0_i32 = arith.constant 0 : i32
    %c0_i32_0 = arith.constant 0 : i32
    %c0_i32_1 = arith.constant 0 : i32
    return %c0_i32, %c0_i32_0 : i32, i32
  }
  func.func @transform_7(%arg0: i32) -> (i32, i32) {
    %c0_i32 = arith.constant 0 : i32
    %c0_i32_0 = arith.constant 0 : i32
    %c0_i32_1 = arith.constant 0 : i32
    return %c0_i32, %c0_i32_0 : i32, i32
  }
  func.func @transform_8(%arg0: i32) -> (i32, i32) {
    %c0_i32 = arith.constant 0 : i32
    %c0_i32_0 = arith.constant 0 : i32
    %c0_i32_1 = arith.constant 0 : i32
    return %c0_i32, %c0_i32_0 : i32, i32
  }
  func.func @transform_9(%arg0: i32) -> (i32, i32) {
    %c0_i32 = arith.constant 0 : i32
    %c0_i32_0 = arith.constant 0 : i32
    %c0_i32_1 = arith.constant 0 : i32
    return %c0_i32, %c0_i32_0 : i32, i32
  }
  func.func @transform_10(%arg0: i32) -> (i32, i32) {
    %c0_i32 = arith.constant 0 : i32
    %c0_i32_0 = arith.constant 0 : i32
    %c0_i32_1 = arith.constant 0 : i32
    return %c0_i32, %c0_i32_0 : i32, i32
  }
  func.func @transform_11(%arg0: i32) -> (i32, i32) {
    %c0_i32 = arith.constant 0 : i32
    %c0_i32_0 = arith.constant 0 : i32
    %c0_i32_1 = arith.constant 0 : i32
    return %c0_i32, %c0_i32_0 : i32, i32
  }
  func.func @transform_12(%arg0: i32) -> (i32, i32) {
    %c0_i32 = arith.constant 0 : i32
    %c0_i32_0 = arith.constant 0 : i32
    %c0_i32_1 = arith.constant 0 : i32
    return %c0_i32, %c0_i32_0 : i32, i32
  }
  func.func @transform_13(%arg0: i32) -> (i32, i32, i32) {
    %c0_i32 = arith.constant 0 : i32
    %c0_i32_0 = arith.constant 0 : i32
    %c0_i32_1 = arith.constant 0 : i32
    return %arg0, %c0_i32, %c0_i32_0 : i32, i32, i32
  }
}

</mosaic_0001>

<llo_original>
// kernel: m5_forward.1
$region0: #{m5_forward.1}
  #allocation0 [shape = 'u32[]', space=smem, size = 0x4, offset = 0x4, fixed_abs, tag = 'smem constant byte address 0x4 - core index']
  #allocation1 [shape = 'u32[144,128]{1,0:T(1,128)}', space=vmem, size = 0x12000, scoped, tag = 'internal scratch']
  %s0 = inlined_call_operand.vmem [shape: f32[2,500,16], index: 0, kind: input, shape index: {}]
  %s1 = inlined_call_operand.vmem [shape: f32[16,64], index: 1, kind: input, shape index: {}]
  %s2 = inlined_call_operand.vmem [shape: f32[1,16], index: 2, kind: input, shape index: {}]
  %s3 = inlined_call_operand.vmem [shape: f32[16,1568], index: 3, kind: input, shape index: {}]
  %s4 = inlined_call_operand.vmem [shape: f32[1,32], index: 4, kind: input, shape index: {}]
  %s5 = inlined_call_operand.vmem [shape: f32[32,448], index: 5, kind: input, shape index: {}]
  %s6 = inlined_call_operand.vmem [shape: f32[1,64], index: 6, kind: input, shape index: {}]
  %s7 = inlined_call_operand.vmem [shape: f32[64,160], index: 7, kind: input, shape index: {}]
  %s8 = inlined_call_operand.vmem [shape: f32[1,32], index: 8, kind: input, shape index: {}]
  %s9 = inlined_call_operand.vmem [shape: f32[32,48], index: 9, kind: input, shape index: {}]
  %s10 = inlined_call_operand.vmem [shape: f32[1,16], index: 10, kind: input, shape index: {}]
  %s11 = inlined_call_operand.vmem [shape: f32[16,2], index: 11, kind: input, shape index: {}]
  %s12 = inlined_call_operand.vmem [shape: f32[1,2], index: 12, kind: input, shape index: {}]
  %s13 = inlined_call_operand.hbm [shape: f32[2,1,2], index: 13, kind: output, shape index: {}]
  %s14 = sld [smem:[#allocation0]]
  $region85: #{m5_forward.1} parent=0
    _
  %s16 = ssub.s32 1, %s14
  %s17 = scalar_select 0, %s16, %s14
  $region1: #{m5_forward.1} parent=0
    #allocation2 [shape = 'u8[1024]{0}', space=vmem, size = 0x400, scoped, tag = 'output window, operand 0']
    #allocation3 [shape = 's32[2]{0}', space=sflag, size = 0x8, scoped, tag = 'scoped memory for m5_forward.1']
    %18 = vsyncpa [#allocation3], 0
    %s19 = scalar_lea.sflag [#allocation3], 1
    %20 = vsyncpa %s19, 0
    loop: start=0, step=1, limit=4
    $region2: #{m5_forward.1} parent=1 // loop_pre_header
      _
    $region3: #{m5_forward.1} parent=1 // loop_header
      %s22 = sphi 0, %s26
      %p23 = scmp.ge.s32.totalorder %s22, 4
      %s32 = sphi 0, %s34
      %s35 = sphi 0, %s32
      %s36 = sphi 0, %s35
      %s52 = sphi 0, %s36
      %s56 = sphi 0, %s56
      %s58 = sphi 0, %s56
      %s59 = sphi 0, %s58
      %s73 = sphi 0, %s59
      %s77 = sphi 0, %s77
      %s79 = sphi 0, %s77
      %s80 = sphi 0, %s79
      %s94 = sphi 0, %s80
      %s98 = sphi 0, %s98
      %s100 = sphi 0, %s98
      %s101 = sphi 0, %s100
      %s115 = sphi 0, %s101
      %s119 = sphi 0, %s119
      %s121 = sphi 0, %s119
      %s122 = sphi 0, %s121
      %s136 = sphi 0, %s122
      %s140 = sphi 0, %s140
      %s142 = sphi 0, %s140
      %s143 = sphi 0, %s142
      %s157 = sphi 0, %s143
      %s161 = sphi 0, %s161
      %s163 = sphi 0, %s161
      %s164 = sphi 0, %s163
      %s178 = sphi 0, %s164
      %s182 = sphi 0, %s182
      %s184 = sphi 0, %s182
      %s185 = sphi 0, %s184
      %s199 = sphi 0, %s185
      %s203 = sphi 0, %s203
      %s205 = sphi 0, %s203
      %s206 = sphi 0, %s205
      %s220 = sphi 0, %s206
      %s224 = sphi 0, %s224
      %s226 = sphi 0, %s224
      %s227 = sphi 0, %s226
      %s241 = sphi 0, %s227
      %s245 = sphi 0, %s245
      %s247 = sphi 0, %s245
      %s248 = sphi 0, %s247
      %s262 = sphi 0, %s248
      %s266 = sphi 0, %s266
      %s268 = sphi 0, %s266
      %s269 = sphi 0, %s268
      %s283 = sphi 0, %s269
      %s287 = sphi 0, %s287
      %s289 = sphi 0, %s287
      %s290 = sphi 0, %s289
      %s304 = sphi 0, %s290
      %s310 = sphi 0, %s312
      %s313 = sphi 0, %s310
      %s314 = sphi 0, %s313
      %s330 = sphi 0, %s314
    $region4: #{m5_forward.1} parent=1 // loop_header_branch
      %25 = sbr.rel (%p23) target = $region8
    $region5: #{m5_forward.1} parent=1 // loop_body
      %s27 = ssub.s32 %s22, 1
      %s28 = ssub.s32 %s22, 2
      %s29 = sadd.s32 %s22, 1
      %s30 = ssub.s32 %s22, %s29
      %p31 = scmp.eq.s32.totalorder %s30, 0
      %s33 = sadd.s32 %s32, 1
      %s34 = scalar_select %p31, %s32, %s33
      %p37 = pneg %p31
      %p38 = scmp.eq.s32.totalorder %s22, 1
      %p39 = por %p37, %p38
      %p40 = scmp.ne.s32.totalorder %s32, %s35
      %p41 = scmp.eq.s32.totalorder %s22, 0
      %p42 = por %p40, %p41
      %p43 = scmp.ne.s32.totalorder %s32, %s35
      %p44 = scmp.eq.s32.totalorder %s27, 1
      %p45 = por %p43, %p44
      %p46 = scmp.ne.s32.totalorder %s35, %s36
      %p47 = scmp.eq.s32.totalorder %s27, 0
      %p48 = por %p46, %p47
      %p49 = scmp.ne.s32.totalorder %s35, %s36
      %p50 = scmp.eq.s32.totalorder %s28, 1
      %p51 = por %p49, %p50
      %p53 = scmp.ne.s32.totalorder %s36, %s52
      %p54 = scmp.eq.s32.totalorder %s28, 0
      %p55 = por %p53, %p54
      %s57 = sadd.s32 %s56, 1
      %p60 = scmp.eq.s32.totalorder %s22, 1
      %p61 = scmp.ne.s32.totalorder %s56, %s58
      %p62 = scmp.eq.s32.totalorder %s22, 0
      %p63 = por %p61, %p62
      %p64 = scmp.ne.s32.totalorder %s56, %s58
      %p65 = scmp.eq.s32.totalorder %s27, 1
      %p66 = por %p64, %p65
      %p67 = scmp.ne.s32.totalorder %s58, %s59
      %p68 = scmp.eq.s32.totalorder %s27, 0
      %p69 = por %p67, %p68
      %p70 = scmp.ne.s32.totalorder %s58, %s59
      %p71 = scmp.eq.s32.totalorder %s28, 1
      %p72 = por %p70, %p71
      %p74 = scmp.ne.s32.totalorder %s59, %s73
      %p75 = scmp.eq.s32.totalorder %s28, 0
      %p76 = por %p74, %p75
      %s78 = sadd.s32 %s77, 1
      %p81 = scmp.eq.s32.totalorder %s22, 1
      %p82 = scmp.ne.s32.totalorder %s77, %s79
      %p83 = scmp.eq.s32.totalorder %s22, 0
      %p84 = por %p82, %p83
      %p85 = scmp.ne.s32.totalorder %s77, %s79
      %p86 = scmp.eq.s32.totalorder %s27, 1
      %p87 = por %p85, %p86
      %p88 = scmp.ne.s32.totalorder %s79, %s80
      %p89 = scmp.eq.s32.totalorder %s27, 0
      %p90 = por %p88, %p89
      %p91 = scmp.ne.s32.totalorder %s79, %s80
      %p92 = scmp.eq.s32.totalorder %s28, 1
      %p93 = por %p91, %p92
      %p95 = scmp.ne.s32.totalorder %s80, %s94
      %p96 = scmp.eq.s32.totalorder %s28, 0
      %p97 = por %p95, %p96
      %s99 = sadd.s32 %s98, 1
      %p102 = scmp.eq.s32.totalorder %s22, 1
      %p103 = scmp.ne.s32.totalorder %s98, %s100
      %p104 = scmp.eq.s32.totalorder %s22, 0
      %p105 = por %p103, %p104
      %p106 = scmp.ne.s32.totalorder %s98, %s100
      %p107 = scmp.eq.s32.totalorder %s27, 1
      %p108 = por %p106, %p107
      %p109 = scmp.ne.s32.totalorder %s100, %s101
      %p110 = scmp.eq.s32.totalorder %s27, 0
      %p111 = por %p109, %p110
      %p112 = scmp.ne.s32.totalorder %s100, %s101
      %p113 = scmp.eq.s32.totalorder %s28, 1
      %p114 = por %p112, %p113
      %p116 = scmp.ne.s32.totalorder %s101, %s115
      %p117 = scmp.eq.s32.totalorder %s28, 0
      %p118 = por %p116, %p117
      %s120 = sadd.s32 %s119, 1
      %p123 = scmp.eq.s32.totalorder %s22, 1
      %p124 = scmp.ne.s32.totalorder %s119, %s121
      %p125 = scmp.eq.s32.totalorder %s22, 0
      %p126 = por %p124, %p125
      %p127 = scmp.ne.s32.totalorder %s119, %s121
      %p128 = scmp.eq.s32.totalorder %s27, 1
      %p129 = por %p127, %p128
      %p130 = scmp.ne.s32.totalorder %s121, %s122
      %p131 = scmp.eq.s32.totalorder %s27, 0
      %p132 = por %p130, %p131
      %p133 = scmp.ne.s32.totalorder %s121, %s122
      %p134 = scmp.eq.s32.totalorder %s28, 1
      %p135 = por %p133, %p134
      %p137 = scmp.ne.s32.totalorder %s122, %s136
      %p138 = scmp.eq.s32.totalorder %s28, 0
      %p139 = por %p137, %p138
      %s141 = sadd.s32 %s140, 1
      %p144 = scmp.eq.s32.totalorder %s22, 1
      %p145 = scmp.ne.s32.totalorder %s140, %s142
      %p146 = scmp.eq.s32.totalorder %s22, 0
      %p147 = por %p145, %p146
      %p148 = scmp.ne.s32.totalorder %s140, %s142
      %p149 = scmp.eq.s32.totalorder %s27, 1
      %p150 = por %p148, %p149
      %p151 = scmp.ne.s32.totalorder %s142, %s143
      %p152 = scmp.eq.s32.totalorder %s27, 0
      %p153 = por %p151, %p152
      %p154 = scmp.ne.s32.totalorder %s142, %s143
      %p155 = scmp.eq.s32.totalorder %s28, 1
      %p156 = por %p154, %p155
      %p158 = scmp.ne.s32.totalorder %s143, %s157
      %p159 = scmp.eq.s32.totalorder %s28, 0
      %p160 = por %p158, %p159
      %s162 = sadd.s32 %s161, 1
      %p165 = scmp.eq.s32.totalorder %s22, 1
      %p166 = scmp.ne.s32.totalorder %s161, %s163
      %p167 = scmp.eq.s32.totalorder %s22, 0
      %p168 = por %p166, %p167
      %p169 = scmp.ne.s32.totalorder %s161, %s163
      %p170 = scmp.eq.s32.totalorder %s27, 1
      %p171 = por %p169, %p170
      %p172 = scmp.ne.s32.totalorder %s163, %s164
      %p173 = scmp.eq.s32.totalorder %s27, 0
      %p174 = por %p172, %p173
      %p175 = scmp.ne.s32.totalorder %s163, %s164
      %p176 = scmp.eq.s32.totalorder %s28, 1
      %p177 = por %p175, %p176
      %p179 = scmp.ne.s32.totalorder %s164, %s178
      %p180 = scmp.eq.s32.totalorder %s28, 0
      %p181 = por %p179, %p180
      %s183 = sadd.s32 %s182, 1
      %p186 = scmp.eq.s32.totalorder %s22, 1
      %p187 = scmp.ne.s32.totalorder %s182, %s184
      %p188 = scmp.eq.s32.totalorder %s22, 0
      %p189 = por %p187, %p188
      %p190 = scmp.ne.s32.totalorder %s182, %s184
      %p191 = scmp.eq.s32.totalorder %s27, 1
      %p192 = por %p190, %p191
      %p193 = scmp.ne.s32.totalorder %s184, %s185
      %p194 = scmp.eq.s32.totalorder %s27, 0
      %p195 = por %p193, %p194
      %p196 = scmp.ne.s32.totalorder %s184, %s185
      %p197 = scmp.eq.s32.totalorder %s28, 1
      %p198 = por %p196, %p197
      %p200 = scmp.ne.s32.totalorder %s185, %s199
      %p201 = scmp.eq.s32.totalorder %s28, 0
      %p202 = por %p200, %p201
      %s204 = sadd.s32 %s203, 1
      %p207 = scmp.eq.s32.totalorder %s22, 1
      %p208 = scmp.ne.s32.totalorder %s203, %s205
      %p209 = scmp.eq.s32.totalorder %s22, 0
      %p210 = por %p208, %p209
      %p211 = scmp.ne.s32.totalorder %s203, %s205
      %p212 = scmp.eq.s32.totalorder %s27, 1
      %p213 = por %p211, %p212
      %p214 = scmp.ne.s32.totalorder %s205, %s206
      %p215 = scmp.eq.s32.totalorder %s27, 0
      %p216 = por %p214, %p215
      %p217 = scmp.ne.s32.totalorder %s205, %s206
      %p218 = scmp.eq.s32.totalorder %s28, 1
      %p219 = por %p217, %p218
      %p221 = scmp.ne.s32.totalorder %s206, %s220
      %p222 = scmp.eq.s32.totalorder %s28, 0
      %p223 = por %p221, %p222
      %s225 = sadd.s32 %s224, 1
      %p228 = scmp.eq.s32.totalorder %s22, 1
      %p229 = scmp.ne.s32.totalorder %s224, %s226
      %p230 = scmp.eq.s32.totalorder %s22, 0
      %p231 = por %p229, %p230
      %p232 = scmp.ne.s32.totalorder %s224, %s226
      %p233 = scmp.eq.s32.totalorder %s27, 1
      %p234 = por %p232, %p233
      %p235 = scmp.ne.s32.totalorder %s226, %s227
      %p236 = scmp.eq.s32.totalorder %s27, 0
      %p237 = por %p235, %p236
      %p238 = scmp.ne.s32.totalorder %s226, %s227
      %p239 = scmp.eq.s32.totalorder %s28, 1
      %p240 = por %p238, %p239
      %p242 = scmp.ne.s32.totalorder %s227, %s241
      %p243 = scmp.eq.s32.totalorder %s28, 0
      %p244 = por %p242, %p243
      %s246 = sadd.s32 %s245, 1
      %p249 = scmp.eq.s32.totalorder %s22, 1
      %p250 = scmp.ne.s32.totalorder %s245, %s247
      %p251 = scmp.eq.s32.totalorder %s22, 0
      %p252 = por %p250, %p251
      %p253 = scmp.ne.s32.totalorder %s245, %s247
      %p254 = scmp.eq.s32.totalorder %s27, 1
      %p255 = por %p253, %p254
      %p256 = scmp.ne.s32.totalorder %s247, %s248
      %p257 = scmp.eq.s32.totalorder %s27, 0
      %p258 = por %p256, %p257
      %p259 = scmp.ne.s32.totalorder %s247, %s248
      %p260 = scmp.eq.s32.totalorder %s28, 1
      %p261 = por %p259, %p260
      %p263 = scmp.ne.s32.totalorder %s248, %s262
      %p264 = scmp.eq.s32.totalorder %s28, 0
      %p265 = por %p263, %p264
      %s267 = sadd.s32 %s266, 1
      %p270 = scmp.eq.s32.totalorder %s22, 1
      %p271 = scmp.ne.s32.totalorder %s266, %s268
      %p272 = scmp.eq.s32.totalorder %s22, 0
      %p273 = por %p271, %p272
      %p274 = scmp.ne.s32.totalorder %s266, %s268
      %p275 = scmp.eq.s32.totalorder %s27, 1
      %p276 = por %p274, %p275
      %p277 = scmp.ne.s32.totalorder %s268, %s269
      %p278 = scmp.eq.s32.totalorder %s27, 0
      %p279 = por %p277, %p278
      %p280 = scmp.ne.s32.totalorder %s268, %s269
      %p281 = scmp.eq.s32.totalorder %s28, 1
      %p282 = por %p280, %p281
      %p284 = scmp.ne.s32.totalorder %s269, %s283
      %p285 = scmp.eq.s32.totalorder %s28, 0
      %p286 = por %p284, %p285
      %s288 = sadd.s32 %s287, 1
      %p291 = scmp.eq.s32.totalorder %s22, 1
      %p292 = scmp.ne.s32.totalorder %s287, %s289
      %p293 = scmp.eq.s32.totalorder %s22, 0
      %p294 = por %p292, %p293
      %p295 = scmp.ne.s32.totalorder %s287, %s289
      %p296 = scmp.eq.s32.totalorder %s27, 1
      %p297 = por %p295, %p296
      %p298 = scmp.ne.s32.totalorder %s289, %s290
      %p299 = scmp.eq.s32.totalorder %s27, 0
      %p300 = por %p298, %p299
      %p301 = scmp.ne.s32.totalorder %s289, %s290
      %p302 = scmp.eq.s32.totalorder %s28, 1
      %p303 = por %p301, %p302
      %p305 = scmp.ne.s32.totalorder %s290, %s304
      %p306 = scmp.eq.s32.totalorder %s28, 0
      %p307 = por %p305, %p306
      %s308 = ssub.s32 %s22, %s29
      %p309 = scmp.eq.s32.totalorder %s308, 0
      %s311 = sadd.s32 %s310, 1
      %s312 = scalar_select %p309, %s310, %s311
      %p315 = pneg %p309
      %p316 = scmp.eq.s32.totalorder %s22, 1
      %p317 = por %p315, %p316
      %p318 = scmp.ne.s32.totalorder %s310, %s313
      %p319 = scmp.eq.s32.totalorder %s22, 0
      %p320 = por %p318, %p319
      %p321 = scmp.ne.s32.totalorder %s310, %s313
      %p322 = scmp.eq.s32.totalorder %s27, 1
      %p323 = por %p321, %p322
      %p324 = scmp.ne.s32.totalorder %s313, %s314
      %p325 = scmp.eq.s32.totalorder %s27, 0
      %p326 = por %p324, %p325
      %p327 = scmp.ne.s32.totalorder %s313, %s314
      %p328 = scmp.eq.s32.totalorder %s28, 1
      %p329 = por %p327, %p328
      %p331 = scmp.ne.s32.totalorder %s314, %s330
      %p332 = scmp.eq.s32.totalorder %s28, 0
      %p333 = por %p331, %p332
      %p334 = scmp.le.s32.totalorder 1, %s22
      %p335 = scmp.lt.s32.totalorder %s22, 3
      %p336 = pnand %p334, %p335
      %p337 = pneg %p336
      // Predicated region
      $region9: #{m5_forward.1} parent=5 // pred_check
        _
      $region10: #{m5_forward.1} parent=5 // pred_check_branch
        %339 = sbr.rel (%p336) target = $region12
      $region11: #{m5_forward.1} parent=5 // pred_region
        %s340 = ssub.s32 %s22, 1
        // Predicated region
        $region13: #{m5_forward.1} parent=11 // pred_check
          %p341 = pneg %p69
        $region14: #{m5_forward.1} parent=11 // pred_check_branch
          %343 = sbr.rel (%p341) target = $region16
        $region15: #{m5_forward.1} parent=11 // pred_region
          _
        $region16: #{m5_forward.1} parent=11 // pred_fallthru
          _
        // Predicated region
        $region17: #{m5_forward.1} parent=11 // pred_check
          %p344 = pneg %p90
        $region18: #{m5_forward.1} parent=11 // pred_check_branch
          %346 = sbr.rel (%p344) target = $region20
        $region19: #{m5_forward.1} parent=11 // pred_region
          _
        $region20: #{m5_forward.1} parent=11 // pred_fallthru
          _
        // Predicated region
        $region21: #{m5_forward.1} parent=11 // pred_check
          %p347 = pneg %p111
        $region22: #{m5_forward.1} parent=11 // pred_check_branch
          %349 = sbr.rel (%p347) target = $region24
        $region23: #{m5_forward.1} parent=11 // pred_region
          _
        $region24: #{m5_forward.1} parent=11 // pred_fallthru
          _
        // Predicated region
        $region25: #{m5_forward.1} parent=11 // pred_check
          %p350 = pneg %p132
        $region26: #{m5_forward.1} parent=11 // pred_check_branch
          %352 = sbr.rel (%p350) target = $region28
        $region27: #{m5_forward.1} parent=11 // pred_region
          _
        $region28: #{m5_forward.1} parent=11 // pred_fallthru
          _
        // Predicated region
        $region29: #{m5_forward.1} parent=11 // pred_check
          %p353 = pneg %p153
        $region30: #{m5_forward.1} parent=11 // pred_check_branch
          %355 = sbr.rel (%p353) target = $region32
        $region31: #{m5_forward.1} parent=11 // pred_region
          _
        $region32: #{m5_forward.1} parent=11 // pred_fallthru
          _
        // Predicated region
        $region33: #{m5_forward.1} parent=11 // pred_check
          %p356 = pneg %p174
        $region34: #{m5_forward.1} parent=11 // pred_check_branch
          %358 = sbr.rel (%p356) target = $region36
        $region35: #{m5_forward.1} parent=11 // pred_region
          _
        $region36: #{m5_forward.1} parent=11 // pred_fallthru
          _
        // Predicated region
        $region37: #{m5_forward.1} parent=11 // pred_check
          %p359 = pneg %p195
        $region38: #{m5_forward.1} parent=11 // pred_check_branch
          %361 = sbr.rel (%p359) target = $region40
        $region39: #{m5_forward.1} parent=11 // pred_region
          _
        $region40: #{m5_forward.1} parent=11 // pred_fallthru
          _
        // Predicated region
        $region41: #{m5_forward.1} parent=11 // pred_check
          %p362 = pneg %p216
        $region42: #{m5_forward.1} parent=11 // pred_check_branch
          %364 = sbr.rel (%p362) target = $region44
        $region43: #{m5_forward.1} parent=11 // pred_region
          _
        $region44: #{m5_forward.1} parent=11 // pred_fallthru
          _
        // Predicated region
        $region45: #{m5_forward.1} parent=11 // pred_check
          %p365 = pneg %p237
        $region46: #{m5_forward.1} parent=11 // pred_check_branch
          %367 = sbr.rel (%p365) target = $region48
        $region47: #{m5_forward.1} parent=11 // pred_region
          _
        $region48: #{m5_forward.1} parent=11 // pred_fallthru
          _
        // Predicated region
        $region49: #{m5_forward.1} parent=11 // pred_check
          %p368 = pneg %p258
        $region50: #{m5_forward.1} parent=11 // pred_check_branch
          %370 = sbr.rel (%p368) target = $region52
        $region51: #{m5_forward.1} parent=11 // pred_region
          _
        $region52: #{m5_forward.1} parent=11 // pred_fallthru
          _
        // Predicated region
        $region53: #{m5_forward.1} parent=11 // pred_check
          %p371 = pneg %p279
        $region54: #{m5_forward.1} parent=11 // pred_check_branch
          %373 = sbr.rel (%p371) target = $region56
        $region55: #{m5_forward.1} parent=11 // pred_region
          _
        $region56: #{m5_forward.1} parent=11 // pred_fallthru
          _
        // Predicated region
        $region57: #{m5_forward.1} parent=11 // pred_check
          %p374 = pneg %p300
        $region58: #{m5_forward.1} parent=11 // pred_check_branch
          %376 = sbr.rel (%p374) target = $region60
        $region59: #{m5_forward.1} parent=11 // pred_region
          _
        $region60: #{m5_forward.1} parent=11 // pred_fallthru
          _
      $region12: #{m5_forward.1} parent=5 // pred_fallthru
        _
      %p377 = scmp.lt.s32.totalorder %s22, 2
      // Predicated region
      $region61: #{m5_forward.1} parent=5 // pred_check
        %p378 = pneg %p377
      $region62: #{m5_forward.1} parent=5 // pred_check_branch
        %380 = sbr.rel (%p378) target = $region64
      $region63: #{m5_forward.1} parent=5 // pred_region
        // Predicated region
        $region65: #{m5_forward.1} parent=63 // pred_check
          %p381 = pneg %p42
        $region66: #{m5_forward.1} parent=63 // pred_check_branch
          %383 = sbr.rel (%p381) target = $region68
        $region67: #{m5_forward.1} parent=63 // pred_region
          %p384 = scmp.lt.s32.totalorder %s22, 1
          %s385 = scalar_select %p384, %s22, 1
          %s386 = smul.addr %s385, 63
          %s387 = smul.addr %s386, 8
          %s388 = scalar_lea.vmem %s0, %s387
        $region68: #{m5_forward.1} parent=63 // pred_fallthru
          _
      $region64: #{m5_forward.1} parent=5 // pred_fallthru
        _
      %p389 = scmp.le.s32.totalorder 1, %s22
      %p390 = scmp.lt.s32.totalorder %s22, 3
      %p391 = pnand %p389, %p390
      %p392 = pneg %p391
      // Predicated region
      $region69: #{m5_forward.1} parent=5 // pred_check
        _
      $region70: #{m5_forward.1} parent=5 // pred_check_branch
        %394 = sbr.rel (%p391) target = $region72
      $region71: #{m5_forward.1} parent=5 // pred_region
        %s395 = ssub.s32 %s22, 1
        %p396 = scmp.lt.s32.totalorder %s27, 1
        %s397 = scalar_select %p396, %s27, 1
        %s398 = smul.addr %s397, 63
        %s399 = smul.addr %s398, 8
        %s400 = scalar_lea.vmem %s0, %s399
        %p401 = pneg %p48
        %p402 = pneg %p45
        %p403 = pneg %p69
        %p404 = pneg %p66
        %p405 = pneg %p90
        %p406 = pneg %p87
        %p407 = pneg %p111
        %p408 = pneg %p108
        %p409 = pneg %p132
        %p410 = pneg %p129
        %p411 = pneg %p153
        %p412 = pneg %p150
        %p413 = pneg %p174
        %p414 = pneg %p171
        %p415 = pneg %p195
        %p416 = pneg %p192
        %p417 = pneg %p216
        %p418 = pneg %p213
        %p419 = pneg %p237
        %p420 = pneg %p234
        %p421 = pneg %p258
        %p422 = pneg %p255
        %p423 = pneg %p279
        %p424 = pneg %p276
        %p425 = pneg %p300
        %p426 = pneg %p297
        %p427 = pneg %p326
        %p428 = pneg %p323
        %s429 = sand.u32 %s313, 1
        %s430 = scalar_lea.sflag [#allocation3], %s429
        %s431 = sand.u32 %s313, 1
        %s432 = scalar_lea.vmem [#allocation2], %s431
        %p433 = scmp.lt.s32.totalorder %s27, 1
        %s434 = scalar_select %p433, %s27, 1
        %s435 = smul.addr %s434, 63
        %s436 = smul.addr %s435, 8
        %s437 = scalar_lea.vmem %s0, %s436
        %v438 = vld [vmem:[%s437] sm:$0xff]
        %v439 = vld [vmem:[%s437 + $0x8] sm:$0xff]
        %v440 = vld [vmem:[%s437 + $0x10] sm:$0xff]
        %v441 = vld [vmem:[%s437 + $0x18] sm:$0xff]
        %v442 = vld [vmem:[%s437 + $0x20] sm:$0xff]
        %v443 = vld [vmem:[%s437 + $0x28] sm:$0xff]
        %v444 = vld [vmem:[%s437 + $0x30] sm:$0xff]
        %v445 = vld [vmem:[%s437 + $0x38] sm:$0xff]
        %v446 = vld [vmem:[%s437 + $0x40] sm:$0xff]
        %v447 = vld [vmem:[%s437 + $0x48] sm:$0xff]
        %v448 = vld [vmem:[%s437 + $0x50] sm:$0xff]
        %v449 = vld [vmem:[%s437 + $0x58] sm:$0xff]
        %v450 = vld [vmem:[%s437 + $0x60] sm:$0xff]
        %v451 = vld [vmem:[%s437 + $0x68] sm:$0xff]
        %v452 = vld [vmem:[%s437 + $0x70] sm:$0xff]
        %v453 = vld [vmem:[%s437 + $0x78] sm:$0xff]
        %v454 = vld [vmem:[%s437 + $0x80] sm:$0xff]
        %v455 = vld [vmem:[%s437 + $0x88] sm:$0xff]
        %v456 = vld [vmem:[%s437 + $0x90] sm:$0xff]
        %v457 = vld [vmem:[%s437 + $0x98] sm:$0xff]
        %v458 = vld [vmem:[%s437 + $0xa0] sm:$0xff]
        %v459 = vld [vmem:[%s437 + $0xa8] sm:$0xff]
        %v460 = vld [vmem:[%s437 + $0xb0] sm:$0xff]
        %v461 = vld [vmem:[%s437 + $0xb8] sm:$0xff]
        %v462 = vld [vmem:[%s437 + $0xc0] sm:$0xff]
        %v463 = vld [vmem:[%s437 + $0xc8] sm:$0xff]
        %v464 = vld [vmem:[%s437 + $0xd0] sm:$0xff]
        %v465 = vld [vmem:[%s437 + $0xd8] sm:$0xff]
        %v466 = vld [vmem:[%s437 + $0xe0] sm:$0xff]
        %v467 = vld [vmem:[%s437 + $0xe8] sm:$0xff]
        %v468 = vld [vmem:[%s437 + $0xf0] sm:$0xff]
        %v469 = vld [vmem:[%s437 + $0xf8] sm:$0xff]
        %v470 = vld [vmem:[%s437 + $0x100] sm:$0xff]
        %v471 = vld [vmem:[%s437 + $0x108] sm:$0xff]
        %v472 = vld [vmem:[%s437 + $0x110] sm:$0xff]
        %v473 = vld [vmem:[%s437 + $0x118] sm:$0xff]
        %v474 = vld [vmem:[%s437 + $0x120] sm:$0xff]
        %v475 = vld [vmem:[%s437 + $0x128] sm:$0xff]
        %v476 = vld [vmem:[%s437 + $0x130] sm:$0xff]
        %v477 = vld [vmem:[%s437 + $0x138] sm:$0xff]
        %v478 = vld [vmem:[%s437 + $0x140] sm:$0xff]
        %v479 = vld [vmem:[%s437 + $0x148] sm:$0xff]
        %v480 = vld [vmem:[%s437 + $0x150] sm:$0xff]
        %v481 = vld [vmem:[%s437 + $0x158] sm:$0xff]
        %v482 = vld [vmem:[%s437 + $0x160] sm:$0xff]
        %v483 = vld [vmem:[%s437 + $0x168] sm:$0xff]
        %v484 = vld [vmem:[%s437 + $0x170] sm:$0xff]
        %v485 = vld [vmem:[%s437 + $0x178] sm:$0xff]
        %v486 = vld [vmem:[%s437 + $0x180] sm:$0xff]
        %v487 = vld [vmem:[%s437 + $0x188] sm:$0xff]
        %v488 = vld [vmem:[%s437 + $0x190] sm:$0xff]
        %v489 = vld [vmem:[%s437 + $0x198] sm:$0xff]
        %v490 = vld [vmem:[%s437 + $0x1a0] sm:$0xff]
        %v491 = vld [vmem:[%s437 + $0x1a8] sm:$0xff]
        %v492 = vld [vmem:[%s437 + $0x1b0] sm:$0xff]
        %v493 = vld [vmem:[%s437 + $0x1b8] sm:$0xff]
        %v494 = vld [vmem:[%s437 + $0x1c0] sm:$0xff]
        %v495 = vld [vmem:[%s437 + $0x1c8] sm:$0xff]
        %v496 = vld [vmem:[%s437 + $0x1d0] sm:$0xff]
        %v497 = vld [vmem:[%s437 + $0x1d8] sm:$0xff]
        %v498 = vld [vmem:[%s437 + $0x1e0] sm:$0xff]
        %v499 = vld [vmem:[%s437 + $0x1e8] sm:$0xff]
        %v500 = vld [vmem:[%s437 + $0x1f0] sm:$0xf]
        %v501 = vld [vmem:[%s1] sm:$0xff]
        %v502 = vld [vmem:[%s1 + $0x8] sm:$0xff]
        %vm503 = vcmask 130048
        %v505 = vsel %vm503, %v438, 0
        %v508 = vsel %vm503, %v439, 0
        %v511 = vsel %vm503, %v440, 0
        %v514 = vsel %vm503, %v441, 0
        %v517 = vsel %vm503, %v442, 0
        %v520 = vsel %vm503, %v443, 0
        %v523 = vsel %vm503, %v444, 0
        %v526 = vsel %vm503, %v445, 0
        %v529 = vsel %vm503, %v446, 0
        %v532 = vsel %vm503, %v447, 0
        %v535 = vsel %vm503, %v448, 0
        %v538 = vsel %vm503, %v449, 0
        %v541 = vsel %vm503, %v450, 0
        %v544 = vsel %vm503, %v451, 0
        %v547 = vsel %vm503, %v452, 0
        %v550 = vsel %vm503, %v453, 0
        %v553 = vsel %vm503, %v454, 0
        %v556 = vsel %vm503, %v455, 0
        %v559 = vsel %vm503, %v456, 0
        %v562 = vsel %vm503, %v457, 0
        %v565 = vsel %vm503, %v458, 0
        %v568 = vsel %vm503, %v459, 0
        %v571 = vsel %vm503, %v460, 0
        %v574 = vsel %vm503, %v461, 0
        %v577 = vsel %vm503, %v462, 0
        %v580 = vsel %vm503, %v463, 0
        %v583 = vsel %vm503, %v464, 0
        %v586 = vsel %vm503, %v465, 0
        %v589 = vsel %vm503, %v466, 0
        %v592 = vsel %vm503, %v467, 0
        %v595 = vsel %vm503, %v468, 0
        %v598 = vsel %vm503, %v469, 0
        %v601 = vsel %vm503, %v470, 0
        %v604 = vsel %vm503, %v471, 0
        %v607 = vsel %vm503, %v472, 0
        %v610 = vsel %vm503, %v473, 0
        %v613 = vsel %vm503, %v474, 0
        %v616 = vsel %vm503, %v475, 0
        %v619 = vsel %vm503, %v476, 0
        %v622 = vsel %vm503, %v477, 0
        %v625 = vsel %vm503, %v478, 0
        %v628 = vsel %vm503, %v479, 0
        %v631 = vsel %vm503, %v480, 0
        %v634 = vsel %vm503, %v481, 0
        %v637 = vsel %vm503, %v482, 0
        %v640 = vsel %vm503, %v483, 0
        %v643 = vsel %vm503, %v484, 0
        %v646 = vsel %vm503, %v485, 0
        %v649 = vsel %vm503, %v486, 0
        %v652 = vsel %vm503, %v487, 0
        %v655 = vsel %vm503, %v488, 0
        %v658 = vsel %vm503, %v489, 0
        %v661 = vsel %vm503, %v490, 0
        %v664 = vsel %vm503, %v491, 0
        %v667 = vsel %vm503, %v492, 0
        %v670 = vsel %vm503, %v493, 0
        %v673 = vsel %vm503, %v494, 0
        %v676 = vsel %vm503, %v495, 0
        %v679 = vsel %vm503, %v496, 0
        %v682 = vsel %vm503, %v497, 0
        %v685 = vsel %vm503, %v498, 0
        %v688 = vsel %vm503, %v499, 0
        %v691 = vsel %vm503, %v500, 0
        %693 = vmatprep.subr.mxu0 0.0
        %694 = vmatpush1.msra.mxu0 0.0
        %695 = vmatprep.subr.mxu0 0.0
        %696 = vmatpush1.msra.mxu0 0.0
        %697 = vmatprep.subr.mxu0 0.0
        %698 = vmatpush1.msra.mxu0 0.0
        %699 = vmatprep.subr.mxu0 0.0
        %700 = vmatpush1.msra.mxu0 0.0
        %701 = vmatprep.subr.mxu0 0.0
        %702 = vmatpush1.msra.mxu0 0.0
        %703 = vmatprep.subr.mxu0 0.0
        %704 = vmatpush1.msra.mxu0 0.0
        %705 = vmatprep.subr.mxu0 0.0
        %706 = vmatpush1.msra.mxu0 0.0
        %707 = vmatprep.subr.mxu0 0.0
        %708 = vmatpush1.msra.mxu0 0.0
        %709 = vmatprep.subr.mxu0 0.0
        %710 = vmatpush1.msra.mxu0 0.0
        %711 = vmatprep.subr.mxu0 0.0
        %712 = vmatpush1.msra.mxu0 0.0
        %713 = vmatprep.subr.mxu0 0.0
        %714 = vmatpush1.msra.mxu0 0.0
        %715 = vmatprep.subr.mxu0 0.0
        %716 = vmatpush1.msra.mxu0 0.0
        %717 = vmatprep.subr.mxu0 0.0
        %718 = vmatpush1.msra.mxu0 0.0
        %719 = vmatprep.subr.mxu0 0.0
        %720 = vmatpush1.msra.mxu0 0.0
        %721 = vmatprep.subr.mxu0 0.0
        %722 = vmatpush1.msra.mxu0 %v502
        %723 = vmatprep.subr.mxu0 0.0
        %724 = vmatpush1.msra.mxu0 %v501
        %725 = vmatprep.subr.mxu0 0.0
        %726 = vmatpush2.msra.mxu0 0.0
        %727 = vmatprep.subr.mxu0 0.0
        %728 = vmatpush2.msra.mxu0 0.0
        %729 = vmatprep.subr.mxu0 0.0
        %730 = vmatpush2.msra.mxu0 0.0
        %731 = vmatprep.subr.mxu0 0.0
        %732 = vmatpush2.msra.mxu0 0.0
        %733 = vmatprep.subr.mxu0 0.0
        %734 = vmatpush2.msra.mxu0 0.0
        %735 = vmatprep.subr.mxu0 0.0
        %736 = vmatpush2.msra.mxu0 0.0
        %737 = vmatprep.subr.mxu0 0.0
        %738 = vmatpush2.msra.mxu0 0.0
        %739 = vmatprep.subr.mxu0 0.0
        %740 = vmatpush2.msra.mxu0 0.0
        %741 = vmatprep.subr.mxu0 0.0
        %742 = vmatpush2.msra.mxu0 0.0
        %743 = vmatprep.subr.mxu0 0.0
        %744 = vmatpush2.msra.mxu0 0.0
        %745 = vmatprep.subr.mxu0 0.0
        %746 = vmatpush2.msra.mxu0 0.0
        %747 = vmatprep.subr.mxu0 0.0
        %748 = vmatpush2.msra.mxu0 0.0
        %749 = vmatprep.subr.mxu0 0.0
        %750 = vmatpush2.msra.mxu0 0.0
        %751 = vmatprep.subr.mxu0 0.0
        %752 = vmatpush2.msra.mxu0 0.0
        %753 = vmatprep.subr.mxu0 0.0
        %754 = vmatpush2.msra.mxu0 0.0
        %755 = vmatprep.subr.mxu0 0.0
        %756 = vmatpush2.msra.mxu0 0.0
        %757 = vmatprep.mubr.f32.mxu0 0.0
        %758 = vmatmul.mubr.f32.gmra.mxu0 %v505
        %v759 = vpop.f32.mrf.mxu0
        %v760 = vadd.f32 0.0, %v759
        %v761 = vpop.f32.mrf.mxu0
        %762 = vmatprep.mubr.f32.mxu0 0.0
        %763 = vmatmul.mubr.f32.gmra.mxu0 %v508
        %v764 = vpop.f32.mrf.mxu0
        %v765 = vadd.f32 0.0, %v764
        %v766 = vpop.f32.mrf.mxu0
        %767 = vmatprep.mubr.f32.mxu0 0.0
        %768 = vmatmul.mubr.f32.gmra.mxu0 %v511
        %v769 = vpop.f32.mrf.mxu0
        %v770 = vadd.f32 0.0, %v769
        %v771 = vpop.f32.mrf.mxu0
        %772 = vmatprep.mubr.f32.mxu0 0.0
        %773 = vmatmul.mubr.f32.gmra.mxu0 %v514
        %v774 = vpop.f32.mrf.mxu0
        %v775 = vadd.f32 0.0, %v774
        %v776 = vpop.f32.mrf.mxu0
        %777 = vmatprep.mubr.f32.mxu0 0.0
        %778 = vmatmul.mubr.f32.gmra.mxu0 %v517
        %v779 = vpop.f32.mrf.mxu0
        %v780 = vadd.f32 0.0, %v779
        %v781 = vpop.f32.mrf.mxu0
        %782 = vmatprep.mubr.f32.mxu0 0.0
        %783 = vmatmul.mubr.f32.gmra.mxu0 %v520
        %v784 = vpop.f32.mrf.mxu0
        %v785 = vadd.f32 0.0, %v784
        %v786 = vpop.f32.mrf.mxu0
        %787 = vmatprep.mubr.f32.mxu0 0.0
        %788 = vmatmul.mubr.f32.gmra.mxu0 %v523
        %v789 = vpop.f32.mrf.mxu0
        %v790 = vadd.f32 0.0, %v789
        %v791 = vpop.f32.mrf.mxu0
        %792 = vmatprep.mubr.f32.mxu0 0.0
        %793 = vmatmul.mubr.f32.gmra.mxu0 %v526
        %v794 = vpop.f32.mrf.mxu0
        %v795 = vadd.f32 0.0, %v794
        %v796 = vpop.f32.mrf.mxu0
        %797 = vmatprep.mubr.f32.mxu0 0.0
        %798 = vmatmul.mubr.f32.gmra.mxu0 %v529
        %v799 = vpop.f32.mrf.mxu0
        %v800 = vadd.f32 0.0, %v799
        %v801 = vpop.f32.mrf.mxu0
        %802 = vmatprep.mubr.f32.mxu0 0.0
        %803 = vmatmul.mubr.f32.gmra.mxu0 %v532
        %v804 = vpop.f32.mrf.mxu0
        %v805 = vadd.f32 0.0, %v804
        %v806 = vpop.f32.mrf.mxu0
        %807 = vmatprep.mubr.f32.mxu0 0.0
        %808 = vmatmul.mubr.f32.gmra.mxu0 %v535
        %v809 = vpop.f32.mrf.mxu0
        %v810 = vadd.f32 0.0, %v809
        %v811 = vpop.f32.mrf.mxu0
        %812 = vmatprep.mubr.f32.mxu0 0.0
        %813 = vmatmul.mubr.f32.gmra.mxu0 %v538
        %v814 = vpop.f32.mrf.mxu0
        %v815 = vadd.f32 0.0, %v814
        %v816 = vpop.f32.mrf.mxu0
        %817 = vmatprep.mubr.f32.mxu0 0.0
        %818 = vmatmul.mubr.f32.gmra.mxu0 %v541
        %v819 = vpop.f32.mrf.mxu0
        %v820 = vadd.f32 0.0, %v819
        %v821 = vpop.f32.mrf.mxu0
        %822 = vmatprep.mubr.f32.mxu0 0.0
        %823 = vmatmul.mubr.f32.gmra.mxu0 %v544
        %v824 = vpop.f32.mrf.mxu0
        %v825 = vadd.f32 0.0, %v824
        %v826 = vpop.f32.mrf.mxu0
        %827 = vmatprep.mubr.f32.mxu0 0.0
        %828 = vmatmul.mubr.f32.gmra.mxu0 %v547
        %v829 = vpop.f32.mrf.mxu0
        %v830 = vadd.f32 0.0, %v829
        %v831 = vpop.f32.mrf.mxu0
        %832 = vmatprep.mubr.f32.mxu0 0.0
        %833 = vmatmul.mubr.f32.gmra.mxu0 %v550
        %v834 = vpop.f32.mrf.mxu0
        %v835 = vadd.f32 0.0, %v834
        %v836 = vpop.f32.mrf.mxu0
        %837 = vmatprep.mubr.f32.mxu0 0.0
        %838 = vmatmul.mubr.f32.gmra.mxu0 %v553
        %v839 = vpop.f32.mrf.mxu0
        %v840 = vadd.f32 0.0, %v839
        %v841 = vpop.f32.mrf.mxu0
        %842 = vmatprep.mubr.f32.mxu0 0.0
        %843 = vmatmul.mubr.f32.gmra.mxu0 %v556
        %v844 = vpop.f32.mrf.mxu0
        %v845 = vadd.f32 0.0, %v844
        %v846 = vpop.f32.mrf.mxu0
        %847 = vmatprep.mubr.f32.mxu0 0.0
        %848 = vmatmul.mubr.f32.gmra.mxu0 %v559
        %v849 = vpop.f32.mrf.mxu0
        %v850 = vadd.f32 0.0, %v849
        %v851 = vpop.f32.mrf.mxu0
        %852 = vmatprep.mubr.f32.mxu0 0.0
        %853 = vmatmul.mubr.f32.gmra.mxu0 %v562
        %v854 = vpop.f32.mrf.mxu0
        %v855 = vadd.f32 0.0, %v854
        %v856 = vpop.f32.mrf.mxu0
        %857 = vmatprep.mubr.f32.mxu0 0.0
        %858 = vmatmul.mubr.f32.gmra.mxu0 %v565
        %v859 = vpop.f32.mrf.mxu0
        %v860 = vadd.f32 0.0, %v859
        %v861 = vpop.f32.mrf.mxu0
        %862 = vmatprep.mubr.f32.mxu0 0.0
        %863 = vmatmul.mubr.f32.gmra.mxu0 %v568
        %v864 = vpop.f32.mrf.mxu0
        %v865 = vadd.f32 0.0, %v864
        %v866 = vpop.f32.mrf.mxu0
        %867 = vmatprep.mubr.f32.mxu0 0.0
        %868 = vmatmul.mubr.f32.gmra.mxu0 %v571
        %v869 = vpop.f32.mrf.mxu0
        %v870 = vadd.f32 0.0, %v869
        %v871 = vpop.f32.mrf.mxu0
        %872 = vmatprep.mubr.f32.mxu0 0.0
        %873 = vmatmul.mubr.f32.gmra.mxu0 %v574
        %v874 = vpop.f32.mrf.mxu0
        %v875 = vadd.f32 0.0, %v874
        %v876 = vpop.f32.mrf.mxu0
        %877 = vmatprep.mubr.f32.mxu0 0.0
        %878 = vmatmul.mubr.f32.gmra.mxu0 %v577
        %v879 = vpop.f32.mrf.mxu0
        %v880 = vadd.f32 0.0, %v879
        %v881 = vpop.f32.mrf.mxu0
        %882 = vmatprep.mubr.f32.mxu0 0.0
        %883 = vmatmul.mubr.f32.gmra.mxu0 %v580
        %v884 = vpop.f32.mrf.mxu0
        %v885 = vadd.f32 0.0, %v884
        %v886 = vpop.f32.mrf.mxu0
        %887 = vmatprep.mubr.f32.mxu0 0.0
        %888 = vmatmul.mubr.f32.gmra.mxu0 %v583
        %v889 = vpop.f32.mrf.mxu0
        %v890 = vadd.f32 0.0, %v889
        %v891 = vpop.f32.mrf.mxu0
        %892 = vmatprep.mubr.f32.mxu0 0.0
        %893 = vmatmul.mubr.f32.gmra.mxu0 %v586
        %v894 = vpop.f32.mrf.mxu0
        %v895 = vadd.f32 0.0, %v894
        %v896 = vpop.f32.mrf.mxu0
        %897 = vmatprep.mubr.f32.mxu0 0.0
        %898 = vmatmul.mubr.f32.gmra.mxu0 %v589
        %v899 = vpop.f32.mrf.mxu0
        %v900 = vadd.f32 0.0, %v899
        %v901 = vpop.f32.mrf.mxu0
        %902 = vmatprep.mubr.f32.mxu0 0.0
        %903 = vmatmul.mubr.f32.gmra.mxu0 %v592
        %v904 = vpop.f32.mrf.mxu0
        %v905 = vadd.f32 0.0, %v904
        %v906 = vpop.f32.mrf.mxu0
        %907 = vmatprep.mubr.f32.mxu0 0.0
        %908 = vmatmul.mubr.f32.gmra.mxu0 %v595
        %v909 = vpop.f32.mrf.mxu0
        %v910 = vadd.f32 0.0, %v909
        %v911 = vpop.f32.mrf.mxu0
        %912 = vmatprep.mubr.f32.mxu0 0.0
        %913 = vmatmul.mubr.f32.gmra.mxu0 %v598
        %v914 = vpop.f32.mrf.mxu0
        %v915 = vadd.f32 0.0, %v914
        %v916 = vpop.f32.mrf.mxu0
        %917 = vmatprep.mubr.f32.mxu0 0.0
        %918 = vmatmul.mubr.f32.gmra.mxu0 %v601
        %v919 = vpop.f32.mrf.mxu0
        %v920 = vadd.f32 0.0, %v919
        %v921 = vpop.f32.mrf.mxu0
        %922 = vmatprep.mubr.f32.mxu0 0.0
        %923 = vmatmul.mubr.f32.gmra.mxu0 %v604
        %v924 = vpop.f32.mrf.mxu0
        %v925 = vadd.f32 0.0, %v924
        %v926 = vpop.f32.mrf.mxu0
        %927 = vmatprep.mubr.f32.mxu0 0.0
        %928 = vmatmul.mubr.f32.gmra.mxu0 %v607
        %v929 = vpop.f32.mrf.mxu0
        %v930 = vadd.f32 0.0, %v929
        %v931 = vpop.f32.mrf.mxu0
        %932 = vmatprep.mubr.f32.mxu0 0.0
        %933 = vmatmul.mubr.f32.gmra.mxu0 %v610
        %v934 = vpop.f32.mrf.mxu0
        %v935 = vadd.f32 0.0, %v934
        %v936 = vpop.f32.mrf.mxu0
        %937 = vmatprep.mubr.f32.mxu0 0.0
        %938 = vmatmul.mubr.f32.gmra.mxu0 %v613
        %v939 = vpop.f32.mrf.mxu0
        %v940 = vadd.f32 0.0, %v939
        %v941 = vpop.f32.mrf.mxu0
        %942 = vmatprep.mubr.f32.mxu0 0.0
        %943 = vmatmul.mubr.f32.gmra.mxu0 %v616
        %v944 = vpop.f32.mrf.mxu0
        %v945 = vadd.f32 0.0, %v944
        %v946 = vpop.f32.mrf.mxu0
        %947 = vmatprep.mubr.f32.mxu0 0.0
        %948 = vmatmul.mubr.f32.gmra.mxu0 %v619
        %v949 = vpop.f32.mrf.mxu0
        %v950 = vadd.f32 0.0, %v949
        %v951 = vpop.f32.mrf.mxu0
        %952 = vmatprep.mubr.f32.mxu0 0.0
        %953 = vmatmul.mubr.f32.gmra.mxu0 %v622
        %v954 = vpop.f32.mrf.mxu0
        %v955 = vadd.f32 0.0, %v954
        %v956 = vpop.f32.mrf.mxu0
        %957 = vmatprep.mubr.f32.mxu0 0.0
        %958 = vmatmul.mubr.f32.gmra.mxu0 %v625
        %v959 = vpop.f32.mrf.mxu0
        %v960 = vadd.f32 0.0, %v959
        %v961 = vpop.f32.mrf.mxu0
        %962 = vmatprep.mubr.f32.mxu0 0.0
        %963 = vmatmul.mubr.f32.gmra.mxu0 %v628
        %v964 = vpop.f32.mrf.mxu0
        %v965 = vadd.f32 0.0, %v964
        %v966 = vpop.f32.mrf.mxu0
        %967 = vmatprep.mubr.f32.mxu0 0.0
        %968 = vmatmul.mubr.f32.gmra.mxu0 %v631
        %v969 = vpop.f32.mrf.mxu0
        %v970 = vadd.f32 0.0, %v969
        %v971 = vpop.f32.mrf.mxu0
        %972 = vmatprep.mubr.f32.mxu0 0.0
        %973 = vmatmul.mubr.f32.gmra.mxu0 %v634
        %v974 = vpop.f32.mrf.mxu0
        %v975 = vadd.f32 0.0, %v974
        %v976 = vpop.f32.mrf.mxu0
        %977 = vmatprep.mubr.f32.mxu0 0.0
        %978 = vmatmul.mubr.f32.gmra.mxu0 %v637
        %v979 = vpop.f32.mrf.mxu0
        %v980 = vadd.f32 0.0, %v979
        %v981 = vpop.f32.mrf.mxu0
        %982 = vmatprep.mubr.f32.mxu0 0.0
        %983 = vmatmul.mubr.f32.gmra.mxu0 %v640
        %v984 = vpop.f32.mrf.mxu0
        %v985 = vadd.f32 0.0, %v984
        %v986 = vpop.f32.mrf.mxu0
        %987 = vmatprep.mubr.f32.mxu0 0.0
        %988 = vmatmul.mubr.f32.gmra.mxu0 %v643
        %v989 = vpop.f32.mrf.mxu0
        %v990 = vadd.f32 0.0, %v989
        %v991 = vpop.f32.mrf.mxu0
        %992 = vmatprep.mubr.f32.mxu0 0.0
        %993 = vmatmul.mubr.f32.gmra.mxu0 %v646
        %v994 = vpop.f32.mrf.mxu0
        %v995 = vadd.f32 0.0, %v994
        %v996 = vpop.f32.mrf.mxu0
        %997 = vmatprep.mubr.f32.mxu0 0.0
        %998 = vmatmul.mubr.f32.gmra.mxu0 %v649
        %v999 = vpop.f32.mrf.mxu0
        %v1000 = vadd.f32 0.0, %v999
        %v1001 = vpop.f32.mrf.mxu0
        %1002 = vmatprep.mubr.f32.mxu0 0.0
        %1003 = vmatmul.mubr.f32.gmra.mxu0 %v652
        %v1004 = vpop.f32.mrf.mxu0
        %v1005 = vadd.f32 0.0, %v1004
        %v1006 = vpop.f32.mrf.mxu0
        %1007 = vmatprep.mubr.f32.mxu0 0.0
        %1008 = vmatmul.mubr.f32.gmra.mxu0 %v655
        %v1009 = vpop.f32.mrf.mxu0
        %v1010 = vadd.f32 0.0, %v1009
        %v1011 = vpop.f32.mrf.mxu0
        %1012 = vmatprep.mubr.f32.mxu0 0.0
        %1013 = vmatmul.mubr.f32.gmra.mxu0 %v658
        %v1014 = vpop.f32.mrf.mxu0
        %v1015 = vadd.f32 0.0, %v1014
        %v1016 = vpop.f32.mrf.mxu0
        %1017 = vmatprep.mubr.f32.mxu0 0.0
        %1018 = vmatmul.mubr.f32.gmra.mxu0 %v661
        %v1019 = vpop.f32.mrf.mxu0
        %v1020 = vadd.f32 0.0, %v1019
        %v1021 = vpop.f32.mrf.mxu0
        %1022 = vmatprep.mubr.f32.mxu0 0.0
        %1023 = vmatmul.mubr.f32.gmra.mxu0 %v664
        %v1024 = vpop.f32.mrf.mxu0
        %v1025 = vadd.f32 0.0, %v1024
        %v1026 = vpop.f32.mrf.mxu0
        %1027 = vmatprep.mubr.f32.mxu0 0.0
        %1028 = vmatmul.mubr.f32.gmra.mxu0 %v667
        %v1029 = vpop.f32.mrf.mxu0
        %v1030 = vadd.f32 0.0, %v1029
        %v1031 = vpop.f32.mrf.mxu0
        %1032 = vmatprep.mubr.f32.mxu0 0.0
        %1033 = vmatmul.mubr.f32.gmra.mxu0 %v670
        %v1034 = vpop.f32.mrf.mxu0
        %v1035 = vadd.f32 0.0, %v1034
        %v1036 = vpop.f32.mrf.mxu0
        %1037 = vmatprep.mubr.f32.mxu0 0.0
        %1038 = vmatmul.mubr.f32.gmra.mxu0 %v673
        %v1039 = vpop.f32.mrf.mxu0
        %v1040 = vadd.f32 0.0, %v1039
        %v1041 = vpop.f32.mrf.mxu0
        %1042 = vmatprep.mubr.f32.mxu0 0.0
        %1043 = vmatmul.mubr.f32.gmra.mxu0 %v676
        %v1044 = vpop.f32.mrf.mxu0
        %v1045 = vadd.f32 0.0, %v1044
        %v1046 = vpop.f32.mrf.mxu0
        %1047 = vmatprep.mubr.f32.mxu0 0.0
        %1048 = vmatmul.mubr.f32.gmra.mxu0 %v679
        %v1049 = vpop.f32.mrf.mxu0
        %v1050 = vadd.f32 0.0, %v1049
        %v1051 = vpop.f32.mrf.mxu0
        %1052 = vmatprep.mubr.f32.mxu0 0.0
        %1053 = vmatmul.mubr.f32.gmra.mxu0 %v682
        %v1054 = vpop.f32.mrf.mxu0
        %v1055 = vadd.f32 0.0, %v1054
        %v1056 = vpop.f32.mrf.mxu0
        %1057 = vmatprep.mubr.f32.mxu0 0.0
        %1058 = vmatmul.mubr.f32.gmra.mxu0 %v685
        %v1059 = vpop.f32.mrf.mxu0
        %v1060 = vadd.f32 0.0, %v1059
        %v1061 = vpop.f32.mrf.mxu0
        %1062 = vmatprep.mubr.f32.mxu0 0.0
        %1063 = vmatmul.mubr.f32.gmra.mxu0 %v688
        %v1064 = vpop.f32.mrf.mxu0
        %v1065 = vadd.f32 0.0, %v1064
        %v1066 = vpop.f32.mrf.mxu0
        %1067 = vmatprep.mubr.f32.mxu0 0.0
        %1068 = vmatmul.mubr.f32.gmra.mxu0 %v691
        %v1069 = vpop.f32.mrf.mxu0
        %v1070 = vadd.f32 0.0, %v1069
        %v1071 = vpop.f32.mrf.mxu0
        %1072 = vdwg.mxu0
        %vm1136 = vcmask 1046528
        %v1137 = vrot.slane %v760, 1
        %v1138 = vrot.slane %v765, 1
        %v1139 = vsel %vm1136, %v1137, %v1138
        %v1140 = vrot.slane %v770, 1
        %v1141 = vsel %vm1136, %v1138, %v1140
        %v1142 = vrot.slane %v775, 1
        %v1143 = vsel %vm1136, %v1140, %v1142
        %v1144 = vrot.slane %v780, 1
        %v1145 = vsel %vm1136, %v1142, %v1144
        %v1146 = vrot.slane %v785, 1
        %v1147 = vsel %vm1136, %v1144, %v1146
        %v1148 = vrot.slane %v790, 1
        %v1149 = vsel %vm1136, %v1146, %v1148
        %v1150 = vrot.slane %v795, 1
        %v1151 = vsel %vm1136, %v1148, %v1150
        %v1152 = vrot.slane %v800, 1
        %v1153 = vsel %vm1136, %v1150, %v1152
        %v1154 = vrot.slane %v805, 1
        %v1155 = vsel %vm1136, %v1152, %v1154
        %v1156 = vrot.slane %v810, 1
        %v1157 = vsel %vm1136, %v1154, %v1156
        %v1158 = vrot.slane %v815, 1
        %v1159 = vsel %vm1136, %v1156, %v1158
        %v1160 = vrot.slane %v820, 1
        %v1161 = vsel %vm1136, %v1158, %v1160
        %v1162 = vrot.slane %v825, 1
        %v1163 = vsel %vm1136, %v1160, %v1162
        %v1164 = vrot.slane %v830, 1
        %v1165 = vsel %vm1136, %v1162, %v1164
        %v1166 = vrot.slane %v835, 1
        %v1167 = vsel %vm1136, %v1164, %v1166
        %v1168 = vrot.slane %v840, 1
        %v1169 = vsel %vm1136, %v1166, %v1168
        %v1170 = vrot.slane %v845, 1
        %v1171 = vsel %vm1136, %v1168, %v1170
        %v1172 = vrot.slane %v850, 1
        %v1173 = vsel %vm1136, %v1170, %v1172
        %v1174 = vrot.slane %v855, 1
        %v1175 = vsel %vm1136, %v1172, %v1174
        %v1176 = vrot.slane %v860, 1
        %v1177 = vsel %vm1136, %v1174, %v1176
        %v1178 = vrot.slane %v865, 1
        %v1179 = vsel %vm1136, %v1176, %v1178
        %v1180 = vrot.slane %v870, 1
        %v1181 = vsel %vm1136, %v1178, %v1180
        %v1182 = vrot.slane %v875, 1
        %v1183 = vsel %vm1136, %v1180, %v1182
        %v1184 = vrot.slane %v880, 1
        %v1185 = vsel %vm1136, %v1182, %v1184
        %v1186 = vrot.slane %v885, 1
        %v1187 = vsel %vm1136, %v1184, %v1186
        %v1188 = vrot.slane %v890, 1
        %v1189 = vsel %vm1136, %v1186, %v1188
        %v1190 = vrot.slane %v895, 1
        %v1191 = vsel %vm1136, %v1188, %v1190
        %v1192 = vrot.slane %v900, 1
        %v1193 = vsel %vm1136, %v1190, %v1192
        %v1194 = vrot.slane %v905, 1
        %v1195 = vsel %vm1136, %v1192, %v1194
        %v1196 = vrot.slane %v910, 1
        %v1197 = vsel %vm1136, %v1194, %v1196
        %v1198 = vrot.slane %v915, 1
        %v1199 = vsel %vm1136, %v1196, %v1198
        %v1200 = vrot.slane %v920, 1
        %v1201 = vsel %vm1136, %v1198, %v1200
        %v1202 = vrot.slane %v925, 1
        %v1203 = vsel %vm1136, %v1200, %v1202
        %v1204 = vrot.slane %v930, 1
        %v1205 = vsel %vm1136, %v1202, %v1204
        %v1206 = vrot.slane %v935, 1
        %v1207 = vsel %vm1136, %v1204, %v1206
        %v1208 = vrot.slane %v940, 1
        %v1209 = vsel %vm1136, %v1206, %v1208
        %v1210 = vrot.slane %v945, 1
        %v1211 = vsel %vm1136, %v1208, %v1210
        %v1212 = vrot.slane %v950, 1
        %v1213 = vsel %vm1136, %v1210, %v1212
        %v1214 = vrot.slane %v955, 1
        %v1215 = vsel %vm1136, %v1212, %v1214
        %v1216 = vrot.slane %v960, 1
        %v1217 = vsel %vm1136, %v1214, %v1216
        %v1218 = vrot.slane %v965, 1
        %v1219 = vsel %vm1136, %v1216, %v1218
        %v1220 = vrot.slane %v970, 1
        %v1221 = vsel %vm1136, %v1218, %v1220
        %v1222 = vrot.slane %v975, 1
        %v1223 = vsel %vm1136, %v1220, %v1222
        %v1224 = vrot.slane %v980, 1
        %v1225 = vsel %vm1136, %v1222, %v1224
        %v1226 = vrot.slane %v985, 1
        %v1227 = vsel %vm1136, %v1224, %v1226
        %v1228 = vrot.slane %v990, 1
        %v1229 = vsel %vm1136, %v1226, %v1228
        %v1230 = vrot.slane %v995, 1
        %v1231 = vsel %vm1136, %v1228, %v1230
        %v1232 = vrot.slane %v1000, 1
        %v1233 = vsel %vm1136, %v1230, %v1232
        %v1234 = vrot.slane %v1005, 1
        %v1235 = vsel %vm1136, %v1232, %v1234
        %v1236 = vrot.slane %v1010, 1
        %v1237 = vsel %vm1136, %v1234, %v1236
        %v1238 = vrot.slane %v1015, 1
        %v1239 = vsel %vm1136, %v1236, %v1238
        %v1240 = vrot.slane %v1020, 1
        %v1241 = vsel %vm1136, %v1238, %v1240
        %v1242 = vrot.slane %v1025, 1
        %v1243 = vsel %vm1136, %v1240, %v1242
        %v1244 = vrot.slane %v1030, 1
        %v1245 = vsel %vm1136, %v1242, %v1244
        %v1246 = vrot.slane %v1035, 1
        %v1247 = vsel %vm1136, %v1244, %v1246
        %v1248 = vrot.slane %v1040, 1
        %v1249 = vsel %vm1136, %v1246, %v1248
        %v1250 = vrot.slane %v1045, 1
        %v1251 = vsel %vm1136, %v1248, %v1250
        %v1252 = vrot.slane %v1050, 1
        %v1253 = vsel %vm1136, %v1250, %v1252
        %v1254 = vrot.slane %v1055, 1
        %v1255 = vsel %vm1136, %v1252, %v1254
        %v1256 = vrot.slane %v1060, 1
        %v1257 = vsel %vm1136, %v1254, %v1256
        %v1258 = vrot.slane %v1065, 1
        %v1259 = vsel %vm1136, %v1256, %v1258
        %v1260 = vrot.slane %v1070, 1
        %v1261 = vsel %vm1136, %v1258, %v1260
        %1262 = vrot.lane.b32.xlu0 %v1139, 112
        %v1263 = vpop.permute.xlu0 %1262
        %1264 = vrot.lane.b32.xlu0 %v1141, 112
        %v1265 = vpop.permute.xlu0 %1264
        %1266 = vrot.lane.b32.xlu0 %v1143, 112
        %v1267 = vpop.permute.xlu0 %1266
        %1268 = vrot.lane.b32.xlu0 %v1145, 112
        %v1269 = vpop.permute.xlu0 %1268
        %1270 = vrot.lane.b32.xlu0 %v1147, 112
        %v1271 = vpop.permute.xlu0 %1270
        %1272 = vrot.lane.b32.xlu0 %v1149, 112
        %v1273 = vpop.permute.xlu0 %1272
        %1274 = vrot.lane.b32.xlu0 %v1151, 112
        %v1275 = vpop.permute.xlu0 %1274
        %1276 = vrot.lane.b32.xlu0 %v1153, 112
        %v1277 = vpop.permute.xlu0 %1276
        %1278 = vrot.lane.b32.xlu0 %v1155, 112
        %v1279 = vpop.permute.xlu0 %1278
        %1280 = vrot.lane.b32.xlu0 %v1157, 112
        %v1281 = vpop.permute.xlu0 %1280
        %1282 = vrot.lane.b32.xlu0 %v1159, 112
        %v1283 = vpop.permute.xlu0 %1282
        %1284 = vrot.lane.b32.xlu0 %v1161, 112
        %v1285 = vpop.permute.xlu0 %1284
        %1286 = vrot.lane.b32.xlu0 %v1163, 112
        %v1287 = vpop.permute.xlu0 %1286
        %1288 = vrot.lane.b32.xlu0 %v1165, 112
        %v1289 = vpop.permute.xlu0 %1288
        %1290 = vrot.lane.b32.xlu0 %v1167, 112
        %v1291 = vpop.permute.xlu0 %1290
        %1292 = vrot.lane.b32.xlu0 %v1169, 112
        %v1293 = vpop.permute.xlu0 %1292
        %1294 = vrot.lane.b32.xlu0 %v1171, 112
        %v1295 = vpop.permute.xlu0 %1294
        %1296 = vrot.lane.b32.xlu0 %v1173, 112
        %v1297 = vpop.permute.xlu0 %1296
        %1298 = vrot.lane.b32.xlu0 %v1175, 112
        %v1299 = vpop.permute.xlu0 %1298
        %1300 = vrot.lane.b32.xlu0 %v1177, 112
        %v1301 = vpop.permute.xlu0 %1300
        %1302 = vrot.lane.b32.xlu0 %v1179, 112
        %v1303 = vpop.permute.xlu0 %1302
        %1304 = vrot.lane.b32.xlu0 %v1181, 112
        %v1305 = vpop.permute.xlu0 %1304
        %1306 = vrot.lane.b32.xlu0 %v1183, 112
        %v1307 = vpop.permute.xlu0 %1306
        %1308 = vrot.lane.b32.xlu0 %v1185, 112
        %v1309 = vpop.permute.xlu0 %1308
        %1310 = vrot.lane.b32.xlu0 %v1187, 112
        %v1311 = vpop.permute.xlu0 %1310
        %1312 = vrot.lane.b32.xlu0 %v1189, 112
        %v1313 = vpop.permute.xlu0 %1312
        %1314 = vrot.lane.b32.xlu0 %v1191, 112
        %v1315 = vpop.permute.xlu0 %1314
        %1316 = vrot.lane.b32.xlu0 %v1193, 112
        %v1317 = vpop.permute.xlu0 %1316
        %1318 = vrot.lane.b32.xlu0 %v1195, 112
        %v1319 = vpop.permute.xlu0 %1318
        %1320 = vrot.lane.b32.xlu0 %v1197, 112
        %v1321 = vpop.permute.xlu0 %1320
        %1322 = vrot.lane.b32.xlu0 %v1199, 112
        %v1323 = vpop.permute.xlu0 %1322
        %1324 = vrot.lane.b32.xlu0 %v1201, 112
        %v1325 = vpop.permute.xlu0 %1324
        %1326 = vrot.lane.b32.xlu0 %v1203, 112
        %v1327 = vpop.permute.xlu0 %1326
        %1328 = vrot.lane.b32.xlu0 %v1205, 112
        %v1329 = vpop.permute.xlu0 %1328
        %1330 = vrot.lane.b32.xlu0 %v1207, 112
        %v1331 = vpop.permute.xlu0 %1330
        %1332 = vrot.lane.b32.xlu0 %v1209, 112
        %v1333 = vpop.permute.xlu0 %1332
        %1334 = vrot.lane.b32.xlu0 %v1211, 112
        %v1335 = vpop.permute.xlu0 %1334
        %1336 = vrot.lane.b32.xlu0 %v1213, 112
        %v1337 = vpop.permute.xlu0 %1336
        %1338 = vrot.lane.b32.xlu0 %v1215, 112
        %v1339 = vpop.permute.xlu0 %1338
        %1340 = vrot.lane.b32.xlu0 %v1217, 112
        %v1341 = vpop.permute.xlu0 %1340
        %1342 = vrot.lane.b32.xlu0 %v1219, 112
        %v1343 = vpop.permute.xlu0 %1342
        %1344 = vrot.lane.b32.xlu0 %v1221, 112
        %v1345 = vpop.permute.xlu0 %1344
        %1346 = vrot.lane.b32.xlu0 %v1223, 112
        %v1347 = vpop.permute.xlu0 %1346
        %1348 = vrot.lane.b32.xlu0 %v1225, 112
        %v1349 = vpop.permute.xlu0 %1348
        %1350 = vrot.lane.b32.xlu0 %v1227, 112
        %v1351 = vpop.permute.xlu0 %1350
        %1352 = vrot.lane.b32.xlu0 %v1229, 112
        %v1353 = vpop.permute.xlu0 %1352
        %1354 = vrot.lane.b32.xlu0 %v1231, 112
        %v1355 = vpop.permute.xlu0 %1354
        %1356 = vrot.lane.b32.xlu0 %v1233, 112
        %v1357 = vpop.permute.xlu0 %1356
        %1358 = vrot.lane.b32.xlu0 %v1235, 112
        %v1359 = vpop.permute.xlu0 %1358
        %1360 = vrot.lane.b32.xlu0 %v1237, 112
        %v1361 = vpop.permute.xlu0 %1360
        %1362 = vrot.lane.b32.xlu0 %v1239, 112
        %v1363 = vpop.permute.xlu0 %1362
        %1364 = vrot.lane.b32.xlu0 %v1241, 112
        %v1365 = vpop.permute.xlu0 %1364
        %1366 = vrot.lane.b32.xlu0 %v1243, 112
        %v1367 = vpop.permute.xlu0 %1366
        %1368 = vrot.lane.b32.xlu0 %v1245, 112
        %v1369 = vpop.permute.xlu0 %1368
        %1370 = vrot.lane.b32.xlu0 %v1247, 112
        %v1371 = vpop.permute.xlu0 %1370
        %1372 = vrot.lane.b32.xlu0 %v1249, 112
        %v1373 = vpop.permute.xlu0 %1372
        %1374 = vrot.lane.b32.xlu0 %v1251, 112
        %v1375 = vpop.permute.xlu0 %1374
        %1376 = vrot.lane.b32.xlu0 %v1253, 112
        %v1377 = vpop.permute.xlu0 %1376
        %1378 = vrot.lane.b32.xlu0 %v1255, 112
        %v1379 = vpop.permute.xlu0 %1378
        %1380 = vrot.lane.b32.xlu0 %v1257, 112
        %v1381 = vpop.permute.xlu0 %1380
        %1382 = vrot.lane.b32.xlu0 %v1259, 112
        %v1383 = vpop.permute.xlu0 %1382
        %1384 = vrot.lane.b32.xlu0 %v1261, 112
        %v1385 = vpop.permute.xlu0 %1384
        %1386 = vrot.lane.b32.xlu0 %v1260, 112
        %v1387 = vpop.permute.xlu0 %1386
        %v1451 = vadd.f32 %v760, %v1263
        %v1452 = vadd.f32 %v765, %v1265
        %v1453 = vadd.f32 %v770, %v1267
        %v1454 = vadd.f32 %v775, %v1269
        %v1455 = vadd.f32 %v780, %v1271
        %v1456 = vadd.f32 %v785, %v1273
        %v1457 = vadd.f32 %v790, %v1275
        %v1458 = vadd.f32 %v795, %v1277
        %v1459 = vadd.f32 %v800, %v1279
        %v1460 = vadd.f32 %v805, %v1281
        %v1461 = vadd.f32 %v810, %v1283
        %v1462 = vadd.f32 %v815, %v1285
        %v1463 = vadd.f32 %v820, %v1287
        %v1464 = vadd.f32 %v825, %v1289
        %v1465 = vadd.f32 %v830, %v1291
        %v1466 = vadd.f32 %v835, %v1293
        %v1467 = vadd.f32 %v840, %v1295
        %v1468 = vadd.f32 %v845, %v1297
        %v1469 = vadd.f32 %v850, %v1299
        %v1470 = vadd.f32 %v855, %v1301
        %v1471 = vadd.f32 %v860, %v1303
        %v1472 = vadd.f32 %v865, %v1305
        %v1473 = vadd.f32 %v870, %v1307
        %v1474 = vadd.f32 %v875, %v1309
        %v1475 = vadd.f32 %v880, %v1311
        %v1476 = vadd.f32 %v885, %v1313
        %v1477 = vadd.f32 %v890, %v1315
        %v1478 = vadd.f32 %v895, %v1317
        %v1479 = vadd.f32 %v900, %v1319
        %v1480 = vadd.f32 %v905, %v1321
        %v1481 = vadd.f32 %v910, %v1323
        %v1482 = vadd.f32 %v915, %v1325
        %v1483 = vadd.f32 %v920, %v1327
        %v1484 = vadd.f32 %v925, %v1329
        %v1485 = vadd.f32 %v930, %v1331
        %v1486 = vadd.f32 %v935, %v1333
        %v1487 = vadd.f32 %v940, %v1335
        %v1488 = vadd.f32 %v945, %v1337
        %v1489 = vadd.f32 %v950, %v1339
        %v1490 = vadd.f32 %v955, %v1341
        %v1491 = vadd.f32 %v960, %v1343
        %v1492 = vadd.f32 %v965, %v1345
        %v1493 = vadd.f32 %v970, %v1347
        %v1494 = vadd.f32 %v975, %v1349
        %v1495 = vadd.f32 %v980, %v1351
        %v1496 = vadd.f32 %v985, %v1353
        %v1497 = vadd.f32 %v990, %v1355
        %v1498 = vadd.f32 %v995, %v1357
        %v1499 = vadd.f32 %v1000, %v1359
        %v1500 = vadd.f32 %v1005, %v1361
        %v1501 = vadd.f32 %v1010, %v1363
        %v1502 = vadd.f32 %v1015, %v1365
        %v1503 = vadd.f32 %v1020, %v1367
        %v1504 = vadd.f32 %v1025, %v1369
        %v1505 = vadd.f32 %v1030, %v1371
        %v1506 = vadd.f32 %v1035, %v1373
        %v1507 = vadd.f32 %v1040, %v1375
        %v1508 = vadd.f32 %v1045, %v1377
        %v1509 = vadd.f32 %v1050, %v1379
        %v1510 = vadd.f32 %v1055, %v1381
        %v1511 = vadd.f32 %v1060, %v1383
        %v1512 = vadd.f32 %v1065, %v1385
        %v1513 = vadd.f32 %v1070, %v1387
        %vm1514 = vcmask 1045504
        %v1515 = vrot.slane %v760, 2
        %v1516 = vrot.slane %v765, 2
        %v1517 = vsel %vm1514, %v1515, %v1516
        %v1518 = vrot.slane %v770, 2
        %v1519 = vsel %vm1514, %v1516, %v1518
        %v1520 = vrot.slane %v775, 2
        %v1521 = vsel %vm1514, %v1518, %v1520
        %v1522 = vrot.slane %v780, 2
        %v1523 = vsel %vm1514, %v1520, %v1522
        %v1524 = vrot.slane %v785, 2
        %v1525 = vsel %vm1514, %v1522, %v1524
        %v1526 = vrot.slane %v790, 2
        %v1527 = vsel %vm1514, %v1524, %v1526
        %v1528 = vrot.slane %v795, 2
        %v1529 = vsel %vm1514, %v1526, %v1528
        %v1530 = vrot.slane %v800, 2
        %v1531 = vsel %vm1514, %v1528, %v1530
        %v1532 = vrot.slane %v805, 2
        %v1533 = vsel %vm1514, %v1530, %v1532
        %v1534 = vrot.slane %v810, 2
        %v1535 = vsel %vm1514, %v1532, %v1534
        %v1536 = vrot.slane %v815, 2
        %v1537 = vsel %vm1514, %v1534, %v1536
        %v1538 = vrot.slane %v820, 2
        %v1539 = vsel %vm1514, %v1536, %v1538
        %v1540 = vrot.slane %v825, 2
        %v1541 = vsel %vm1514, %v1538, %v1540
        %v1542 = vrot.slane %v830, 2
        %v1543 = vsel %vm1514, %v1540, %v1542
        %v1544 = vrot.slane %v835, 2
        %v1545 = vsel %vm1514, %v1542, %v1544
        %v1546 = vrot.slane %v840, 2
        %v1547 = vsel %vm1514, %v1544, %v1546
        %v1548 = vrot.slane %v845, 2
        %v1549 = vsel %vm1514, %v1546, %v1548
        %v1550 = vrot.slane %v850, 2
        %v1551 = vsel %vm1514, %v1548, %v1550
        %v1552 = vrot.slane %v855, 2
        %v1553 = vsel %vm1514, %v1550, %v1552
        %v1554 = vrot.slane %v860, 2
        %v1555 = vsel %vm1514, %v1552, %v1554
        %v1556 = vrot.slane %v865, 2
        %v1557 = vsel %vm1514, %v1554, %v1556
        %v1558 = vrot.slane %v870, 2
        %v1559 = vsel %vm1514, %v1556, %v1558
        %v1560 = vrot.slane %v875, 2
        %v1561 = vsel %vm1514, %v1558, %v1560
        %v1562 = vrot.slane %v880, 2
        %v1563 = vsel %vm1514, %v1560, %v1562
        %v1564 = vrot.slane %v885, 2
        %v1565 = vsel %vm1514, %v1562, %v1564
        %v1566 = vrot.slane %v890, 2
        %v1567 = vsel %vm1514, %v1564, %v1566
        %v1568 = vrot.slane %v895, 2
        %v1569 = vsel %vm1514, %v1566, %v1568
        %v1570 = vrot.slane %v900, 2
        %v1571 = vsel %vm1514, %v1568, %v1570
        %v1572 = vrot.slane %v905, 2
        %v1573 = vsel %vm1514, %v1570, %v1572
        %v1574 = vrot.slane %v910, 2
        %v1575 = vsel %vm1514, %v1572, %v1574
        %v1576 = vrot.slane %v915, 2
        %v1577 = vsel %vm1514, %v1574, %v1576
        %v1578 = vrot.slane %v920, 2
        %v1579 = vsel %vm1514, %v1576, %v1578
        %v1580 = vrot.slane %v925, 2
        %v1581 = vsel %vm1514, %v1578, %v1580
        %v1582 = vrot.slane %v930, 2
        %v1583 = vsel %vm1514, %v1580, %v1582
        %v1584 = vrot.slane %v935, 2
        %v1585 = vsel %vm1514, %v1582, %v1584
        %v1586 = vrot.slane %v940, 2
        %v1587 = vsel %vm1514, %v1584, %v1586
        %v1588 = vrot.slane %v945, 2
        %v1589 = vsel %vm1514, %v1586, %v1588
        %v1590 = vrot.slane %v950, 2
        %v1591 = vsel %vm1514, %v1588, %v1590
        %v1592 = vrot.slane %v955, 2
        %v1593 = vsel %vm1514, %v1590, %v1592
        %v1594 = vrot.slane %v960, 2
        %v1595 = vsel %vm1514, %v1592, %v1594
        %v1596 = vrot.slane %v965, 2
        %v1597 = vsel %vm1514, %v1594, %v1596
        %v1598 = vrot.slane %v970, 2
        %v1599 = vsel %vm1514, %v1596, %v1598
        %v1600 = vrot.slane %v975, 2
        %v1601 = vsel %vm1514, %v1598, %v1600
        %v1602 = vrot.slane %v980, 2
        %v1603 = vsel %vm1514, %v1600, %v1602
        %v1604 = vrot.slane %v985, 2
        %v1605 = vsel %vm1514, %v1602, %v1604
        %v1606 = vrot.slane %v990, 2
        %v1607 = vsel %vm1514, %v1604, %v1606
        %v1608 = vrot.slane %v995, 2
        %v1609 = vsel %vm1514, %v1606, %v1608
        %v1610 = vrot.slane %v1000, 2
        %v1611 = vsel %vm1514, %v1608, %v1610
        %v1612 = vrot.slane %v1005, 2
        %v1613 = vsel %vm1514, %v1610, %v1612
        %v1614 = vrot.slane %v1010, 2
        %v1615 = vsel %vm1514, %v1612, %v1614
        %v1616 = vrot.slane %v1015, 2
        %v1617 = vsel %vm1514, %v1614, %v1616
        %v1618 = vrot.slane %v1020, 2
        %v1619 = vsel %vm1514, %v1616, %v1618
        %v1620 = vrot.slane %v1025, 2
        %v1621 = vsel %vm1514, %v1618, %v1620
        %v1622 = vrot.slane %v1030, 2
        %v1623 = vsel %vm1514, %v1620, %v1622
        %v1624 = vrot.slane %v1035, 2
        %v1625 = vsel %vm1514, %v1622, %v1624
        %v1626 = vrot.slane %v1040, 2
        %v1627 = vsel %vm1514, %v1624, %v1626
        %v1628 = vrot.slane %v1045, 2
        %v1629 = vsel %vm1514, %v1626, %v1628
        %v1630 = vrot.slane %v1050, 2
        %v1631 = vsel %vm1514, %v1628, %v1630
        %v1632 = vrot.slane %v1055, 2
        %v1633 = vsel %vm1514, %v1630, %v1632
        %v1634 = vrot.slane %v1060, 2
        %v1635 = vsel %vm1514, %v1632, %v1634
        %v1636 = vrot.slane %v1065, 2
        %v1637 = vsel %vm1514, %v1634, %v1636
        %v1638 = vrot.slane %v1070, 2
        %v1639 = vsel %vm1514, %v1636, %v1638
        %1640 = vrot.lane.b32.xlu0 %v1517, 96
        %v1641 = vpop.permute.xlu0 %1640
        %1642 = vrot.lane.b32.xlu0 %v1519, 96
        %v1643 = vpop.permute.xlu0 %1642
        %1644 = vrot.lane.b32.xlu0 %v1521, 96
        %v1645 = vpop.permute.xlu0 %1644
        %1646 = vrot.lane.b32.xlu0 %v1523, 96
        %v1647 = vpop.permute.xlu0 %1646
        %1648 = vrot.lane.b32.xlu0 %v1525, 96
        %v1649 = vpop.permute.xlu0 %1648
        %1650 = vrot.lane.b32.xlu0 %v1527, 96
        %v1651 = vpop.permute.xlu0 %1650
        %1652 = vrot.lane.b32.xlu0 %v1529, 96
        %v1653 = vpop.permute.xlu0 %1652
        %1654 = vrot.lane.b32.xlu0 %v1531, 96
        %v1655 = vpop.permute.xlu0 %1654
        %1656 = vrot.lane.b32.xlu0 %v1533, 96
        %v1657 = vpop.permute.xlu0 %1656
        %1658 = vrot.lane.b32.xlu0 %v1535, 96
        %v1659 = vpop.permute.xlu0 %1658
        %1660 = vrot.lane.b32.xlu0 %v1537, 96
        %v1661 = vpop.permute.xlu0 %1660
        %1662 = vrot.lane.b32.xlu0 %v1539, 96
        %v1663 = vpop.permute.xlu0 %1662
        %1664 = vrot.lane.b32.xlu0 %v1541, 96
        %v1665 = vpop.permute.xlu0 %1664
        %1666 = vrot.lane.b32.xlu0 %v1543, 96
        %v1667 = vpop.permute.xlu0 %1666
        %1668 = vrot.lane.b32.xlu0 %v1545, 96
        %v1669 = vpop.permute.xlu0 %1668
        %1670 = vrot.lane.b32.xlu0 %v1547, 96
        %v1671 = vpop.permute.xlu0 %1670
        %1672 = vrot.lane.b32.xlu0 %v1549, 96
        %v1673 = vpop.permute.xlu0 %1672
        %1674 = vrot.lane.b32.xlu0 %v1551, 96
        %v1675 = vpop.permute.xlu0 %1674
        %1676 = vrot.lane.b32.xlu0 %v1553, 96
        %v1677 = vpop.permute.xlu0 %1676
        %1678 = vrot.lane.b32.xlu0 %v1555, 96
        %v1679 = vpop.permute.xlu0 %1678
        %1680 = vrot.lane.b32.xlu0 %v1557, 96
        %v1681 = vpop.permute.xlu0 %1680
        %1682 = vrot.lane.b32.xlu0 %v1559, 96
        %v1683 = vpop.permute.xlu0 %1682
        %1684 = vrot.lane.b32.xlu0 %v1561, 96
        %v1685 = vpop.permute.xlu0 %1684
        %1686 = vrot.lane.b32.xlu0 %v1563, 96
        %v1687 = vpop.permute.xlu0 %1686
        %1688 = vrot.lane.b32.xlu0 %v1565, 96
        %v1689 = vpop.permute.xlu0 %1688
        %1690 = vrot.lane.b32.xlu0 %v1567, 96
        %v1691 = vpop.permute.xlu0 %1690
        %1692 = vrot.lane.b32.xlu0 %v1569, 96
        %v1693 = vpop.permute.xlu0 %1692
        %1694 = vrot.lane.b32.xlu0 %v1571, 96
        %v1695 = vpop.permute.xlu0 %1694
        %1696 = vrot.lane.b32.xlu0 %v1573, 96
        %v1697 = vpop.permute.xlu0 %1696
        %1698 = vrot.lane.b32.xlu0 %v1575, 96
        %v1699 = vpop.permute.xlu0 %1698
        %1700 = vrot.lane.b32.xlu0 %v1577, 96
        %v1701 = vpop.permute.xlu0 %1700
        %1702 = vrot.lane.b32.xlu0 %v1579, 96
        %v1703 = vpop.permute.xlu0 %1702
        %1704 = vrot.lane.b32.xlu0 %v1581, 96
        %v1705 = vpop.permute.xlu0 %1704
        %1706 = vrot.lane.b32.xlu0 %v1583, 96
        %v1707 = vpop.permute.xlu0 %1706
        %1708 = vrot.lane.b32.xlu0 %v1585, 96
        %v1709 = vpop.permute.xlu0 %1708
        %1710 = vrot.lane.b32.xlu0 %v1587, 96
        %v1711 = vpop.permute.xlu0 %1710
        %1712 = vrot.lane.b32.xlu0 %v1589, 96
        %v1713 = vpop.permute.xlu0 %1712
        %1714 = vrot.lane.b32.xlu0 %v1591, 96
        %v1715 = vpop.permute.xlu0 %1714
        %1716 = vrot.lane.b32.xlu0 %v1593, 96
        %v1717 = vpop.permute.xlu0 %1716
        %1718 = vrot.lane.b32.xlu0 %v1595, 96
        %v1719 = vpop.permute.xlu0 %1718
        %1720 = vrot.lane.b32.xlu0 %v1597, 96
        %v1721 = vpop.permute.xlu0 %1720
        %1722 = vrot.lane.b32.xlu0 %v1599, 96
        %v1723 = vpop.permute.xlu0 %1722
        %1724 = vrot.lane.b32.xlu0 %v1601, 96
        %v1725 = vpop.permute.xlu0 %1724
        %1726 = vrot.lane.b32.xlu0 %v1603, 96
        %v1727 = vpop.permute.xlu0 %1726
        %1728 = vrot.lane.b32.xlu0 %v1605, 96
        %v1729 = vpop.permute.xlu0 %1728
        %1730 = vrot.lane.b32.xlu0 %v1607, 96
        %v1731 = vpop.permute.xlu0 %1730
        %1732 = vrot.lane.b32.xlu0 %v1609, 96
        %v1733 = vpop.permute.xlu0 %1732
        %1734 = vrot.lane.b32.xlu0 %v1611, 96
        %v1735 = vpop.permute.xlu0 %1734
        %1736 = vrot.lane.b32.xlu0 %v1613, 96
        %v1737 = vpop.permute.xlu0 %1736
        %1738 = vrot.lane.b32.xlu0 %v1615, 96
        %v1739 = vpop.permute.xlu0 %1738
        %1740 = vrot.lane.b32.xlu0 %v1617, 96
        %v1741 = vpop.permute.xlu0 %1740
        %1742 = vrot.lane.b32.xlu0 %v1619, 96
        %v1743 = vpop.permute.xlu0 %1742
        %1744 = vrot.lane.b32.xlu0 %v1621, 96
        %v1745 = vpop.permute.xlu0 %1744
        %1746 = vrot.lane.b32.xlu0 %v1623, 96
        %v1747 = vpop.permute.xlu0 %1746
        %1748 = vrot.lane.b32.xlu0 %v1625, 96
        %v1749 = vpop.permute.xlu0 %1748
        %1750 = vrot.lane.b32.xlu0 %v1627, 96
        %v1751 = vpop.permute.xlu0 %1750
        %1752 = vrot.lane.b32.xlu0 %v1629, 96
        %v1753 = vpop.permute.xlu0 %1752
        %1754 = vrot.lane.b32.xlu0 %v1631, 96
        %v1755 = vpop.permute.xlu0 %1754
        %1756 = vrot.lane.b32.xlu0 %v1633, 96
        %v1757 = vpop.permute.xlu0 %1756
        %1758 = vrot.lane.b32.xlu0 %v1635, 96
        %v1759 = vpop.permute.xlu0 %1758
        %1760 = vrot.lane.b32.xlu0 %v1637, 96
        %v1761 = vpop.permute.xlu0 %1760
        %1762 = vrot.lane.b32.xlu0 %v1639, 96
        %v1763 = vpop.permute.xlu0 %1762
        %1764 = vrot.lane.b32.xlu0 %v1638, 96
        %v1765 = vpop.permute.xlu0 %1764
        %v1829 = vadd.f32 %v1451, %v1641
        %v1830 = vadd.f32 %v1452, %v1643
        %v1831 = vadd.f32 %v1453, %v1645
        %v1832 = vadd.f32 %v1454, %v1647
        %v1833 = vadd.f32 %v1455, %v1649
        %v1834 = vadd.f32 %v1456, %v1651
        %v1835 = vadd.f32 %v1457, %v1653
        %v1836 = vadd.f32 %v1458, %v1655
        %v1837 = vadd.f32 %v1459, %v1657
        %v1838 = vadd.f32 %v1460, %v1659
        %v1839 = vadd.f32 %v1461, %v1661
        %v1840 = vadd.f32 %v1462, %v1663
        %v1841 = vadd.f32 %v1463, %v1665
        %v1842 = vadd.f32 %v1464, %v1667
        %v1843 = vadd.f32 %v1465, %v1669
        %v1844 = vadd.f32 %v1466, %v1671
        %v1845 = vadd.f32 %v1467, %v1673
        %v1846 = vadd.f32 %v1468, %v1675
        %v1847 = vadd.f32 %v1469, %v1677
        %v1848 = vadd.f32 %v1470, %v1679
        %v1849 = vadd.f32 %v1471, %v1681
        %v1850 = vadd.f32 %v1472, %v1683
        %v1851 = vadd.f32 %v1473, %v1685
        %v1852 = vadd.f32 %v1474, %v1687
        %v1853 = vadd.f32 %v1475, %v1689
        %v1854 = vadd.f32 %v1476, %v1691
        %v1855 = vadd.f32 %v1477, %v1693
        %v1856 = vadd.f32 %v1478, %v1695
        %v1857 = vadd.f32 %v1479, %v1697
        %v1858 = vadd.f32 %v1480, %v1699
        %v1859 = vadd.f32 %v1481, %v1701
        %v1860 = vadd.f32 %v1482, %v1703
        %v1861 = vadd.f32 %v1483, %v1705
        %v1862 = vadd.f32 %v1484, %v1707
        %v1863 = vadd.f32 %v1485, %v1709
        %v1864 = vadd.f32 %v1486, %v1711
        %v1865 = vadd.f32 %v1487, %v1713
        %v1866 = vadd.f32 %v1488, %v1715
        %v1867 = vadd.f32 %v1489, %v1717
        %v1868 = vadd.f32 %v1490, %v1719
        %v1869 = vadd.f32 %v1491, %v1721
        %v1870 = vadd.f32 %v1492, %v1723
        %v1871 = vadd.f32 %v1493, %v1725
        %v1872 = vadd.f32 %v1494, %v1727
        %v1873 = vadd.f32 %v1495, %v1729
        %v1874 = vadd.f32 %v1496, %v1731
        %v1875 = vadd.f32 %v1497, %v1733
        %v1876 = vadd.f32 %v1498, %v1735
        %v1877 = vadd.f32 %v1499, %v1737
        %v1878 = vadd.f32 %v1500, %v1739
        %v1879 = vadd.f32 %v1501, %v1741
        %v1880 = vadd.f32 %v1502, %v1743
        %v1881 = vadd.f32 %v1503, %v1745
        %v1882 = vadd.f32 %v1504, %v1747
        %v1883 = vadd.f32 %v1505, %v1749
        %v1884 = vadd.f32 %v1506, %v1751
        %v1885 = vadd.f32 %v1507, %v1753
        %v1886 = vadd.f32 %v1508, %v1755
        %v1887 = vadd.f32 %v1509, %v1757
        %v1888 = vadd.f32 %v1510, %v1759
        %v1889 = vadd.f32 %v1511, %v1761
        %v1890 = vadd.f32 %v1512, %v1763
        %v1891 = vadd.f32 %v1513, %v1765
        %vm1892 = vcmask 1044480
        %v1893 = vrot.slane %v760, 3
        %v1894 = vrot.slane %v765, 3
        %v1895 = vsel %vm1892, %v1893, %v1894
        %v1896 = vrot.slane %v770, 3
        %v1897 = vsel %vm1892, %v1894, %v1896
        %v1898 = vrot.slane %v775, 3
        %v1899 = vsel %vm1892, %v1896, %v1898
        %v1900 = vrot.slane %v780, 3
        %v1901 = vsel %vm1892, %v1898, %v1900
        %v1902 = vrot.slane %v785, 3
        %v1903 = vsel %vm1892, %v1900, %v1902
        %v1904 = vrot.slane %v790, 3
        %v1905 = vsel %vm1892, %v1902, %v1904
        %v1906 = vrot.slane %v795, 3
        %v1907 = vsel %vm1892, %v1904, %v1906
        %v1908 = vrot.slane %v800, 3
        %v1909 = vsel %vm1892, %v1906, %v1908
        %v1910 = vrot.slane %v805, 3
        %v1911 = vsel %vm1892, %v1908, %v1910
        %v1912 = vrot.slane %v810, 3
        %v1913 = vsel %vm1892, %v1910, %v1912
        %v1914 = vrot.slane %v815, 3
        %v1915 = vsel %vm1892, %v1912, %v1914
        %v1916 = vrot.slane %v820, 3
        %v1917 = vsel %vm1892, %v1914, %v1916
        %v1918 = vrot.slane %v825, 3
        %v1919 = vsel %vm1892, %v1916, %v1918
        %v1920 = vrot.slane %v830, 3
        %v1921 = vsel %vm1892, %v1918, %v1920
        %v1922 = vrot.slane %v835, 3
        %v1923 = vsel %vm1892, %v1920, %v1922
        %v1924 = vrot.slane %v840, 3
        %v1925 = vsel %vm1892, %v1922, %v1924
        %v1926 = vrot.slane %v845, 3
        %v1927 = vsel %vm1892, %v1924, %v1926
        %v1928 = vrot.slane %v850, 3
        %v1929 = vsel %vm1892, %v1926, %v1928
        %v1930 = vrot.slane %v855, 3
        %v1931 = vsel %vm1892, %v1928, %v1930
        %v1932 = vrot.slane %v860, 3
        %v1933 = vsel %vm1892, %v1930, %v1932
        %v1934 = vrot.slane %v865, 3
        %v1935 = vsel %vm1892, %v1932, %v1934
        %v1936 = vrot.slane %v870, 3
        %v1937 = vsel %vm1892, %v1934, %v1936
        %v1938 = vrot.slane %v875, 3
        %v1939 = vsel %vm1892, %v1936, %v1938
        %v1940 = vrot.slane %v880, 3
        %v1941 = vsel %vm1892, %v1938, %v1940
        %v1942 = vrot.slane %v885, 3
        %v1943 = vsel %vm1892, %v1940, %v1942
        %v1944 = vrot.slane %v890, 3
        %v1945 = vsel %vm1892, %v1942, %v1944
        %v1946 = vrot.slane %v895, 3
        %v1947 = vsel %vm1892, %v1944, %v1946
        %v1948 = vrot.slane %v900, 3
        %v1949 = vsel %vm1892, %v1946, %v1948
        %v1950 = vrot.slane %v905, 3
        %v1951 = vsel %vm1892, %v1948, %v1950
        %v1952 = vrot.slane %v910, 3
        %v1953 = vsel %vm1892, %v1950, %v1952
        %v1954 = vrot.slane %v915, 3
        %v1955 = vsel %vm1892, %v1952, %v1954
        %v1956 = vrot.slane %v920, 3
        %v1957 = vsel %vm1892, %v1954, %v1956
        %v1958 = vrot.slane %v925, 3
        %v1959 = vsel %vm1892, %v1956, %v1958
        %v1960 = vrot.slane %v930, 3
        %v1961 = vsel %vm1892, %v1958, %v1960
        %v1962 = vrot.slane %v935, 3
        %v1963 = vsel %vm1892, %v1960, %v1962
        %v1964 = vrot.slane %v940, 3
        %v1965 = vsel %vm1892, %v1962, %v1964
        %v1966 = vrot.slane %v945, 3
        %v1967 = vsel %vm1892, %v1964, %v1966
        %v1968 = vrot.slane %v950, 3
        %v1969 = vsel %vm1892, %v1966, %v1968
        %v1970 = vrot.slane %v955, 3
        %v1971 = vsel %vm1892, %v1968, %v1970
        %v1972 = vrot.slane %v960, 3
        %v1973 = vsel %vm1892, %v1970, %v1972
        %v1974 = vrot.slane %v965, 3
        %v1975 = vsel %vm1892, %v1972, %v1974
        %v1976 = vrot.slane %v970, 3
        %v1977 = vsel %vm1892, %v1974, %v1976
        %v1978 = vrot.slane %v975, 3
        %v1979 = vsel %vm1892, %v1976, %v1978
        %v1980 = vrot.slane %v980, 3
        %v1981 = vsel %vm1892, %v1978, %v1980
        %v1982 = vrot.slane %v985, 3
        %v1983 = vsel %vm1892, %v1980, %v1982
        %v1984 = vrot.slane %v990, 3
        %v1985 = vsel %vm1892, %v1982, %v1984
        %v1986 = vrot.slane %v995, 3
        %v1987 = vsel %vm1892, %v1984, %v1986
        %v1988 = vrot.slane %v1000, 3
        %v1989 = vsel %vm1892, %v1986, %v1988
        %v1990 = vrot.slane %v1005, 3
        %v1991 = vsel %vm1892, %v1988, %v1990
        %v1992 = vrot.slane %v1010, 3
        %v1993 = vsel %vm1892, %v1990, %v1992
        %v1994 = vrot.slane %v1015, 3
        %v1995 = vsel %vm1892, %v1992, %v1994
        %v1996 = vrot.slane %v1020, 3
        %v1997 = vsel %vm1892, %v1994, %v1996
        %v1998 = vrot.slane %v1025, 3
        %v1999 = vsel %vm1892, %v1996, %v1998
        %v2000 = vrot.slane %v1030, 3
        %v2001 = vsel %vm1892, %v1998, %v2000
        %v2002 = vrot.slane %v1035, 3
        %v2003 = vsel %vm1892, %v2000, %v2002
        %v2004 = vrot.slane %v1040, 3
        %v2005 = vsel %vm1892, %v2002, %v2004
        %v2006 = vrot.slane %v1045, 3
        %v2007 = vsel %vm1892, %v2004, %v2006
        %v2008 = vrot.slane %v1050, 3
        %v2009 = vsel %vm1892, %v2006, %v2008
        %v2010 = vrot.slane %v1055, 3
        %v2011 = vsel %vm1892, %v2008, %v2010
        %v2012 = vrot.slane %v1060, 3
        %v2013 = vsel %vm1892, %v2010, %v2012
        %v2014 = vrot.slane %v1065, 3
        %v2015 = vsel %vm1892, %v2012, %v2014
        %v2016 = vrot.slane %v1070, 3
        %v2017 = vsel %vm1892, %v2014, %v2016
        %2018 = vrot.lane.b32.xlu0 %v1895, 80
        %v2019 = vpop.permute.xlu0 %2018
        %2020 = vrot.lane.b32.xlu0 %v1897, 80
        %v2021 = vpop.permute.xlu0 %2020
        %2022 = vrot.lane.b32.xlu0 %v1899, 80
        %v2023 = vpop.permute.xlu0 %2022
        %2024 = vrot.lane.b32.xlu0 %v1901, 80
        %v2025 = vpop.permute.xlu0 %2024
        %2026 = vrot.lane.b32.xlu0 %v1903, 80
        %v2027 = vpop.permute.xlu0 %2026
        %2028 = vrot.lane.b32.xlu0 %v1905, 80
        %v2029 = vpop.permute.xlu0 %2028
        %2030 = vrot.lane.b32.xlu0 %v1907, 80
        %v2031 = vpop.permute.xlu0 %2030
        %2032 = vrot.lane.b32.xlu0 %v1909, 80
        %v2033 = vpop.permute.xlu0 %2032
        %2034 = vrot.lane.b32.xlu0 %v1911, 80
        %v2035 = vpop.permute.xlu0 %2034
        %2036 = vrot.lane.b32.xlu0 %v1913, 80
        %v2037 = vpop.permute.xlu0 %2036
        %2038 = vrot.lane.b32.xlu0 %v1915, 80
        %v2039 = vpop.permute.xlu0 %2038
        %2040 = vrot.lane.b32.xlu0 %v1917, 80
        %v2041 = vpop.permute.xlu0 %2040
        %2042 = vrot.lane.b32.xlu0 %v1919, 80
        %v2043 = vpop.permute.xlu0 %2042
        %2044 = vrot.lane.b32.xlu0 %v1921, 80
        %v2045 = vpop.permute.xlu0 %2044
        %2046 = vrot.lane.b32.xlu0 %v1923, 80
        %v2047 = vpop.permute.xlu0 %2046
        %2048 = vrot.lane.b32.xlu0 %v1925, 80
        %v2049 = vpop.permute.xlu0 %2048
        %2050 = vrot.lane.b32.xlu0 %v1927, 80
        %v2051 = vpop.permute.xlu0 %2050
        %2052 = vrot.lane.b32.xlu0 %v1929, 80
        %v2053 = vpop.permute.xlu0 %2052
        %2054 = vrot.lane.b32.xlu0 %v1931, 80
        %v2055 = vpop.permute.xlu0 %2054
        %2056 = vrot.lane.b32.xlu0 %v1933, 80
        %v2057 = vpop.permute.xlu0 %2056
        %2058 = vrot.lane.b32.xlu0 %v1935, 80
        %v2059 = vpop.permute.xlu0 %2058
        %2060 = vrot.lane.b32.xlu0 %v1937, 80
        %v2061 = vpop.permute.xlu0 %2060
        %2062 = vrot.lane.b32.xlu0 %v1939, 80
        %v2063 = vpop.permute.xlu0 %2062
        %2064 = vrot.lane.b32.xlu0 %v1941, 80
        %v2065 = vpop.permute.xlu0 %2064
        %2066 = vrot.lane.b32.xlu0 %v1943, 80
        %v2067 = vpop.permute.xlu0 %2066
        %2068 = vrot.lane.b32.xlu0 %v1945, 80
        %v2069 = vpop.permute.xlu0 %2068
        %2070 = vrot.lane.b32.xlu0 %v1947, 80
        %v2071 = vpop.permute.xlu0 %2070
        %2072 = vrot.lane.b32.xlu0 %v1949, 80
        %v2073 = vpop.permute.xlu0 %2072
        %2074 = vrot.lane.b32.xlu0 %v1951, 80
        %v2075 = vpop.permute.xlu0 %2074
        %2076 = vrot.lane.b32.xlu0 %v1953, 80
        %v2077 = vpop.permute.xlu0 %2076
        %2078 = vrot.lane.b32.xlu0 %v1955, 80
        %v2079 = vpop.permute.xlu0 %2078
        %2080 = vrot.lane.b32.xlu0 %v1957, 80
        %v2081 = vpop.permute.xlu0 %2080
        %2082 = vrot.lane.b32.xlu0 %v1959, 80
        %v2083 = vpop.permute.xlu0 %2082
        %2084 = vrot.lane.b32.xlu0 %v1961, 80
        %v2085 = vpop.permute.xlu0 %2084
        %2086 = vrot.lane.b32.xlu0 %v1963, 80
        %v2087 = vpop.permute.xlu0 %2086
        %2088 = vrot.lane.b32.xlu0 %v1965, 80
        %v2089 = vpop.permute.xlu0 %2088
        %2090 = vrot.lane.b32.xlu0 %v1967, 80
        %v2091 = vpop.permute.xlu0 %2090
        %2092 = vrot.lane.b32.xlu0 %v1969, 80
        %v2093 = vpop.permute.xlu0 %2092
        %2094 = vrot.lane.b32.xlu0 %v1971, 80
        %v2095 = vpop.permute.xlu0 %2094
        %2096 = vrot.lane.b32.xlu0 %v1973, 80
        %v2097 = vpop.permute.xlu0 %2096
        %2098 = vrot.lane.b32.xlu0 %v1975, 80
        %v2099 = vpop.permute.xlu0 %2098
        %2100 = vrot.lane.b32.xlu0 %v1977, 80
        %v2101 = vpop.permute.xlu0 %2100
        %2102 = vrot.lane.b32.xlu0 %v1979, 80
        %v2103 = vpop.permute.xlu0 %2102
        %2104 = vrot.lane.b32.xlu0 %v1981, 80
        %v2105 = vpop.permute.xlu0 %2104
        %2106 = vrot.lane.b32.xlu0 %v1983, 80
        %v2107 = vpop.permute.xlu0 %2106
        %2108 = vrot.lane.b32.xlu0 %v1985, 80
        %v2109 = vpop.permute.xlu0 %2108
        %2110 = vrot.lane.b32.xlu0 %v1987, 80
        %v2111 = vpop.permute.xlu0 %2110
        %2112 = vrot.lane.b32.xlu0 %v1989, 80
        %v2113 = vpop.permute.xlu0 %2112
        %2114 = vrot.lane.b32.xlu0 %v1991, 80
        %v2115 = vpop.permute.xlu0 %2114
        %2116 = vrot.lane.b32.xlu0 %v1993, 80
        %v2117 = vpop.permute.xlu0 %2116
        %2118 = vrot.lane.b32.xlu0 %v1995, 80
        %v2119 = vpop.permute.xlu0 %2118
        %2120 = vrot.lane.b32.xlu0 %v1997, 80
        %v2121 = vpop.permute.xlu0 %2120
        %2122 = vrot.lane.b32.xlu0 %v1999, 80
        %v2123 = vpop.permute.xlu0 %2122
        %2124 = vrot.lane.b32.xlu0 %v2001, 80
        %v2125 = vpop.permute.xlu0 %2124
        %2126 = vrot.lane.b32.xlu0 %v2003, 80
        %v2127 = vpop.permute.xlu0 %2126
        %2128 = vrot.lane.b32.xlu0 %v2005, 80
        %v2129 = vpop.permute.xlu0 %2128
        %2130 = vrot.lane.b32.xlu0 %v2007, 80
        %v2131 = vpop.permute.xlu0 %2130
        %2132 = vrot.lane.b32.xlu0 %v2009, 80
        %v2133 = vpop.permute.xlu0 %2132
        %2134 = vrot.lane.b32.xlu0 %v2011, 80
        %v2135 = vpop.permute.xlu0 %2134
        %2136 = vrot.lane.b32.xlu0 %v2013, 80
        %v2137 = vpop.permute.xlu0 %2136
        %2138 = vrot.lane.b32.xlu0 %v2015, 80
        %v2139 = vpop.permute.xlu0 %2138
        %2140 = vrot.lane.b32.xlu0 %v2017, 80
        %v2141 = vpop.permute.xlu0 %2140
        %2142 = vrot.lane.b32.xlu0 %v2016, 80
        %v2143 = vpop.permute.xlu0 %2142
        %v2207 = vadd.f32 %v1829, %v2019
        %v2208 = vadd.f32 %v1830, %v2021
        %v2209 = vadd.f32 %v1831, %v2023
        %v2210 = vadd.f32 %v1832, %v2025
        %v2211 = vadd.f32 %v1833, %v2027
        %v2212 = vadd.f32 %v1834, %v2029
        %v2213 = vadd.f32 %v1835, %v2031
        %v2214 = vadd.f32 %v1836, %v2033
        %v2215 = vadd.f32 %v1837, %v2035
        %v2216 = vadd.f32 %v1838, %v2037
        %v2217 = vadd.f32 %v1839, %v2039
        %v2218 = vadd.f32 %v1840, %v2041
        %v2219 = vadd.f32 %v1841, %v2043
        %v2220 = vadd.f32 %v1842, %v2045
        %v2221 = vadd.f32 %v1843, %v2047
        %v2222 = vadd.f32 %v1844, %v2049
        %v2223 = vadd.f32 %v1845, %v2051
        %v2224 = vadd.f32 %v1846, %v2053
        %v2225 = vadd.f32 %v1847, %v2055
        %v2226 = vadd.f32 %v1848, %v2057
        %v2227 = vadd.f32 %v1849, %v2059
        %v2228 = vadd.f32 %v1850, %v2061
        %v2229 = vadd.f32 %v1851, %v2063
        %v2230 = vadd.f32 %v1852, %v2065
        %v2231 = vadd.f32 %v1853, %v2067
        %v2232 = vadd.f32 %v1854, %v2069
        %v2233 = vadd.f32 %v1855, %v2071
        %v2234 = vadd.f32 %v1856, %v2073
        %v2235 = vadd.f32 %v1857, %v2075
        %v2236 = vadd.f32 %v1858, %v2077
        %v2237 = vadd.f32 %v1859, %v2079
        %v2238 = vadd.f32 %v1860, %v2081
        %v2239 = vadd.f32 %v1861, %v2083
        %v2240 = vadd.f32 %v1862, %v2085
        %v2241 = vadd.f32 %v1863, %v2087
        %v2242 = vadd.f32 %v1864, %v2089
        %v2243 = vadd.f32 %v1865, %v2091
        %v2244 = vadd.f32 %v1866, %v2093
        %v2245 = vadd.f32 %v1867, %v2095
        %v2246 = vadd.f32 %v1868, %v2097
        %v2247 = vadd.f32 %v1869, %v2099
        %v2248 = vadd.f32 %v1870, %v2101
        %v2249 = vadd.f32 %v1871, %v2103
        %v2250 = vadd.f32 %v1872, %v2105
        %v2251 = vadd.f32 %v1873, %v2107
        %v2252 = vadd.f32 %v1874, %v2109
        %v2253 = vadd.f32 %v1875, %v2111
        %v2254 = vadd.f32 %v1876, %v2113
        %v2255 = vadd.f32 %v1877, %v2115
        %v2256 = vadd.f32 %v1878, %v2117
        %v2257 = vadd.f32 %v1879, %v2119
        %v2258 = vadd.f32 %v1880, %v2121
        %v2259 = vadd.f32 %v1881, %v2123
        %v2260 = vadd.f32 %v1882, %v2125
        %v2261 = vadd.f32 %v1883, %v2127
        %v2262 = vadd.f32 %v1884, %v2129
        %v2263 = vadd.f32 %v1885, %v2131
        %v2264 = vadd.f32 %v1886, %v2133
        %v2265 = vadd.f32 %v1887, %v2135
        %v2266 = vadd.f32 %v1888, %v2137
        %v2267 = vadd.f32 %v1889, %v2139
        %v2268 = vadd.f32 %v1890, %v2141
        %v2269 = vadd.f32 %v1891, %v2143
        %v2270 = vld [vmem:[%s2] sm:$0x1]
        %v2272 = vlaneseq
        %v2273 = vshrl.u32 %v2272, 7
        %v2274 = vsub.s32 0, %v2273
        %v2275 = vrot.slane %v2270, %v2274
        %v2277 = vadd.f32 %v2207, %v2275
        %v2278 = vadd.f32 %v2208, %v2275
        %v2279 = vadd.f32 %v2209, %v2275
        %v2280 = vadd.f32 %v2210, %v2275
        %v2281 = vadd.f32 %v2211, %v2275
        %v2282 = vadd.f32 %v2212, %v2275
        %v2283 = vadd.f32 %v2213, %v2275
        %v2284 = vadd.f32 %v2214, %v2275
        %v2285 = vadd.f32 %v2215, %v2275
        %v2286 = vadd.f32 %v2216, %v2275
        %v2287 = vadd.f32 %v2217, %v2275
        %v2288 = vadd.f32 %v2218, %v2275
        %v2289 = vadd.f32 %v2219, %v2275
        %v2290 = vadd.f32 %v2220, %v2275
        %v2291 = vadd.f32 %v2221, %v2275
        %v2292 = vadd.f32 %v2222, %v2275
        %v2293 = vadd.f32 %v2223, %v2275
        %v2294 = vadd.f32 %v2224, %v2275
        %v2295 = vadd.f32 %v2225, %v2275
        %v2296 = vadd.f32 %v2226, %v2275
        %v2297 = vadd.f32 %v2227, %v2275
        %v2298 = vadd.f32 %v2228, %v2275
        %v2299 = vadd.f32 %v2229, %v2275
        %v2300 = vadd.f32 %v2230, %v2275
        %v2301 = vadd.f32 %v2231, %v2275
        %v2302 = vadd.f32 %v2232, %v2275
        %v2303 = vadd.f32 %v2233, %v2275
        %v2304 = vadd.f32 %v2234, %v2275
        %v2305 = vadd.f32 %v2235, %v2275
        %v2306 = vadd.f32 %v2236, %v2275
        %v2307 = vadd.f32 %v2237, %v2275
        %v2308 = vadd.f32 %v2238, %v2275
        %v2309 = vadd.f32 %v2239, %v2275
        %v2310 = vadd.f32 %v2240, %v2275
        %v2311 = vadd.f32 %v2241, %v2275
        %v2312 = vadd.f32 %v2242, %v2275
        %v2313 = vadd.f32 %v2243, %v2275
        %v2314 = vadd.f32 %v2244, %v2275
        %v2315 = vadd.f32 %v2245, %v2275
        %v2316 = vadd.f32 %v2246, %v2275
        %v2317 = vadd.f32 %v2247, %v2275
        %v2318 = vadd.f32 %v2248, %v2275
        %v2319 = vadd.f32 %v2249, %v2275
        %v2320 = vadd.f32 %v2250, %v2275
        %v2321 = vadd.f32 %v2251, %v2275
        %v2322 = vadd.f32 %v2252, %v2275
        %v2323 = vadd.f32 %v2253, %v2275
        %v2324 = vadd.f32 %v2254, %v2275
        %v2325 = vadd.f32 %v2255, %v2275
        %v2326 = vadd.f32 %v2256, %v2275
        %v2327 = vadd.f32 %v2257, %v2275
        %v2328 = vadd.f32 %v2258, %v2275
        %v2329 = vadd.f32 %v2259, %v2275
        %v2330 = vadd.f32 %v2260, %v2275
        %v2331 = vadd.f32 %v2261, %v2275
        %v2332 = vadd.f32 %v2262, %v2275
        %v2333 = vadd.f32 %v2263, %v2275
        %v2334 = vadd.f32 %v2264, %v2275
        %v2335 = vadd.f32 %v2265, %v2275
        %v2336 = vadd.f32 %v2266, %v2275
        %v2337 = vadd.f32 %v2267, %v2275
        %v2338 = vadd.f32 %v2268, %v2275
        %v2339 = vadd.f32 %v2269, %v2275
        %v2340 = vmax.f32 %v2277, 0.0
        %v2341 = vmax.f32 %v2278, 0.0
        %v2342 = vmax.f32 %v2279, 0.0
        %v2343 = vmax.f32 %v2280, 0.0
        %v2344 = vmax.f32 %v2281, 0.0
        %v2345 = vmax.f32 %v2282, 0.0
        %v2346 = vmax.f32 %v2283, 0.0
        %v2347 = vmax.f32 %v2284, 0.0
        %v2348 = vmax.f32 %v2285, 0.0
        %v2349 = vmax.f32 %v2286, 0.0
        %v2350 = vmax.f32 %v2287, 0.0
        %v2351 = vmax.f32 %v2288, 0.0
        %v2352 = vmax.f32 %v2289, 0.0
        %v2353 = vmax.f32 %v2290, 0.0
        %v2354 = vmax.f32 %v2291, 0.0
        %v2355 = vmax.f32 %v2292, 0.0
        %v2356 = vmax.f32 %v2293, 0.0
        %v2357 = vmax.f32 %v2294, 0.0
        %v2358 = vmax.f32 %v2295, 0.0
        %v2359 = vmax.f32 %v2296, 0.0
        %v2360 = vmax.f32 %v2297, 0.0
        %v2361 = vmax.f32 %v2298, 0.0
        %v2362 = vmax.f32 %v2299, 0.0
        %v2363 = vmax.f32 %v2300, 0.0
        %v2364 = vmax.f32 %v2301, 0.0
        %v2365 = vmax.f32 %v2302, 0.0
        %v2366 = vmax.f32 %v2303, 0.0
        %v2367 = vmax.f32 %v2304, 0.0
        %v2368 = vmax.f32 %v2305, 0.0
        %v2369 = vmax.f32 %v2306, 0.0
        %v2370 = vmax.f32 %v2307, 0.0
        %v2371 = vmax.f32 %v2308, 0.0
        %v2372 = vmax.f32 %v2309, 0.0
        %v2373 = vmax.f32 %v2310, 0.0
        %v2374 = vmax.f32 %v2311, 0.0
        %v2375 = vmax.f32 %v2312, 0.0
        %v2376 = vmax.f32 %v2313, 0.0
        %v2377 = vmax.f32 %v2314, 0.0
        %v2378 = vmax.f32 %v2315, 0.0
        %v2379 = vmax.f32 %v2316, 0.0
        %v2380 = vmax.f32 %v2317, 0.0
        %v2381 = vmax.f32 %v2318, 0.0
        %v2382 = vmax.f32 %v2319, 0.0
        %v2383 = vmax.f32 %v2320, 0.0
        %v2384 = vmax.f32 %v2321, 0.0
        %v2385 = vmax.f32 %v2322, 0.0
        %v2386 = vmax.f32 %v2323, 0.0
        %v2387 = vmax.f32 %v2324, 0.0
        %v2388 = vmax.f32 %v2325, 0.0
        %v2389 = vmax.f32 %v2326, 0.0
        %v2390 = vmax.f32 %v2327, 0.0
        %v2391 = vmax.f32 %v2328, 0.0
        %v2392 = vmax.f32 %v2329, 0.0
        %v2393 = vmax.f32 %v2330, 0.0
        %v2394 = vmax.f32 %v2331, 0.0
        %v2395 = vmax.f32 %v2332, 0.0
        %v2396 = vmax.f32 %v2333, 0.0
        %v2397 = vmax.f32 %v2334, 0.0
        %v2398 = vmax.f32 %v2335, 0.0
        %v2399 = vmax.f32 %v2336, 0.0
        %v2400 = vmax.f32 %v2337, 0.0
        %v2401 = vmax.f32 %v2338, 0.0
        %v2402 = vmax.f32 %v2339, 0.0
        %v2465 = vrot.slane %v2340, 1
        %v2466 = vrot.slane %v2341, 1
        %v2467 = vsel %vm1136, %v2465, %v2466
        %v2468 = vrot.slane %v2342, 1
        %v2469 = vsel %vm1136, %v2466, %v2468
        %v2470 = vrot.slane %v2343, 1
        %v2471 = vsel %vm1136, %v2468, %v2470
        %v2472 = vrot.slane %v2344, 1
        %v2473 = vsel %vm1136, %v2470, %v2472
        %v2474 = vrot.slane %v2345, 1
        %v2475 = vsel %vm1136, %v2472, %v2474
        %v2476 = vrot.slane %v2346, 1
        %v2477 = vsel %vm1136, %v2474, %v2476
        %v2478 = vrot.slane %v2347, 1
        %v2479 = vsel %vm1136, %v2476, %v2478
        %v2480 = vrot.slane %v2348, 1
        %v2481 = vsel %vm1136, %v2478, %v2480
        %v2482 = vrot.slane %v2349, 1
        %v2483 = vsel %vm1136, %v2480, %v2482
        %v2484 = vrot.slane %v2350, 1
        %v2485 = vsel %vm1136, %v2482, %v2484
        %v2486 = vrot.slane %v2351, 1
        %v2487 = vsel %vm1136, %v2484, %v2486
        %v2488 = vrot.slane %v2352, 1
        %v2489 = vsel %vm1136, %v2486, %v2488
        %v2490 = vrot.slane %v2353, 1
        %v2491 = vsel %vm1136, %v2488, %v2490
        %v2492 = vrot.slane %v2354, 1
        %v2493 = vsel %vm1136, %v2490, %v2492
        %v2494 = vrot.slane %v2355, 1
        %v2495 = vsel %vm1136, %v2492, %v2494
        %v2496 = vrot.slane %v2356, 1
        %v2497 = vsel %vm1136, %v2494, %v2496
        %v2498 = vrot.slane %v2357, 1
        %v2499 = vsel %vm1136, %v2496, %v2498
        %v2500 = vrot.slane %v2358, 1
        %v2501 = vsel %vm1136, %v2498, %v2500
        %v2502 = vrot.slane %v2359, 1
        %v2503 = vsel %vm1136, %v2500, %v2502
        %v2504 = vrot.slane %v2360, 1
        %v2505 = vsel %vm1136, %v2502, %v2504
        %v2506 = vrot.slane %v2361, 1
        %v2507 = vsel %vm1136, %v2504, %v2506
        %v2508 = vrot.slane %v2362, 1
        %v2509 = vsel %vm1136, %v2506, %v2508
        %v2510 = vrot.slane %v2363, 1
        %v2511 = vsel %vm1136, %v2508, %v2510
        %v2512 = vrot.slane %v2364, 1
        %v2513 = vsel %vm1136, %v2510, %v2512
        %v2514 = vrot.slane %v2365, 1
        %v2515 = vsel %vm1136, %v2512, %v2514
        %v2516 = vrot.slane %v2366, 1
        %v2517 = vsel %vm1136, %v2514, %v2516
        %v2518 = vrot.slane %v2367, 1
        %v2519 = vsel %vm1136, %v2516, %v2518
        %v2520 = vrot.slane %v2368, 1
        %v2521 = vsel %vm1136, %v2518, %v2520
        %v2522 = vrot.slane %v2369, 1
        %v2523 = vsel %vm1136, %v2520, %v2522
        %v2524 = vrot.slane %v2370, 1
        %v2525 = vsel %vm1136, %v2522, %v2524
        %v2526 = vrot.slane %v2371, 1
        %v2527 = vsel %vm1136, %v2524, %v2526
        %v2528 = vrot.slane %v2372, 1
        %v2529 = vsel %vm1136, %v2526, %v2528
        %v2530 = vrot.slane %v2373, 1
        %v2531 = vsel %vm1136, %v2528, %v2530
        %v2532 = vrot.slane %v2374, 1
        %v2533 = vsel %vm1136, %v2530, %v2532
        %v2534 = vrot.slane %v2375, 1
        %v2535 = vsel %vm1136, %v2532, %v2534
        %v2536 = vrot.slane %v2376, 1
        %v2537 = vsel %vm1136, %v2534, %v2536
        %v2538 = vrot.slane %v2377, 1
        %v2539 = vsel %vm1136, %v2536, %v2538
        %v2540 = vrot.slane %v2378, 1
        %v2541 = vsel %vm1136, %v2538, %v2540
        %v2542 = vrot.slane %v2379, 1
        %v2543 = vsel %vm1136, %v2540, %v2542
        %v2544 = vrot.slane %v2380, 1
        %v2545 = vsel %vm1136, %v2542, %v2544
        %v2546 = vrot.slane %v2381, 1
        %v2547 = vsel %vm1136, %v2544, %v2546
        %v2548 = vrot.slane %v2382, 1
        %v2549 = vsel %vm1136, %v2546, %v2548
        %v2550 = vrot.slane %v2383, 1
        %v2551 = vsel %vm1136, %v2548, %v2550
        %v2552 = vrot.slane %v2384, 1
        %v2553 = vsel %vm1136, %v2550, %v2552
        %v2554 = vrot.slane %v2385, 1
        %v2555 = vsel %vm1136, %v2552, %v2554
        %v2556 = vrot.slane %v2386, 1
        %v2557 = vsel %vm1136, %v2554, %v2556
        %v2558 = vrot.slane %v2387, 1
        %v2559 = vsel %vm1136, %v2556, %v2558
        %v2560 = vrot.slane %v2388, 1
        %v2561 = vsel %vm1136, %v2558, %v2560
        %v2562 = vrot.slane %v2389, 1
        %v2563 = vsel %vm1136, %v2560, %v2562
        %v2564 = vrot.slane %v2390, 1
        %v2565 = vsel %vm1136, %v2562, %v2564
        %v2566 = vrot.slane %v2391, 1
        %v2567 = vsel %vm1136, %v2564, %v2566
        %v2568 = vrot.slane %v2392, 1
        %v2569 = vsel %vm1136, %v2566, %v2568
        %v2570 = vrot.slane %v2393, 1
        %v2571 = vsel %vm1136, %v2568, %v2570
        %v2572 = vrot.slane %v2394, 1
        %v2573 = vsel %vm1136, %v2570, %v2572
        %v2574 = vrot.slane %v2395, 1
        %v2575 = vsel %vm1136, %v2572, %v2574
        %v2576 = vrot.slane %v2396, 1
        %v2577 = vsel %vm1136, %v2574, %v2576
        %v2578 = vrot.slane %v2397, 1
        %v2579 = vsel %vm1136, %v2576, %v2578
        %v2580 = vrot.slane %v2398, 1
        %v2581 = vsel %vm1136, %v2578, %v2580
        %v2582 = vrot.slane %v2399, 1
        %v2583 = vsel %vm1136, %v2580, %v2582
        %v2584 = vrot.slane %v2400, 1
        %v2585 = vsel %vm1136, %v2582, %v2584
        %v2586 = vrot.slane %v2401, 1
        %v2587 = vsel %vm1136, %v2584, %v2586
        %v2650 = vmax.f32 %v2340, %v2467
        %v2651 = vmax.f32 %v2341, %v2469
        %v2652 = vmax.f32 %v2342, %v2471
        %v2653 = vmax.f32 %v2343, %v2473
        %v2654 = vmax.f32 %v2344, %v2475
        %v2655 = vmax.f32 %v2345, %v2477
        %v2656 = vmax.f32 %v2346, %v2479
        %v2657 = vmax.f32 %v2347, %v2481
        %v2658 = vmax.f32 %v2348, %v2483
        %v2659 = vmax.f32 %v2349, %v2485
        %v2660 = vmax.f32 %v2350, %v2487
        %v2661 = vmax.f32 %v2351, %v2489
        %v2662 = vmax.f32 %v2352, %v2491
        %v2663 = vmax.f32 %v2353, %v2493
        %v2664 = vmax.f32 %v2354, %v2495
        %v2665 = vmax.f32 %v2355, %v2497
        %v2666 = vmax.f32 %v2356, %v2499
        %v2667 = vmax.f32 %v2357, %v2501
        %v2668 = vmax.f32 %v2358, %v2503
        %v2669 = vmax.f32 %v2359, %v2505
        %v2670 = vmax.f32 %v2360, %v2507
        %v2671 = vmax.f32 %v2361, %v2509
        %v2672 = vmax.f32 %v2362, %v2511
        %v2673 = vmax.f32 %v2363, %v2513
        %v2674 = vmax.f32 %v2364, %v2515
        %v2675 = vmax.f32 %v2365, %v2517
        %v2676 = vmax.f32 %v2366, %v2519
        %v2677 = vmax.f32 %v2367, %v2521
        %v2678 = vmax.f32 %v2368, %v2523
        %v2679 = vmax.f32 %v2369, %v2525
        %v2680 = vmax.f32 %v2370, %v2527
        %v2681 = vmax.f32 %v2371, %v2529
        %v2682 = vmax.f32 %v2372, %v2531
        %v2683 = vmax.f32 %v2373, %v2533
        %v2684 = vmax.f32 %v2374, %v2535
        %v2685 = vmax.f32 %v2375, %v2537
        %v2686 = vmax.f32 %v2376, %v2539
        %v2687 = vmax.f32 %v2377, %v2541
        %v2688 = vmax.f32 %v2378, %v2543
        %v2689 = vmax.f32 %v2379, %v2545
        %v2690 = vmax.f32 %v2380, %v2547
        %v2691 = vmax.f32 %v2381, %v2549
        %v2692 = vmax.f32 %v2382, %v2551
        %v2693 = vmax.f32 %v2383, %v2553
        %v2694 = vmax.f32 %v2384, %v2555
        %v2695 = vmax.f32 %v2385, %v2557
        %v2696 = vmax.f32 %v2386, %v2559
        %v2697 = vmax.f32 %v2387, %v2561
        %v2698 = vmax.f32 %v2388, %v2563
        %v2699 = vmax.f32 %v2389, %v2565
        %v2700 = vmax.f32 %v2390, %v2567
        %v2701 = vmax.f32 %v2391, %v2569
        %v2702 = vmax.f32 %v2392, %v2571
        %v2703 = vmax.f32 %v2393, %v2573
        %v2704 = vmax.f32 %v2394, %v2575
        %v2705 = vmax.f32 %v2395, %v2577
        %v2706 = vmax.f32 %v2396, %v2579
        %v2707 = vmax.f32 %v2397, %v2581
        %v2708 = vmax.f32 %v2398, %v2583
        %v2709 = vmax.f32 %v2399, %v2585
        %v2710 = vmax.f32 %v2400, %v2587
        %v2711 = vmax.f32 %v2401, %v2586
        %v2712 = vrot.slane %v2340, 2
        %v2713 = vrot.slane %v2341, 2
        %v2714 = vsel %vm1514, %v2712, %v2713
        %v2715 = vrot.slane %v2342, 2
        %v2716 = vsel %vm1514, %v2713, %v2715
        %v2717 = vrot.slane %v2343, 2
        %v2718 = vsel %vm1514, %v2715, %v2717
        %v2719 = vrot.slane %v2344, 2
        %v2720 = vsel %vm1514, %v2717, %v2719
        %v2721 = vrot.slane %v2345, 2
        %v2722 = vsel %vm1514, %v2719, %v2721
        %v2723 = vrot.slane %v2346, 2
        %v2724 = vsel %vm1514, %v2721, %v2723
        %v2725 = vrot.slane %v2347, 2
        %v2726 = vsel %vm1514, %v2723, %v2725
        %v2727 = vrot.slane %v2348, 2
        %v2728 = vsel %vm1514, %v2725, %v2727
        %v2729 = vrot.slane %v2349, 2
        %v2730 = vsel %vm1514, %v2727, %v2729
        %v2731 = vrot.slane %v2350, 2
        %v2732 = vsel %vm1514, %v2729, %v2731
        %v2733 = vrot.slane %v2351, 2
        %v2734 = vsel %vm1514, %v2731, %v2733
        %v2735 = vrot.slane %v2352, 2
        %v2736 = vsel %vm1514, %v2733, %v2735
        %v2737 = vrot.slane %v2353, 2
        %v2738 = vsel %vm1514, %v2735, %v2737
        %v2739 = vrot.slane %v2354, 2
        %v2740 = vsel %vm1514, %v2737, %v2739
        %v2741 = vrot.slane %v2355, 2
        %v2742 = vsel %vm1514, %v2739, %v2741
        %v2743 = vrot.slane %v2356, 2
        %v2744 = vsel %vm1514, %v2741, %v2743
        %v2745 = vrot.slane %v2357, 2
        %v2746 = vsel %vm1514, %v2743, %v2745
        %v2747 = vrot.slane %v2358, 2
        %v2748 = vsel %vm1514, %v2745, %v2747
        %v2749 = vrot.slane %v2359, 2
        %v2750 = vsel %vm1514, %v2747, %v2749
        %v2751 = vrot.slane %v2360, 2
        %v2752 = vsel %vm1514, %v2749, %v2751
        %v2753 = vrot.slane %v2361, 2
        %v2754 = vsel %vm1514, %v2751, %v2753
        %v2755 = vrot.slane %v2362, 2
        %v2756 = vsel %vm1514, %v2753, %v2755
        %v2757 = vrot.slane %v2363, 2
        %v2758 = vsel %vm1514, %v2755, %v2757
        %v2759 = vrot.slane %v2364, 2
        %v2760 = vsel %vm1514, %v2757, %v2759
        %v2761 = vrot.slane %v2365, 2
        %v2762 = vsel %vm1514, %v2759, %v2761
        %v2763 = vrot.slane %v2366, 2
        %v2764 = vsel %vm1514, %v2761, %v2763
        %v2765 = vrot.slane %v2367, 2
        %v2766 = vsel %vm1514, %v2763, %v2765
        %v2767 = vrot.slane %v2368, 2
        %v2768 = vsel %vm1514, %v2765, %v2767
        %v2769 = vrot.slane %v2369, 2
        %v2770 = vsel %vm1514, %v2767, %v2769
        %v2771 = vrot.slane %v2370, 2
        %v2772 = vsel %vm1514, %v2769, %v2771
        %v2773 = vrot.slane %v2371, 2
        %v2774 = vsel %vm1514, %v2771, %v2773
        %v2775 = vrot.slane %v2372, 2
        %v2776 = vsel %vm1514, %v2773, %v2775
        %v2777 = vrot.slane %v2373, 2
        %v2778 = vsel %vm1514, %v2775, %v2777
        %v2779 = vrot.slane %v2374, 2
        %v2780 = vsel %vm1514, %v2777, %v2779
        %v2781 = vrot.slane %v2375, 2
        %v2782 = vsel %vm1514, %v2779, %v2781
        %v2783 = vrot.slane %v2376, 2
        %v2784 = vsel %vm1514, %v2781, %v2783
        %v2785 = vrot.slane %v2377, 2
        %v2786 = vsel %vm1514, %v2783, %v2785
        %v2787 = vrot.slane %v2378, 2
        %v2788 = vsel %vm1514, %v2785, %v2787
        %v2789 = vrot.slane %v2379, 2
        %v2790 = vsel %vm1514, %v2787, %v2789
        %v2791 = vrot.slane %v2380, 2
        %v2792 = vsel %vm1514, %v2789, %v2791
        %v2793 = vrot.slane %v2381, 2
        %v2794 = vsel %vm1514, %v2791, %v2793
        %v2795 = vrot.slane %v2382, 2
        %v2796 = vsel %vm1514, %v2793, %v2795
        %v2797 = vrot.slane %v2383, 2
        %v2798 = vsel %vm1514, %v2795, %v2797
        %v2799 = vrot.slane %v2384, 2
        %v2800 = vsel %vm1514, %v2797, %v2799
        %v2801 = vrot.slane %v2385, 2
        %v2802 = vsel %vm1514, %v2799, %v2801
        %v2803 = vrot.slane %v2386, 2
        %v2804 = vsel %vm1514, %v2801, %v2803
        %v2805 = vrot.slane %v2387, 2
        %v2806 = vsel %vm1514, %v2803, %v2805
        %v2807 = vrot.slane %v2388, 2
        %v2808 = vsel %vm1514, %v2805, %v2807
        %v2809 = vrot.slane %v2389, 2
        %v2810 = vsel %vm1514, %v2807, %v2809
        %v2811 = vrot.slane %v2390, 2
        %v2812 = vsel %vm1514, %v2809, %v2811
        %v2813 = vrot.slane %v2391, 2
        %v2814 = vsel %vm1514, %v2811, %v2813
        %v2815 = vrot.slane %v2392, 2
        %v2816 = vsel %vm1514, %v2813, %v2815
        %v2817 = vrot.slane %v2393, 2
        %v2818 = vsel %vm1514, %v2815, %v2817
        %v2819 = vrot.slane %v2394, 2
        %v2820 = vsel %vm1514, %v2817, %v2819
        %v2821 = vrot.slane %v2395, 2
        %v2822 = vsel %vm1514, %v2819, %v2821
        %v2823 = vrot.slane %v2396, 2
        %v2824 = vsel %vm1514, %v2821, %v2823
        %v2825 = vrot.slane %v2397, 2
        %v2826 = vsel %vm1514, %v2823, %v2825
        %v2827 = vrot.slane %v2398, 2
        %v2828 = vsel %vm1514, %v2825, %v2827
        %v2829 = vrot.slane %v2399, 2
        %v2830 = vsel %vm1514, %v2827, %v2829
        %v2831 = vrot.slane %v2400, 2
        %v2832 = vsel %vm1514, %v2829, %v2831
        %v2833 = vrot.slane %v2401, 2
        %v2834 = vsel %vm1514, %v2831, %v2833
        %v2897 = vmax.f32 %v2650, %v2714
        %v2898 = vmax.f32 %v2651, %v2716
        %v2899 = vmax.f32 %v2652, %v2718
        %v2900 = vmax.f32 %v2653, %v2720
        %v2901 = vmax.f32 %v2654, %v2722
        %v2902 = vmax.f32 %v2655, %v2724
        %v2903 = vmax.f32 %v2656, %v2726
        %v2904 = vmax.f32 %v2657, %v2728
        %v2905 = vmax.f32 %v2658, %v2730
        %v2906 = vmax.f32 %v2659, %v2732
        %v2907 = vmax.f32 %v2660, %v2734
        %v2908 = vmax.f32 %v2661, %v2736
        %v2909 = vmax.f32 %v2662, %v2738
        %v2910 = vmax.f32 %v2663, %v2740
        %v2911 = vmax.f32 %v2664, %v2742
        %v2912 = vmax.f32 %v2665, %v2744
        %v2913 = vmax.f32 %v2666, %v2746
        %v2914 = vmax.f32 %v2667, %v2748
        %v2915 = vmax.f32 %v2668, %v2750
        %v2916 = vmax.f32 %v2669, %v2752
        %v2917 = vmax.f32 %v2670, %v2754
        %v2918 = vmax.f32 %v2671, %v2756
        %v2919 = vmax.f32 %v2672, %v2758
        %v2920 = vmax.f32 %v2673, %v2760
        %v2921 = vmax.f32 %v2674, %v2762
        %v2922 = vmax.f32 %v2675, %v2764
        %v2923 = vmax.f32 %v2676, %v2766
        %v2924 = vmax.f32 %v2677, %v2768
        %v2925 = vmax.f32 %v2678, %v2770
        %v2926 = vmax.f32 %v2679, %v2772
        %v2927 = vmax.f32 %v2680, %v2774
        %v2928 = vmax.f32 %v2681, %v2776
        %v2929 = vmax.f32 %v2682, %v2778
        %v2930 = vmax.f32 %v2683, %v2780
        %v2931 = vmax.f32 %v2684, %v2782
        %v2932 = vmax.f32 %v2685, %v2784
        %v2933 = vmax.f32 %v2686, %v2786
        %v2934 = vmax.f32 %v2687, %v2788
        %v2935 = vmax.f32 %v2688, %v2790
        %v2936 = vmax.f32 %v2689, %v2792
        %v2937 = vmax.f32 %v2690, %v2794
        %v2938 = vmax.f32 %v2691, %v2796
        %v2939 = vmax.f32 %v2692, %v2798
        %v2940 = vmax.f32 %v2693, %v2800
        %v2941 = vmax.f32 %v2694, %v2802
        %v2942 = vmax.f32 %v2695, %v2804
        %v2943 = vmax.f32 %v2696, %v2806
        %v2944 = vmax.f32 %v2697, %v2808
        %v2945 = vmax.f32 %v2698, %v2810
        %v2946 = vmax.f32 %v2699, %v2812
        %v2947 = vmax.f32 %v2700, %v2814
        %v2948 = vmax.f32 %v2701, %v2816
        %v2949 = vmax.f32 %v2702, %v2818
        %v2950 = vmax.f32 %v2703, %v2820
        %v2951 = vmax.f32 %v2704, %v2822
        %v2952 = vmax.f32 %v2705, %v2824
        %v2953 = vmax.f32 %v2706, %v2826
        %v2954 = vmax.f32 %v2707, %v2828
        %v2955 = vmax.f32 %v2708, %v2830
        %v2956 = vmax.f32 %v2709, %v2832
        %v2957 = vmax.f32 %v2710, %v2834
        %v2958 = vmax.f32 %v2711, %v2833
        %v2960 = vrot.slane %v2340, 3
        %v2961 = vrot.slane %v2341, 3
        %v2962 = vsel %vm1892, %v2960, %v2961
        %v2963 = vrot.slane %v2342, 3
        %v2964 = vsel %vm1892, %v2961, %v2963
        %v2965 = vrot.slane %v2343, 3
        %v2966 = vsel %vm1892, %v2963, %v2965
        %v2967 = vrot.slane %v2344, 3
        %v2968 = vsel %vm1892, %v2965, %v2967
        %v2969 = vrot.slane %v2345, 3
        %v2970 = vsel %vm1892, %v2967, %v2969
        %v2971 = vrot.slane %v2346, 3
        %v2972 = vsel %vm1892, %v2969, %v2971
        %v2973 = vrot.slane %v2347, 3
        %v2974 = vsel %vm1892, %v2971, %v2973
        %v2975 = vrot.slane %v2348, 3
        %v2976 = vsel %vm1892, %v2973, %v2975
        %v2977 = vrot.slane %v2349, 3
        %v2978 = vsel %vm1892, %v2975, %v2977
        %v2979 = vrot.slane %v2350, 3
        %v2980 = vsel %vm1892, %v2977, %v2979
        %v2981 = vrot.slane %v2351, 3
        %v2982 = vsel %vm1892, %v2979, %v2981
        %v2983 = vrot.slane %v2352, 3
        %v2984 = vsel %vm1892, %v2981, %v2983
        %v2985 = vrot.slane %v2353, 3
        %v2986 = vsel %vm1892, %v2983, %v2985
        %v2987 = vrot.slane %v2354, 3
        %v2988 = vsel %vm1892, %v2985, %v2987
        %v2989 = vrot.slane %v2355, 3
        %v2990 = vsel %vm1892, %v2987, %v2989
        %v2991 = vrot.slane %v2356, 3
        %v2992 = vsel %vm1892, %v2989, %v2991
        %v2993 = vrot.slane %v2357, 3
        %v2994 = vsel %vm1892, %v2991, %v2993
        %v2995 = vrot.slane %v2358, 3
        %v2996 = vsel %vm1892, %v2993, %v2995
        %v2997 = vrot.slane %v2359, 3
        %v2998 = vsel %vm1892, %v2995, %v2997
        %v2999 = vrot.slane %v2360, 3
        %v3000 = vsel %vm1892, %v2997, %v2999
        %v3001 = vrot.slane %v2361, 3
        %v3002 = vsel %vm1892, %v2999, %v3001
        %v3003 = vrot.slane %v2362, 3
        %v3004 = vsel %vm1892, %v3001, %v3003
        %v3005 = vrot.slane %v2363, 3
        %v3006 = vsel %vm1892, %v3003, %v3005
        %v3007 = vrot.slane %v2364, 3
        %v3008 = vsel %vm1892, %v3005, %v3007
        %v3009 = vrot.slane %v2365, 3
        %v3010 = vsel %vm1892, %v3007, %v3009
        %v3011 = vrot.slane %v2366, 3
        %v3012 = vsel %vm1892, %v3009, %v3011
        %v3013 = vrot.slane %v2367, 3
        %v3014 = vsel %vm1892, %v3011, %v3013
        %v3015 = vrot.slane %v2368, 3
        %v3016 = vsel %vm1892, %v3013, %v3015
        %v3017 = vrot.slane %v2369, 3
        %v3018 = vsel %vm1892, %v3015, %v3017
        %v3019 = vrot.slane %v2370, 3
        %v3020 = vsel %vm1892, %v3017, %v3019
        %v3021 = vrot.slane %v2371, 3
        %v3022 = vsel %vm1892, %v3019, %v3021
        %v3023 = vrot.slane %v2372, 3
        %v3024 = vsel %vm1892, %v3021, %v3023
        %v3025 = vrot.slane %v2373, 3
        %v3026 = vsel %vm1892, %v3023, %v3025
        %v3027 = vrot.slane %v2374, 3
        %v3028 = vsel %vm1892, %v3025, %v3027
        %v3029 = vrot.slane %v2375, 3
        %v3030 = vsel %vm1892, %v3027, %v3029
        %v3031 = vrot.slane %v2376, 3
        %v3032 = vsel %vm1892, %v3029, %v3031
        %v3033 = vrot.slane %v2377, 3
        %v3034 = vsel %vm1892, %v3031, %v3033
        %v3035 = vrot.slane %v2378, 3
        %v3036 = vsel %vm1892, %v3033, %v3035
        %v3037 = vrot.slane %v2379, 3
        %v3038 = vsel %vm1892, %v3035, %v3037
        %v3039 = vrot.slane %v2380, 3
        %v3040 = vsel %vm1892, %v3037, %v3039
        %v3041 = vrot.slane %v2381, 3
        %v3042 = vsel %vm1892, %v3039, %v3041
        %v3043 = vrot.slane %v2382, 3
        %v3044 = vsel %vm1892, %v3041, %v3043
        %v3045 = vrot.slane %v2383, 3
        %v3046 = vsel %vm1892, %v3043, %v3045
        %v3047 = vrot.slane %v2384, 3
        %v3048 = vsel %vm1892, %v3045, %v3047
        %v3049 = vrot.slane %v2385, 3
        %v3050 = vsel %vm1892, %v3047, %v3049
        %v3051 = vrot.slane %v2386, 3
        %v3052 = vsel %vm1892, %v3049, %v3051
        %v3053 = vrot.slane %v2387, 3
        %v3054 = vsel %vm1892, %v3051, %v3053
        %v3055 = vrot.slane %v2388, 3
        %v3056 = vsel %vm1892, %v3053, %v3055
        %v3057 = vrot.slane %v2389, 3
        %v3058 = vsel %vm1892, %v3055, %v3057
        %v3059 = vrot.slane %v2390, 3
        %v3060 = vsel %vm1892, %v3057, %v3059
        %v3061 = vrot.slane %v2391, 3
        %v3062 = vsel %vm1892, %v3059, %v3061
        %v3063 = vrot.slane %v2392, 3
        %v3064 = vsel %vm1892, %v3061, %v3063
        %v3065 = vrot.slane %v2393, 3
        %v3066 = vsel %vm1892, %v3063, %v3065
        %v3067 = vrot.slane %v2394, 3
        %v3068 = vsel %vm1892, %v3065, %v3067
        %v3069 = vrot.slane %v2395, 3
        %v3070 = vsel %vm1892, %v3067, %v3069
        %v3071 = vrot.slane %v2396, 3
        %v3072 = vsel %vm1892, %v3069, %v3071
        %v3073 = vrot.slane %v2397, 3
        %v3074 = vsel %vm1892, %v3071, %v3073
        %v3075 = vrot.slane %v2398, 3
        %v3076 = vsel %vm1892, %v3073, %v3075
        %v3077 = vrot.slane %v2399, 3
        %v3078 = vsel %vm1892, %v3075, %v3077
        %v3079 = vrot.slane %v2400, 3
        %v3080 = vsel %vm1892, %v3077, %v3079
        %v3081 = vrot.slane %v2401, 3
        %v3082 = vsel %vm1892, %v3079, %v3081
        %v3083 = vrot.slane %v2402, 3
        %v3084 = vsel %vm1892, %v3081, %v3083
        %v3147 = vmax.f32 %v2897, %v2962
        %v3148 = vmax.f32 %v2898, %v2964
        %v3149 = vmax.f32 %v2899, %v2966
        %v3150 = vmax.f32 %v2900, %v2968
        %v3151 = vmax.f32 %v2901, %v2970
        %v3152 = vmax.f32 %v2902, %v2972
        %v3153 = vmax.f32 %v2903, %v2974
        %v3154 = vmax.f32 %v2904, %v2976
        %v3155 = vmax.f32 %v2905, %v2978
        %v3156 = vmax.f32 %v2906, %v2980
        %v3157 = vmax.f32 %v2907, %v2982
        %v3158 = vmax.f32 %v2908, %v2984
        %v3159 = vmax.f32 %v2909, %v2986
        %v3160 = vmax.f32 %v2910, %v2988
        %v3161 = vmax.f32 %v2911, %v2990
        %v3162 = vmax.f32 %v2912, %v2992
        %v3163 = vmax.f32 %v2913, %v2994
        %v3164 = vmax.f32 %v2914, %v2996
        %v3165 = vmax.f32 %v2915, %v2998
        %v3166 = vmax.f32 %v2916, %v3000
        %v3167 = vmax.f32 %v2917, %v3002
        %v3168 = vmax.f32 %v2918, %v3004
        %v3169 = vmax.f32 %v2919, %v3006
        %v3170 = vmax.f32 %v2920, %v3008
        %v3171 = vmax.f32 %v2921, %v3010
        %v3172 = vmax.f32 %v2922, %v3012
        %v3173 = vmax.f32 %v2923, %v3014
        %v3174 = vmax.f32 %v2924, %v3016
        %v3175 = vmax.f32 %v2925, %v3018
        %v3176 = vmax.f32 %v2926, %v3020
        %v3177 = vmax.f32 %v2927, %v3022
        %v3178 = vmax.f32 %v2928, %v3024
        %v3179 = vmax.f32 %v2929, %v3026
        %v3180 = vmax.f32 %v2930, %v3028
        %v3181 = vmax.f32 %v2931, %v3030
        %v3182 = vmax.f32 %v2932, %v3032
        %v3183 = vmax.f32 %v2933, %v3034
        %v3184 = vmax.f32 %v2934, %v3036
        %v3185 = vmax.f32 %v2935, %v3038
        %v3186 = vmax.f32 %v2936, %v3040
        %v3187 = vmax.f32 %v2937, %v3042
        %v3188 = vmax.f32 %v2938, %v3044
        %v3189 = vmax.f32 %v2939, %v3046
        %v3190 = vmax.f32 %v2940, %v3048
        %v3191 = vmax.f32 %v2941, %v3050
        %v3192 = vmax.f32 %v2942, %v3052
        %v3193 = vmax.f32 %v2943, %v3054
        %v3194 = vmax.f32 %v2944, %v3056
        %v3195 = vmax.f32 %v2945, %v3058
        %v3196 = vmax.f32 %v2946, %v3060
        %v3197 = vmax.f32 %v2947, %v3062
        %v3198 = vmax.f32 %v2948, %v3064
        %v3199 = vmax.f32 %v2949, %v3066
        %v3200 = vmax.f32 %v2950, %v3068
        %v3201 = vmax.f32 %v2951, %v3070
        %v3202 = vmax.f32 %v2952, %v3072
        %v3203 = vmax.f32 %v2953, %v3074
        %v3204 = vmax.f32 %v2954, %v3076
        %v3205 = vmax.f32 %v2955, %v3078
        %v3206 = vmax.f32 %v2956, %v3080
        %v3207 = vmax.f32 %v2957, %v3082
        %v3208 = vmax.f32 %v2958, %v3084
        %v3209 = vlaneseq
        %v3210 = vshrl.u32 %v3209, 7
        %v3211 = vadd.s32 %v3210, 8
        %v3212 = vadd.s32 %v3210, 16
        %v3213 = vadd.s32 %v3210, 24
        %v3214 = vadd.s32 %v3210, 32
        %v3215 = vadd.s32 %v3210, 40
        %v3216 = vadd.s32 %v3210, 48
        %v3217 = vadd.s32 %v3210, 56
        %v3218 = vadd.s32 %v3210, 64
        %v3219 = vadd.s32 %v3210, 72
        %v3220 = vadd.s32 %v3210, 80
        %v3221 = vadd.s32 %v3210, 88
        %v3222 = vadd.s32 %v3210, 96
        %v3223 = vadd.s32 %v3210, 104
        %v3224 = vadd.s32 %v3210, 112
        %v3225 = vadd.s32 %v3210, 120
        %v3226 = vlaneseq
        %v3227 = vand.u32 %v3226, 127
        %v3228 = vadd.s32 %v3227, 128
        %v3229 = vadd.s32 %v3227, 256
        %v3230 = vadd.s32 %v3227, 384
        %v3231 = vmul.u32 %v3210, 4
        %v3232 = vmul.u32 %v3211, 4
        %v3233 = vmul.u32 %v3212, 4
        %v3234 = vmul.u32 %v3213, 4
        %v3235 = vmul.u32 %v3214, 4
        %v3236 = vmul.u32 %v3215, 4
        %v3237 = vmul.u32 %v3216, 4
        %v3238 = vmul.u32 %v3217, 4
        %v3239 = vmul.u32 %v3218, 4
        %v3240 = vmul.u32 %v3219, 4
        %v3241 = vmul.u32 %v3220, 4
        %v3242 = vmul.u32 %v3221, 4
        %v3243 = vmul.u32 %v3222, 4
        %v3244 = vmul.u32 %v3223, 4
        %v3245 = vmul.u32 %v3224, 4
        %v3246 = vmul.u32 %v3225, 4
        %vm3247 = vcmp.eq.s32.totalorder %v3227, %v3231
        %vm3248 = vcmp.eq.s32.totalorder %v3228, %v3231
        %vm3249 = vcmp.eq.s32.totalorder %v3229, %v3231
        %vm3250 = vcmp.eq.s32.totalorder %v3230, %v3231
        %vm3251 = vcmp.eq.s32.totalorder %v3227, %v3232
        %vm3252 = vcmp.eq.s32.totalorder %v3228, %v3232
        %vm3253 = vcmp.eq.s32.totalorder %v3229, %v3232
        %vm3254 = vcmp.eq.s32.totalorder %v3230, %v3232
        %vm3255 = vcmp.eq.s32.totalorder %v3227, %v3233
        %vm3256 = vcmp.eq.s32.totalorder %v3228, %v3233
        %vm3257 = vcmp.eq.s32.totalorder %v3229, %v3233
        %vm3258 = vcmp.eq.s32.totalorder %v3230, %v3233
        %vm3259 = vcmp.eq.s32.totalorder %v3227, %v3234
        %vm3260 = vcmp.eq.s32.totalorder %v3228, %v3234
        %vm3261 = vcmp.eq.s32.totalorder %v3229, %v3234
        %vm3262 = vcmp.eq.s32.totalorder %v3230, %v3234
        %vm3263 = vcmp.eq.s32.totalorder %v3227, %v3235
        %vm3264 = vcmp.eq.s32.totalorder %v3228, %v3235
        %vm3265 = vcmp.eq.s32.totalorder %v3229, %v3235
        %vm3266 = vcmp.eq.s32.totalorder %v3230, %v3235
        %vm3267 = vcmp.eq.s32.totalorder %v3227, %v3236
        %vm3268 = vcmp.eq.s32.totalorder %v3228, %v3236
        %vm3269 = vcmp.eq.s32.totalorder %v3229, %v3236
        %vm3270 = vcmp.eq.s32.totalorder %v3230, %v3236
        %vm3271 = vcmp.eq.s32.totalorder %v3227, %v3237
        %vm3272 = vcmp.eq.s32.totalorder %v3228, %v3237
        %vm3273 = vcmp.eq.s32.totalorder %v3229, %v3237
        %vm3274 = vcmp.eq.s32.totalorder %v3230, %v3237
        %vm3275 = vcmp.eq.s32.totalorder %v3227, %v3238
        %vm3276 = vcmp.eq.s32.totalorder %v3228, %v3238
        %vm3277 = vcmp.eq.s32.totalorder %v3229, %v3238
        %vm3278 = vcmp.eq.s32.totalorder %v3230, %v3238
        %vm3279 = vcmp.eq.s32.totalorder %v3227, %v3239
        %vm3280 = vcmp.eq.s32.totalorder %v3228, %v3239
        %vm3281 = vcmp.eq.s32.totalorder %v3229, %v3239
        %vm3282 = vcmp.eq.s32.totalorder %v3230, %v3239
        %vm3283 = vcmp.eq.s32.totalorder %v3227, %v3240
        %vm3284 = vcmp.eq.s32.totalorder %v3228, %v3240
        %vm3285 = vcmp.eq.s32.totalorder %v3229, %v3240
        %vm3286 = vcmp.eq.s32.totalorder %v3230, %v3240
        %vm3287 = vcmp.eq.s32.totalorder %v3227, %v3241
        %vm3288 = vcmp.eq.s32.totalorder %v3228, %v3241
        %vm3289 = vcmp.eq.s32.totalorder %v3229, %v3241
        %vm3290 = vcmp.eq.s32.totalorder %v3230, %v3241
        %vm3291 = vcmp.eq.s32.totalorder %v3227, %v3242
        %vm3292 = vcmp.eq.s32.totalorder %v3228, %v3242
        %vm3293 = vcmp.eq.s32.totalorder %v3229, %v3242
        %vm3294 = vcmp.eq.s32.totalorder %v3230, %v3242
        %vm3295 = vcmp.eq.s32.totalorder %v3227, %v3243
        %vm3296 = vcmp.eq.s32.totalorder %v3228, %v3243
        %vm3297 = vcmp.eq.s32.totalorder %v3229, %v3243
        %vm3298 = vcmp.eq.s32.totalorder %v3230, %v3243
        %vm3299 = vcmp.eq.s32.totalorder %v3227, %v3244
        %vm3300 = vcmp.eq.s32.totalorder %v3228, %v3244
        %vm3301 = vcmp.eq.s32.totalorder %v3229, %v3244
        %vm3302 = vcmp.eq.s32.totalorder %v3230, %v3244
        %vm3303 = vcmp.eq.s32.totalorder %v3227, %v3245
        %vm3304 = vcmp.eq.s32.totalorder %v3228, %v3245
        %vm3305 = vcmp.eq.s32.totalorder %v3229, %v3245
        %vm3306 = vcmp.eq.s32.totalorder %v3230, %v3245
        %vm3307 = vcmp.eq.s32.totalorder %v3227, %v3246
        %vm3308 = vcmp.eq.s32.totalorder %v3228, %v3246
        %vm3309 = vcmp.eq.s32.totalorder %v3229, %v3246
        %vm3310 = vcmp.eq.s32.totalorder %v3230, %v3246
        %v3311 = vsel %vm3247, 1, 0
        %v3312 = vsel %vm3248, 1, 0
        %v3313 = vsel %vm3249, 1, 0
        %v3314 = vsel %vm3250, 1, 0
        %v3315 = vsel %vm3251, 1, 0
        %v3316 = vsel %vm3252, 1, 0
        %v3317 = vsel %vm3253, 1, 0
        %v3318 = vsel %vm3254, 1, 0
        %v3319 = vsel %vm3255, 1, 0
        %v3320 = vsel %vm3256, 1, 0
        %v3321 = vsel %vm3257, 1, 0
        %v3322 = vsel %vm3258, 1, 0
        %v3323 = vsel %vm3259, 1, 0
        %v3324 = vsel %vm3260, 1, 0
        %v3325 = vsel %vm3261, 1, 0
        %v3326 = vsel %vm3262, 1, 0
        %v3327 = vsel %vm3263, 1, 0
        %v3328 = vsel %vm3264, 1, 0
        %v3329 = vsel %vm3265, 1, 0
        %v3330 = vsel %vm3266, 1, 0
        %v3331 = vsel %vm3267, 1, 0
        %v3332 = vsel %vm3268, 1, 0
        %v3333 = vsel %vm3269, 1, 0
        %v3334 = vsel %vm3270, 1, 0
        %v3335 = vsel %vm3271, 1, 0
        %v3336 = vsel %vm3272, 1, 0
        %v3337 = vsel %vm3273, 1, 0
        %v3338 = vsel %vm3274, 1, 0
        %v3339 = vsel %vm3275, 1, 0
        %v3340 = vsel %vm3276, 1, 0
        %v3341 = vsel %vm3277, 1, 0
        %v3342 = vsel %vm3278, 1, 0
        %v3343 = vsel %vm3279, 1, 0
        %v3344 = vsel %vm3280, 1, 0
        %v3345 = vsel %vm3281, 1, 0
        %v3346 = vsel %vm3282, 1, 0
        %v3347 = vsel %vm3283, 1, 0
        %v3348 = vsel %vm3284, 1, 0
        %v3349 = vsel %vm3285, 1, 0
        %v3350 = vsel %vm3286, 1, 0
        %v3351 = vsel %vm3287, 1, 0
        %v3352 = vsel %vm3288, 1, 0
        %v3353 = vsel %vm3289, 1, 0
        %v3354 = vsel %vm3290, 1, 0
        %v3355 = vsel %vm3291, 1, 0
        %v3356 = vsel %vm3292, 1, 0
        %v3357 = vsel %vm3293, 1, 0
        %v3358 = vsel %vm3294, 1, 0
        %v3359 = vsel %vm3295, 1, 0
        %v3360 = vsel %vm3296, 1, 0
        %v3361 = vsel %vm3297, 1, 0
        %v3362 = vsel %vm3298, 1, 0
        %v3363 = vsel %vm3299, 1, 0
        %v3364 = vsel %vm3300, 1, 0
        %v3365 = vsel %vm3301, 1, 0
        %v3366 = vsel %vm3302, 1, 0
        %v3367 = vsel %vm3303, 1, 0
        %v3368 = vsel %vm3304, 1, 0
        %v3369 = vsel %vm3305, 1, 0
        %v3370 = vsel %vm3306, 1, 0
        %v3371 = vsel %vm3307, 1, 0
        %v3372 = vsel %vm3308, 1, 0
        %v3373 = vsel %vm3309, 1, 0
        %v3374 = vsel %vm3310, 1, 0
        %v3375 = vcvt.s32.f32 %v3311
        %v3376 = vcvt.s32.f32 %v3312
        %v3377 = vcvt.s32.f32 %v3313
        %v3378 = vcvt.s32.f32 %v3314
        %v3379 = vcvt.s32.f32 %v3315
        %v3380 = vcvt.s32.f32 %v3316
        %v3381 = vcvt.s32.f32 %v3317
        %v3382 = vcvt.s32.f32 %v3318
        %v3383 = vcvt.s32.f32 %v3319
        %v3384 = vcvt.s32.f32 %v3320
        %v3385 = vcvt.s32.f32 %v3321
        %v3386 = vcvt.s32.f32 %v3322
        %v3387 = vcvt.s32.f32 %v3323
        %v3388 = vcvt.s32.f32 %v3324
        %v3389 = vcvt.s32.f32 %v3325
        %v3390 = vcvt.s32.f32 %v3326
        %v3391 = vcvt.s32.f32 %v3327
        %v3392 = vcvt.s32.f32 %v3328
        %v3393 = vcvt.s32.f32 %v3329
        %v3394 = vcvt.s32.f32 %v3330
        %v3395 = vcvt.s32.f32 %v3331
        %v3396 = vcvt.s32.f32 %v3332
        %v3397 = vcvt.s32.f32 %v3333
        %v3398 = vcvt.s32.f32 %v3334
        %v3399 = vcvt.s32.f32 %v3335
        %v3400 = vcvt.s32.f32 %v3336
        %v3401 = vcvt.s32.f32 %v3337
        %v3402 = vcvt.s32.f32 %v3338
        %v3403 = vcvt.s32.f32 %v3339
        %v3404 = vcvt.s32.f32 %v3340
        %v3405 = vcvt.s32.f32 %v3341
        %v3406 = vcvt.s32.f32 %v3342
        %v3407 = vcvt.s32.f32 %v3343
        %v3408 = vcvt.s32.f32 %v3344
        %v3409 = vcvt.s32.f32 %v3345
        %v3410 = vcvt.s32.f32 %v3346
        %v3411 = vcvt.s32.f32 %v3347
        %v3412 = vcvt.s32.f32 %v3348
        %v3413 = vcvt.s32.f32 %v3349
        %v3414 = vcvt.s32.f32 %v3350
        %v3415 = vcvt.s32.f32 %v3351
        %v3416 = vcvt.s32.f32 %v3352
        %v3417 = vcvt.s32.f32 %v3353
        %v3418 = vcvt.s32.f32 %v3354
        %v3419 = vcvt.s32.f32 %v3355
        %v3420 = vcvt.s32.f32 %v3356
        %v3421 = vcvt.s32.f32 %v3357
        %v3422 = vcvt.s32.f32 %v3358
        %v3423 = vcvt.s32.f32 %v3359
        %v3424 = vcvt.s32.f32 %v3360
        %v3425 = vcvt.s32.f32 %v3361
        %v3426 = vcvt.s32.f32 %v3362
        %v3427 = vcvt.s32.f32 %v3363
        %v3428 = vcvt.s32.f32 %v3364
        %v3429 = vcvt.s32.f32 %v3365
        %v3430 = vcvt.s32.f32 %v3366
        %v3431 = vcvt.s32.f32 %v3367
        %v3432 = vcvt.s32.f32 %v3368
        %v3433 = vcvt.s32.f32 %v3369
        %v3434 = vcvt.s32.f32 %v3370
        %v3435 = vcvt.s32.f32 %v3371
        %v3436 = vcvt.s32.f32 %v3372
        %v3437 = vcvt.s32.f32 %v3373
        %v3438 = vcvt.s32.f32 %v3374
        %vm3439 = vcmask 900096
        %v3441 = vsel %vm3439, %v3378, 0
        %v3444 = vsel %vm3439, %v3382, 0
        %v3447 = vsel %vm3439, %v3386, 0
        %v3450 = vsel %vm3439, %v3390, 0
        %v3453 = vsel %vm3439, %v3394, 0
        %v3456 = vsel %vm3439, %v3398, 0
        %v3459 = vsel %vm3439, %v3402, 0
        %v3462 = vsel %vm3439, %v3406, 0
        %v3465 = vsel %vm3439, %v3410, 0
        %v3468 = vsel %vm3439, %v3414, 0
        %v3471 = vsel %vm3439, %v3418, 0
        %v3474 = vsel %vm3439, %v3422, 0
        %v3477 = vsel %vm3439, %v3426, 0
        %v3480 = vsel %vm3439, %v3430, 0
        %v3483 = vsel %vm3439, %v3434, 0
        %v3486 = vsel %vm3439, %v3438, 0
        %v3489 = vsel %vm1514, %v3208, 0
        %3491 = vmatprep.subr.mxu0 0.0
        %3492 = vmatpush1.msra.mxu0 %v3162
        %3493 = vmatprep.subr.mxu0 0.0
        %3494 = vmatpush1.msra.mxu0 %v3161
        %3495 = vmatprep.subr.mxu0 0.0
        %3496 = vmatpush1.msra.mxu0 %v3160
        %3497 = vmatprep.subr.mxu0 0.0
        %3498 = vmatpush1.msra.mxu0 %v3159
        %3499 = vmatprep.subr.mxu0 0.0
        %3500 = vmatpush1.msra.mxu0 %v3158
        %3501 = vmatprep.subr.mxu0 0.0
        %3502 = vmatpush1.msra.mxu0 %v3157
        %3503 = vmatprep.subr.mxu0 0.0
        %3504 = vmatpush1.msra.mxu0 %v3156
        %3505 = vmatprep.subr.mxu0 0.0
        %3506 = vmatpush1.msra.mxu0 %v3155
        %3507 = vmatprep.subr.mxu0 0.0
        %3508 = vmatpush1.msra.mxu0 %v3154
        %3509 = vmatprep.subr.mxu0 0.0
        %3510 = vmatpush1.msra.mxu0 %v3153
        %3511 = vmatprep.subr.mxu0 0.0
        %3512 = vmatpush1.msra.mxu0 %v3152
        %3513 = vmatprep.subr.mxu0 0.0
        %3514 = vmatpush1.msra.mxu0 %v3151
        %3515 = vmatprep.subr.mxu0 0.0
        %3516 = vmatpush1.msra.mxu0 %v3150
        %3517 = vmatprep.subr.mxu0 0.0
        %3518 = vmatpush1.msra.mxu0 %v3149
        %3519 = vmatprep.subr.mxu0 0.0
        %3520 = vmatpush1.msra.mxu0 %v3148
        %3521 = vmatprep.subr.mxu0 0.0
        %3522 = vmatpush1.msra.mxu0 %v3147
        %3523 = vmatprep.subr.mxu0 0.0
        %3524 = vmatpush2.msra.mxu0 %v3178
        %3525 = vmatprep.subr.mxu0 0.0
        %3526 = vmatpush2.msra.mxu0 %v3177
        %3527 = vmatprep.subr.mxu0 0.0
        %3528 = vmatpush2.msra.mxu0 %v3176
        %3529 = vmatprep.subr.mxu0 0.0
        %3530 = vmatpush2.msra.mxu0 %v3175
        %3531 = vmatprep.subr.mxu0 0.0
        %3532 = vmatpush2.msra.mxu0 %v3174
        %3533 = vmatprep.subr.mxu0 0.0
        %3534 = vmatpush2.msra.mxu0 %v3173
        %3535 = vmatprep.subr.mxu0 0.0
        %3536 = vmatpush2.msra.mxu0 %v3172
        %3537 = vmatprep.subr.mxu0 0.0
        %3538 = vmatpush2.msra.mxu0 %v3171
        %3539 = vmatprep.subr.mxu0 0.0
        %3540 = vmatpush2.msra.mxu0 %v3170
        %3541 = vmatprep.subr.mxu0 0.0
        %3542 = vmatpush2.msra.mxu0 %v3169
        %3543 = vmatprep.subr.mxu0 0.0
        %3544 = vmatpush2.msra.mxu0 %v3168
        %3545 = vmatprep.subr.mxu0 0.0
        %3546 = vmatpush2.msra.mxu0 %v3167
        %3547 = vmatprep.subr.mxu0 0.0
        %3548 = vmatpush2.msra.mxu0 %v3166
        %3549 = vmatprep.subr.mxu0 0.0
        %3550 = vmatpush2.msra.mxu0 %v3165
        %3551 = vmatprep.subr.mxu0 0.0
        %3552 = vmatpush2.msra.mxu0 %v3164
        %3553 = vmatprep.subr.mxu0 0.0
        %3554 = vmatpush2.msra.mxu0 %v3163
        %3555 = vmatprep.mubr.f32.mxu0 %v3376
        %3556 = vmatmul.mubr.f32.gmra.mxu0 %v3375
        %v3557 = vpop.f32.mrf.mxu0
        %v3558 = vadd.f32 0.0, %v3557
        %v3559 = vpop.f32.mrf.mxu0
        %3560 = vmatprep.mubr.f32.mxu0 %v3380
        %3561 = vmatmul.mubr.f32.gmra.mxu0 %v3379
        %v3562 = vpop.f32.mrf.mxu0
        %v3563 = vadd.f32 0.0, %v3562
        %v3564 = vpop.f32.mrf.mxu0
        %3565 = vmatprep.mubr.f32.mxu0 %v3384
        %3566 = vmatmul.mubr.f32.gmra.mxu0 %v3383
        %v3567 = vpop.f32.mrf.mxu0
        %v3568 = vadd.f32 0.0, %v3567
        %v3569 = vpop.f32.mrf.mxu0
        %3570 = vmatprep.mubr.f32.mxu0 %v3388
        %3571 = vmatmul.mubr.f32.gmra.mxu0 %v3387
        %v3572 = vpop.f32.mrf.mxu0
        %v3573 = vadd.f32 0.0, %v3572
        %v3574 = vpop.f32.mrf.mxu0
        %3575 = vmatprep.mubr.f32.mxu0 %v3392
        %3576 = vmatmul.mubr.f32.gmra.mxu0 %v3391
        %v3577 = vpop.f32.mrf.mxu0
        %v3578 = vadd.f32 0.0, %v3577
        %v3579 = vpop.f32.mrf.mxu0
        %3580 = vmatprep.mubr.f32.mxu0 %v3396
        %3581 = vmatmul.mubr.f32.gmra.mxu0 %v3395
        %v3582 = vpop.f32.mrf.mxu0
        %v3583 = vadd.f32 0.0, %v3582
        %v3584 = vpop.f32.mrf.mxu0
        %3585 = vmatprep.mubr.f32.mxu0 %v3400
        %3586 = vmatmul.mubr.f32.gmra.mxu0 %v3399
        %v3587 = vpop.f32.mrf.mxu0
        %v3588 = vadd.f32 0.0, %v3587
        %v3589 = vpop.f32.mrf.mxu0
        %3590 = vmatprep.mubr.f32.mxu0 %v3404
        %3591 = vmatmul.mubr.f32.gmra.mxu0 %v3403
        %v3592 = vpop.f32.mrf.mxu0
        %v3593 = vadd.f32 0.0, %v3592
        %v3594 = vpop.f32.mrf.mxu0
        %3595 = vmatprep.mubr.f32.mxu0 %v3408
        %3596 = vmatmul.mubr.f32.gmra.mxu0 %v3407
        %v3597 = vpop.f32.mrf.mxu0
        %v3598 = vadd.f32 0.0, %v3597
        %v3599 = vpop.f32.mrf.mxu0
        %3600 = vmatprep.mubr.f32.mxu0 %v3412
        %3601 = vmatmul.mubr.f32.gmra.mxu0 %v3411
        %v3602 = vpop.f32.mrf.mxu0
        %v3603 = vadd.f32 0.0, %v3602
        %v3604 = vpop.f32.mrf.mxu0
        %3605 = vmatprep.mubr.f32.mxu0 %v3416
        %3606 = vmatmul.mubr.f32.gmra.mxu0 %v3415
        %v3607 = vpop.f32.mrf.mxu0
        %v3608 = vadd.f32 0.0, %v3607
        %v3609 = vpop.f32.mrf.mxu0
        %3610 = vmatprep.mubr.f32.mxu0 %v3420
        %3611 = vmatmul.mubr.f32.gmra.mxu0 %v3419
        %v3612 = vpop.f32.mrf.mxu0
        %v3613 = vadd.f32 0.0, %v3612
        %v3614 = vpop.f32.mrf.mxu0
        %3615 = vmatprep.mubr.f32.mxu0 %v3424
        %3616 = vmatmul.mubr.f32.gmra.mxu0 %v3423
        %v3617 = vpop.f32.mrf.mxu0
        %v3618 = vadd.f32 0.0, %v3617
        %v3619 = vpop.f32.mrf.mxu0
        %3620 = vmatprep.mubr.f32.mxu0 %v3428
        %3621 = vmatmul.mubr.f32.gmra.mxu0 %v3427
        %v3622 = vpop.f32.mrf.mxu0
        %v3623 = vadd.f32 0.0, %v3622
        %v3624 = vpop.f32.mrf.mxu0
        %3625 = vmatprep.mubr.f32.mxu0 %v3432
        %3626 = vmatmul.mubr.f32.gmra.mxu0 %v3431
        %v3627 = vpop.f32.mrf.mxu0
        %v3628 = vadd.f32 0.0, %v3627
        %v3629 = vpop.f32.mrf.mxu0
        %3630 = vmatprep.mubr.f32.mxu0 %v3436
        %3631 = vmatmul.mubr.f32.gmra.mxu0 %v3435
        %v3632 = vpop.f32.mrf.mxu0
        %v3633 = vadd.f32 0.0, %v3632
        %v3634 = vpop.f32.mrf.mxu0
        %3635 = vdwg.mxu0
        %3636 = vmatprep.subr.mxu0 0.0
        %3637 = vmatpush1.msra.mxu0 %v3194
        %3638 = vmatprep.subr.mxu0 0.0
        %3639 = vmatpush1.msra.mxu0 %v3193
        %3640 = vmatprep.subr.mxu0 0.0
        %3641 = vmatpush1.msra.mxu0 %v3192
        %3642 = vmatprep.subr.mxu0 0.0
        %3643 = vmatpush1.msra.mxu0 %v3191
        %3644 = vmatprep.subr.mxu0 0.0
        %3645 = vmatpush1.msra.mxu0 %v3190
        %3646 = vmatprep.subr.mxu0 0.0
        %3647 = vmatpush1.msra.mxu0 %v3189
        %3648 = vmatprep.subr.mxu0 0.0
        %3649 = vmatpush1.msra.mxu0 %v3188
        %3650 = vmatprep.subr.mxu0 0.0
        %3651 = vmatpush1.msra.mxu0 %v3187
        %3652 = vmatprep.subr.mxu0 0.0
        %3653 = vmatpush1.msra.mxu0 %v3186
        %3654 = vmatprep.subr.mxu0 0.0
        %3655 = vmatpush1.msra.mxu0 %v3185
        %3656 = vmatprep.subr.mxu0 0.0
        %3657 = vmatpush1.msra.mxu0 %v3184
        %3658 = vmatprep.subr.mxu0 0.0
        %3659 = vmatpush1.msra.mxu0 %v3183
        %3660 = vmatprep.subr.mxu0 0.0
        %3661 = vmatpush1.msra.mxu0 %v3182
        %3662 = vmatprep.subr.mxu0 0.0
        %3663 = vmatpush1.msra.mxu0 %v3181
        %3664 = vmatprep.subr.mxu0 0.0
        %3665 = vmatpush1.msra.mxu0 %v3180
        %3666 = vmatprep.subr.mxu0 0.0
        %3667 = vmatpush1.msra.mxu0 %v3179
        %3668 = vmatprep.subr.mxu0 0.0
        %3669 = vmatpush2.msra.mxu0 0.0
        %3670 = vmatprep.subr.mxu0 0.0
        %3671 = vmatpush2.msra.mxu0 0.0
        %3672 = vmatprep.subr.mxu0 0.0
        %3673 = vmatpush2.msra.mxu0 %v3489
        %3674 = vmatprep.subr.mxu0 0.0
        %3675 = vmatpush2.msra.mxu0 %v3207
        %3676 = vmatprep.subr.mxu0 0.0
        %3677 = vmatpush2.msra.mxu0 %v3206
        %3678 = vmatprep.subr.mxu0 0.0
        %3679 = vmatpush2.msra.mxu0 %v3205
        %3680 = vmatprep.subr.mxu0 0.0
        %3681 = vmatpush2.msra.mxu0 %v3204
        %3682 = vmatprep.subr.mxu0 0.0
        %3683 = vmatpush2.msra.mxu0 %v3203
        %3684 = vmatprep.subr.mxu0 0.0
        %3685 = vmatpush2.msra.mxu0 %v3202
        %3686 = vmatprep.subr.mxu0 0.0
        %3687 = vmatpush2.msra.mxu0 %v3201
        %3688 = vmatprep.subr.mxu0 0.0
        %3689 = vmatpush2.msra.mxu0 %v3200
        %3690 = vmatprep.subr.mxu0 0.0
        %3691 = vmatpush2.msra.mxu0 %v3199
        %3692 = vmatprep.subr.mxu0 0.0
        %3693 = vmatpush2.msra.mxu0 %v3198
        %3694 = vmatprep.subr.mxu0 0.0
        %3695 = vmatpush2.msra.mxu0 %v3197
        %3696 = vmatprep.subr.mxu0 0.0
        %3697 = vmatpush2.msra.mxu0 %v3196
        %3698 = vmatprep.subr.mxu0 0.0
        %3699 = vmatpush2.msra.mxu0 %v3195
        %3700 = vmatprep.mubr.f32.mxu0 %v3441
        %3701 = vmatmul.mubr.f32.gmra.mxu0 %v3377
        %v3702 = vpop.f32.mrf.mxu0
        %v3703 = vadd.f32 %v3558, %v3702
        %v3704 = vpop.f32.mrf.mxu0
        %3705 = vmatprep.mubr.f32.mxu0 %v3444
        %3706 = vmatmul.mubr.f32.gmra.mxu0 %v3381
        %v3707 = vpop.f32.mrf.mxu0
        %v3708 = vadd.f32 %v3563, %v3707
        %v3709 = vpop.f32.mrf.mxu0
        %3710 = vmatprep.mubr.f32.mxu0 %v3447
        %3711 = vmatmul.mubr.f32.gmra.mxu0 %v3385
        %v3712 = vpop.f32.mrf.mxu0
        %v3713 = vadd.f32 %v3568, %v3712
        %v3714 = vpop.f32.mrf.mxu0
        %3715 = vmatprep.mubr.f32.mxu0 %v3450
        %3716 = vmatmul.mubr.f32.gmra.mxu0 %v3389
        %v3717 = vpop.f32.mrf.mxu0
        %v3718 = vadd.f32 %v3573, %v3717
        %v3719 = vpop.f32.mrf.mxu0
        %3720 = vmatprep.mubr.f32.mxu0 %v3453
        %3721 = vmatmul.mubr.f32.gmra.mxu0 %v3393
        %v3722 = vpop.f32.mrf.mxu0
        %v3723 = vadd.f32 %v3578, %v3722
        %v3724 = vpop.f32.mrf.mxu0
        %3725 = vmatprep.mubr.f32.mxu0 %v3456
        %3726 = vmatmul.mubr.f32.gmra.mxu0 %v3397
        %v3727 = vpop.f32.mrf.mxu0
        %v3728 = vadd.f32 %v3583, %v3727
        %v3729 = vpop.f32.mrf.mxu0
        %3730 = vmatprep.mubr.f32.mxu0 %v3459
        %3731 = vmatmul.mubr.f32.gmra.mxu0 %v3401
        %v3732 = vpop.f32.mrf.mxu0
        %v3733 = vadd.f32 %v3588, %v3732
        %v3734 = vpop.f32.mrf.mxu0
        %3735 = vmatprep.mubr.f32.mxu0 %v3462
        %3736 = vmatmul.mubr.f32.gmra.mxu0 %v3405
        %v3737 = vpop.f32.mrf.mxu0
        %v3738 = vadd.f32 %v3593, %v3737
        %v3739 = vpop.f32.mrf.mxu0
        %3740 = vmatprep.mubr.f32.mxu0 %v3465
        %3741 = vmatmul.mubr.f32.gmra.mxu0 %v3409
        %v3742 = vpop.f32.mrf.mxu0
        %v3743 = vadd.f32 %v3598, %v3742
        %v3744 = vpop.f32.mrf.mxu0
        %3745 = vmatprep.mubr.f32.mxu0 %v3468
        %3746 = vmatmul.mubr.f32.gmra.mxu0 %v3413
        %v3747 = vpop.f32.mrf.mxu0
        %v3748 = vadd.f32 %v3603, %v3747
        %v3749 = vpop.f32.mrf.mxu0
        %3750 = vmatprep.mubr.f32.mxu0 %v3471
        %3751 = vmatmul.mubr.f32.gmra.mxu0 %v3417
        %v3752 = vpop.f32.mrf.mxu0
        %v3753 = vadd.f32 %v3608, %v3752
        %v3754 = vpop.f32.mrf.mxu0
        %3755 = vmatprep.mubr.f32.mxu0 %v3474
        %3756 = vmatmul.mubr.f32.gmra.mxu0 %v3421
        %v3757 = vpop.f32.mrf.mxu0
        %v3758 = vadd.f32 %v3613, %v3757
        %v3759 = vpop.f32.mrf.mxu0
        %3760 = vmatprep.mubr.f32.mxu0 %v3477
        %3761 = vmatmul.mubr.f32.gmra.mxu0 %v3425
        %v3762 = vpop.f32.mrf.mxu0
        %v3763 = vadd.f32 %v3618, %v3762
        %v3764 = vpop.f32.mrf.mxu0
        %3765 = vmatprep.mubr.f32.mxu0 %v3480
        %3766 = vmatmul.mubr.f32.gmra.mxu0 %v3429
        %v3767 = vpop.f32.mrf.mxu0
        %v3768 = vadd.f32 %v3623, %v3767
        %v3769 = vpop.f32.mrf.mxu0
        %3770 = vmatprep.mubr.f32.mxu0 %v3483
        %3771 = vmatmul.mubr.f32.gmra.mxu0 %v3433
        %v3772 = vpop.f32.mrf.mxu0
        %v3773 = vadd.f32 %v3628, %v3772
        %v3774 = vpop.f32.mrf.mxu0
        %3775 = vmatprep.mubr.f32.mxu0 %v3486
        %3776 = vmatmul.mubr.f32.gmra.mxu0 %v3437
        %v3777 = vpop.f32.mrf.mxu0
        %v3778 = vadd.f32 %v3633, %v3777
        %v3779 = vpop.f32.mrf.mxu0
        %3780 = vdwg.mxu0
        %v3781 = vld [vmem:[%s3] sm:$0xff]
        %v3782 = vld [vmem:[%s3 + $0x8] sm:$0xff]
        %v3783 = vld [vmem:[%s3 + $0x10] sm:$0xff]
        %v3784 = vld [vmem:[%s3 + $0x18] sm:$0xff]
        %v3785 = vld [vmem:[%s3 + $0x20] sm:$0xff]
        %v3786 = vld [vmem:[%s3 + $0x28] sm:$0xff]
        %v3787 = vld [vmem:[%s3 + $0x30] sm:$0xff]
        %v3788 = vld [vmem:[%s3 + $0x38] sm:$0xff]
        %v3789 = vld [vmem:[%s3 + $0x40] sm:$0xff]
        %v3790 = vld [vmem:[%s3 + $0x48] sm:$0xff]
        %v3791 = vld [vmem:[%s3 + $0x50] sm:$0xff]
        %v3792 = vld [vmem:[%s3 + $0x58] sm:$0xff]
        %v3793 = vld [vmem:[%s3 + $0x60] sm:$0xff]
        %v3794 = vld [vmem:[%s3 + $0x68] sm:$0xff]
        %v3795 = vld [vmem:[%s3 + $0x70] sm:$0xff]
        %v3796 = vld [vmem:[%s3 + $0x78] sm:$0xff]
        %v3797 = vld [vmem:[%s3 + $0x80] sm:$0xff]
        %v3798 = vld [vmem:[%s3 + $0x88] sm:$0xff]
        %v3799 = vld [vmem:[%s3 + $0x90] sm:$0xff]
        %v3800 = vld [vmem:[%s3 + $0x98] sm:$0xff]
        %v3801 = vld [vmem:[%s3 + $0xa0] sm:$0xff]
        %v3802 = vld [vmem:[%s3 + $0xa8] sm:$0xff]
        %v3803 = vld [vmem:[%s3 + $0xb0] sm:$0xff]
        %v3804 = vld [vmem:[%s3 + $0xb8] sm:$0xff]
        %v3805 = vld [vmem:[%s3 + $0xc0] sm:$0xff]
        %v3806 = vld [vmem:[%s3 + $0xc8] sm:$0xff]
        %v3808 = vsel %vm503, %v3703, 0
        %v3811 = vsel %vm503, %v3708, 0
        %v3814 = vsel %vm503, %v3713, 0
        %v3817 = vsel %vm503, %v3718, 0
        %v3820 = vsel %vm503, %v3723, 0
        %v3823 = vsel %vm503, %v3728, 0
        %v3826 = vsel %vm503, %v3733, 0
        %v3829 = vsel %vm503, %v3738, 0
        %v3832 = vsel %vm503, %v3743, 0
        %v3835 = vsel %vm503, %v3748, 0
        %v3838 = vsel %vm503, %v3753, 0
        %v3841 = vsel %vm503, %v3758, 0
        %v3844 = vsel %vm503, %v3763, 0
        %v3847 = vsel %vm503, %v3768, 0
        %v3850 = vsel %vm503, %v3773, 0
        %v3853 = vsel %vm503, %v3778, 0
        %3855 = vmatprep.subr.mxu0 0.0
        %3856 = vmatpush1.msra.mxu0 0.0
        %3857 = vmatprep.subr.mxu0 0.0
        %3858 = vmatpush1.msra.mxu0 0.0
        %3859 = vmatprep.subr.mxu0 0.0
        %3860 = vmatpush1.msra.mxu0 0.0
        %3861 = vmatprep.subr.mxu0 0.0
        %3862 = vmatpush1.msra.mxu0 0.0
        %3863 = vmatprep.subr.mxu0 0.0
        %3864 = vmatpush1.msra.mxu0 0.0
        %3865 = vmatprep.subr.mxu0 0.0
        %3866 = vmatpush1.msra.mxu0 0.0
        %3867 = vmatprep.subr.mxu0 0.0
        %3868 = vmatpush1.msra.mxu0 0.0
        %3869 = vmatprep.subr.mxu0 0.0
        %3870 = vmatpush1.msra.mxu0 0.0
        %3871 = vmatprep.subr.mxu0 0.0
        %3872 = vmatpush1.msra.mxu0 0.0
        %3873 = vmatprep.subr.mxu0 0.0
        %3874 = vmatpush1.msra.mxu0 0.0
        %3875 = vmatprep.subr.mxu0 0.0
        %3876 = vmatpush1.msra.mxu0 0.0
        %3877 = vmatprep.subr.mxu0 0.0
        %3878 = vmatpush1.msra.mxu0 0.0
        %3879 = vmatprep.subr.mxu0 0.0
        %3880 = vmatpush1.msra.mxu0 0.0
        %3881 = vmatprep.subr.mxu0 0.0
        %3882 = vmatpush1.msra.mxu0 0.0
        %3883 = vmatprep.subr.mxu0 %v3795
        %3884 = vmatpush1.msra.mxu0 %v3794
        %3885 = vmatprep.subr.mxu0 %v3782
        %3886 = vmatpush1.msra.mxu0 %v3781
        %3887 = vmatprep.subr.mxu0 0.0
        %3888 = vmatpush2.msra.mxu0 0.0
        %3889 = vmatprep.subr.mxu0 0.0
        %3890 = vmatpush2.msra.mxu0 0.0
        %3891 = vmatprep.subr.mxu0 0.0
        %3892 = vmatpush2.msra.mxu0 0.0
        %3893 = vmatprep.subr.mxu0 0.0
        %3894 = vmatpush2.msra.mxu0 0.0
        %3895 = vmatprep.subr.mxu0 0.0
        %3896 = vmatpush2.msra.mxu0 0.0
        %3897 = vmatprep.subr.mxu0 0.0
        %3898 = vmatpush2.msra.mxu0 0.0
        %3899 = vmatprep.subr.mxu0 0.0
        %3900 = vmatpush2.msra.mxu0 0.0
        %3901 = vmatprep.subr.mxu0 0.0
        %3902 = vmatpush2.msra.mxu0 0.0
        %3903 = vmatprep.subr.mxu0 0.0
        %3904 = vmatpush2.msra.mxu0 0.0
        %3905 = vmatprep.subr.mxu0 0.0
        %3906 = vmatpush2.msra.mxu0 0.0
        %3907 = vmatprep.subr.mxu0 0.0
        %3908 = vmatpush2.msra.mxu0 0.0
        %3909 = vmatprep.subr.mxu0 0.0
        %3910 = vmatpush2.msra.mxu0 0.0
        %3911 = vmatprep.subr.mxu0 0.0
        %3912 = vmatpush2.msra.mxu0 0.0
        %3913 = vmatprep.subr.mxu0 0.0
        %3914 = vmatpush2.msra.mxu0 0.0
        %3915 = vmatprep.subr.mxu0 0.0
        %3916 = vmatpush2.msra.mxu0 0.0
        %3917 = vmatprep.subr.mxu0 0.0
        %3918 = vmatpush2.msra.mxu0 0.0
        %3919 = vmatprep.mubr.f32.mxu0 0.0
        %3920 = vmatmul.mubr.f32.gmra.mxu0 %v3808
        %v3921 = vpop.f32.mrf.mxu0
        %v3922 = vadd.f32 0.0, %v3921
        %v3923 = vpop.f32.mrf.mxu0
        %v3924 = vadd.f32 0.0, %v3923
        %3925 = vmatprep.mubr.f32.mxu0 0.0
        %3926 = vmatmul.mubr.f32.gmra.mxu0 %v3811
        %v3927 = vpop.f32.mrf.mxu0
        %v3928 = vadd.f32 0.0, %v3927
        %v3929 = vpop.f32.mrf.mxu0
        %v3930 = vadd.f32 0.0, %v3929
        %3931 = vmatprep.mubr.f32.mxu0 0.0
        %3932 = vmatmul.mubr.f32.gmra.mxu0 %v3814
        %v3933 = vpop.f32.mrf.mxu0
        %v3934 = vadd.f32 0.0, %v3933
        %v3935 = vpop.f32.mrf.mxu0
        %v3936 = vadd.f32 0.0, %v3935
        %3937 = vmatprep.mubr.f32.mxu0 0.0
        %3938 = vmatmul.mubr.f32.gmra.mxu0 %v3817
        %v3939 = vpop.f32.mrf.mxu0
        %v3940 = vadd.f32 0.0, %v3939
        %v3941 = vpop.f32.mrf.mxu0
        %v3942 = vadd.f32 0.0, %v3941
        %3943 = vmatprep.mubr.f32.mxu0 0.0
        %3944 = vmatmul.mubr.f32.gmra.mxu0 %v3820
        %v3945 = vpop.f32.mrf.mxu0
        %v3946 = vadd.f32 0.0, %v3945
        %v3947 = vpop.f32.mrf.mxu0
        %v3948 = vadd.f32 0.0, %v3947
        %3949 = vmatprep.mubr.f32.mxu0 0.0
        %3950 = vmatmul.mubr.f32.gmra.mxu0 %v3823
        %v3951 = vpop.f32.mrf.mxu0
        %v3952 = vadd.f32 0.0, %v3951
        %v3953 = vpop.f32.mrf.mxu0
        %v3954 = vadd.f32 0.0, %v3953
        %3955 = vmatprep.mubr.f32.mxu0 0.0
        %3956 = vmatmul.mubr.f32.gmra.mxu0 %v3826
        %v3957 = vpop.f32.mrf.mxu0
        %v3958 = vadd.f32 0.0, %v3957
        %v3959 = vpop.f32.mrf.mxu0
        %v3960 = vadd.f32 0.0, %v3959
        %3961 = vmatprep.mubr.f32.mxu0 0.0
        %3962 = vmatmul.mubr.f32.gmra.mxu0 %v3829
        %v3963 = vpop.f32.mrf.mxu0
        %v3964 = vadd.f32 0.0, %v3963
        %v3965 = vpop.f32.mrf.mxu0
        %v3966 = vadd.f32 0.0, %v3965
        %3967 = vmatprep.mubr.f32.mxu0 0.0
        %3968 = vmatmul.mubr.f32.gmra.mxu0 %v3832
        %v3969 = vpop.f32.mrf.mxu0
        %v3970 = vadd.f32 0.0, %v3969
        %v3971 = vpop.f32.mrf.mxu0
        %v3972 = vadd.f32 0.0, %v3971
        %3973 = vmatprep.mubr.f32.mxu0 0.0
        %3974 = vmatmul.mubr.f32.gmra.mxu0 %v3835
        %v3975 = vpop.f32.mrf.mxu0
        %v3976 = vadd.f32 0.0, %v3975
        %v3977 = vpop.f32.mrf.mxu0
        %v3978 = vadd.f32 0.0, %v3977
        %3979 = vmatprep.mubr.f32.mxu0 0.0
        %3980 = vmatmul.mubr.f32.gmra.mxu0 %v3838
        %v3981 = vpop.f32.mrf.mxu0
        %v3982 = vpop.f32.mrf.mxu0
        %v3983 = vadd.f32 0.0, %v3982
        %3984 = vmatprep.mubr.f32.mxu0 0.0
        %3985 = vmatmul.mubr.f32.gmra.mxu0 %v3841
        %v3986 = vpop.f32.mrf.mxu0
        %v3987 = vpop.f32.mrf.mxu0
        %3988 = vmatprep.mubr.f32.mxu0 0.0
        %3989 = vmatmul.mubr.f32.gmra.mxu0 %v3844
        %v3990 = vpop.f32.mrf.mxu0
        %v3991 = vpop.f32.mrf.mxu0
        %3992 = vmatprep.mubr.f32.mxu0 0.0
        %3993 = vmatmul.mubr.f32.gmra.mxu0 %v3847
        %v3994 = vpop.f32.mrf.mxu0
        %v3995 = vpop.f32.mrf.mxu0
        %3996 = vmatprep.mubr.f32.mxu0 0.0
        %3997 = vmatmul.mubr.f32.gmra.mxu0 %v3850
        %v3998 = vpop.f32.mrf.mxu0
        %v3999 = vpop.f32.mrf.mxu0
        %4000 = vmatprep.mubr.f32.mxu0 0.0
        %4001 = vmatmul.mubr.f32.gmra.mxu0 %v3853
        %v4002 = vpop.f32.mrf.mxu0
        %v4003 = vpop.f32.mrf.mxu0
        %4004 = vdwg.mxu0
        %4005 = vmatprep.subr.mxu0 0.0
        %4006 = vmatpush1.msra.mxu0 0.0
        %4007 = vmatprep.subr.mxu0 0.0
        %4008 = vmatpush1.msra.mxu0 0.0
        %4009 = vmatprep.subr.mxu0 0.0
        %4010 = vmatpush1.msra.mxu0 0.0
        %4011 = vmatprep.subr.mxu0 0.0
        %4012 = vmatpush1.msra.mxu0 0.0
        %4013 = vmatprep.subr.mxu0 0.0
        %4014 = vmatpush1.msra.mxu0 0.0
        %4015 = vmatprep.subr.mxu0 0.0
        %4016 = vmatpush1.msra.mxu0 0.0
        %4017 = vmatprep.subr.mxu0 0.0
        %4018 = vmatpush1.msra.mxu0 0.0
        %4019 = vmatprep.subr.mxu0 0.0
        %4020 = vmatpush1.msra.mxu0 0.0
        %4021 = vmatprep.subr.mxu0 0.0
        %4022 = vmatpush1.msra.mxu0 0.0
        %4023 = vmatprep.subr.mxu0 0.0
        %4024 = vmatpush1.msra.mxu0 0.0
        %4025 = vmatprep.subr.mxu0 0.0
        %4026 = vmatpush1.msra.mxu0 0.0
        %4027 = vmatprep.subr.mxu0 0.0
        %4028 = vmatpush1.msra.mxu0 0.0
        %4029 = vmatprep.subr.mxu0 0.0
        %4030 = vmatpush1.msra.mxu0 0.0
        %4031 = vmatprep.subr.mxu0 0.0
        %4032 = vmatpush1.msra.mxu0 0.0
        %4033 = vmatprep.subr.mxu0 %v3797
        %4034 = vmatpush1.msra.mxu0 %v3796
        %4035 = vmatprep.subr.mxu0 %v3784
        %4036 = vmatpush1.msra.mxu0 %v3783
        %4037 = vmatprep.subr.mxu0 0.0
        %4038 = vmatpush2.msra.mxu0 0.0
        %4039 = vmatprep.subr.mxu0 0.0
        %4040 = vmatpush2.msra.mxu0 0.0
        %4041 = vmatprep.subr.mxu0 0.0
        %4042 = vmatpush2.msra.mxu0 0.0
        %4043 = vmatprep.subr.mxu0 0.0
        %4044 = vmatpush2.msra.mxu0 0.0
        %4045 = vmatprep.subr.mxu0 0.0
        %4046 = vmatpush2.msra.mxu0 0.0
        %4047 = vmatprep.subr.mxu0 0.0
        %4048 = vmatpush2.msra.mxu0 0.0
        %4049 = vmatprep.subr.mxu0 0.0
        %4050 = vmatpush2.msra.mxu0 0.0
        %4051 = vmatprep.subr.mxu0 0.0
        %4052 = vmatpush2.msra.mxu0 0.0
        %4053 = vmatprep.subr.mxu0 0.0
        %4054 = vmatpush2.msra.mxu0 0.0
        %4055 = vmatprep.subr.mxu0 0.0
        %4056 = vmatpush2.msra.mxu0 0.0
        %4057 = vmatprep.subr.mxu0 0.0
        %4058 = vmatpush2.msra.mxu0 0.0
        %4059 = vmatprep.subr.mxu0 0.0
        %4060 = vmatpush2.msra.mxu0 0.0
        %4061 = vmatprep.subr.mxu0 0.0
        %4062 = vmatpush2.msra.mxu0 0.0
        %4063 = vmatprep.subr.mxu0 0.0
        %4064 = vmatpush2.msra.mxu0 0.0
        %4065 = vmatprep.subr.mxu0 0.0
        %4066 = vmatpush2.msra.mxu0 0.0
        %4067 = vmatprep.subr.mxu0 0.0
        %4068 = vmatpush2.msra.mxu0 0.0
        %4069 = vmatprep.mubr.f32.mxu0 0.0
        %4070 = vmatmul.mubr.f32.gmra.mxu0 %v3808
        %v4071 = vpop.f32.mrf.mxu0
        %v4072 = vpop.f32.mrf.mxu0
        %4073 = vmatprep.mubr.f32.mxu0 0.0
        %4074 = vmatmul.mubr.f32.gmra.mxu0 %v3811
        %v4075 = vpop.f32.mrf.mxu0
        %v4076 = vadd.f32 0.0, %v4075
        %v4077 = vpop.f32.mrf.mxu0
        %v4078 = vadd.f32 0.0, %v4077
        %4079 = vmatprep.mubr.f32.mxu0 0.0
        %4080 = vmatmul.mubr.f32.gmra.mxu0 %v3814
        %v4081 = vpop.f32.mrf.mxu0
        %v4082 = vadd.f32 0.0, %v4081
        %v4083 = vpop.f32.mrf.mxu0
        %v4084 = vadd.f32 0.0, %v4083
        %4085 = vmatprep.mubr.f32.mxu0 0.0
        %4086 = vmatmul.mubr.f32.gmra.mxu0 %v3817
        %v4087 = vpop.f32.mrf.mxu0
        %v4088 = vadd.f32 0.0, %v4087
        %v4089 = vpop.f32.mrf.mxu0
        %v4090 = vadd.f32 0.0, %v4089
        %4091 = vmatprep.mubr.f32.mxu0 0.0
        %4092 = vmatmul.mubr.f32.gmra.mxu0 %v3820
        %v4093 = vpop.f32.mrf.mxu0
        %v4094 = vadd.f32 0.0, %v4093
        %v4095 = vpop.f32.mrf.mxu0
        %v4096 = vadd.f32 0.0, %v4095
        %4097 = vmatprep.mubr.f32.mxu0 0.0
        %4098 = vmatmul.mubr.f32.gmra.mxu0 %v3823
        %v4099 = vpop.f32.mrf.mxu0
        %v4100 = vadd.f32 0.0, %v4099
        %v4101 = vpop.f32.mrf.mxu0
        %v4102 = vadd.f32 0.0, %v4101
        %4103 = vmatprep.mubr.f32.mxu0 0.0
        %4104 = vmatmul.mubr.f32.gmra.mxu0 %v3826
        %v4105 = vpop.f32.mrf.mxu0
        %v4106 = vadd.f32 0.0, %v4105
        %v4107 = vpop.f32.mrf.mxu0
        %v4108 = vadd.f32 0.0, %v4107
        %4109 = vmatprep.mubr.f32.mxu0 0.0
        %4110 = vmatmul.mubr.f32.gmra.mxu0 %v3829
        %v4111 = vpop.f32.mrf.mxu0
        %v4112 = vadd.f32 0.0, %v4111
        %v4113 = vpop.f32.mrf.mxu0
        %v4114 = vadd.f32 0.0, %v4113
        %4115 = vmatprep.mubr.f32.mxu0 0.0
        %4116 = vmatmul.mubr.f32.gmra.mxu0 %v3832
        %v4117 = vpop.f32.mrf.mxu0
        %v4118 = vadd.f32 0.0, %v4117
        %v4119 = vpop.f32.mrf.mxu0
        %v4120 = vadd.f32 0.0, %v4119
        %4121 = vmatprep.mubr.f32.mxu0 0.0
        %4122 = vmatmul.mubr.f32.gmra.mxu0 %v3835
        %v4123 = vpop.f32.mrf.mxu0
        %v4124 = vadd.f32 0.0, %v4123
        %v4125 = vpop.f32.mrf.mxu0
        %v4126 = vadd.f32 0.0, %v4125
        %4127 = vmatprep.mubr.f32.mxu0 0.0
        %4128 = vmatmul.mubr.f32.gmra.mxu0 %v3838
        %v4129 = vpop.f32.mrf.mxu0
        %v4130 = vadd.f32 0.0, %v4129
        %v4131 = vpop.f32.mrf.mxu0
        %v4132 = vadd.f32 0.0, %v4131
        %4133 = vmatprep.mubr.f32.mxu0 0.0
        %4134 = vmatmul.mubr.f32.gmra.mxu0 %v3841
        %v4135 = vpop.f32.mrf.mxu0
        %v4136 = vpop.f32.mrf.mxu0
        %v4137 = vadd.f32 0.0, %v4136
        %4138 = vmatprep.mubr.f32.mxu0 0.0
        %4139 = vmatmul.mubr.f32.gmra.mxu0 %v3844
        %v4140 = vpop.f32.mrf.mxu0
        %v4141 = vpop.f32.mrf.mxu0
        %4142 = vmatprep.mubr.f32.mxu0 0.0
        %4143 = vmatmul.mubr.f32.gmra.mxu0 %v3847
        %v4144 = vpop.f32.mrf.mxu0
        %v4145 = vpop.f32.mrf.mxu0
        %4146 = vmatprep.mubr.f32.mxu0 0.0
        %4147 = vmatmul.mubr.f32.gmra.mxu0 %v3850
        %v4148 = vpop.f32.mrf.mxu0
        %v4149 = vpop.f32.mrf.mxu0
        %4150 = vmatprep.mubr.f32.mxu0 0.0
        %4151 = vmatmul.mubr.f32.gmra.mxu0 %v3853
        %v4152 = vpop.f32.mrf.mxu0
        %v4153 = vpop.f32.mrf.mxu0
        %4154 = vdwg.mxu0
        %4155 = vmatprep.subr.mxu0 0.0
        %4156 = vmatpush1.msra.mxu0 0.0
        %4157 = vmatprep.subr.mxu0 0.0
        %4158 = vmatpush1.msra.mxu0 0.0
        %4159 = vmatprep.subr.mxu0 0.0
        %4160 = vmatpush1.msra.mxu0 0.0
        %4161 = vmatprep.subr.mxu0 0.0
        %4162 = vmatpush1.msra.mxu0 0.0
        %4163 = vmatprep.subr.mxu0 0.0
        %4164 = vmatpush1.msra.mxu0 0.0
        %4165 = vmatprep.subr.mxu0 0.0
        %4166 = vmatpush1.msra.mxu0 0.0
        %4167 = vmatprep.subr.mxu0 0.0
        %4168 = vmatpush1.msra.mxu0 0.0
        %4169 = vmatprep.subr.mxu0 0.0
        %4170 = vmatpush1.msra.mxu0 0.0
        %4171 = vmatprep.subr.mxu0 0.0
        %4172 = vmatpush1.msra.mxu0 0.0
        %4173 = vmatprep.subr.mxu0 0.0
        %4174 = vmatpush1.msra.mxu0 0.0
        %4175 = vmatprep.subr.mxu0 0.0
        %4176 = vmatpush1.msra.mxu0 0.0
        %4177 = vmatprep.subr.mxu0 0.0
        %4178 = vmatpush1.msra.mxu0 0.0
        %4179 = vmatprep.subr.mxu0 0.0
        %4180 = vmatpush1.msra.mxu0 0.0
        %4181 = vmatprep.subr.mxu0 0.0
        %4182 = vmatpush1.msra.mxu0 0.0
        %4183 = vmatprep.subr.mxu0 %v3799
        %4184 = vmatpush1.msra.mxu0 %v3798
        %4185 = vmatprep.subr.mxu0 %v3786
        %4186 = vmatpush1.msra.mxu0 %v3785
        %4187 = vmatprep.subr.mxu0 0.0
        %4188 = vmatpush2.msra.mxu0 0.0
        %4189 = vmatprep.subr.mxu0 0.0
        %4190 = vmatpush2.msra.mxu0 0.0
        %4191 = vmatprep.subr.mxu0 0.0
        %4192 = vmatpush2.msra.mxu0 0.0
        %4193 = vmatprep.subr.mxu0 0.0
        %4194 = vmatpush2.msra.mxu0 0.0
        %4195 = vmatprep.subr.mxu0 0.0
        %4196 = vmatpush2.msra.mxu0 0.0
        %4197 = vmatprep.subr.mxu0 0.0
        %4198 = vmatpush2.msra.mxu0 0.0
        %4199 = vmatprep.subr.mxu0 0.0
        %4200 = vmatpush2.msra.mxu0 0.0
        %4201 = vmatprep.subr.mxu0 0.0
        %4202 = vmatpush2.msra.mxu0 0.0
        %4203 = vmatprep.subr.mxu0 0.0
        %4204 = vmatpush2.msra.mxu0 0.0
        %4205 = vmatprep.subr.mxu0 0.0
        %4206 = vmatpush2.msra.mxu0 0.0
        %4207 = vmatprep.subr.mxu0 0.0
        %4208 = vmatpush2.msra.mxu0 0.0
        %4209 = vmatprep.subr.mxu0 0.0
        %4210 = vmatpush2.msra.mxu0 0.0
        %4211 = vmatprep.subr.mxu0 0.0
        %4212 = vmatpush2.msra.mxu0 0.0
        %4213 = vmatprep.subr.mxu0 0.0
        %4214 = vmatpush2.msra.mxu0 0.0
        %4215 = vmatprep.subr.mxu0 0.0
        %4216 = vmatpush2.msra.mxu0 0.0
        %4217 = vmatprep.subr.mxu0 0.0
        %4218 = vmatpush2.msra.mxu0 0.0
        %4219 = vmatprep.mubr.f32.mxu0 0.0
        %4220 = vmatmul.mubr.f32.gmra.mxu0 %v3808
        %v4221 = vpop.f32.mrf.mxu0
        %v4222 = vpop.f32.mrf.mxu0
        %4223 = vmatprep.mubr.f32.mxu0 0.0
        %4224 = vmatmul.mubr.f32.gmra.mxu0 %v3811
        %v4225 = vpop.f32.mrf.mxu0
        %v4226 = vpop.f32.mrf.mxu0
        %4227 = vmatprep.mubr.f32.mxu0 0.0
        %4228 = vmatmul.mubr.f32.gmra.mxu0 %v3814
        %v4229 = vpop.f32.mrf.mxu0
        %v4230 = vadd.f32 0.0, %v4229
        %v4231 = vpop.f32.mrf.mxu0
        %v4232 = vadd.f32 0.0, %v4231
        %4233 = vmatprep.mubr.f32.mxu0 0.0
        %4234 = vmatmul.mubr.f32.gmra.mxu0 %v3817
        %v4235 = vpop.f32.mrf.mxu0
        %v4236 = vadd.f32 0.0, %v4235
        %v4237 = vpop.f32.mrf.mxu0
        %v4238 = vadd.f32 0.0, %v4237
        %4239 = vmatprep.mubr.f32.mxu0 0.0
        %4240 = vmatmul.mubr.f32.gmra.mxu0 %v3820
        %v4241 = vpop.f32.mrf.mxu0
        %v4242 = vadd.f32 0.0, %v4241
        %v4243 = vpop.f32.mrf.mxu0
        %v4244 = vadd.f32 0.0, %v4243
        %4245 = vmatprep.mubr.f32.mxu0 0.0
        %4246 = vmatmul.mubr.f32.gmra.mxu0 %v3823
        %v4247 = vpop.f32.mrf.mxu0
        %v4248 = vadd.f32 0.0, %v4247
        %v4249 = vpop.f32.mrf.mxu0
        %v4250 = vadd.f32 0.0, %v4249
        %4251 = vmatprep.mubr.f32.mxu0 0.0
        %4252 = vmatmul.mubr.f32.gmra.mxu0 %v3826
        %v4253 = vpop.f32.mrf.mxu0
        %v4254 = vadd.f32 0.0, %v4253
        %v4255 = vpop.f32.mrf.mxu0
        %v4256 = vadd.f32 0.0, %v4255
        %4257 = vmatprep.mubr.f32.mxu0 0.0
        %4258 = vmatmul.mubr.f32.gmra.mxu0 %v3829
        %v4259 = vpop.f32.mrf.mxu0
        %v4260 = vadd.f32 0.0, %v4259
        %v4261 = vpop.f32.mrf.mxu0
        %v4262 = vadd.f32 0.0, %v4261
        %4263 = vmatprep.mubr.f32.mxu0 0.0
        %4264 = vmatmul.mubr.f32.gmra.mxu0 %v3832
        %v4265 = vpop.f32.mrf.mxu0
        %v4266 = vadd.f32 0.0, %v4265
        %v4267 = vpop.f32.mrf.mxu0
        %v4268 = vadd.f32 0.0, %v4267
        %4269 = vmatprep.mubr.f32.mxu0 0.0
        %4270 = vmatmul.mubr.f32.gmra.mxu0 %v3835
        %v4271 = vpop.f32.mrf.mxu0
        %v4272 = vadd.f32 0.0, %v4271
        %v4273 = vpop.f32.mrf.mxu0
        %v4274 = vadd.f32 0.0, %v4273
        %4275 = vmatprep.mubr.f32.mxu0 0.0
        %4276 = vmatmul.mubr.f32.gmra.mxu0 %v3838
        %v4277 = vpop.f32.mrf.mxu0
        %v4278 = vadd.f32 0.0, %v4277
        %v4279 = vpop.f32.mrf.mxu0
        %v4280 = vadd.f32 0.0, %v4279
        %4281 = vmatprep.mubr.f32.mxu0 0.0
        %4282 = vmatmul.mubr.f32.gmra.mxu0 %v3841
        %v4283 = vpop.f32.mrf.mxu0
        %v4284 = vadd.f32 0.0, %v4283
        %v4285 = vpop.f32.mrf.mxu0
        %v4286 = vadd.f32 0.0, %v4285
        %4287 = vmatprep.mubr.f32.mxu0 0.0
        %4288 = vmatmul.mubr.f32.gmra.mxu0 %v3844
        %v4289 = vpop.f32.mrf.mxu0
        %v4290 = vpop.f32.mrf.mxu0
        %v4291 = vadd.f32 0.0, %v4290
        %4292 = vmatprep.mubr.f32.mxu0 0.0
        %4293 = vmatmul.mubr.f32.gmra.mxu0 %v3847
        %v4294 = vpop.f32.mrf.mxu0
        %v4295 = vpop.f32.mrf.mxu0
        %4296 = vmatprep.mubr.f32.mxu0 0.0
        %4297 = vmatmul.mubr.f32.gmra.mxu0 %v3850
        %v4298 = vpop.f32.mrf.mxu0
        %v4299 = vpop.f32.mrf.mxu0
        %4300 = vmatprep.mubr.f32.mxu0 0.0
        %4301 = vmatmul.mubr.f32.gmra.mxu0 %v3853
        %v4302 = vpop.f32.mrf.mxu0
        %v4303 = vpop.f32.mrf.mxu0
        %4304 = vdwg.mxu0
        %4305 = vmatprep.subr.mxu0 0.0
        %4306 = vmatpush1.msra.mxu0 0.0
        %4307 = vmatprep.subr.mxu0 0.0
        %4308 = vmatpush1.msra.mxu0 0.0
        %4309 = vmatprep.subr.mxu0 0.0
        %4310 = vmatpush1.msra.mxu0 0.0
        %4311 = vmatprep.subr.mxu0 0.0
        %4312 = vmatpush1.msra.mxu0 0.0
        %4313 = vmatprep.subr.mxu0 0.0
        %4314 = vmatpush1.msra.mxu0 0.0
        %4315 = vmatprep.subr.mxu0 0.0
        %4316 = vmatpush1.msra.mxu0 0.0
        %4317 = vmatprep.subr.mxu0 0.0
        %4318 = vmatpush1.msra.mxu0 0.0
        %4319 = vmatprep.subr.mxu0 0.0
        %4320 = vmatpush1.msra.mxu0 0.0
        %4321 = vmatprep.subr.mxu0 0.0
        %4322 = vmatpush1.msra.mxu0 0.0
        %4323 = vmatprep.subr.mxu0 0.0
        %4324 = vmatpush1.msra.mxu0 0.0
        %4325 = vmatprep.subr.mxu0 0.0
        %4326 = vmatpush1.msra.mxu0 0.0
        %4327 = vmatprep.subr.mxu0 0.0
        %4328 = vmatpush1.msra.mxu0 0.0
        %4329 = vmatprep.subr.mxu0 0.0
        %4330 = vmatpush1.msra.mxu0 0.0
        %4331 = vmatprep.subr.mxu0 0.0
        %4332 = vmatpush1.msra.mxu0 0.0
        %4333 = vmatprep.subr.mxu0 %v3801
        %4334 = vmatpush1.msra.mxu0 %v3800
        %4335 = vmatprep.subr.mxu0 %v3788
        %4336 = vmatpush1.msra.mxu0 %v3787
        %4337 = vmatprep.subr.mxu0 0.0
        %4338 = vmatpush2.msra.mxu0 0.0
        %4339 = vmatprep.subr.mxu0 0.0
        %4340 = vmatpush2.msra.mxu0 0.0
        %4341 = vmatprep.subr.mxu0 0.0
        %4342 = vmatpush2.msra.mxu0 0.0
        %4343 = vmatprep.subr.mxu0 0.0
        %4344 = vmatpush2.msra.mxu0 0.0
        %4345 = vmatprep.subr.mxu0 0.0
        %4346 = vmatpush2.msra.mxu0 0.0
        %4347 = vmatprep.subr.mxu0 0.0
        %4348 = vmatpush2.msra.mxu0 0.0
        %4349 = vmatprep.subr.mxu0 0.0
        %4350 = vmatpush2.msra.mxu0 0.0
        %4351 = vmatprep.subr.mxu0 0.0
        %4352 = vmatpush2.msra.mxu0 0.0
        %4353 = vmatprep.subr.mxu0 0.0
        %4354 = vmatpush2.msra.mxu0 0.0
        %4355 = vmatprep.subr.mxu0 0.0
        %4356 = vmatpush2.msra.mxu0 0.0
        %4357 = vmatprep.subr.mxu0 0.0
        %4358 = vmatpush2.msra.mxu0 0.0
        %4359 = vmatprep.subr.mxu0 0.0
        %4360 = vmatpush2.msra.mxu0 0.0
        %4361 = vmatprep.subr.mxu0 0.0
        %4362 = vmatpush2.msra.mxu0 0.0
        %4363 = vmatprep.subr.mxu0 0.0
        %4364 = vmatpush2.msra.mxu0 0.0
        %4365 = vmatprep.subr.mxu0 0.0
        %4366 = vmatpush2.msra.mxu0 0.0
        %4367 = vmatprep.subr.mxu0 0.0
        %4368 = vmatpush2.msra.mxu0 0.0
        %4369 = vmatprep.mubr.f32.mxu0 0.0
        %4370 = vmatmul.mubr.f32.gmra.mxu0 %v3808
        %v4371 = vpop.f32.mrf.mxu0
        %v4372 = vpop.f32.mrf.mxu0
        %4373 = vmatprep.mubr.f32.mxu0 0.0
        %4374 = vmatmul.mubr.f32.gmra.mxu0 %v3811
        %v4375 = vpop.f32.mrf.mxu0
        %v4376 = vpop.f32.mrf.mxu0
        %4377 = vmatprep.mubr.f32.mxu0 0.0
        %4378 = vmatmul.mubr.f32.gmra.mxu0 %v3814
        %v4379 = vpop.f32.mrf.mxu0
        %v4380 = vpop.f32.mrf.mxu0
        %4381 = vmatprep.mubr.f32.mxu0 0.0
        %4382 = vmatmul.mubr.f32.gmra.mxu0 %v3817
        %v4383 = vpop.f32.mrf.mxu0
        %v4384 = vadd.f32 0.0, %v4383
        %v4385 = vpop.f32.mrf.mxu0
        %v4386 = vadd.f32 0.0, %v4385
        %4387 = vmatprep.mubr.f32.mxu0 0.0
        %4388 = vmatmul.mubr.f32.gmra.mxu0 %v3820
        %v4389 = vpop.f32.mrf.mxu0
        %v4390 = vadd.f32 0.0, %v4389
        %v4391 = vpop.f32.mrf.mxu0
        %v4392 = vadd.f32 0.0, %v4391
        %4393 = vmatprep.mubr.f32.mxu0 0.0
        %4394 = vmatmul.mubr.f32.gmra.mxu0 %v3823
        %v4395 = vpop.f32.mrf.mxu0
        %v4396 = vadd.f32 0.0, %v4395
        %v4397 = vpop.f32.mrf.mxu0
        %v4398 = vadd.f32 0.0, %v4397
        %4399 = vmatprep.mubr.f32.mxu0 0.0
        %4400 = vmatmul.mubr.f32.gmra.mxu0 %v3826
        %v4401 = vpop.f32.mrf.mxu0
        %v4402 = vadd.f32 0.0, %v4401
        %v4403 = vpop.f32.mrf.mxu0
        %v4404 = vadd.f32 0.0, %v4403
        %4405 = vmatprep.mubr.f32.mxu0 0.0
        %4406 = vmatmul.mubr.f32.gmra.mxu0 %v3829
        %v4407 = vpop.f32.mrf.mxu0
        %v4408 = vadd.f32 0.0, %v4407
        %v4409 = vpop.f32.mrf.mxu0
        %v4410 = vadd.f32 0.0, %v4409
        %4411 = vmatprep.mubr.f32.mxu0 0.0
        %4412 = vmatmul.mubr.f32.gmra.mxu0 %v3832
        %v4413 = vpop.f32.mrf.mxu0
        %v4414 = vadd.f32 0.0, %v4413
        %v4415 = vpop.f32.mrf.mxu0
        %v4416 = vadd.f32 0.0, %v4415
        %4417 = vmatprep.mubr.f32.mxu0 0.0
        %4418 = vmatmul.mubr.f32.gmra.mxu0 %v3835
        %v4419 = vpop.f32.mrf.mxu0
        %v4420 = vadd.f32 0.0, %v4419
        %v4421 = vpop.f32.mrf.mxu0
        %v4422 = vadd.f32 0.0, %v4421
        %4423 = vmatprep.mubr.f32.mxu0 0.0
        %4424 = vmatmul.mubr.f32.gmra.mxu0 %v3838
        %v4425 = vpop.f32.mrf.mxu0
        %v4426 = vadd.f32 0.0, %v4425
        %v4427 = vpop.f32.mrf.mxu0
        %v4428 = vadd.f32 0.0, %v4427
        %4429 = vmatprep.mubr.f32.mxu0 0.0
        %4430 = vmatmul.mubr.f32.gmra.mxu0 %v3841
        %v4431 = vpop.f32.mrf.mxu0
        %v4432 = vadd.f32 0.0, %v4431
        %v4433 = vpop.f32.mrf.mxu0
        %v4434 = vadd.f32 0.0, %v4433
        %4435 = vmatprep.mubr.f32.mxu0 0.0
        %4436 = vmatmul.mubr.f32.gmra.mxu0 %v3844
        %v4437 = vpop.f32.mrf.mxu0
        %v4438 = vadd.f32 0.0, %v4437
        %v4439 = vpop.f32.mrf.mxu0
        %v4440 = vadd.f32 0.0, %v4439
        %4441 = vmatprep.mubr.f32.mxu0 0.0
        %4442 = vmatmul.mubr.f32.gmra.mxu0 %v3847
        %v4443 = vpop.f32.mrf.mxu0
        %v4444 = vpop.f32.mrf.mxu0
        %v4445 = vadd.f32 0.0, %v4444
        %4446 = vmatprep.mubr.f32.mxu0 0.0
        %4447 = vmatmul.mubr.f32.gmra.mxu0 %v3850
        %v4448 = vpop.f32.mrf.mxu0
        %v4449 = vpop.f32.mrf.mxu0
        %4450 = vmatprep.mubr.f32.mxu0 0.0
        %4451 = vmatmul.mubr.f32.gmra.mxu0 %v3853
        %v4452 = vpop.f32.mrf.mxu0
        %v4453 = vpop.f32.mrf.mxu0
        %4454 = vdwg.mxu0
        %4455 = vmatprep.subr.mxu0 0.0
        %4456 = vmatpush1.msra.mxu0 0.0
        %4457 = vmatprep.subr.mxu0 0.0
        %4458 = vmatpush1.msra.mxu0 0.0
        %4459 = vmatprep.subr.mxu0 0.0
        %4460 = vmatpush1.msra.mxu0 0.0
        %4461 = vmatprep.subr.mxu0 0.0
        %4462 = vmatpush1.msra.mxu0 0.0
        %4463 = vmatprep.subr.mxu0 0.0
        %4464 = vmatpush1.msra.mxu0 0.0
        %4465 = vmatprep.subr.mxu0 0.0
        %4466 = vmatpush1.msra.mxu0 0.0
        %4467 = vmatprep.subr.mxu0 0.0
        %4468 = vmatpush1.msra.mxu0 0.0
        %4469 = vmatprep.subr.mxu0 0.0
        %4470 = vmatpush1.msra.mxu0 0.0
        %4471 = vmatprep.subr.mxu0 0.0
        %4472 = vmatpush1.msra.mxu0 0.0
        %4473 = vmatprep.subr.mxu0 0.0
        %4474 = vmatpush1.msra.mxu0 0.0
        %4475 = vmatprep.subr.mxu0 0.0
        %4476 = vmatpush1.msra.mxu0 0.0
        %4477 = vmatprep.subr.mxu0 0.0
        %4478 = vmatpush1.msra.mxu0 0.0
        %4479 = vmatprep.subr.mxu0 0.0
        %4480 = vmatpush1.msra.mxu0 0.0
        %4481 = vmatprep.subr.mxu0 0.0
        %4482 = vmatpush1.msra.mxu0 0.0
        %4483 = vmatprep.subr.mxu0 %v3803
        %4484 = vmatpush1.msra.mxu0 %v3802
        %4485 = vmatprep.subr.mxu0 %v3790
        %4486 = vmatpush1.msra.mxu0 %v3789
        %4487 = vmatprep.subr.mxu0 0.0
        %4488 = vmatpush2.msra.mxu0 0.0
        %4489 = vmatprep.subr.mxu0 0.0
        %4490 = vmatpush2.msra.mxu0 0.0
        %4491 = vmatprep.subr.mxu0 0.0
        %4492 = vmatpush2.msra.mxu0 0.0
        %4493 = vmatprep.subr.mxu0 0.0
        %4494 = vmatpush2.msra.mxu0 0.0
        %4495 = vmatprep.subr.mxu0 0.0
        %4496 = vmatpush2.msra.mxu0 0.0
        %4497 = vmatprep.subr.mxu0 0.0
        %4498 = vmatpush2.msra.mxu0 0.0
        %4499 = vmatprep.subr.mxu0 0.0
        %4500 = vmatpush2.msra.mxu0 0.0
        %4501 = vmatprep.subr.mxu0 0.0
        %4502 = vmatpush2.msra.mxu0 0.0
        %4503 = vmatprep.subr.mxu0 0.0
        %4504 = vmatpush2.msra.mxu0 0.0
        %4505 = vmatprep.subr.mxu0 0.0
        %4506 = vmatpush2.msra.mxu0 0.0
        %4507 = vmatprep.subr.mxu0 0.0
        %4508 = vmatpush2.msra.mxu0 0.0
        %4509 = vmatprep.subr.mxu0 0.0
        %4510 = vmatpush2.msra.mxu0 0.0
        %4511 = vmatprep.subr.mxu0 0.0
        %4512 = vmatpush2.msra.mxu0 0.0
        %4513 = vmatprep.subr.mxu0 0.0
        %4514 = vmatpush2.msra.mxu0 0.0
        %4515 = vmatprep.subr.mxu0 0.0
        %4516 = vmatpush2.msra.mxu0 0.0
        %4517 = vmatprep.subr.mxu0 0.0
        %4518 = vmatpush2.msra.mxu0 0.0
        %4519 = vmatprep.mubr.f32.mxu0 0.0
        %4520 = vmatmul.mubr.f32.gmra.mxu0 %v3808
        %v4521 = vpop.f32.mrf.mxu0
        %v4522 = vpop.f32.mrf.mxu0
        %4523 = vmatprep.mubr.f32.mxu0 0.0
        %4524 = vmatmul.mubr.f32.gmra.mxu0 %v3811
        %v4525 = vpop.f32.mrf.mxu0
        %v4526 = vpop.f32.mrf.mxu0
        %4527 = vmatprep.mubr.f32.mxu0 0.0
        %4528 = vmatmul.mubr.f32.gmra.mxu0 %v3814
        %v4529 = vpop.f32.mrf.mxu0
        %v4530 = vpop.f32.mrf.mxu0
        %4531 = vmatprep.mubr.f32.mxu0 0.0
        %4532 = vmatmul.mubr.f32.gmra.mxu0 %v3817
        %v4533 = vpop.f32.mrf.mxu0
        %v4534 = vpop.f32.mrf.mxu0
        %4535 = vmatprep.mubr.f32.mxu0 0.0
        %4536 = vmatmul.mubr.f32.gmra.mxu0 %v3820
        %v4537 = vpop.f32.mrf.mxu0
        %v4538 = vadd.f32 0.0, %v4537
        %v4539 = vpop.f32.mrf.mxu0
        %v4540 = vadd.f32 0.0, %v4539
        %4541 = vmatprep.mubr.f32.mxu0 0.0
        %4542 = vmatmul.mubr.f32.gmra.mxu0 %v3823
        %v4543 = vpop.f32.mrf.mxu0
        %v4544 = vadd.f32 0.0, %v4543
        %v4545 = vpop.f32.mrf.mxu0
        %v4546 = vadd.f32 0.0, %v4545
        %4547 = vmatprep.mubr.f32.mxu0 0.0
        %4548 = vmatmul.mubr.f32.gmra.mxu0 %v3826
        %v4549 = vpop.f32.mrf.mxu0
        %v4550 = vadd.f32 0.0, %v4549
        %v4551 = vpop.f32.mrf.mxu0
        %v4552 = vadd.f32 0.0, %v4551
        %4553 = vmatprep.mubr.f32.mxu0 0.0
        %4554 = vmatmul.mubr.f32.gmra.mxu0 %v3829
        %v4555 = vpop.f32.mrf.mxu0
        %v4556 = vadd.f32 0.0, %v4555
        %v4557 = vpop.f32.mrf.mxu0
        %v4558 = vadd.f32 0.0, %v4557
        %4559 = vmatprep.mubr.f32.mxu0 0.0
        %4560 = vmatmul.mubr.f32.gmra.mxu0 %v3832
        %v4561 = vpop.f32.mrf.mxu0
        %v4562 = vadd.f32 0.0, %v4561
        %v4563 = vpop.f32.mrf.mxu0
        %v4564 = vadd.f32 0.0, %v4563
        %4565 = vmatprep.mubr.f32.mxu0 0.0
        %4566 = vmatmul.mubr.f32.gmra.mxu0 %v3835
        %v4567 = vpop.f32.mrf.mxu0
        %v4568 = vadd.f32 0.0, %v4567
        %v4569 = vpop.f32.mrf.mxu0
        %v4570 = vadd.f32 0.0, %v4569
        %4571 = vmatprep.mubr.f32.mxu0 0.0
        %4572 = vmatmul.mubr.f32.gmra.mxu0 %v3838
        %v4573 = vpop.f32.mrf.mxu0
        %v4574 = vadd.f32 0.0, %v4573
        %v4575 = vpop.f32.mrf.mxu0
        %v4576 = vadd.f32 0.0, %v4575
        %4577 = vmatprep.mubr.f32.mxu0 0.0
        %4578 = vmatmul.mubr.f32.gmra.mxu0 %v3841
        %v4579 = vpop.f32.mrf.mxu0
        %v4580 = vadd.f32 0.0, %v4579
        %v4581 = vpop.f32.mrf.mxu0
        %v4582 = vadd.f32 0.0, %v4581
        %4583 = vmatprep.mubr.f32.mxu0 0.0
        %4584 = vmatmul.mubr.f32.gmra.mxu0 %v3844
        %v4585 = vpop.f32.mrf.mxu0
        %v4586 = vadd.f32 0.0, %v4585
        %v4587 = vpop.f32.mrf.mxu0
        %v4588 = vadd.f32 0.0, %v4587
        %4589 = vmatprep.mubr.f32.mxu0 0.0
        %4590 = vmatmul.mubr.f32.gmra.mxu0 %v3847
        %v4591 = vpop.f32.mrf.mxu0
        %v4592 = vadd.f32 0.0, %v4591
        %v4593 = vpop.f32.mrf.mxu0
        %v4594 = vadd.f32 0.0, %v4593
        %4595 = vmatprep.mubr.f32.mxu0 0.0
        %4596 = vmatmul.mubr.f32.gmra.mxu0 %v3850
        %v4597 = vpop.f32.mrf.mxu0
        %v4598 = vpop.f32.mrf.mxu0
        %v4599 = vadd.f32 0.0, %v4598
        %4600 = vmatprep.mubr.f32.mxu0 0.0
        %4601 = vmatmul.mubr.f32.gmra.mxu0 %v3853
        %v4602 = vpop.f32.mrf.mxu0
        %v4603 = vpop.f32.mrf.mxu0
        %4604 = vdwg.mxu0
        %4605 = vmatprep.subr.mxu0 0.0
        %4606 = vmatpush1.msra.mxu0 0.0
        %4607 = vmatprep.subr.mxu0 0.0
        %4608 = vmatpush1.msra.mxu0 0.0
        %4609 = vmatprep.subr.mxu0 0.0
        %4610 = vmatpush1.msra.mxu0 0.0
        %4611 = vmatprep.subr.mxu0 0.0
        %4612 = vmatpush1.msra.mxu0 0.0
        %4613 = vmatprep.subr.mxu0 0.0
        %4614 = vmatpush1.msra.mxu0 0.0
        %4615 = vmatprep.subr.mxu0 0.0
        %4616 = vmatpush1.msra.mxu0 0.0
        %4617 = vmatprep.subr.mxu0 0.0
        %4618 = vmatpush1.msra.mxu0 0.0
        %4619 = vmatprep.subr.mxu0 0.0
        %4620 = vmatpush1.msra.mxu0 0.0
        %4621 = vmatprep.subr.mxu0 0.0
        %4622 = vmatpush1.msra.mxu0 0.0
        %4623 = vmatprep.subr.mxu0 0.0
        %4624 = vmatpush1.msra.mxu0 0.0
        %4625 = vmatprep.subr.mxu0 0.0
        %4626 = vmatpush1.msra.mxu0 0.0
        %4627 = vmatprep.subr.mxu0 0.0
        %4628 = vmatpush1.msra.mxu0 0.0
        %4629 = vmatprep.subr.mxu0 0.0
        %4630 = vmatpush1.msra.mxu0 0.0
        %4631 = vmatprep.subr.mxu0 0.0
        %4632 = vmatpush1.msra.mxu0 0.0
        %4633 = vmatprep.subr.mxu0 %v3805
        %4634 = vmatpush1.msra.mxu0 %v3804
        %4635 = vmatprep.subr.mxu0 %v3792
        %4636 = vmatpush1.msra.mxu0 %v3791
        %4637 = vmatprep.subr.mxu0 0.0
        %4638 = vmatpush2.msra.mxu0 0.0
        %4639 = vmatprep.subr.mxu0 0.0
        %4640 = vmatpush2.msra.mxu0 0.0
        %4641 = vmatprep.subr.mxu0 0.0
        %4642 = vmatpush2.msra.mxu0 0.0
        %4643 = vmatprep.subr.mxu0 0.0
        %4644 = vmatpush2.msra.mxu0 0.0
        %4645 = vmatprep.subr.mxu0 0.0
        %4646 = vmatpush2.msra.mxu0 0.0
        %4647 = vmatprep.subr.mxu0 0.0
        %4648 = vmatpush2.msra.mxu0 0.0
        %4649 = vmatprep.subr.mxu0 0.0
        %4650 = vmatpush2.msra.mxu0 0.0
        %4651 = vmatprep.subr.mxu0 0.0
        %4652 = vmatpush2.msra.mxu0 0.0
        %4653 = vmatprep.subr.mxu0 0.0
        %4654 = vmatpush2.msra.mxu0 0.0
        %4655 = vmatprep.subr.mxu0 0.0
        %4656 = vmatpush2.msra.mxu0 0.0
        %4657 = vmatprep.subr.mxu0 0.0
        %4658 = vmatpush2.msra.mxu0 0.0
        %4659 = vmatprep.subr.mxu0 0.0
        %4660 = vmatpush2.msra.mxu0 0.0
        %4661 = vmatprep.subr.mxu0 0.0
        %4662 = vmatpush2.msra.mxu0 0.0
        %4663 = vmatprep.subr.mxu0 0.0
        %4664 = vmatpush2.msra.mxu0 0.0
        %4665 = vmatprep.subr.mxu0 0.0
        %4666 = vmatpush2.msra.mxu0 0.0
        %4667 = vmatprep.subr.mxu0 0.0
        %4668 = vmatpush2.msra.mxu0 0.0
        %4669 = vmatprep.mubr.f32.mxu0 0.0
        %4670 = vmatmul.mubr.f32.gmra.mxu0 %v3808
        %v4671 = vpop.f32.mrf.mxu0
        %v4672 = vpop.f32.mrf.mxu0
        %4673 = vmatprep.mubr.f32.mxu0 0.0
        %4674 = vmatmul.mubr.f32.gmra.mxu0 %v3811
        %v4675 = vpop.f32.mrf.mxu0
        %v4676 = vpop.f32.mrf.mxu0
        %4677 = vmatprep.mubr.f32.mxu0 0.0
        %4678 = vmatmul.mubr.f32.gmra.mxu0 %v3814
        %v4679 = vpop.f32.mrf.mxu0
        %v4680 = vpop.f32.mrf.mxu0
        %4681 = vmatprep.mubr.f32.mxu0 0.0
        %4682 = vmatmul.mubr.f32.gmra.mxu0 %v3817
        %v4683 = vpop.f32.mrf.mxu0
        %v4684 = vpop.f32.mrf.mxu0
        %4685 = vmatprep.mubr.f32.mxu0 0.0
        %4686 = vmatmul.mubr.f32.gmra.mxu0 %v3820
        %v4687 = vpop.f32.mrf.mxu0
        %v4688 = vpop.f32.mrf.mxu0
        %4689 = vmatprep.mubr.f32.mxu0 0.0
        %4690 = vmatmul.mubr.f32.gmra.mxu0 %v3823
        %v4691 = vpop.f32.mrf.mxu0
        %v4692 = vadd.f32 0.0, %v4691
        %v4693 = vpop.f32.mrf.mxu0
        %v4694 = vadd.f32 0.0, %v4693
        %4695 = vmatprep.mubr.f32.mxu0 0.0
        %4696 = vmatmul.mubr.f32.gmra.mxu0 %v3826
        %v4697 = vpop.f32.mrf.mxu0
        %v4698 = vadd.f32 0.0, %v4697
        %v4699 = vpop.f32.mrf.mxu0
        %v4700 = vadd.f32 0.0, %v4699
        %4701 = vmatprep.mubr.f32.mxu0 0.0
        %4702 = vmatmul.mubr.f32.gmra.mxu0 %v3829
        %v4703 = vpop.f32.mrf.mxu0
        %v4704 = vadd.f32 0.0, %v4703
        %v4705 = vpop.f32.mrf.mxu0
        %v4706 = vadd.f32 0.0, %v4705
        %4707 = vmatprep.mubr.f32.mxu0 0.0
        %4708 = vmatmul.mubr.f32.gmra.mxu0 %v3832
        %v4709 = vpop.f32.mrf.mxu0
        %v4710 = vadd.f32 0.0, %v4709
        %v4711 = vpop.f32.mrf.mxu0
        %v4712 = vadd.f32 0.0, %v4711
        %4713 = vmatprep.mubr.f32.mxu0 0.0
        %4714 = vmatmul.mubr.f32.gmra.mxu0 %v3835
        %v4715 = vpop.f32.mrf.mxu0
        %v4716 = vadd.f32 0.0, %v4715
        %v4717 = vpop.f32.mrf.mxu0
        %v4718 = vadd.f32 0.0, %v4717
        %4719 = vmatprep.mubr.f32.mxu0 0.0
        %4720 = vmatmul.mubr.f32.gmra.mxu0 %v3838
        %v4721 = vpop.f32.mrf.mxu0
        %v4722 = vadd.f32 0.0, %v4721
        %v4723 = vpop.f32.mrf.mxu0
        %v4724 = vadd.f32 0.0, %v4723
        %4725 = vmatprep.mubr.f32.mxu0 0.0
        %4726 = vmatmul.mubr.f32.gmra.mxu0 %v3841
        %v4727 = vpop.f32.mrf.mxu0
        %v4728 = vadd.f32 0.0, %v4727
        %v4729 = vpop.f32.mrf.mxu0
        %v4730 = vadd.f32 0.0, %v4729
        %4731 = vmatprep.mubr.f32.mxu0 0.0
        %4732 = vmatmul.mubr.f32.gmra.mxu0 %v3844
        %v4733 = vpop.f32.mrf.mxu0
        %v4734 = vadd.f32 0.0, %v4733
        %v4735 = vpop.f32.mrf.mxu0
        %v4736 = vadd.f32 0.0, %v4735
        %4737 = vmatprep.mubr.f32.mxu0 0.0
        %4738 = vmatmul.mubr.f32.gmra.mxu0 %v3847
        %v4739 = vpop.f32.mrf.mxu0
        %v4740 = vadd.f32 0.0, %v4739
        %v4741 = vpop.f32.mrf.mxu0
        %v4742 = vadd.f32 0.0, %v4741
        %4743 = vmatprep.mubr.f32.mxu0 0.0
        %4744 = vmatmul.mubr.f32.gmra.mxu0 %v3850
        %v4745 = vpop.f32.mrf.mxu0
        %v4746 = vadd.f32 0.0, %v4745
        %v4747 = vpop.f32.mrf.mxu0
        %v4748 = vadd.f32 0.0, %v4747
        %4749 = vmatprep.mubr.f32.mxu0 0.0
        %4750 = vmatmul.mubr.f32.gmra.mxu0 %v3853
        %v4751 = vpop.f32.mrf.mxu0
        %v4752 = vpop.f32.mrf.mxu0
        %v4753 = vadd.f32 0.0, %v4752
        %4754 = vdwg.mxu0
        %4755 = vmatprep.subr.mxu0 0.0
        %4756 = vmatpush1.msra.mxu0 0.0
        %4757 = vmatprep.subr.mxu0 0.0
        %4758 = vmatpush1.msra.mxu0 0.0
        %4759 = vmatprep.subr.mxu0 0.0
        %4760 = vmatpush1.msra.mxu0 0.0
        %4761 = vmatprep.subr.mxu0 0.0
        %4762 = vmatpush1.msra.mxu0 0.0
        %4763 = vmatprep.subr.mxu0 0.0
        %4764 = vmatpush1.msra.mxu0 0.0
        %4765 = vmatprep.subr.mxu0 0.0
        %4766 = vmatpush1.msra.mxu0 0.0
        %4767 = vmatprep.subr.mxu0 0.0
        %4768 = vmatpush1.msra.mxu0 0.0
        %4769 = vmatprep.subr.mxu0 0.0
        %4770 = vmatpush1.msra.mxu0 0.0
        %4771 = vmatprep.subr.mxu0 0.0
        %4772 = vmatpush1.msra.mxu0 0.0
        %4773 = vmatprep.subr.mxu0 0.0
        %4774 = vmatpush1.msra.mxu0 0.0
        %4775 = vmatprep.subr.mxu0 0.0
        %4776 = vmatpush1.msra.mxu0 0.0
        %4777 = vmatprep.subr.mxu0 0.0
        %4778 = vmatpush1.msra.mxu0 0.0
        %4779 = vmatprep.subr.mxu0 0.0
        %4780 = vmatpush1.msra.mxu0 0.0
        %4781 = vmatprep.subr.mxu0 0.0
        %4782 = vmatpush1.msra.mxu0 0.0
        %4783 = vmatprep.subr.mxu0 0.0
        %4784 = vmatpush1.msra.mxu0 %v3806
        %4785 = vmatprep.subr.mxu0 0.0
        %4786 = vmatpush1.msra.mxu0 %v3793
        %4787 = vmatprep.subr.mxu0 0.0
        %4788 = vmatpush2.msra.mxu0 0.0
        %4789 = vmatprep.subr.mxu0 0.0
        %4790 = vmatpush2.msra.mxu0 0.0
        %4791 = vmatprep.subr.mxu0 0.0
        %4792 = vmatpush2.msra.mxu0 0.0
        %4793 = vmatprep.subr.mxu0 0.0
        %4794 = vmatpush2.msra.mxu0 0.0
        %4795 = vmatprep.subr.mxu0 0.0
        %4796 = vmatpush2.msra.mxu0 0.0
        %4797 = vmatprep.subr.mxu0 0.0
        %4798 = vmatpush2.msra.mxu0 0.0
        %4799 = vmatprep.subr.mxu0 0.0
        %4800 = vmatpush2.msra.mxu0 0.0
        %4801 = vmatprep.subr.mxu0 0.0
        %4802 = vmatpush2.msra.mxu0 0.0
        %4803 = vmatprep.subr.mxu0 0.0
        %4804 = vmatpush2.msra.mxu0 0.0
        %4805 = vmatprep.subr.mxu0 0.0
        %4806 = vmatpush2.msra.mxu0 0.0
        %4807 = vmatprep.subr.mxu0 0.0
        %4808 = vmatpush2.msra.mxu0 0.0
        %4809 = vmatprep.subr.mxu0 0.0
        %4810 = vmatpush2.msra.mxu0 0.0
        %4811 = vmatprep.subr.mxu0 0.0
        %4812 = vmatpush2.msra.mxu0 0.0
        %4813 = vmatprep.subr.mxu0 0.0
        %4814 = vmatpush2.msra.mxu0 0.0
        %4815 = vmatprep.subr.mxu0 0.0
        %4816 = vmatpush2.msra.mxu0 0.0
        %4817 = vmatprep.subr.mxu0 0.0
        %4818 = vmatpush2.msra.mxu0 0.0
        %4819 = vmatprep.mubr.f32.mxu0 0.0
        %4820 = vmatmul.mubr.f32.gmra.mxu0 %v3808
        %v4821 = vpop.f32.mrf.mxu0
        %v4822 = vpop.f32.mrf.mxu0
        %4823 = vmatprep.mubr.f32.mxu0 0.0
        %4824 = vmatmul.mubr.f32.gmra.mxu0 %v3811
        %v4825 = vpop.f32.mrf.mxu0
        %v4826 = vpop.f32.mrf.mxu0
        %4827 = vmatprep.mubr.f32.mxu0 0.0
        %4828 = vmatmul.mubr.f32.gmra.mxu0 %v3814
        %v4829 = vpop.f32.mrf.mxu0
        %v4830 = vpop.f32.mrf.mxu0
        %4831 = vmatprep.mubr.f32.mxu0 0.0
        %4832 = vmatmul.mubr.f32.gmra.mxu0 %v3817
        %v4833 = vpop.f32.mrf.mxu0
        %v4834 = vpop.f32.mrf.mxu0
        %4835 = vmatprep.mubr.f32.mxu0 0.0
        %4836 = vmatmul.mubr.f32.gmra.mxu0 %v3820
        %v4837 = vpop.f32.mrf.mxu0
        %v4838 = vpop.f32.mrf.mxu0
        %4839 = vmatprep.mubr.f32.mxu0 0.0
        %4840 = vmatmul.mubr.f32.gmra.mxu0 %v3823
        %v4841 = vpop.f32.mrf.mxu0
        %v4842 = vpop.f32.mrf.mxu0
        %4843 = vmatprep.mubr.f32.mxu0 0.0
        %4844 = vmatmul.mubr.f32.gmra.mxu0 %v3826
        %v4845 = vpop.f32.mrf.mxu0
        %v4846 = vadd.f32 0.0, %v4845
        %v4847 = vpop.f32.mrf.mxu0
        %4848 = vmatprep.mubr.f32.mxu0 0.0
        %4849 = vmatmul.mubr.f32.gmra.mxu0 %v3829
        %v4850 = vpop.f32.mrf.mxu0
        %v4851 = vadd.f32 0.0, %v4850
        %v4852 = vpop.f32.mrf.mxu0
        %4853 = vmatprep.mubr.f32.mxu0 0.0
        %4854 = vmatmul.mubr.f32.gmra.mxu0 %v3832
        %v4855 = vpop.f32.mrf.mxu0
        %v4856 = vadd.f32 0.0, %v4855
        %v4857 = vpop.f32.mrf.mxu0
        %4858 = vmatprep.mubr.f32.mxu0 0.0
        %4859 = vmatmul.mubr.f32.gmra.mxu0 %v3835
        %v4860 = vpop.f32.mrf.mxu0
        %v4861 = vadd.f32 0.0, %v4860
        %v4862 = vpop.f32.mrf.mxu0
        %4863 = vmatprep.mubr.f32.mxu0 0.0
        %4864 = vmatmul.mubr.f32.gmra.mxu0 %v3838
        %v4865 = vpop.f32.mrf.mxu0
        %v4866 = vadd.f32 0.0, %v4865
        %v4867 = vpop.f32.mrf.mxu0
        %4868 = vmatprep.mubr.f32.mxu0 0.0
        %4869 = vmatmul.mubr.f32.gmra.mxu0 %v3841
        %v4870 = vpop.f32.mrf.mxu0
        %v4871 = vadd.f32 0.0, %v4870
        %v4872 = vpop.f32.mrf.mxu0
        %4873 = vmatprep.mubr.f32.mxu0 0.0
        %4874 = vmatmul.mubr.f32.gmra.mxu0 %v3844
        %v4875 = vpop.f32.mrf.mxu0
        %v4876 = vadd.f32 0.0, %v4875
        %v4877 = vpop.f32.mrf.mxu0
        %4878 = vmatprep.mubr.f32.mxu0 0.0
        %4879 = vmatmul.mubr.f32.gmra.mxu0 %v3847
        %v4880 = vpop.f32.mrf.mxu0
        %v4881 = vadd.f32 0.0, %v4880
        %v4882 = vpop.f32.mrf.mxu0
        %4883 = vmatprep.mubr.f32.mxu0 0.0
        %4884 = vmatmul.mubr.f32.gmra.mxu0 %v3850
        %v4885 = vpop.f32.mrf.mxu0
        %v4886 = vadd.f32 0.0, %v4885
        %v4887 = vpop.f32.mrf.mxu0
        %4888 = vmatprep.mubr.f32.mxu0 0.0
        %4889 = vmatmul.mubr.f32.gmra.mxu0 %v3853
        %v4890 = vpop.f32.mrf.mxu0
        %v4891 = vadd.f32 0.0, %v4890
        %v4892 = vpop.f32.mrf.mxu0
        %4893 = vdwg.mxu0
        %v4904 = vrot.slane %v3922, 1
        %v4905 = vrot.slane %v3928, 1
        %v4906 = vsel %vm1136, %v4904, %v4905
        %v4907 = vrot.slane %v3934, 1
        %v4908 = vsel %vm1136, %v4905, %v4907
        %v4909 = vrot.slane %v3940, 1
        %v4910 = vsel %vm1136, %v4907, %v4909
        %v4911 = vrot.slane %v3946, 1
        %v4912 = vsel %vm1136, %v4909, %v4911
        %v4913 = vrot.slane %v3952, 1
        %v4914 = vsel %vm1136, %v4911, %v4913
        %v4915 = vrot.slane %v3958, 1
        %v4916 = vsel %vm1136, %v4913, %v4915
        %v4917 = vrot.slane %v3964, 1
        %v4918 = vsel %vm1136, %v4915, %v4917
        %v4919 = vrot.slane %v3970, 1
        %v4920 = vsel %vm1136, %v4917, %v4919
        %v4921 = vrot.slane %v3976, 1
        %v4922 = vsel %vm1136, %v4919, %v4921
        %4923 = vrot.lane.b32.xlu0 %v4906, 96
        %v4924 = vpop.permute.xlu0 %4923
        %4925 = vrot.lane.b32.xlu0 %v4908, 96
        %v4926 = vpop.permute.xlu0 %4925
        %4927 = vrot.lane.b32.xlu0 %v4910, 96
        %v4928 = vpop.permute.xlu0 %4927
        %4929 = vrot.lane.b32.xlu0 %v4912, 96
        %v4930 = vpop.permute.xlu0 %4929
        %4931 = vrot.lane.b32.xlu0 %v4914, 96
        %v4932 = vpop.permute.xlu0 %4931
        %4933 = vrot.lane.b32.xlu0 %v4916, 96
        %v4934 = vpop.permute.xlu0 %4933
        %4935 = vrot.lane.b32.xlu0 %v4918, 96
        %v4936 = vpop.permute.xlu0 %4935
        %4937 = vrot.lane.b32.xlu0 %v4920, 96
        %v4938 = vpop.permute.xlu0 %4937
        %4939 = vrot.lane.b32.xlu0 %v4922, 96
        %v4940 = vpop.permute.xlu0 %4939
        %4941 = vrot.lane.b32.xlu0 %v4921, 96
        %v4942 = vpop.permute.xlu0 %4941
        %v4953 = vadd.f32 %v3922, %v4924
        %v4954 = vadd.f32 %v3928, %v4926
        %v4955 = vadd.f32 %v3934, %v4928
        %v4956 = vadd.f32 %v3940, %v4930
        %v4957 = vadd.f32 %v3946, %v4932
        %v4958 = vadd.f32 %v3952, %v4934
        %v4959 = vadd.f32 %v3958, %v4936
        %v4960 = vadd.f32 %v3964, %v4938
        %v4961 = vadd.f32 %v3970, %v4940
        %v4962 = vadd.f32 %v3976, %v4942
        %v4963 = vrot.slane %v3922, 2
        %v4964 = vrot.slane %v3928, 2
        %v4965 = vsel %vm1514, %v4963, %v4964
        %v4966 = vrot.slane %v3934, 2
        %v4967 = vsel %vm1514, %v4964, %v4966
        %v4968 = vrot.slane %v3940, 2
        %v4969 = vsel %vm1514, %v4966, %v4968
        %v4970 = vrot.slane %v3946, 2
        %v4971 = vsel %vm1514, %v4968, %v4970
        %v4972 = vrot.slane %v3952, 2
        %v4973 = vsel %vm1514, %v4970, %v4972
        %v4974 = vrot.slane %v3958, 2
        %v4975 = vsel %vm1514, %v4972, %v4974
        %v4976 = vrot.slane %v3964, 2
        %v4977 = vsel %vm1514, %v4974, %v4976
        %v4978 = vrot.slane %v3970, 2
        %v4979 = vsel %vm1514, %v4976, %v4978
        %v4980 = vrot.slane %v3976, 2
        %v4981 = vsel %vm1514, %v4978, %v4980
        %4982 = vrot.lane.b32.xlu0 %v4965, 64
        %v4983 = vpop.permute.xlu0 %4982
        %4984 = vrot.lane.b32.xlu0 %v4967, 64
        %v4985 = vpop.permute.xlu0 %4984
        %4986 = vrot.lane.b32.xlu0 %v4969, 64
        %v4987 = vpop.permute.xlu0 %4986
        %4988 = vrot.lane.b32.xlu0 %v4971, 64
        %v4989 = vpop.permute.xlu0 %4988
        %4990 = vrot.lane.b32.xlu0 %v4973, 64
        %v4991 = vpop.permute.xlu0 %4990
        %4992 = vrot.lane.b32.xlu0 %v4975, 64
        %v4993 = vpop.permute.xlu0 %4992
        %4994 = vrot.lane.b32.xlu0 %v4977, 64
        %v4995 = vpop.permute.xlu0 %4994
        %4996 = vrot.lane.b32.xlu0 %v4979, 64
        %v4997 = vpop.permute.xlu0 %4996
        %4998 = vrot.lane.b32.xlu0 %v4981, 64
        %v4999 = vpop.permute.xlu0 %4998
        %5000 = vrot.lane.b32.xlu0 %v4980, 64
        %v5001 = vpop.permute.xlu0 %5000
        %v5012 = vadd.f32 %v4953, %v4983
        %v5013 = vadd.f32 %v4954, %v4985
        %v5014 = vadd.f32 %v4955, %v4987
        %v5015 = vadd.f32 %v4956, %v4989
        %v5016 = vadd.f32 %v4957, %v4991
        %v5017 = vadd.f32 %v4958, %v4993
        %v5018 = vadd.f32 %v4959, %v4995
        %v5019 = vadd.f32 %v4960, %v4997
        %v5020 = vadd.f32 %v4961, %v4999
        %v5021 = vadd.f32 %v4962, %v5001
        %v5022 = vrot.slane %v3922, 3
        %v5023 = vrot.slane %v3928, 3
        %v5024 = vsel %vm1892, %v5022, %v5023
        %v5025 = vrot.slane %v3934, 3
        %v5026 = vsel %vm1892, %v5023, %v5025
        %v5027 = vrot.slane %v3940, 3
        %v5028 = vsel %vm1892, %v5025, %v5027
        %v5029 = vrot.slane %v3946, 3
        %v5030 = vsel %vm1892, %v5027, %v5029
        %v5031 = vrot.slane %v3952, 3
        %v5032 = vsel %vm1892, %v5029, %v5031
        %v5033 = vrot.slane %v3958, 3
        %v5034 = vsel %vm1892, %v5031, %v5033
        %v5035 = vrot.slane %v3964, 3
        %v5036 = vsel %vm1892, %v5033, %v5035
        %v5037 = vrot.slane %v3970, 3
        %v5038 = vsel %vm1892, %v5035, %v5037
        %v5039 = vrot.slane %v3976, 3
        %v5040 = vsel %vm1892, %v5037, %v5039
        %5041 = vrot.lane.b32.xlu0 %v5024, 32
        %v5042 = vpop.permute.xlu0 %5041
        %5043 = vrot.lane.b32.xlu0 %v5026, 32
        %v5044 = vpop.permute.xlu0 %5043
        %5045 = vrot.lane.b32.xlu0 %v5028, 32
        %v5046 = vpop.permute.xlu0 %5045
        %5047 = vrot.lane.b32.xlu0 %v5030, 32
        %v5048 = vpop.permute.xlu0 %5047
        %5049 = vrot.lane.b32.xlu0 %v5032, 32
        %v5050 = vpop.permute.xlu0 %5049
        %5051 = vrot.lane.b32.xlu0 %v5034, 32
        %v5052 = vpop.permute.xlu0 %5051
        %5053 = vrot.lane.b32.xlu0 %v5036, 32
        %v5054 = vpop.permute.xlu0 %5053
        %5055 = vrot.lane.b32.xlu0 %v5038, 32
        %v5056 = vpop.permute.xlu0 %5055
        %5057 = vrot.lane.b32.xlu0 %v5040, 32
        %v5058 = vpop.permute.xlu0 %5057
        %5059 = vrot.lane.b32.xlu0 %v5039, 32
        %v5060 = vpop.permute.xlu0 %5059
        %v5071 = vadd.f32 %v5012, %v5042
        %v5072 = vadd.f32 %v5013, %v5044
        %v5073 = vadd.f32 %v5014, %v5046
        %v5074 = vadd.f32 %v5015, %v5048
        %v5075 = vadd.f32 %v5016, %v5050
        %v5076 = vadd.f32 %v5017, %v5052
        %v5077 = vadd.f32 %v5018, %v5054
        %v5078 = vadd.f32 %v5019, %v5056
        %v5079 = vadd.f32 %v5020, %v5058
        %v5080 = vadd.f32 %v5021, %v5060
        %vm5091 = vcmask 1043456
        %v5092 = vrot.slane %v3924, 4
        %v5093 = vrot.slane %v3930, 4
        %v5094 = vsel %vm5091, %v5092, %v5093
        %v5095 = vrot.slane %v3936, 4
        %v5096 = vsel %vm5091, %v5093, %v5095
        %v5097 = vrot.slane %v3942, 4
        %v5098 = vsel %vm5091, %v5095, %v5097
        %v5099 = vrot.slane %v3948, 4
        %v5100 = vsel %vm5091, %v5097, %v5099
        %v5101 = vrot.slane %v3954, 4
        %v5102 = vsel %vm5091, %v5099, %v5101
        %v5103 = vrot.slane %v3960, 4
        %v5104 = vsel %vm5091, %v5101, %v5103
        %v5105 = vrot.slane %v3966, 4
        %v5106 = vsel %vm5091, %v5103, %v5105
        %v5107 = vrot.slane %v3972, 4
        %v5108 = vsel %vm5091, %v5105, %v5107
        %v5109 = vrot.slane %v3978, 4
        %v5110 = vsel %vm5091, %v5107, %v5109
        %v5121 = vadd.f32 %v5071, %v5094
        %v5122 = vadd.f32 %v5072, %v5096
        %v5123 = vadd.f32 %v5073, %v5098
        %v5124 = vadd.f32 %v5074, %v5100
        %v5125 = vadd.f32 %v5075, %v5102
        %v5126 = vadd.f32 %v5076, %v5104
        %v5127 = vadd.f32 %v5077, %v5106
        %v5128 = vadd.f32 %v5078, %v5108
        %v5129 = vadd.f32 %v5079, %v5110
        %v5130 = vadd.f32 %v5080, %v5109
        %vm5132 = vcmask 1042432
        %v5133 = vrot.slane %v3924, 5
        %v5134 = vrot.slane %v3930, 5
        %v5135 = vsel %vm5132, %v5133, %v5134
        %v5136 = vrot.slane %v3936, 5
        %v5137 = vsel %vm5132, %v5134, %v5136
        %v5138 = vrot.slane %v3942, 5
        %v5139 = vsel %vm5132, %v5136, %v5138
        %v5140 = vrot.slane %v3948, 5
        %v5141 = vsel %vm5132, %v5138, %v5140
        %v5142 = vrot.slane %v3954, 5
        %v5143 = vsel %vm5132, %v5140, %v5142
        %v5144 = vrot.slane %v3960, 5
        %v5145 = vsel %vm5132, %v5142, %v5144
        %v5146 = vrot.slane %v3966, 5
        %v5147 = vsel %vm5132, %v5144, %v5146
        %v5148 = vrot.slane %v3972, 5
        %v5149 = vsel %vm5132, %v5146, %v5148
        %v5150 = vrot.slane %v3978, 5
        %v5151 = vsel %vm5132, %v5148, %v5150
        %v5152 = vrot.slane %v3983, 5
        %v5153 = vsel %vm5132, %v5150, %v5152
        %5154 = vrot.lane.b32.xlu0 %v5135, 96
        %v5155 = vpop.permute.xlu0 %5154
        %5156 = vrot.lane.b32.xlu0 %v5137, 96
        %v5157 = vpop.permute.xlu0 %5156
        %5158 = vrot.lane.b32.xlu0 %v5139, 96
        %v5159 = vpop.permute.xlu0 %5158
        %5160 = vrot.lane.b32.xlu0 %v5141, 96
        %v5161 = vpop.permute.xlu0 %5160
        %5162 = vrot.lane.b32.xlu0 %v5143, 96
        %v5163 = vpop.permute.xlu0 %5162
        %5164 = vrot.lane.b32.xlu0 %v5145, 96
        %v5165 = vpop.permute.xlu0 %5164
        %5166 = vrot.lane.b32.xlu0 %v5147, 96
        %v5167 = vpop.permute.xlu0 %5166
        %5168 = vrot.lane.b32.xlu0 %v5149, 96
        %v5169 = vpop.permute.xlu0 %5168
        %5170 = vrot.lane.b32.xlu0 %v5151, 96
        %v5171 = vpop.permute.xlu0 %5170
        %5172 = vrot.lane.b32.xlu0 %v5153, 96
        %v5173 = vpop.permute.xlu0 %5172
        %v5184 = vadd.f32 %v5121, %v5155
        %v5185 = vadd.f32 %v5122, %v5157
        %v5186 = vadd.f32 %v5123, %v5159
        %v5187 = vadd.f32 %v5124, %v5161
        %v5188 = vadd.f32 %v5125, %v5163
        %v5189 = vadd.f32 %v5126, %v5165
        %v5190 = vadd.f32 %v5127, %v5167
        %v5191 = vadd.f32 %v5128, %v5169
        %v5192 = vadd.f32 %v5129, %v5171
        %v5193 = vadd.f32 %v5130, %v5173
        %vm5194 = vcmask 1041408
        %v5195 = vrot.slane %v3924, 6
        %v5196 = vrot.slane %v3930, 6
        %v5197 = vsel %vm5194, %v5195, %v5196
        %v5198 = vrot.slane %v3936, 6
        %v5199 = vsel %vm5194, %v5196, %v5198
        %v5200 = vrot.slane %v3942, 6
        %v5201 = vsel %vm5194, %v5198, %v5200
        %v5202 = vrot.slane %v3948, 6
        %v5203 = vsel %vm5194, %v5200, %v5202
        %v5204 = vrot.slane %v3954, 6
        %v5205 = vsel %vm5194, %v5202, %v5204
        %v5206 = vrot.slane %v3960, 6
        %v5207 = vsel %vm5194, %v5204, %v5206
        %v5208 = vrot.slane %v3966, 6
        %v5209 = vsel %vm5194, %v5206, %v5208
        %v5210 = vrot.slane %v3972, 6
        %v5211 = vsel %vm5194, %v5208, %v5210
        %v5212 = vrot.slane %v3978, 6
        %v5213 = vsel %vm5194, %v5210, %v5212
        %v5214 = vrot.slane %v3983, 6
        %v5215 = vsel %vm5194, %v5212, %v5214
        %5216 = vrot.lane.b32.xlu0 %v5197, 64
        %v5217 = vpop.permute.xlu0 %5216
        %5218 = vrot.lane.b32.xlu0 %v5199, 64
        %v5219 = vpop.permute.xlu0 %5218
        %5220 = vrot.lane.b32.xlu0 %v5201, 64
        %v5221 = vpop.permute.xlu0 %5220
        %5222 = vrot.lane.b32.xlu0 %v5203, 64
        %v5223 = vpop.permute.xlu0 %5222
        %5224 = vrot.lane.b32.xlu0 %v5205, 64
        %v5225 = vpop.permute.xlu0 %5224
        %5226 = vrot.lane.b32.xlu0 %v5207, 64
        %v5227 = vpop.permute.xlu0 %5226
        %5228 = vrot.lane.b32.xlu0 %v5209, 64
        %v5229 = vpop.permute.xlu0 %5228
        %5230 = vrot.lane.b32.xlu0 %v5211, 64
        %v5231 = vpop.permute.xlu0 %5230
        %5232 = vrot.lane.b32.xlu0 %v5213, 64
        %v5233 = vpop.permute.xlu0 %5232
        %5234 = vrot.lane.b32.xlu0 %v5215, 64
        %v5235 = vpop.permute.xlu0 %5234
        %v5246 = vadd.f32 %v5184, %v5217
        %v5247 = vadd.f32 %v5185, %v5219
        %v5248 = vadd.f32 %v5186, %v5221
        %v5249 = vadd.f32 %v5187, %v5223
        %v5250 = vadd.f32 %v5188, %v5225
        %v5251 = vadd.f32 %v5189, %v5227
        %v5252 = vadd.f32 %v5190, %v5229
        %v5253 = vadd.f32 %v5191, %v5231
        %v5254 = vadd.f32 %v5192, %v5233
        %v5255 = vadd.f32 %v5193, %v5235
        %vm5256 = vcmask 1040384
        %v5257 = vrot.slane %v3924, 7
        %v5258 = vrot.slane %v3930, 7
        %v5259 = vsel %vm5256, %v5257, %v5258
        %v5260 = vrot.slane %v3936, 7
        %v5261 = vsel %vm5256, %v5258, %v5260
        %v5262 = vrot.slane %v3942, 7
        %v5263 = vsel %vm5256, %v5260, %v5262
        %v5264 = vrot.slane %v3948, 7
        %v5265 = vsel %vm5256, %v5262, %v5264
        %v5266 = vrot.slane %v3954, 7
        %v5267 = vsel %vm5256, %v5264, %v5266
        %v5268 = vrot.slane %v3960, 7
        %v5269 = vsel %vm5256, %v5266, %v5268
        %v5270 = vrot.slane %v3966, 7
        %v5271 = vsel %vm5256, %v5268, %v5270
        %v5272 = vrot.slane %v3972, 7
        %v5273 = vsel %vm5256, %v5270, %v5272
        %v5274 = vrot.slane %v3978, 7
        %v5275 = vsel %vm5256, %v5272, %v5274
        %v5276 = vrot.slane %v3983, 7
        %v5277 = vsel %vm5256, %v5274, %v5276
        %5278 = vrot.lane.b32.xlu0 %v5259, 32
        %v5279 = vpop.permute.xlu0 %5278
        %5280 = vrot.lane.b32.xlu0 %v5261, 32
        %v5281 = vpop.permute.xlu0 %5280
        %5282 = vrot.lane.b32.xlu0 %v5263, 32
        %v5283 = vpop.permute.xlu0 %5282
        %5284 = vrot.lane.b32.xlu0 %v5265, 32
        %v5285 = vpop.permute.xlu0 %5284
        %5286 = vrot.lane.b32.xlu0 %v5267, 32
        %v5287 = vpop.permute.xlu0 %5286
        %5288 = vrot.lane.b32.xlu0 %v5269, 32
        %v5289 = vpop.permute.xlu0 %5288
        %5290 = vrot.lane.b32.xlu0 %v5271, 32
        %v5291 = vpop.permute.xlu0 %5290
        %5292 = vrot.lane.b32.xlu0 %v5273, 32
        %v5293 = vpop.permute.xlu0 %5292
        %5294 = vrot.lane.b32.xlu0 %v5275, 32
        %v5295 = vpop.permute.xlu0 %5294
        %5296 = vrot.lane.b32.xlu0 %v5277, 32
        %v5297 = vpop.permute.xlu0 %5296
        %v5308 = vadd.f32 %v5246, %v5279
        %v5309 = vadd.f32 %v5247, %v5281
        %v5310 = vadd.f32 %v5248, %v5283
        %v5311 = vadd.f32 %v5249, %v5285
        %v5312 = vadd.f32 %v5250, %v5287
        %v5313 = vadd.f32 %v5251, %v5289
        %v5314 = vadd.f32 %v5252, %v5291
        %v5315 = vadd.f32 %v5253, %v5293
        %v5316 = vadd.f32 %v5254, %v5295
        %v5317 = vadd.f32 %v5255, %v5297
        %v5318 = vadd.f32 %v5308, %v4076
        %v5319 = vadd.f32 %v5309, %v4082
        %v5320 = vadd.f32 %v5310, %v4088
        %v5321 = vadd.f32 %v5311, %v4094
        %v5322 = vadd.f32 %v5312, %v4100
        %v5323 = vadd.f32 %v5313, %v4106
        %v5324 = vadd.f32 %v5314, %v4112
        %v5325 = vadd.f32 %v5315, %v4118
        %v5326 = vadd.f32 %v5316, %v4124
        %v5327 = vadd.f32 %v5317, %v4130
        %v5338 = vrot.slane %v4076, 1
        %v5339 = vrot.slane %v4082, 1
        %v5340 = vsel %vm1136, %v5338, %v5339
        %v5341 = vrot.slane %v4088, 1
        %v5342 = vsel %vm1136, %v5339, %v5341
        %v5343 = vrot.slane %v4094, 1
        %v5344 = vsel %vm1136, %v5341, %v5343
        %v5345 = vrot.slane %v4100, 1
        %v5346 = vsel %vm1136, %v5343, %v5345
        %v5347 = vrot.slane %v4106, 1
        %v5348 = vsel %vm1136, %v5345, %v5347
        %v5349 = vrot.slane %v4112, 1
        %v5350 = vsel %vm1136, %v5347, %v5349
        %v5351 = vrot.slane %v4118, 1
        %v5352 = vsel %vm1136, %v5349, %v5351
        %v5353 = vrot.slane %v4124, 1
        %v5354 = vsel %vm1136, %v5351, %v5353
        %v5355 = vrot.slane %v4130, 1
        %v5356 = vsel %vm1136, %v5353, %v5355
        %5357 = vrot.lane.b32.xlu0 %v5340, 96
        %v5358 = vpop.permute.xlu0 %5357
        %5359 = vrot.lane.b32.xlu0 %v5342, 96
        %v5360 = vpop.permute.xlu0 %5359
        %5361 = vrot.lane.b32.xlu0 %v5344, 96
        %v5362 = vpop.permute.xlu0 %5361
        %5363 = vrot.lane.b32.xlu0 %v5346, 96
        %v5364 = vpop.permute.xlu0 %5363
        %5365 = vrot.lane.b32.xlu0 %v5348, 96
        %v5366 = vpop.permute.xlu0 %5365
        %5367 = vrot.lane.b32.xlu0 %v5350, 96
        %v5368 = vpop.permute.xlu0 %5367
        %5369 = vrot.lane.b32.xlu0 %v5352, 96
        %v5370 = vpop.permute.xlu0 %5369
        %5371 = vrot.lane.b32.xlu0 %v5354, 96
        %v5372 = vpop.permute.xlu0 %5371
        %5373 = vrot.lane.b32.xlu0 %v5356, 96
        %v5374 = vpop.permute.xlu0 %5373
        %5375 = vrot.lane.b32.xlu0 %v5355, 96
        %v5376 = vpop.permute.xlu0 %5375
        %v5387 = vadd.f32 %v5318, %v5358
        %v5388 = vadd.f32 %v5319, %v5360
        %v5389 = vadd.f32 %v5320, %v5362
        %v5390 = vadd.f32 %v5321, %v5364
        %v5391 = vadd.f32 %v5322, %v5366
        %v5392 = vadd.f32 %v5323, %v5368
        %v5393 = vadd.f32 %v5324, %v5370
        %v5394 = vadd.f32 %v5325, %v5372
        %v5395 = vadd.f32 %v5326, %v5374
        %v5396 = vadd.f32 %v5327, %v5376
        %v5397 = vrot.slane %v4076, 2
        %v5398 = vrot.slane %v4082, 2
        %v5399 = vsel %vm1514, %v5397, %v5398
        %v5400 = vrot.slane %v4088, 2
        %v5401 = vsel %vm1514, %v5398, %v5400
        %v5402 = vrot.slane %v4094, 2
        %v5403 = vsel %vm1514, %v5400, %v5402
        %v5404 = vrot.slane %v4100, 2
        %v5405 = vsel %vm1514, %v5402, %v5404
        %v5406 = vrot.slane %v4106, 2
        %v5407 = vsel %vm1514, %v5404, %v5406
        %v5408 = vrot.slane %v4112, 2
        %v5409 = vsel %vm1514, %v5406, %v5408
        %v5410 = vrot.slane %v4118, 2
        %v5411 = vsel %vm1514, %v5408, %v5410
        %v5412 = vrot.slane %v4124, 2
        %v5413 = vsel %vm1514, %v5410, %v5412
        %v5414 = vrot.slane %v4130, 2
        %v5415 = vsel %vm1514, %v5412, %v5414
        %5416 = vrot.lane.b32.xlu0 %v5399, 64
        %v5417 = vpop.permute.xlu0 %5416
        %5418 = vrot.lane.b32.xlu0 %v5401, 64
        %v5419 = vpop.permute.xlu0 %5418
        %5420 = vrot.lane.b32.xlu0 %v5403, 64
        %v5421 = vpop.permute.xlu0 %5420
        %5422 = vrot.lane.b32.xlu0 %v5405, 64
        %v5423 = vpop.permute.xlu0 %5422
        %5424 = vrot.lane.b32.xlu0 %v5407, 64
        %v5425 = vpop.permute.xlu0 %5424
        %5426 = vrot.lane.b32.xlu0 %v5409, 64
        %v5427 = vpop.permute.xlu0 %5426
        %5428 = vrot.lane.b32.xlu0 %v5411, 64
        %v5429 = vpop.permute.xlu0 %5428
        %5430 = vrot.lane.b32.xlu0 %v5413, 64
        %v5431 = vpop.permute.xlu0 %5430
        %5432 = vrot.lane.b32.xlu0 %v5415, 64
        %v5433 = vpop.permute.xlu0 %5432
        %5434 = vrot.lane.b32.xlu0 %v5414, 64
        %v5435 = vpop.permute.xlu0 %5434
        %v5446 = vadd.f32 %v5387, %v5417
        %v5447 = vadd.f32 %v5388, %v5419
        %v5448 = vadd.f32 %v5389, %v5421
        %v5449 = vadd.f32 %v5390, %v5423
        %v5450 = vadd.f32 %v5391, %v5425
        %v5451 = vadd.f32 %v5392, %v5427
        %v5452 = vadd.f32 %v5393, %v5429
        %v5453 = vadd.f32 %v5394, %v5431
        %v5454 = vadd.f32 %v5395, %v5433
        %v5455 = vadd.f32 %v5396, %v5435
        %v5456 = vrot.slane %v4076, 3
        %v5457 = vrot.slane %v4082, 3
        %v5458 = vsel %vm1892, %v5456, %v5457
        %v5459 = vrot.slane %v4088, 3
        %v5460 = vsel %vm1892, %v5457, %v5459
        %v5461 = vrot.slane %v4094, 3
        %v5462 = vsel %vm1892, %v5459, %v5461
        %v5463 = vrot.slane %v4100, 3
        %v5464 = vsel %vm1892, %v5461, %v5463
        %v5465 = vrot.slane %v4106, 3
        %v5466 = vsel %vm1892, %v5463, %v5465
        %v5467 = vrot.slane %v4112, 3
        %v5468 = vsel %vm1892, %v5465, %v5467
        %v5469 = vrot.slane %v4118, 3
        %v5470 = vsel %vm1892, %v5467, %v5469
        %v5471 = vrot.slane %v4124, 3
        %v5472 = vsel %vm1892, %v5469, %v5471
        %v5473 = vrot.slane %v4130, 3
        %v5474 = vsel %vm1892, %v5471, %v5473
        %5475 = vrot.lane.b32.xlu0 %v5458, 32
        %v5476 = vpop.permute.xlu0 %5475
        %5477 = vrot.lane.b32.xlu0 %v5460, 32
        %v5478 = vpop.permute.xlu0 %5477
        %5479 = vrot.lane.b32.xlu0 %v5462, 32
        %v5480 = vpop.permute.xlu0 %5479
        %5481 = vrot.lane.b32.xlu0 %v5464, 32
        %v5482 = vpop.permute.xlu0 %5481
        %5483 = vrot.lane.b32.xlu0 %v5466, 32
        %v5484 = vpop.permute.xlu0 %5483
        %5485 = vrot.lane.b32.xlu0 %v5468, 32
        %v5486 = vpop.permute.xlu0 %5485
        %5487 = vrot.lane.b32.xlu0 %v5470, 32
        %v5488 = vpop.permute.xlu0 %5487
        %5489 = vrot.lane.b32.xlu0 %v5472, 32
        %v5490 = vpop.permute.xlu0 %5489
        %5491 = vrot.lane.b32.xlu0 %v5474, 32
        %v5492 = vpop.permute.xlu0 %5491
        %5493 = vrot.lane.b32.xlu0 %v5473, 32
        %v5494 = vpop.permute.xlu0 %5493
        %v5505 = vadd.f32 %v5446, %v5476
        %v5506 = vadd.f32 %v5447, %v5478
        %v5507 = vadd.f32 %v5448, %v5480
        %v5508 = vadd.f32 %v5449, %v5482
        %v5509 = vadd.f32 %v5450, %v5484
        %v5510 = vadd.f32 %v5451, %v5486
        %v5511 = vadd.f32 %v5452, %v5488
        %v5512 = vadd.f32 %v5453, %v5490
        %v5513 = vadd.f32 %v5454, %v5492
        %v5514 = vadd.f32 %v5455, %v5494
        %v5525 = vrot.slane %v4078, 4
        %v5526 = vrot.slane %v4084, 4
        %v5527 = vsel %vm5091, %v5525, %v5526
        %v5528 = vrot.slane %v4090, 4
        %v5529 = vsel %vm5091, %v5526, %v5528
        %v5530 = vrot.slane %v4096, 4
        %v5531 = vsel %vm5091, %v5528, %v5530
        %v5532 = vrot.slane %v4102, 4
        %v5533 = vsel %vm5091, %v5530, %v5532
        %v5534 = vrot.slane %v4108, 4
        %v5535 = vsel %vm5091, %v5532, %v5534
        %v5536 = vrot.slane %v4114, 4
        %v5537 = vsel %vm5091, %v5534, %v5536
        %v5538 = vrot.slane %v4120, 4
        %v5539 = vsel %vm5091, %v5536, %v5538
        %v5540 = vrot.slane %v4126, 4
        %v5541 = vsel %vm5091, %v5538, %v5540
        %v5542 = vrot.slane %v4132, 4
        %v5543 = vsel %vm5091, %v5540, %v5542
        %v5554 = vadd.f32 %v5505, %v5527
        %v5555 = vadd.f32 %v5506, %v5529
        %v5556 = vadd.f32 %v5507, %v5531
        %v5557 = vadd.f32 %v5508, %v5533
        %v5558 = vadd.f32 %v5509, %v5535
        %v5559 = vadd.f32 %v5510, %v5537
        %v5560 = vadd.f32 %v5511, %v5539
        %v5561 = vadd.f32 %v5512, %v5541
        %v5562 = vadd.f32 %v5513, %v5543
        %v5563 = vadd.f32 %v5514, %v5542
        %v5565 = vrot.slane %v4078, 5
        %v5566 = vrot.slane %v4084, 5
        %v5567 = vsel %vm5132, %v5565, %v5566
        %v5568 = vrot.slane %v4090, 5
        %v5569 = vsel %vm5132, %v5566, %v5568
        %v5570 = vrot.slane %v4096, 5
        %v5571 = vsel %vm5132, %v5568, %v5570
        %v5572 = vrot.slane %v4102, 5
        %v5573 = vsel %vm5132, %v5570, %v5572
        %v5574 = vrot.slane %v4108, 5
        %v5575 = vsel %vm5132, %v5572, %v5574
        %v5576 = vrot.slane %v4114, 5
        %v5577 = vsel %vm5132, %v5574, %v5576
        %v5578 = vrot.slane %v4120, 5
        %v5579 = vsel %vm5132, %v5576, %v5578
        %v5580 = vrot.slane %v4126, 5
        %v5581 = vsel %vm5132, %v5578, %v5580
        %v5582 = vrot.slane %v4132, 5
        %v5583 = vsel %vm5132, %v5580, %v5582
        %v5584 = vrot.slane %v4137, 5
        %v5585 = vsel %vm5132, %v5582, %v5584
        %5586 = vrot.lane.b32.xlu0 %v5567, 96
        %v5587 = vpop.permute.xlu0 %5586
        %5588 = vrot.lane.b32.xlu0 %v5569, 96
        %v5589 = vpop.permute.xlu0 %5588
        %5590 = vrot.lane.b32.xlu0 %v5571, 96
        %v5591 = vpop.permute.xlu0 %5590
        %5592 = vrot.lane.b32.xlu0 %v5573, 96
        %v5593 = vpop.permute.xlu0 %5592
        %5594 = vrot.lane.b32.xlu0 %v5575, 96
        %v5595 = vpop.permute.xlu0 %5594
        %5596 = vrot.lane.b32.xlu0 %v5577, 96
        %v5597 = vpop.permute.xlu0 %5596
        %5598 = vrot.lane.b32.xlu0 %v5579, 96
        %v5599 = vpop.permute.xlu0 %5598
        %5600 = vrot.lane.b32.xlu0 %v5581, 96
        %v5601 = vpop.permute.xlu0 %5600
        %5602 = vrot.lane.b32.xlu0 %v5583, 96
        %v5603 = vpop.permute.xlu0 %5602
        %5604 = vrot.lane.b32.xlu0 %v5585, 96
        %v5605 = vpop.permute.xlu0 %5604
        %v5616 = vadd.f32 %v5554, %v5587
        %v5617 = vadd.f32 %v5555, %v5589
        %v5618 = vadd.f32 %v5556, %v5591
        %v5619 = vadd.f32 %v5557, %v5593
        %v5620 = vadd.f32 %v5558, %v5595
        %v5621 = vadd.f32 %v5559, %v5597
        %v5622 = vadd.f32 %v5560, %v5599
        %v5623 = vadd.f32 %v5561, %v5601
        %v5624 = vadd.f32 %v5562, %v5603
        %v5625 = vadd.f32 %v5563, %v5605
        %v5626 = vrot.slane %v4078, 6
        %v5627 = vrot.slane %v4084, 6
        %v5628 = vsel %vm5194, %v5626, %v5627
        %v5629 = vrot.slane %v4090, 6
        %v5630 = vsel %vm5194, %v5627, %v5629
        %v5631 = vrot.slane %v4096, 6
        %v5632 = vsel %vm5194, %v5629, %v5631
        %v5633 = vrot.slane %v4102, 6
        %v5634 = vsel %vm5194, %v5631, %v5633
        %v5635 = vrot.slane %v4108, 6
        %v5636 = vsel %vm5194, %v5633, %v5635
        %v5637 = vrot.slane %v4114, 6
        %v5638 = vsel %vm5194, %v5635, %v5637
        %v5639 = vrot.slane %v4120, 6
        %v5640 = vsel %vm5194, %v5637, %v5639
        %v5641 = vrot.slane %v4126, 6
        %v5642 = vsel %vm5194, %v5639, %v5641
        %v5643 = vrot.slane %v4132, 6
        %v5644 = vsel %vm5194, %v5641, %v5643
        %v5645 = vrot.slane %v4137, 6
        %v5646 = vsel %vm5194, %v5643, %v5645
        %5647 = vrot.lane.b32.xlu0 %v5628, 64
        %v5648 = vpop.permute.xlu0 %5647
        %5649 = vrot.lane.b32.xlu0 %v5630, 64
        %v5650 = vpop.permute.xlu0 %5649
        %5651 = vrot.lane.b32.xlu0 %v5632, 64
        %v5652 = vpop.permute.xlu0 %5651
        %5653 = vrot.lane.b32.xlu0 %v5634, 64
        %v5654 = vpop.permute.xlu0 %5653
        %5655 = vrot.lane.b32.xlu0 %v5636, 64
        %v5656 = vpop.permute.xlu0 %5655
        %5657 = vrot.lane.b32.xlu0 %v5638, 64
        %v5658 = vpop.permute.xlu0 %5657
        %5659 = vrot.lane.b32.xlu0 %v5640, 64
        %v5660 = vpop.permute.xlu0 %5659
        %5661 = vrot.lane.b32.xlu0 %v5642, 64
        %v5662 = vpop.permute.xlu0 %5661
        %5663 = vrot.lane.b32.xlu0 %v5644, 64
        %v5664 = vpop.permute.xlu0 %5663
        %5665 = vrot.lane.b32.xlu0 %v5646, 64
        %v5666 = vpop.permute.xlu0 %5665
        %v5677 = vadd.f32 %v5616, %v5648
        %v5678 = vadd.f32 %v5617, %v5650
        %v5679 = vadd.f32 %v5618, %v5652
        %v5680 = vadd.f32 %v5619, %v5654
        %v5681 = vadd.f32 %v5620, %v5656
        %v5682 = vadd.f32 %v5621, %v5658
        %v5683 = vadd.f32 %v5622, %v5660
        %v5684 = vadd.f32 %v5623, %v5662
        %v5685 = vadd.f32 %v5624, %v5664
        %v5686 = vadd.f32 %v5625, %v5666
        %v5687 = vrot.slane %v4078, 7
        %v5688 = vrot.slane %v4084, 7
        %v5689 = vsel %vm5256, %v5687, %v5688
        %v5690 = vrot.slane %v4090, 7
        %v5691 = vsel %vm5256, %v5688, %v5690
        %v5692 = vrot.slane %v4096, 7
        %v5693 = vsel %vm5256, %v5690, %v5692
        %v5694 = vrot.slane %v4102, 7
        %v5695 = vsel %vm5256, %v5692, %v5694
        %v5696 = vrot.slane %v4108, 7
        %v5697 = vsel %vm5256, %v5694, %v5696
        %v5698 = vrot.slane %v4114, 7
        %v5699 = vsel %vm5256, %v5696, %v5698
        %v5700 = vrot.slane %v4120, 7
        %v5701 = vsel %vm5256, %v5698, %v5700
        %v5702 = vrot.slane %v4126, 7
        %v5703 = vsel %vm5256, %v5700, %v5702
        %v5704 = vrot.slane %v4132, 7
        %v5705 = vsel %vm5256, %v5702, %v5704
        %v5706 = vrot.slane %v4137, 7
        %v5707 = vsel %vm5256, %v5704, %v5706
        %5708 = vrot.lane.b32.xlu0 %v5689, 32
        %v5709 = vpop.permute.xlu0 %5708
        %5710 = vrot.lane.b32.xlu0 %v5691, 32
        %v5711 = vpop.permute.xlu0 %5710
        %5712 = vrot.lane.b32.xlu0 %v5693, 32
        %v5713 = vpop.permute.xlu0 %5712
        %5714 = vrot.lane.b32.xlu0 %v5695, 32
        %v5715 = vpop.permute.xlu0 %5714
        %5716 = vrot.lane.b32.xlu0 %v5697, 32
        %v5717 = vpop.permute.xlu0 %5716
        %5718 = vrot.lane.b32.xlu0 %v5699, 32
        %v5719 = vpop.permute.xlu0 %5718
        %5720 = vrot.lane.b32.xlu0 %v5701, 32
        %v5721 = vpop.permute.xlu0 %5720
        %5722 = vrot.lane.b32.xlu0 %v5703, 32
        %v5723 = vpop.permute.xlu0 %5722
        %5724 = vrot.lane.b32.xlu0 %v5705, 32
        %v5725 = vpop.permute.xlu0 %5724
        %5726 = vrot.lane.b32.xlu0 %v5707, 32
        %v5727 = vpop.permute.xlu0 %5726
        %v5738 = vadd.f32 %v5677, %v5709
        %v5739 = vadd.f32 %v5678, %v5711
        %v5740 = vadd.f32 %v5679, %v5713
        %v5741 = vadd.f32 %v5680, %v5715
        %v5742 = vadd.f32 %v5681, %v5717
        %v5743 = vadd.f32 %v5682, %v5719
        %v5744 = vadd.f32 %v5683, %v5721
        %v5745 = vadd.f32 %v5684, %v5723
        %v5746 = vadd.f32 %v5685, %v5725
        %v5747 = vadd.f32 %v5686, %v5727
        %v5748 = vadd.f32 %v5738, %v4230
        %v5749 = vadd.f32 %v5739, %v4236
        %v5750 = vadd.f32 %v5740, %v4242
        %v5751 = vadd.f32 %v5741, %v4248
        %v5752 = vadd.f32 %v5742, %v4254
        %v5753 = vadd.f32 %v5743, %v4260
        %v5754 = vadd.f32 %v5744, %v4266
        %v5755 = vadd.f32 %v5745, %v4272
        %v5756 = vadd.f32 %v5746, %v4278
        %v5757 = vadd.f32 %v5747, %v4284
        %v5768 = vrot.slane %v4230, 1
        %v5769 = vrot.slane %v4236, 1
        %v5770 = vsel %vm1136, %v5768, %v5769
        %v5771 = vrot.slane %v4242, 1
        %v5772 = vsel %vm1136, %v5769, %v5771
        %v5773 = vrot.slane %v4248, 1
        %v5774 = vsel %vm1136, %v5771, %v5773
        %v5775 = vrot.slane %v4254, 1
        %v5776 = vsel %vm1136, %v5773, %v5775
        %v5777 = vrot.slane %v4260, 1
        %v5778 = vsel %vm1136, %v5775, %v5777
        %v5779 = vrot.slane %v4266, 1
        %v5780 = vsel %vm1136, %v5777, %v5779
        %v5781 = vrot.slane %v4272, 1
        %v5782 = vsel %vm1136, %v5779, %v5781
        %v5783 = vrot.slane %v4278, 1
        %v5784 = vsel %vm1136, %v5781, %v5783
        %v5785 = vrot.slane %v4284, 1
        %v5786 = vsel %vm1136, %v5783, %v5785
        %5787 = vrot.lane.b32.xlu0 %v5770, 96
        %v5788 = vpop.permute.xlu0 %5787
        %5789 = vrot.lane.b32.xlu0 %v5772, 96
        %v5790 = vpop.permute.xlu0 %5789
        %5791 = vrot.lane.b32.xlu0 %v5774, 96
        %v5792 = vpop.permute.xlu0 %5791
        %5793 = vrot.lane.b32.xlu0 %v5776, 96
        %v5794 = vpop.permute.xlu0 %5793
        %5795 = vrot.lane.b32.xlu0 %v5778, 96
        %v5796 = vpop.permute.xlu0 %5795
        %5797 = vrot.lane.b32.xlu0 %v5780, 96
        %v5798 = vpop.permute.xlu0 %5797
        %5799 = vrot.lane.b32.xlu0 %v5782, 96
        %v5800 = vpop.permute.xlu0 %5799
        %5801 = vrot.lane.b32.xlu0 %v5784, 96
        %v5802 = vpop.permute.xlu0 %5801
        %5803 = vrot.lane.b32.xlu0 %v5786, 96
        %v5804 = vpop.permute.xlu0 %5803
        %5805 = vrot.lane.b32.xlu0 %v5785, 96
        %v5806 = vpop.permute.xlu0 %5805
        %v5817 = vadd.f32 %v5748, %v5788
        %v5818 = vadd.f32 %v5749, %v5790
        %v5819 = vadd.f32 %v5750, %v5792
        %v5820 = vadd.f32 %v5751, %v5794
        %v5821 = vadd.f32 %v5752, %v5796
        %v5822 = vadd.f32 %v5753, %v5798
        %v5823 = vadd.f32 %v5754, %v5800
        %v5824 = vadd.f32 %v5755, %v5802
        %v5825 = vadd.f32 %v5756, %v5804
        %v5826 = vadd.f32 %v5757, %v5806
        %v5827 = vrot.slane %v4230, 2
        %v5828 = vrot.slane %v4236, 2
        %v5829 = vsel %vm1514, %v5827, %v5828
        %v5830 = vrot.slane %v4242, 2
        %v5831 = vsel %vm1514, %v5828, %v5830
        %v5832 = vrot.slane %v4248, 2
        %v5833 = vsel %vm1514, %v5830, %v5832
        %v5834 = vrot.slane %v4254, 2
        %v5835 = vsel %vm1514, %v5832, %v5834
        %v5836 = vrot.slane %v4260, 2
        %v5837 = vsel %vm1514, %v5834, %v5836
        %v5838 = vrot.slane %v4266, 2
        %v5839 = vsel %vm1514, %v5836, %v5838
        %v5840 = vrot.slane %v4272, 2
        %v5841 = vsel %vm1514, %v5838, %v5840
        %v5842 = vrot.slane %v4278, 2
        %v5843 = vsel %vm1514, %v5840, %v5842
        %v5844 = vrot.slane %v4284, 2
        %v5845 = vsel %vm1514, %v5842, %v5844
        %5846 = vrot.lane.b32.xlu0 %v5829, 64
        %v5847 = vpop.permute.xlu0 %5846
        %5848 = vrot.lane.b32.xlu0 %v5831, 64
        %v5849 = vpop.permute.xlu0 %5848
        %5850 = vrot.lane.b32.xlu0 %v5833, 64
        %v5851 = vpop.permute.xlu0 %5850
        %5852 = vrot.lane.b32.xlu0 %v5835, 64
        %v5853 = vpop.permute.xlu0 %5852
        %5854 = vrot.lane.b32.xlu0 %v5837, 64
        %v5855 = vpop.permute.xlu0 %5854
        %5856 = vrot.lane.b32.xlu0 %v5839, 64
        %v5857 = vpop.permute.xlu0 %5856
        %5858 = vrot.lane.b32.xlu0 %v5841, 64
        %v5859 = vpop.permute.xlu0 %5858
        %5860 = vrot.lane.b32.xlu0 %v5843, 64
        %v5861 = vpop.permute.xlu0 %5860
        %5862 = vrot.lane.b32.xlu0 %v5845, 64
        %v5863 = vpop.permute.xlu0 %5862
        %5864 = vrot.lane.b32.xlu0 %v5844, 64
        %v5865 = vpop.permute.xlu0 %5864
        %v5876 = vadd.f32 %v5817, %v5847
        %v5877 = vadd.f32 %v5818, %v5849
        %v5878 = vadd.f32 %v5819, %v5851
        %v5879 = vadd.f32 %v5820, %v5853
        %v5880 = vadd.f32 %v5821, %v5855
        %v5881 = vadd.f32 %v5822, %v5857
        %v5882 = vadd.f32 %v5823, %v5859
        %v5883 = vadd.f32 %v5824, %v5861
        %v5884 = vadd.f32 %v5825, %v5863
        %v5885 = vadd.f32 %v5826, %v5865
        %v5886 = vrot.slane %v4230, 3
        %v5887 = vrot.slane %v4236, 3
        %v5888 = vsel %vm1892, %v5886, %v5887
        %v5889 = vrot.slane %v4242, 3
        %v5890 = vsel %vm1892, %v5887, %v5889
        %v5891 = vrot.slane %v4248, 3
        %v5892 = vsel %vm1892, %v5889, %v5891
        %v5893 = vrot.slane %v4254, 3
        %v5894 = vsel %vm1892, %v5891, %v5893
        %v5895 = vrot.slane %v4260, 3
        %v5896 = vsel %vm1892, %v5893, %v5895
        %v5897 = vrot.slane %v4266, 3
        %v5898 = vsel %vm1892, %v5895, %v5897
        %v5899 = vrot.slane %v4272, 3
        %v5900 = vsel %vm1892, %v5897, %v5899
        %v5901 = vrot.slane %v4278, 3
        %v5902 = vsel %vm1892, %v5899, %v5901
        %v5903 = vrot.slane %v4284, 3
        %v5904 = vsel %vm1892, %v5901, %v5903
        %5905 = vrot.lane.b32.xlu0 %v5888, 32
        %v5906 = vpop.permute.xlu0 %5905
        %5907 = vrot.lane.b32.xlu0 %v5890, 32
        %v5908 = vpop.permute.xlu0 %5907
        %5909 = vrot.lane.b32.xlu0 %v5892, 32
        %v5910 = vpop.permute.xlu0 %5909
        %5911 = vrot.lane.b32.xlu0 %v5894, 32
        %v5912 = vpop.permute.xlu0 %5911
        %5913 = vrot.lane.b32.xlu0 %v5896, 32
        %v5914 = vpop.permute.xlu0 %5913
        %5915 = vrot.lane.b32.xlu0 %v5898, 32
        %v5916 = vpop.permute.xlu0 %5915
        %5917 = vrot.lane.b32.xlu0 %v5900, 32
        %v5918 = vpop.permute.xlu0 %5917
        %5919 = vrot.lane.b32.xlu0 %v5902, 32
        %v5920 = vpop.permute.xlu0 %5919
        %5921 = vrot.lane.b32.xlu0 %v5904, 32
        %v5922 = vpop.permute.xlu0 %5921
        %5923 = vrot.lane.b32.xlu0 %v5903, 32
        %v5924 = vpop.permute.xlu0 %5923
        %v5935 = vadd.f32 %v5876, %v5906
        %v5936 = vadd.f32 %v5877, %v5908
        %v5937 = vadd.f32 %v5878, %v5910
        %v5938 = vadd.f32 %v5879, %v5912
        %v5939 = vadd.f32 %v5880, %v5914
        %v5940 = vadd.f32 %v5881, %v5916
        %v5941 = vadd.f32 %v5882, %v5918
        %v5942 = vadd.f32 %v5883, %v5920
        %v5943 = vadd.f32 %v5884, %v5922
        %v5944 = vadd.f32 %v5885, %v5924
        %v5955 = vrot.slane %v4232, 4
        %v5956 = vrot.slane %v4238, 4
        %v5957 = vsel %vm5091, %v5955, %v5956
        %v5958 = vrot.slane %v4244, 4
        %v5959 = vsel %vm5091, %v5956, %v5958
        %v5960 = vrot.slane %v4250, 4
        %v5961 = vsel %vm5091, %v5958, %v5960
        %v5962 = vrot.slane %v4256, 4
        %v5963 = vsel %vm5091, %v5960, %v5962
        %v5964 = vrot.slane %v4262, 4
        %v5965 = vsel %vm5091, %v5962, %v5964
        %v5966 = vrot.slane %v4268, 4
        %v5967 = vsel %vm5091, %v5964, %v5966
        %v5968 = vrot.slane %v4274, 4
        %v5969 = vsel %vm5091, %v5966, %v5968
        %v5970 = vrot.slane %v4280, 4
        %v5971 = vsel %vm5091, %v5968, %v5970
        %v5972 = vrot.slane %v4286, 4
        %v5973 = vsel %vm5091, %v5970, %v5972
        %v5984 = vadd.f32 %v5935, %v5957
        %v5985 = vadd.f32 %v5936, %v5959
        %v5986 = vadd.f32 %v5937, %v5961
        %v5987 = vadd.f32 %v5938, %v5963
        %v5988 = vadd.f32 %v5939, %v5965
        %v5989 = vadd.f32 %v5940, %v5967
        %v5990 = vadd.f32 %v5941, %v5969
        %v5991 = vadd.f32 %v5942, %v5971
        %v5992 = vadd.f32 %v5943, %v5973
        %v5993 = vadd.f32 %v5944, %v5972
        %v5995 = vrot.slane %v4232, 5
        %v5996 = vrot.slane %v4238, 5
        %v5997 = vsel %vm5132, %v5995, %v5996
        %v5998 = vrot.slane %v4244, 5
        %v5999 = vsel %vm5132, %v5996, %v5998
        %v6000 = vrot.slane %v4250, 5
        %v6001 = vsel %vm5132, %v5998, %v6000
        %v6002 = vrot.slane %v4256, 5
        %v6003 = vsel %vm5132, %v6000, %v6002
        %v6004 = vrot.slane %v4262, 5
        %v6005 = vsel %vm5132, %v6002, %v6004
        %v6006 = vrot.slane %v4268, 5
        %v6007 = vsel %vm5132, %v6004, %v6006
        %v6008 = vrot.slane %v4274, 5
        %v6009 = vsel %vm5132, %v6006, %v6008
        %v6010 = vrot.slane %v4280, 5
        %v6011 = vsel %vm5132, %v6008, %v6010
        %v6012 = vrot.slane %v4286, 5
        %v6013 = vsel %vm5132, %v6010, %v6012
        %v6014 = vrot.slane %v4291, 5
        %v6015 = vsel %vm5132, %v6012, %v6014
        %6016 = vrot.lane.b32.xlu0 %v5997, 96
        %v6017 = vpop.permute.xlu0 %6016
        %6018 = vrot.lane.b32.xlu0 %v5999, 96
        %v6019 = vpop.permute.xlu0 %6018
        %6020 = vrot.lane.b32.xlu0 %v6001, 96
        %v6021 = vpop.permute.xlu0 %6020
        %6022 = vrot.lane.b32.xlu0 %v6003, 96
        %v6023 = vpop.permute.xlu0 %6022
        %6024 = vrot.lane.b32.xlu0 %v6005, 96
        %v6025 = vpop.permute.xlu0 %6024
        %6026 = vrot.lane.b32.xlu0 %v6007, 96
        %v6027 = vpop.permute.xlu0 %6026
        %6028 = vrot.lane.b32.xlu0 %v6009, 96
        %v6029 = vpop.permute.xlu0 %6028
        %6030 = vrot.lane.b32.xlu0 %v6011, 96
        %v6031 = vpop.permute.xlu0 %6030
        %6032 = vrot.lane.b32.xlu0 %v6013, 96
        %v6033 = vpop.permute.xlu0 %6032
        %6034 = vrot.lane.b32.xlu0 %v6015, 96
        %v6035 = vpop.permute.xlu0 %6034
        %v6046 = vadd.f32 %v5984, %v6017
        %v6047 = vadd.f32 %v5985, %v6019
        %v6048 = vadd.f32 %v5986, %v6021
        %v6049 = vadd.f32 %v5987, %v6023
        %v6050 = vadd.f32 %v5988, %v6025
        %v6051 = vadd.f32 %v5989, %v6027
        %v6052 = vadd.f32 %v5990, %v6029
        %v6053 = vadd.f32 %v5991, %v6031
        %v6054 = vadd.f32 %v5992, %v6033
        %v6055 = vadd.f32 %v5993, %v6035
        %v6056 = vrot.slane %v4232, 6
        %v6057 = vrot.slane %v4238, 6
        %v6058 = vsel %vm5194, %v6056, %v6057
        %v6059 = vrot.slane %v4244, 6
        %v6060 = vsel %vm5194, %v6057, %v6059
        %v6061 = vrot.slane %v4250, 6
        %v6062 = vsel %vm5194, %v6059, %v6061
        %v6063 = vrot.slane %v4256, 6
        %v6064 = vsel %vm5194, %v6061, %v6063
        %v6065 = vrot.slane %v4262, 6
        %v6066 = vsel %vm5194, %v6063, %v6065
        %v6067 = vrot.slane %v4268, 6
        %v6068 = vsel %vm5194, %v6065, %v6067
        %v6069 = vrot.slane %v4274, 6
        %v6070 = vsel %vm5194, %v6067, %v6069
        %v6071 = vrot.slane %v4280, 6
        %v6072 = vsel %vm5194, %v6069, %v6071
        %v6073 = vrot.slane %v4286, 6
        %v6074 = vsel %vm5194, %v6071, %v6073
        %v6075 = vrot.slane %v4291, 6
        %v6076 = vsel %vm5194, %v6073, %v6075
        %6077 = vrot.lane.b32.xlu0 %v6058, 64
        %v6078 = vpop.permute.xlu0 %6077
        %6079 = vrot.lane.b32.xlu0 %v6060, 64
        %v6080 = vpop.permute.xlu0 %6079
        %6081 = vrot.lane.b32.xlu0 %v6062, 64
        %v6082 = vpop.permute.xlu0 %6081
        %6083 = vrot.lane.b32.xlu0 %v6064, 64
        %v6084 = vpop.permute.xlu0 %6083
        %6085 = vrot.lane.b32.xlu0 %v6066, 64
        %v6086 = vpop.permute.xlu0 %6085
        %6087 = vrot.lane.b32.xlu0 %v6068, 64
        %v6088 = vpop.permute.xlu0 %6087
        %6089 = vrot.lane.b32.xlu0 %v6070, 64
        %v6090 = vpop.permute.xlu0 %6089
        %6091 = vrot.lane.b32.xlu0 %v6072, 64
        %v6092 = vpop.permute.xlu0 %6091
        %6093 = vrot.lane.b32.xlu0 %v6074, 64
        %v6094 = vpop.permute.xlu0 %6093
        %6095 = vrot.lane.b32.xlu0 %v6076, 64
        %v6096 = vpop.permute.xlu0 %6095
        %v6107 = vadd.f32 %v6046, %v6078
        %v6108 = vadd.f32 %v6047, %v6080
        %v6109 = vadd.f32 %v6048, %v6082
        %v6110 = vadd.f32 %v6049, %v6084
        %v6111 = vadd.f32 %v6050, %v6086
        %v6112 = vadd.f32 %v6051, %v6088
        %v6113 = vadd.f32 %v6052, %v6090
        %v6114 = vadd.f32 %v6053, %v6092
        %v6115 = vadd.f32 %v6054, %v6094
        %v6116 = vadd.f32 %v6055, %v6096
        %v6117 = vrot.slane %v4232, 7
        %v6118 = vrot.slane %v4238, 7
        %v6119 = vsel %vm5256, %v6117, %v6118
        %v6120 = vrot.slane %v4244, 7
        %v6121 = vsel %vm5256, %v6118, %v6120
        %v6122 = vrot.slane %v4250, 7
        %v6123 = vsel %vm5256, %v6120, %v6122
        %v6124 = vrot.slane %v4256, 7
        %v6125 = vsel %vm5256, %v6122, %v6124
        %v6126 = vrot.slane %v4262, 7
        %v6127 = vsel %vm5256, %v6124, %v6126
        %v6128 = vrot.slane %v4268, 7
        %v6129 = vsel %vm5256, %v6126, %v6128
        %v6130 = vrot.slane %v4274, 7
        %v6131 = vsel %vm5256, %v6128, %v6130
        %v6132 = vrot.slane %v4280, 7
        %v6133 = vsel %vm5256, %v6130, %v6132
        %v6134 = vrot.slane %v4286, 7
        %v6135 = vsel %vm5256, %v6132, %v6134
        %v6136 = vrot.slane %v4291, 7
        %v6137 = vsel %vm5256, %v6134, %v6136
        %6138 = vrot.lane.b32.xlu0 %v6119, 32
        %v6139 = vpop.permute.xlu0 %6138
        %6140 = vrot.lane.b32.xlu0 %v6121, 32
        %v6141 = vpop.permute.xlu0 %6140
        %6142 = vrot.lane.b32.xlu0 %v6123, 32
        %v6143 = vpop.permute.xlu0 %6142
        %6144 = vrot.lane.b32.xlu0 %v6125, 32
        %v6145 = vpop.permute.xlu0 %6144
        %6146 = vrot.lane.b32.xlu0 %v6127, 32
        %v6147 = vpop.permute.xlu0 %6146
        %6148 = vrot.lane.b32.xlu0 %v6129, 32
        %v6149 = vpop.permute.xlu0 %6148
        %6150 = vrot.lane.b32.xlu0 %v6131, 32
        %v6151 = vpop.permute.xlu0 %6150
        %6152 = vrot.lane.b32.xlu0 %v6133, 32
        %v6153 = vpop.permute.xlu0 %6152
        %6154 = vrot.lane.b32.xlu0 %v6135, 32
        %v6155 = vpop.permute.xlu0 %6154
        %6156 = vrot.lane.b32.xlu0 %v6137, 32
        %v6157 = vpop.permute.xlu0 %6156
        %v6168 = vadd.f32 %v6107, %v6139
        %v6169 = vadd.f32 %v6108, %v6141
        %v6170 = vadd.f32 %v6109, %v6143
        %v6171 = vadd.f32 %v6110, %v6145
        %v6172 = vadd.f32 %v6111, %v6147
        %v6173 = vadd.f32 %v6112, %v6149
        %v6174 = vadd.f32 %v6113, %v6151
        %v6175 = vadd.f32 %v6114, %v6153
        %v6176 = vadd.f32 %v6115, %v6155
        %v6177 = vadd.f32 %v6116, %v6157
        %v6178 = vadd.f32 %v6168, %v4384
        %v6179 = vadd.f32 %v6169, %v4390
        %v6180 = vadd.f32 %v6170, %v4396
        %v6181 = vadd.f32 %v6171, %v4402
        %v6182 = vadd.f32 %v6172, %v4408
        %v6183 = vadd.f32 %v6173, %v4414
        %v6184 = vadd.f32 %v6174, %v4420
        %v6185 = vadd.f32 %v6175, %v4426
        %v6186 = vadd.f32 %v6176, %v4432
        %v6187 = vadd.f32 %v6177, %v4438
        %v6198 = vrot.slane %v4384, 1
        %v6199 = vrot.slane %v4390, 1
        %v6200 = vsel %vm1136, %v6198, %v6199
        %v6201 = vrot.slane %v4396, 1
        %v6202 = vsel %vm1136, %v6199, %v6201
        %v6203 = vrot.slane %v4402, 1
        %v6204 = vsel %vm1136, %v6201, %v6203
        %v6205 = vrot.slane %v4408, 1
        %v6206 = vsel %vm1136, %v6203, %v6205
        %v6207 = vrot.slane %v4414, 1
        %v6208 = vsel %vm1136, %v6205, %v6207
        %v6209 = vrot.slane %v4420, 1
        %v6210 = vsel %vm1136, %v6207, %v6209
        %v6211 = vrot.slane %v4426, 1
        %v6212 = vsel %vm1136, %v6209, %v6211
        %v6213 = vrot.slane %v4432, 1
        %v6214 = vsel %vm1136, %v6211, %v6213
        %v6215 = vrot.slane %v4438, 1
        %v6216 = vsel %vm1136, %v6213, %v6215
        %6217 = vrot.lane.b32.xlu0 %v6200, 96
        %v6218 = vpop.permute.xlu0 %6217
        %6219 = vrot.lane.b32.xlu0 %v6202, 96
        %v6220 = vpop.permute.xlu0 %6219
        %6221 = vrot.lane.b32.xlu0 %v6204, 96
        %v6222 = vpop.permute.xlu0 %6221
        %6223 = vrot.lane.b32.xlu0 %v6206, 96
        %v6224 = vpop.permute.xlu0 %6223
        %6225 = vrot.lane.b32.xlu0 %v6208, 96
        %v6226 = vpop.permute.xlu0 %6225
        %6227 = vrot.lane.b32.xlu0 %v6210, 96
        %v6228 = vpop.permute.xlu0 %6227
        %6229 = vrot.lane.b32.xlu0 %v6212, 96
        %v6230 = vpop.permute.xlu0 %6229
        %6231 = vrot.lane.b32.xlu0 %v6214, 96
        %v6232 = vpop.permute.xlu0 %6231
        %6233 = vrot.lane.b32.xlu0 %v6216, 96
        %v6234 = vpop.permute.xlu0 %6233
        %6235 = vrot.lane.b32.xlu0 %v6215, 96
        %v6236 = vpop.permute.xlu0 %6235
        %v6247 = vadd.f32 %v6178, %v6218
        %v6248 = vadd.f32 %v6179, %v6220
        %v6249 = vadd.f32 %v6180, %v6222
        %v6250 = vadd.f32 %v6181, %v6224
        %v6251 = vadd.f32 %v6182, %v6226
        %v6252 = vadd.f32 %v6183, %v6228
        %v6253 = vadd.f32 %v6184, %v6230
        %v6254 = vadd.f32 %v6185, %v6232
        %v6255 = vadd.f32 %v6186, %v6234
        %v6256 = vadd.f32 %v6187, %v6236
        %v6257 = vrot.slane %v4384, 2
        %v6258 = vrot.slane %v4390, 2
        %v6259 = vsel %vm1514, %v6257, %v6258
        %v6260 = vrot.slane %v4396, 2
        %v6261 = vsel %vm1514, %v6258, %v6260
        %v6262 = vrot.slane %v4402, 2
        %v6263 = vsel %vm1514, %v6260, %v6262
        %v6264 = vrot.slane %v4408, 2
        %v6265 = vsel %vm1514, %v6262, %v6264
        %v6266 = vrot.slane %v4414, 2
        %v6267 = vsel %vm1514, %v6264, %v6266
        %v6268 = vrot.slane %v4420, 2
        %v6269 = vsel %vm1514, %v6266, %v6268
        %v6270 = vrot.slane %v4426, 2
        %v6271 = vsel %vm1514, %v6268, %v6270
        %v6272 = vrot.slane %v4432, 2
        %v6273 = vsel %vm1514, %v6270, %v6272
        %v6274 = vrot.slane %v4438, 2
        %v6275 = vsel %vm1514, %v6272, %v6274
        %6276 = vrot.lane.b32.xlu0 %v6259, 64
        %v6277 = vpop.permute.xlu0 %6276
        %6278 = vrot.lane.b32.xlu0 %v6261, 64
        %v6279 = vpop.permute.xlu0 %6278
        %6280 = vrot.lane.b32.xlu0 %v6263, 64
        %v6281 = vpop.permute.xlu0 %6280
        %6282 = vrot.lane.b32.xlu0 %v6265, 64
        %v6283 = vpop.permute.xlu0 %6282
        %6284 = vrot.lane.b32.xlu0 %v6267, 64
        %v6285 = vpop.permute.xlu0 %6284
        %6286 = vrot.lane.b32.xlu0 %v6269, 64
        %v6287 = vpop.permute.xlu0 %6286
        %6288 = vrot.lane.b32.xlu0 %v6271, 64
        %v6289 = vpop.permute.xlu0 %6288
        %6290 = vrot.lane.b32.xlu0 %v6273, 64
        %v6291 = vpop.permute.xlu0 %6290
        %6292 = vrot.lane.b32.xlu0 %v6275, 64
        %v6293 = vpop.permute.xlu0 %6292
        %6294 = vrot.lane.b32.xlu0 %v6274, 64
        %v6295 = vpop.permute.xlu0 %6294
        %v6306 = vadd.f32 %v6247, %v6277
        %v6307 = vadd.f32 %v6248, %v6279
        %v6308 = vadd.f32 %v6249, %v6281
        %v6309 = vadd.f32 %v6250, %v6283
        %v6310 = vadd.f32 %v6251, %v6285
        %v6311 = vadd.f32 %v6252, %v6287
        %v6312 = vadd.f32 %v6253, %v6289
        %v6313 = vadd.f32 %v6254, %v6291
        %v6314 = vadd.f32 %v6255, %v6293
        %v6315 = vadd.f32 %v6256, %v6295
        %v6316 = vrot.slane %v4384, 3
        %v6317 = vrot.slane %v4390, 3
        %v6318 = vsel %vm1892, %v6316, %v6317
        %v6319 = vrot.slane %v4396, 3
        %v6320 = vsel %vm1892, %v6317, %v6319
        %v6321 = vrot.slane %v4402, 3
        %v6322 = vsel %vm1892, %v6319, %v6321
        %v6323 = vrot.slane %v4408, 3
        %v6324 = vsel %vm1892, %v6321, %v6323
        %v6325 = vrot.slane %v4414, 3
        %v6326 = vsel %vm1892, %v6323, %v6325
        %v6327 = vrot.slane %v4420, 3
        %v6328 = vsel %vm1892, %v6325, %v6327
        %v6329 = vrot.slane %v4426, 3
        %v6330 = vsel %vm1892, %v6327, %v6329
        %v6331 = vrot.slane %v4432, 3
        %v6332 = vsel %vm1892, %v6329, %v6331
        %v6333 = vrot.slane %v4438, 3
        %v6334 = vsel %vm1892, %v6331, %v6333
        %6335 = vrot.lane.b32.xlu0 %v6318, 32
        %v6336 = vpop.permute.xlu0 %6335
        %6337 = vrot.lane.b32.xlu0 %v6320, 32
        %v6338 = vpop.permute.xlu0 %6337
        %6339 = vrot.lane.b32.xlu0 %v6322, 32
        %v6340 = vpop.permute.xlu0 %6339
        %6341 = vrot.lane.b32.xlu0 %v6324, 32
        %v6342 = vpop.permute.xlu0 %6341
        %6343 = vrot.lane.b32.xlu0 %v6326, 32
        %v6344 = vpop.permute.xlu0 %6343
        %6345 = vrot.lane.b32.xlu0 %v6328, 32
        %v6346 = vpop.permute.xlu0 %6345
        %6347 = vrot.lane.b32.xlu0 %v6330, 32
        %v6348 = vpop.permute.xlu0 %6347
        %6349 = vrot.lane.b32.xlu0 %v6332, 32
        %v6350 = vpop.permute.xlu0 %6349
        %6351 = vrot.lane.b32.xlu0 %v6334, 32
        %v6352 = vpop.permute.xlu0 %6351
        %6353 = vrot.lane.b32.xlu0 %v6333, 32
        %v6354 = vpop.permute.xlu0 %6353
        %v6365 = vadd.f32 %v6306, %v6336
        %v6366 = vadd.f32 %v6307, %v6338
        %v6367 = vadd.f32 %v6308, %v6340
        %v6368 = vadd.f32 %v6309, %v6342
        %v6369 = vadd.f32 %v6310, %v6344
        %v6370 = vadd.f32 %v6311, %v6346
        %v6371 = vadd.f32 %v6312, %v6348
        %v6372 = vadd.f32 %v6313, %v6350
        %v6373 = vadd.f32 %v6314, %v6352
        %v6374 = vadd.f32 %v6315, %v6354
        %v6385 = vrot.slane %v4386, 4
        %v6386 = vrot.slane %v4392, 4
        %v6387 = vsel %vm5091, %v6385, %v6386
        %v6388 = vrot.slane %v4398, 4
        %v6389 = vsel %vm5091, %v6386, %v6388
        %v6390 = vrot.slane %v4404, 4
        %v6391 = vsel %vm5091, %v6388, %v6390
        %v6392 = vrot.slane %v4410, 4
        %v6393 = vsel %vm5091, %v6390, %v6392
        %v6394 = vrot.slane %v4416, 4
        %v6395 = vsel %vm5091, %v6392, %v6394
        %v6396 = vrot.slane %v4422, 4
        %v6397 = vsel %vm5091, %v6394, %v6396
        %v6398 = vrot.slane %v4428, 4
        %v6399 = vsel %vm5091, %v6396, %v6398
        %v6400 = vrot.slane %v4434, 4
        %v6401 = vsel %vm5091, %v6398, %v6400
        %v6402 = vrot.slane %v4440, 4
        %v6403 = vsel %vm5091, %v6400, %v6402
        %v6414 = vadd.f32 %v6365, %v6387
        %v6415 = vadd.f32 %v6366, %v6389
        %v6416 = vadd.f32 %v6367, %v6391
        %v6417 = vadd.f32 %v6368, %v6393
        %v6418 = vadd.f32 %v6369, %v6395
        %v6419 = vadd.f32 %v6370, %v6397
        %v6420 = vadd.f32 %v6371, %v6399
        %v6421 = vadd.f32 %v6372, %v6401
        %v6422 = vadd.f32 %v6373, %v6403
        %v6423 = vadd.f32 %v6374, %v6402
        %v6425 = vrot.slane %v4386, 5
        %v6426 = vrot.slane %v4392, 5
        %v6427 = vsel %vm5132, %v6425, %v6426
        %v6428 = vrot.slane %v4398, 5
        %v6429 = vsel %vm5132, %v6426, %v6428
        %v6430 = vrot.slane %v4404, 5
        %v6431 = vsel %vm5132, %v6428, %v6430
        %v6432 = vrot.slane %v4410, 5
        %v6433 = vsel %vm5132, %v6430, %v6432
        %v6434 = vrot.slane %v4416, 5
        %v6435 = vsel %vm5132, %v6432, %v6434
        %v6436 = vrot.slane %v4422, 5
        %v6437 = vsel %vm5132, %v6434, %v6436
        %v6438 = vrot.slane %v4428, 5
        %v6439 = vsel %vm5132, %v6436, %v6438
        %v6440 = vrot.slane %v4434, 5
        %v6441 = vsel %vm5132, %v6438, %v6440
        %v6442 = vrot.slane %v4440, 5
        %v6443 = vsel %vm5132, %v6440, %v6442
        %v6444 = vrot.slane %v4445, 5
        %v6445 = vsel %vm5132, %v6442, %v6444
        %6446 = vrot.lane.b32.xlu0 %v6427, 96
        %v6447 = vpop.permute.xlu0 %6446
        %6448 = vrot.lane.b32.xlu0 %v6429, 96
        %v6449 = vpop.permute.xlu0 %6448
        %6450 = vrot.lane.b32.xlu0 %v6431, 96
        %v6451 = vpop.permute.xlu0 %6450
        %6452 = vrot.lane.b32.xlu0 %v6433, 96
        %v6453 = vpop.permute.xlu0 %6452
        %6454 = vrot.lane.b32.xlu0 %v6435, 96
        %v6455 = vpop.permute.xlu0 %6454
        %6456 = vrot.lane.b32.xlu0 %v6437, 96
        %v6457 = vpop.permute.xlu0 %6456
        %6458 = vrot.lane.b32.xlu0 %v6439, 96
        %v6459 = vpop.permute.xlu0 %6458
        %6460 = vrot.lane.b32.xlu0 %v6441, 96
        %v6461 = vpop.permute.xlu0 %6460
        %6462 = vrot.lane.b32.xlu0 %v6443, 96
        %v6463 = vpop.permute.xlu0 %6462
        %6464 = vrot.lane.b32.xlu0 %v6445, 96
        %v6465 = vpop.permute.xlu0 %6464
        %v6476 = vadd.f32 %v6414, %v6447
        %v6477 = vadd.f32 %v6415, %v6449
        %v6478 = vadd.f32 %v6416, %v6451
        %v6479 = vadd.f32 %v6417, %v6453
        %v6480 = vadd.f32 %v6418, %v6455
        %v6481 = vadd.f32 %v6419, %v6457
        %v6482 = vadd.f32 %v6420, %v6459
        %v6483 = vadd.f32 %v6421, %v6461
        %v6484 = vadd.f32 %v6422, %v6463
        %v6485 = vadd.f32 %v6423, %v6465
        %v6486 = vrot.slane %v4386, 6
        %v6487 = vrot.slane %v4392, 6
        %v6488 = vsel %vm5194, %v6486, %v6487
        %v6489 = vrot.slane %v4398, 6
        %v6490 = vsel %vm5194, %v6487, %v6489
        %v6491 = vrot.slane %v4404, 6
        %v6492 = vsel %vm5194, %v6489, %v6491
        %v6493 = vrot.slane %v4410, 6
        %v6494 = vsel %vm5194, %v6491, %v6493
        %v6495 = vrot.slane %v4416, 6
        %v6496 = vsel %vm5194, %v6493, %v6495
        %v6497 = vrot.slane %v4422, 6
        %v6498 = vsel %vm5194, %v6495, %v6497
        %v6499 = vrot.slane %v4428, 6
        %v6500 = vsel %vm5194, %v6497, %v6499
        %v6501 = vrot.slane %v4434, 6
        %v6502 = vsel %vm5194, %v6499, %v6501
        %v6503 = vrot.slane %v4440, 6
        %v6504 = vsel %vm5194, %v6501, %v6503
        %v6505 = vrot.slane %v4445, 6
        %v6506 = vsel %vm5194, %v6503, %v6505
        %6507 = vrot.lane.b32.xlu0 %v6488, 64
        %v6508 = vpop.permute.xlu0 %6507
        %6509 = vrot.lane.b32.xlu0 %v6490, 64
        %v6510 = vpop.permute.xlu0 %6509
        %6511 = vrot.lane.b32.xlu0 %v6492, 64
        %v6512 = vpop.permute.xlu0 %6511
        %6513 = vrot.lane.b32.xlu0 %v6494, 64
        %v6514 = vpop.permute.xlu0 %6513
        %6515 = vrot.lane.b32.xlu0 %v6496, 64
        %v6516 = vpop.permute.xlu0 %6515
        %6517 = vrot.lane.b32.xlu0 %v6498, 64
        %v6518 = vpop.permute.xlu0 %6517
        %6519 = vrot.lane.b32.xlu0 %v6500, 64
        %v6520 = vpop.permute.xlu0 %6519
        %6521 = vrot.lane.b32.xlu0 %v6502, 64
        %v6522 = vpop.permute.xlu0 %6521
        %6523 = vrot.lane.b32.xlu0 %v6504, 64
        %v6524 = vpop.permute.xlu0 %6523
        %6525 = vrot.lane.b32.xlu0 %v6506, 64
        %v6526 = vpop.permute.xlu0 %6525
        %v6537 = vadd.f32 %v6476, %v6508
        %v6538 = vadd.f32 %v6477, %v6510
        %v6539 = vadd.f32 %v6478, %v6512
        %v6540 = vadd.f32 %v6479, %v6514
        %v6541 = vadd.f32 %v6480, %v6516
        %v6542 = vadd.f32 %v6481, %v6518
        %v6543 = vadd.f32 %v6482, %v6520
        %v6544 = vadd.f32 %v6483, %v6522
        %v6545 = vadd.f32 %v6484, %v6524
        %v6546 = vadd.f32 %v6485, %v6526
        %v6547 = vrot.slane %v4386, 7
        %v6548 = vrot.slane %v4392, 7
        %v6549 = vsel %vm5256, %v6547, %v6548
        %v6550 = vrot.slane %v4398, 7
        %v6551 = vsel %vm5256, %v6548, %v6550
        %v6552 = vrot.slane %v4404, 7
        %v6553 = vsel %vm5256, %v6550, %v6552
        %v6554 = vrot.slane %v4410, 7
        %v6555 = vsel %vm5256, %v6552, %v6554
        %v6556 = vrot.slane %v4416, 7
        %v6557 = vsel %vm5256, %v6554, %v6556
        %v6558 = vrot.slane %v4422, 7
        %v6559 = vsel %vm5256, %v6556, %v6558
        %v6560 = vrot.slane %v4428, 7
        %v6561 = vsel %vm5256, %v6558, %v6560
        %v6562 = vrot.slane %v4434, 7
        %v6563 = vsel %vm5256, %v6560, %v6562
        %v6564 = vrot.slane %v4440, 7
        %v6565 = vsel %vm5256, %v6562, %v6564
        %v6566 = vrot.slane %v4445, 7
        %v6567 = vsel %vm5256, %v6564, %v6566
        %6568 = vrot.lane.b32.xlu0 %v6549, 32
        %v6569 = vpop.permute.xlu0 %6568
        %6570 = vrot.lane.b32.xlu0 %v6551, 32
        %v6571 = vpop.permute.xlu0 %6570
        %6572 = vrot.lane.b32.xlu0 %v6553, 32
        %v6573 = vpop.permute.xlu0 %6572
        %6574 = vrot.lane.b32.xlu0 %v6555, 32
        %v6575 = vpop.permute.xlu0 %6574
        %6576 = vrot.lane.b32.xlu0 %v6557, 32
        %v6577 = vpop.permute.xlu0 %6576
        %6578 = vrot.lane.b32.xlu0 %v6559, 32
        %v6579 = vpop.permute.xlu0 %6578
        %6580 = vrot.lane.b32.xlu0 %v6561, 32
        %v6581 = vpop.permute.xlu0 %6580
        %6582 = vrot.lane.b32.xlu0 %v6563, 32
        %v6583 = vpop.permute.xlu0 %6582
        %6584 = vrot.lane.b32.xlu0 %v6565, 32
        %v6585 = vpop.permute.xlu0 %6584
        %6586 = vrot.lane.b32.xlu0 %v6567, 32
        %v6587 = vpop.permute.xlu0 %6586
        %v6598 = vadd.f32 %v6537, %v6569
        %v6599 = vadd.f32 %v6538, %v6571
        %v6600 = vadd.f32 %v6539, %v6573
        %v6601 = vadd.f32 %v6540, %v6575
        %v6602 = vadd.f32 %v6541, %v6577
        %v6603 = vadd.f32 %v6542, %v6579
        %v6604 = vadd.f32 %v6543, %v6581
        %v6605 = vadd.f32 %v6544, %v6583
        %v6606 = vadd.f32 %v6545, %v6585
        %v6607 = vadd.f32 %v6546, %v6587
        %v6608 = vadd.f32 %v6598, %v4538
        %v6609 = vadd.f32 %v6599, %v4544
        %v6610 = vadd.f32 %v6600, %v4550
        %v6611 = vadd.f32 %v6601, %v4556
        %v6612 = vadd.f32 %v6602, %v4562
        %v6613 = vadd.f32 %v6603, %v4568
        %v6614 = vadd.f32 %v6604, %v4574
        %v6615 = vadd.f32 %v6605, %v4580
        %v6616 = vadd.f32 %v6606, %v4586
        %v6617 = vadd.f32 %v6607, %v4592
        %v6628 = vrot.slane %v4538, 1
        %v6629 = vrot.slane %v4544, 1
        %v6630 = vsel %vm1136, %v6628, %v6629
        %v6631 = vrot.slane %v4550, 1
        %v6632 = vsel %vm1136, %v6629, %v6631
        %v6633 = vrot.slane %v4556, 1
        %v6634 = vsel %vm1136, %v6631, %v6633
        %v6635 = vrot.slane %v4562, 1
        %v6636 = vsel %vm1136, %v6633, %v6635
        %v6637 = vrot.slane %v4568, 1
        %v6638 = vsel %vm1136, %v6635, %v6637
        %v6639 = vrot.slane %v4574, 1
        %v6640 = vsel %vm1136, %v6637, %v6639
        %v6641 = vrot.slane %v4580, 1
        %v6642 = vsel %vm1136, %v6639, %v6641
        %v6643 = vrot.slane %v4586, 1
        %v6644 = vsel %vm1136, %v6641, %v6643
        %v6645 = vrot.slane %v4592, 1
        %v6646 = vsel %vm1136, %v6643, %v6645
        %6647 = vrot.lane.b32.xlu0 %v6630, 96
        %v6648 = vpop.permute.xlu0 %6647
        %6649 = vrot.lane.b32.xlu0 %v6632, 96
        %v6650 = vpop.permute.xlu0 %6649
        %6651 = vrot.lane.b32.xlu0 %v6634, 96
        %v6652 = vpop.permute.xlu0 %6651
        %6653 = vrot.lane.b32.xlu0 %v6636, 96
        %v6654 = vpop.permute.xlu0 %6653
        %6655 = vrot.lane.b32.xlu0 %v6638, 96
        %v6656 = vpop.permute.xlu0 %6655
        %6657 = vrot.lane.b32.xlu0 %v6640, 96
        %v6658 = vpop.permute.xlu0 %6657
        %6659 = vrot.lane.b32.xlu0 %v6642, 96
        %v6660 = vpop.permute.xlu0 %6659
        %6661 = vrot.lane.b32.xlu0 %v6644, 96
        %v6662 = vpop.permute.xlu0 %6661
        %6663 = vrot.lane.b32.xlu0 %v6646, 96
        %v6664 = vpop.permute.xlu0 %6663
        %6665 = vrot.lane.b32.xlu0 %v6645, 96
        %v6666 = vpop.permute.xlu0 %6665
        %v6677 = vadd.f32 %v6608, %v6648
        %v6678 = vadd.f32 %v6609, %v6650
        %v6679 = vadd.f32 %v6610, %v6652
        %v6680 = vadd.f32 %v6611, %v6654
        %v6681 = vadd.f32 %v6612, %v6656
        %v6682 = vadd.f32 %v6613, %v6658
        %v6683 = vadd.f32 %v6614, %v6660
        %v6684 = vadd.f32 %v6615, %v6662
        %v6685 = vadd.f32 %v6616, %v6664
        %v6686 = vadd.f32 %v6617, %v6666
        %v6687 = vrot.slane %v4538, 2
        %v6688 = vrot.slane %v4544, 2
        %v6689 = vsel %vm1514, %v6687, %v6688
        %v6690 = vrot.slane %v4550, 2
        %v6691 = vsel %vm1514, %v6688, %v6690
        %v6692 = vrot.slane %v4556, 2
        %v6693 = vsel %vm1514, %v6690, %v6692
        %v6694 = vrot.slane %v4562, 2
        %v6695 = vsel %vm1514, %v6692, %v6694
        %v6696 = vrot.slane %v4568, 2
        %v6697 = vsel %vm1514, %v6694, %v6696
        %v6698 = vrot.slane %v4574, 2
        %v6699 = vsel %vm1514, %v6696, %v6698
        %v6700 = vrot.slane %v4580, 2
        %v6701 = vsel %vm1514, %v6698, %v6700
        %v6702 = vrot.slane %v4586, 2
        %v6703 = vsel %vm1514, %v6700, %v6702
        %v6704 = vrot.slane %v4592, 2
        %v6705 = vsel %vm1514, %v6702, %v6704
        %6706 = vrot.lane.b32.xlu0 %v6689, 64
        %v6707 = vpop.permute.xlu0 %6706
        %6708 = vrot.lane.b32.xlu0 %v6691, 64
        %v6709 = vpop.permute.xlu0 %6708
        %6710 = vrot.lane.b32.xlu0 %v6693, 64
        %v6711 = vpop.permute.xlu0 %6710
        %6712 = vrot.lane.b32.xlu0 %v6695, 64
        %v6713 = vpop.permute.xlu0 %6712
        %6714 = vrot.lane.b32.xlu0 %v6697, 64
        %v6715 = vpop.permute.xlu0 %6714
        %6716 = vrot.lane.b32.xlu0 %v6699, 64
        %v6717 = vpop.permute.xlu0 %6716
        %6718 = vrot.lane.b32.xlu0 %v6701, 64
        %v6719 = vpop.permute.xlu0 %6718
        %6720 = vrot.lane.b32.xlu0 %v6703, 64
        %v6721 = vpop.permute.xlu0 %6720
        %6722 = vrot.lane.b32.xlu0 %v6705, 64
        %v6723 = vpop.permute.xlu0 %6722
        %6724 = vrot.lane.b32.xlu0 %v6704, 64
        %v6725 = vpop.permute.xlu0 %6724
        %v6736 = vadd.f32 %v6677, %v6707
        %v6737 = vadd.f32 %v6678, %v6709
        %v6738 = vadd.f32 %v6679, %v6711
        %v6739 = vadd.f32 %v6680, %v6713
        %v6740 = vadd.f32 %v6681, %v6715
        %v6741 = vadd.f32 %v6682, %v6717
        %v6742 = vadd.f32 %v6683, %v6719
        %v6743 = vadd.f32 %v6684, %v6721
        %v6744 = vadd.f32 %v6685, %v6723
        %v6745 = vadd.f32 %v6686, %v6725
        %v6746 = vrot.slane %v4538, 3
        %v6747 = vrot.slane %v4544, 3
        %v6748 = vsel %vm1892, %v6746, %v6747
        %v6749 = vrot.slane %v4550, 3
        %v6750 = vsel %vm1892, %v6747, %v6749
        %v6751 = vrot.slane %v4556, 3
        %v6752 = vsel %vm1892, %v6749, %v6751
        %v6753 = vrot.slane %v4562, 3
        %v6754 = vsel %vm1892, %v6751, %v6753
        %v6755 = vrot.slane %v4568, 3
        %v6756 = vsel %vm1892, %v6753, %v6755
        %v6757 = vrot.slane %v4574, 3
        %v6758 = vsel %vm1892, %v6755, %v6757
        %v6759 = vrot.slane %v4580, 3
        %v6760 = vsel %vm1892, %v6757, %v6759
        %v6761 = vrot.slane %v4586, 3
        %v6762 = vsel %vm1892, %v6759, %v6761
        %v6763 = vrot.slane %v4592, 3
        %v6764 = vsel %vm1892, %v6761, %v6763
        %6765 = vrot.lane.b32.xlu0 %v6748, 32
        %v6766 = vpop.permute.xlu0 %6765
        %6767 = vrot.lane.b32.xlu0 %v6750, 32
        %v6768 = vpop.permute.xlu0 %6767
        %6769 = vrot.lane.b32.xlu0 %v6752, 32
        %v6770 = vpop.permute.xlu0 %6769
        %6771 = vrot.lane.b32.xlu0 %v6754, 32
        %v6772 = vpop.permute.xlu0 %6771
        %6773 = vrot.lane.b32.xlu0 %v6756, 32
        %v6774 = vpop.permute.xlu0 %6773
        %6775 = vrot.lane.b32.xlu0 %v6758, 32
        %v6776 = vpop.permute.xlu0 %6775
        %6777 = vrot.lane.b32.xlu0 %v6760, 32
        %v6778 = vpop.permute.xlu0 %6777
        %6779 = vrot.lane.b32.xlu0 %v6762, 32
        %v6780 = vpop.permute.xlu0 %6779
        %6781 = vrot.lane.b32.xlu0 %v6764, 32
        %v6782 = vpop.permute.xlu0 %6781
        %6783 = vrot.lane.b32.xlu0 %v6763, 32
        %v6784 = vpop.permute.xlu0 %6783
        %v6795 = vadd.f32 %v6736, %v6766
        %v6796 = vadd.f32 %v6737, %v6768
        %v6797 = vadd.f32 %v6738, %v6770
        %v6798 = vadd.f32 %v6739, %v6772
        %v6799 = vadd.f32 %v6740, %v6774
        %v6800 = vadd.f32 %v6741, %v6776
        %v6801 = vadd.f32 %v6742, %v6778
        %v6802 = vadd.f32 %v6743, %v6780
        %v6803 = vadd.f32 %v6744, %v6782
        %v6804 = vadd.f32 %v6745, %v6784
        %v6815 = vrot.slane %v4540, 4
        %v6816 = vrot.slane %v4546, 4
        %v6817 = vsel %vm5091, %v6815, %v6816
        %v6818 = vrot.slane %v4552, 4
        %v6819 = vsel %vm5091, %v6816, %v6818
        %v6820 = vrot.slane %v4558, 4
        %v6821 = vsel %vm5091, %v6818, %v6820
        %v6822 = vrot.slane %v4564, 4
        %v6823 = vsel %vm5091, %v6820, %v6822
        %v6824 = vrot.slane %v4570, 4
        %v6825 = vsel %vm5091, %v6822, %v6824
        %v6826 = vrot.slane %v4576, 4
        %v6827 = vsel %vm5091, %v6824, %v6826
        %v6828 = vrot.slane %v4582, 4
        %v6829 = vsel %vm5091, %v6826, %v6828
        %v6830 = vrot.slane %v4588, 4
        %v6831 = vsel %vm5091, %v6828, %v6830
        %v6832 = vrot.slane %v4594, 4
        %v6833 = vsel %vm5091, %v6830, %v6832
        %v6844 = vadd.f32 %v6795, %v6817
        %v6845 = vadd.f32 %v6796, %v6819
        %v6846 = vadd.f32 %v6797, %v6821
        %v6847 = vadd.f32 %v6798, %v6823
        %v6848 = vadd.f32 %v6799, %v6825
        %v6849 = vadd.f32 %v6800, %v6827
        %v6850 = vadd.f32 %v6801, %v6829
        %v6851 = vadd.f32 %v6802, %v6831
        %v6852 = vadd.f32 %v6803, %v6833
        %v6853 = vadd.f32 %v6804, %v6832
        %v6855 = vrot.slane %v4540, 5
        %v6856 = vrot.slane %v4546, 5
        %v6857 = vsel %vm5132, %v6855, %v6856
        %v6858 = vrot.slane %v4552, 5
        %v6859 = vsel %vm5132, %v6856, %v6858
        %v6860 = vrot.slane %v4558, 5
        %v6861 = vsel %vm5132, %v6858, %v6860
        %v6862 = vrot.slane %v4564, 5
        %v6863 = vsel %vm5132, %v6860, %v6862
        %v6864 = vrot.slane %v4570, 5
        %v6865 = vsel %vm5132, %v6862, %v6864
        %v6866 = vrot.slane %v4576, 5
        %v6867 = vsel %vm5132, %v6864, %v6866
        %v6868 = vrot.slane %v4582, 5
        %v6869 = vsel %vm5132, %v6866, %v6868
        %v6870 = vrot.slane %v4588, 5
        %v6871 = vsel %vm5132, %v6868, %v6870
        %v6872 = vrot.slane %v4594, 5
        %v6873 = vsel %vm5132, %v6870, %v6872
        %v6874 = vrot.slane %v4599, 5
        %v6875 = vsel %vm5132, %v6872, %v6874
        %6876 = vrot.lane.b32.xlu0 %v6857, 96
        %v6877 = vpop.permute.xlu0 %6876
        %6878 = vrot.lane.b32.xlu0 %v6859, 96
        %v6879 = vpop.permute.xlu0 %6878
        %6880 = vrot.lane.b32.xlu0 %v6861, 96
        %v6881 = vpop.permute.xlu0 %6880
        %6882 = vrot.lane.b32.xlu0 %v6863, 96
        %v6883 = vpop.permute.xlu0 %6882
        %6884 = vrot.lane.b32.xlu0 %v6865, 96
        %v6885 = vpop.permute.xlu0 %6884
        %6886 = vrot.lane.b32.xlu0 %v6867, 96
        %v6887 = vpop.permute.xlu0 %6886
        %6888 = vrot.lane.b32.xlu0 %v6869, 96
        %v6889 = vpop.permute.xlu0 %6888
        %6890 = vrot.lane.b32.xlu0 %v6871, 96
        %v6891 = vpop.permute.xlu0 %6890
        %6892 = vrot.lane.b32.xlu0 %v6873, 96
        %v6893 = vpop.permute.xlu0 %6892
        %6894 = vrot.lane.b32.xlu0 %v6875, 96
        %v6895 = vpop.permute.xlu0 %6894
        %v6906 = vadd.f32 %v6844, %v6877
        %v6907 = vadd.f32 %v6845, %v6879
        %v6908 = vadd.f32 %v6846, %v6881
        %v6909 = vadd.f32 %v6847, %v6883
        %v6910 = vadd.f32 %v6848, %v6885
        %v6911 = vadd.f32 %v6849, %v6887
        %v6912 = vadd.f32 %v6850, %v6889
        %v6913 = vadd.f32 %v6851, %v6891
        %v6914 = vadd.f32 %v6852, %v6893
        %v6915 = vadd.f32 %v6853, %v6895
        %v6916 = vrot.slane %v4540, 6
        %v6917 = vrot.slane %v4546, 6
        %v6918 = vsel %vm5194, %v6916, %v6917
        %v6919 = vrot.slane %v4552, 6
        %v6920 = vsel %vm5194, %v6917, %v6919
        %v6921 = vrot.slane %v4558, 6
        %v6922 = vsel %vm5194, %v6919, %v6921
        %v6923 = vrot.slane %v4564, 6
        %v6924 = vsel %vm5194, %v6921, %v6923
        %v6925 = vrot.slane %v4570, 6
        %v6926 = vsel %vm5194, %v6923, %v6925
        %v6927 = vrot.slane %v4576, 6
        %v6928 = vsel %vm5194, %v6925, %v6927
        %v6929 = vrot.slane %v4582, 6
        %v6930 = vsel %vm5194, %v6927, %v6929
        %v6931 = vrot.slane %v4588, 6
        %v6932 = vsel %vm5194, %v6929, %v6931
        %v6933 = vrot.slane %v4594, 6
        %v6934 = vsel %vm5194, %v6931, %v6933
        %v6935 = vrot.slane %v4599, 6
        %v6936 = vsel %vm5194, %v6933, %v6935
        %6937 = vrot.lane.b32.xlu0 %v6918, 64
        %v6938 = vpop.permute.xlu0 %6937
        %6939 = vrot.lane.b32.xlu0 %v6920, 64
        %v6940 = vpop.permute.xlu0 %6939
        %6941 = vrot.lane.b32.xlu0 %v6922, 64
        %v6942 = vpop.permute.xlu0 %6941
        %6943 = vrot.lane.b32.xlu0 %v6924, 64
        %v6944 = vpop.permute.xlu0 %6943
        %6945 = vrot.lane.b32.xlu0 %v6926, 64
        %v6946 = vpop.permute.xlu0 %6945
        %6947 = vrot.lane.b32.xlu0 %v6928, 64
        %v6948 = vpop.permute.xlu0 %6947
        %6949 = vrot.lane.b32.xlu0 %v6930, 64
        %v6950 = vpop.permute.xlu0 %6949
        %6951 = vrot.lane.b32.xlu0 %v6932, 64
        %v6952 = vpop.permute.xlu0 %6951
        %6953 = vrot.lane.b32.xlu0 %v6934, 64
        %v6954 = vpop.permute.xlu0 %6953
        %6955 = vrot.lane.b32.xlu0 %v6936, 64
        %v6956 = vpop.permute.xlu0 %6955
        %v6967 = vadd.f32 %v6906, %v6938
        %v6968 = vadd.f32 %v6907, %v6940
        %v6969 = vadd.f32 %v6908, %v6942
        %v6970 = vadd.f32 %v6909, %v6944
        %v6971 = vadd.f32 %v6910, %v6946
        %v6972 = vadd.f32 %v6911, %v6948
        %v6973 = vadd.f32 %v6912, %v6950
        %v6974 = vadd.f32 %v6913, %v6952
        %v6975 = vadd.f32 %v6914, %v6954
        %v6976 = vadd.f32 %v6915, %v6956
        %v6977 = vrot.slane %v4540, 7
        %v6978 = vrot.slane %v4546, 7
        %v6979 = vsel %vm5256, %v6977, %v6978
        %v6980 = vrot.slane %v4552, 7
        %v6981 = vsel %vm5256, %v6978, %v6980
        %v6982 = vrot.slane %v4558, 7
        %v6983 = vsel %vm5256, %v6980, %v6982
        %v6984 = vrot.slane %v4564, 7
        %v6985 = vsel %vm5256, %v6982, %v6984
        %v6986 = vrot.slane %v4570, 7
        %v6987 = vsel %vm5256, %v6984, %v6986
        %v6988 = vrot.slane %v4576, 7
        %v6989 = vsel %vm5256, %v6986, %v6988
        %v6990 = vrot.slane %v4582, 7
        %v6991 = vsel %vm5256, %v6988, %v6990
        %v6992 = vrot.slane %v4588, 7
        %v6993 = vsel %vm5256, %v6990, %v6992
        %v6994 = vrot.slane %v4594, 7
        %v6995 = vsel %vm5256, %v6992, %v6994
        %v6996 = vrot.slane %v4599, 7
        %v6997 = vsel %vm5256, %v6994, %v6996
        %6998 = vrot.lane.b32.xlu0 %v6979, 32
        %v6999 = vpop.permute.xlu0 %6998
        %7000 = vrot.lane.b32.xlu0 %v6981, 32
        %v7001 = vpop.permute.xlu0 %7000
        %7002 = vrot.lane.b32.xlu0 %v6983, 32
        %v7003 = vpop.permute.xlu0 %7002
        %7004 = vrot.lane.b32.xlu0 %v6985, 32
        %v7005 = vpop.permute.xlu0 %7004
        %7006 = vrot.lane.b32.xlu0 %v6987, 32
        %v7007 = vpop.permute.xlu0 %7006
        %7008 = vrot.lane.b32.xlu0 %v6989, 32
        %v7009 = vpop.permute.xlu0 %7008
        %7010 = vrot.lane.b32.xlu0 %v6991, 32
        %v7011 = vpop.permute.xlu0 %7010
        %7012 = vrot.lane.b32.xlu0 %v6993, 32
        %v7013 = vpop.permute.xlu0 %7012
        %7014 = vrot.lane.b32.xlu0 %v6995, 32
        %v7015 = vpop.permute.xlu0 %7014
        %7016 = vrot.lane.b32.xlu0 %v6997, 32
        %v7017 = vpop.permute.xlu0 %7016
        %v7028 = vadd.f32 %v6967, %v6999
        %v7029 = vadd.f32 %v6968, %v7001
        %v7030 = vadd.f32 %v6969, %v7003
        %v7031 = vadd.f32 %v6970, %v7005
        %v7032 = vadd.f32 %v6971, %v7007
        %v7033 = vadd.f32 %v6972, %v7009
        %v7034 = vadd.f32 %v6973, %v7011
        %v7035 = vadd.f32 %v6974, %v7013
        %v7036 = vadd.f32 %v6975, %v7015
        %v7037 = vadd.f32 %v6976, %v7017
        %v7038 = vadd.f32 %v7028, %v4692
        %v7039 = vadd.f32 %v7029, %v4698
        %v7040 = vadd.f32 %v7030, %v4704
        %v7041 = vadd.f32 %v7031, %v4710
        %v7042 = vadd.f32 %v7032, %v4716
        %v7043 = vadd.f32 %v7033, %v4722
        %v7044 = vadd.f32 %v7034, %v4728
        %v7045 = vadd.f32 %v7035, %v4734
        %v7046 = vadd.f32 %v7036, %v4740
        %v7047 = vadd.f32 %v7037, %v4746
        %v7058 = vrot.slane %v4692, 1
        %v7059 = vrot.slane %v4698, 1
        %v7060 = vsel %vm1136, %v7058, %v7059
        %v7061 = vrot.slane %v4704, 1
        %v7062 = vsel %vm1136, %v7059, %v7061
        %v7063 = vrot.slane %v4710, 1
        %v7064 = vsel %vm1136, %v7061, %v7063
        %v7065 = vrot.slane %v4716, 1
        %v7066 = vsel %vm1136, %v7063, %v7065
        %v7067 = vrot.slane %v4722, 1
        %v7068 = vsel %vm1136, %v7065, %v7067
        %v7069 = vrot.slane %v4728, 1
        %v7070 = vsel %vm1136, %v7067, %v7069
        %v7071 = vrot.slane %v4734, 1
        %v7072 = vsel %vm1136, %v7069, %v7071
        %v7073 = vrot.slane %v4740, 1
        %v7074 = vsel %vm1136, %v7071, %v7073
        %v7075 = vrot.slane %v4746, 1
        %v7076 = vsel %vm1136, %v7073, %v7075
        %7077 = vrot.lane.b32.xlu0 %v7060, 96
        %v7078 = vpop.permute.xlu0 %7077
        %7079 = vrot.lane.b32.xlu0 %v7062, 96
        %v7080 = vpop.permute.xlu0 %7079
        %7081 = vrot.lane.b32.xlu0 %v7064, 96
        %v7082 = vpop.permute.xlu0 %7081
        %7083 = vrot.lane.b32.xlu0 %v7066, 96
        %v7084 = vpop.permute.xlu0 %7083
        %7085 = vrot.lane.b32.xlu0 %v7068, 96
        %v7086 = vpop.permute.xlu0 %7085
        %7087 = vrot.lane.b32.xlu0 %v7070, 96
        %v7088 = vpop.permute.xlu0 %7087
        %7089 = vrot.lane.b32.xlu0 %v7072, 96
        %v7090 = vpop.permute.xlu0 %7089
        %7091 = vrot.lane.b32.xlu0 %v7074, 96
        %v7092 = vpop.permute.xlu0 %7091
        %7093 = vrot.lane.b32.xlu0 %v7076, 96
        %v7094 = vpop.permute.xlu0 %7093
        %7095 = vrot.lane.b32.xlu0 %v7075, 96
        %v7096 = vpop.permute.xlu0 %7095
        %v7107 = vadd.f32 %v7038, %v7078
        %v7108 = vadd.f32 %v7039, %v7080
        %v7109 = vadd.f32 %v7040, %v7082
        %v7110 = vadd.f32 %v7041, %v7084
        %v7111 = vadd.f32 %v7042, %v7086
        %v7112 = vadd.f32 %v7043, %v7088
        %v7113 = vadd.f32 %v7044, %v7090
        %v7114 = vadd.f32 %v7045, %v7092
        %v7115 = vadd.f32 %v7046, %v7094
        %v7116 = vadd.f32 %v7047, %v7096
        %v7117 = vrot.slane %v4692, 2
        %v7118 = vrot.slane %v4698, 2
        %v7119 = vsel %vm1514, %v7117, %v7118
        %v7120 = vrot.slane %v4704, 2
        %v7121 = vsel %vm1514, %v7118, %v7120
        %v7122 = vrot.slane %v4710, 2
        %v7123 = vsel %vm1514, %v7120, %v7122
        %v7124 = vrot.slane %v4716, 2
        %v7125 = vsel %vm1514, %v7122, %v7124
        %v7126 = vrot.slane %v4722, 2
        %v7127 = vsel %vm1514, %v7124, %v7126
        %v7128 = vrot.slane %v4728, 2
        %v7129 = vsel %vm1514, %v7126, %v7128
        %v7130 = vrot.slane %v4734, 2
        %v7131 = vsel %vm1514, %v7128, %v7130
        %v7132 = vrot.slane %v4740, 2
        %v7133 = vsel %vm1514, %v7130, %v7132
        %v7134 = vrot.slane %v4746, 2
        %v7135 = vsel %vm1514, %v7132, %v7134
        %7136 = vrot.lane.b32.xlu0 %v7119, 64
        %v7137 = vpop.permute.xlu0 %7136
        %7138 = vrot.lane.b32.xlu0 %v7121, 64
        %v7139 = vpop.permute.xlu0 %7138
        %7140 = vrot.lane.b32.xlu0 %v7123, 64
        %v7141 = vpop.permute.xlu0 %7140
        %7142 = vrot.lane.b32.xlu0 %v7125, 64
        %v7143 = vpop.permute.xlu0 %7142
        %7144 = vrot.lane.b32.xlu0 %v7127, 64
        %v7145 = vpop.permute.xlu0 %7144
        %7146 = vrot.lane.b32.xlu0 %v7129, 64
        %v7147 = vpop.permute.xlu0 %7146
        %7148 = vrot.lane.b32.xlu0 %v7131, 64
        %v7149 = vpop.permute.xlu0 %7148
        %7150 = vrot.lane.b32.xlu0 %v7133, 64
        %v7151 = vpop.permute.xlu0 %7150
        %7152 = vrot.lane.b32.xlu0 %v7135, 64
        %v7153 = vpop.permute.xlu0 %7152
        %7154 = vrot.lane.b32.xlu0 %v7134, 64
        %v7155 = vpop.permute.xlu0 %7154
        %v7166 = vadd.f32 %v7107, %v7137
        %v7167 = vadd.f32 %v7108, %v7139
        %v7168 = vadd.f32 %v7109, %v7141
        %v7169 = vadd.f32 %v7110, %v7143
        %v7170 = vadd.f32 %v7111, %v7145
        %v7171 = vadd.f32 %v7112, %v7147
        %v7172 = vadd.f32 %v7113, %v7149
        %v7173 = vadd.f32 %v7114, %v7151
        %v7174 = vadd.f32 %v7115, %v7153
        %v7175 = vadd.f32 %v7116, %v7155
        %v7176 = vrot.slane %v4692, 3
        %v7177 = vrot.slane %v4698, 3
        %v7178 = vsel %vm1892, %v7176, %v7177
        %v7179 = vrot.slane %v4704, 3
        %v7180 = vsel %vm1892, %v7177, %v7179
        %v7181 = vrot.slane %v4710, 3
        %v7182 = vsel %vm1892, %v7179, %v7181
        %v7183 = vrot.slane %v4716, 3
        %v7184 = vsel %vm1892, %v7181, %v7183
        %v7185 = vrot.slane %v4722, 3
        %v7186 = vsel %vm1892, %v7183, %v7185
        %v7187 = vrot.slane %v4728, 3
        %v7188 = vsel %vm1892, %v7185, %v7187
        %v7189 = vrot.slane %v4734, 3
        %v7190 = vsel %vm1892, %v7187, %v7189
        %v7191 = vrot.slane %v4740, 3
        %v7192 = vsel %vm1892, %v7189, %v7191
        %v7193 = vrot.slane %v4746, 3
        %v7194 = vsel %vm1892, %v7191, %v7193
        %7195 = vrot.lane.b32.xlu0 %v7178, 32
        %v7196 = vpop.permute.xlu0 %7195
        %7197 = vrot.lane.b32.xlu0 %v7180, 32
        %v7198 = vpop.permute.xlu0 %7197
        %7199 = vrot.lane.b32.xlu0 %v7182, 32
        %v7200 = vpop.permute.xlu0 %7199
        %7201 = vrot.lane.b32.xlu0 %v7184, 32
        %v7202 = vpop.permute.xlu0 %7201
        %7203 = vrot.lane.b32.xlu0 %v7186, 32
        %v7204 = vpop.permute.xlu0 %7203
        %7205 = vrot.lane.b32.xlu0 %v7188, 32
        %v7206 = vpop.permute.xlu0 %7205
        %7207 = vrot.lane.b32.xlu0 %v7190, 32
        %v7208 = vpop.permute.xlu0 %7207
        %7209 = vrot.lane.b32.xlu0 %v7192, 32
        %v7210 = vpop.permute.xlu0 %7209
        %7211 = vrot.lane.b32.xlu0 %v7194, 32
        %v7212 = vpop.permute.xlu0 %7211
        %7213 = vrot.lane.b32.xlu0 %v7193, 32
        %v7214 = vpop.permute.xlu0 %7213
        %v7225 = vadd.f32 %v7166, %v7196
        %v7226 = vadd.f32 %v7167, %v7198
        %v7227 = vadd.f32 %v7168, %v7200
        %v7228 = vadd.f32 %v7169, %v7202
        %v7229 = vadd.f32 %v7170, %v7204
        %v7230 = vadd.f32 %v7171, %v7206
        %v7231 = vadd.f32 %v7172, %v7208
        %v7232 = vadd.f32 %v7173, %v7210
        %v7233 = vadd.f32 %v7174, %v7212
        %v7234 = vadd.f32 %v7175, %v7214
        %v7245 = vrot.slane %v4694, 4
        %v7246 = vrot.slane %v4700, 4
        %v7247 = vsel %vm5091, %v7245, %v7246
        %v7248 = vrot.slane %v4706, 4
        %v7249 = vsel %vm5091, %v7246, %v7248
        %v7250 = vrot.slane %v4712, 4
        %v7251 = vsel %vm5091, %v7248, %v7250
        %v7252 = vrot.slane %v4718, 4
        %v7253 = vsel %vm5091, %v7250, %v7252
        %v7254 = vrot.slane %v4724, 4
        %v7255 = vsel %vm5091, %v7252, %v7254
        %v7256 = vrot.slane %v4730, 4
        %v7257 = vsel %vm5091, %v7254, %v7256
        %v7258 = vrot.slane %v4736, 4
        %v7259 = vsel %vm5091, %v7256, %v7258
        %v7260 = vrot.slane %v4742, 4
        %v7261 = vsel %vm5091, %v7258, %v7260
        %v7262 = vrot.slane %v4748, 4
        %v7263 = vsel %vm5091, %v7260, %v7262
        %v7274 = vadd.f32 %v7225, %v7247
        %v7275 = vadd.f32 %v7226, %v7249
        %v7276 = vadd.f32 %v7227, %v7251
        %v7277 = vadd.f32 %v7228, %v7253
        %v7278 = vadd.f32 %v7229, %v7255
        %v7279 = vadd.f32 %v7230, %v7257
        %v7280 = vadd.f32 %v7231, %v7259
        %v7281 = vadd.f32 %v7232, %v7261
        %v7282 = vadd.f32 %v7233, %v7263
        %v7283 = vadd.f32 %v7234, %v7262
        %v7285 = vrot.slane %v4694, 5
        %v7286 = vrot.slane %v4700, 5
        %v7287 = vsel %vm5132, %v7285, %v7286
        %v7288 = vrot.slane %v4706, 5
        %v7289 = vsel %vm5132, %v7286, %v7288
        %v7290 = vrot.slane %v4712, 5
        %v7291 = vsel %vm5132, %v7288, %v7290
        %v7292 = vrot.slane %v4718, 5
        %v7293 = vsel %vm5132, %v7290, %v7292
        %v7294 = vrot.slane %v4724, 5
        %v7295 = vsel %vm5132, %v7292, %v7294
        %v7296 = vrot.slane %v4730, 5
        %v7297 = vsel %vm5132, %v7294, %v7296
        %v7298 = vrot.slane %v4736, 5
        %v7299 = vsel %vm5132, %v7296, %v7298
        %v7300 = vrot.slane %v4742, 5
        %v7301 = vsel %vm5132, %v7298, %v7300
        %v7302 = vrot.slane %v4748, 5
        %v7303 = vsel %vm5132, %v7300, %v7302
        %v7304 = vrot.slane %v4753, 5
        %v7305 = vsel %vm5132, %v7302, %v7304
        %7306 = vrot.lane.b32.xlu0 %v7287, 96
        %v7307 = vpop.permute.xlu0 %7306
        %7308 = vrot.lane.b32.xlu0 %v7289, 96
        %v7309 = vpop.permute.xlu0 %7308
        %7310 = vrot.lane.b32.xlu0 %v7291, 96
        %v7311 = vpop.permute.xlu0 %7310
        %7312 = vrot.lane.b32.xlu0 %v7293, 96
        %v7313 = vpop.permute.xlu0 %7312
        %7314 = vrot.lane.b32.xlu0 %v7295, 96
        %v7315 = vpop.permute.xlu0 %7314
        %7316 = vrot.lane.b32.xlu0 %v7297, 96
        %v7317 = vpop.permute.xlu0 %7316
        %7318 = vrot.lane.b32.xlu0 %v7299, 96
        %v7319 = vpop.permute.xlu0 %7318
        %7320 = vrot.lane.b32.xlu0 %v7301, 96
        %v7321 = vpop.permute.xlu0 %7320
        %7322 = vrot.lane.b32.xlu0 %v7303, 96
        %v7323 = vpop.permute.xlu0 %7322
        %7324 = vrot.lane.b32.xlu0 %v7305, 96
        %v7325 = vpop.permute.xlu0 %7324
        %v7336 = vadd.f32 %v7274, %v7307
        %v7337 = vadd.f32 %v7275, %v7309
        %v7338 = vadd.f32 %v7276, %v7311
        %v7339 = vadd.f32 %v7277, %v7313
        %v7340 = vadd.f32 %v7278, %v7315
        %v7341 = vadd.f32 %v7279, %v7317
        %v7342 = vadd.f32 %v7280, %v7319
        %v7343 = vadd.f32 %v7281, %v7321
        %v7344 = vadd.f32 %v7282, %v7323
        %v7345 = vadd.f32 %v7283, %v7325
        %v7346 = vrot.slane %v4694, 6
        %v7347 = vrot.slane %v4700, 6
        %v7348 = vsel %vm5194, %v7346, %v7347
        %v7349 = vrot.slane %v4706, 6
        %v7350 = vsel %vm5194, %v7347, %v7349
        %v7351 = vrot.slane %v4712, 6
        %v7352 = vsel %vm5194, %v7349, %v7351
        %v7353 = vrot.slane %v4718, 6
        %v7354 = vsel %vm5194, %v7351, %v7353
        %v7355 = vrot.slane %v4724, 6
        %v7356 = vsel %vm5194, %v7353, %v7355
        %v7357 = vrot.slane %v4730, 6
        %v7358 = vsel %vm5194, %v7355, %v7357
        %v7359 = vrot.slane %v4736, 6
        %v7360 = vsel %vm5194, %v7357, %v7359
        %v7361 = vrot.slane %v4742, 6
        %v7362 = vsel %vm5194, %v7359, %v7361
        %v7363 = vrot.slane %v4748, 6
        %v7364 = vsel %vm5194, %v7361, %v7363
        %v7365 = vrot.slane %v4753, 6
        %v7366 = vsel %vm5194, %v7363, %v7365
        %7367 = vrot.lane.b32.xlu0 %v7348, 64
        %v7368 = vpop.permute.xlu0 %7367
        %7369 = vrot.lane.b32.xlu0 %v7350, 64
        %v7370 = vpop.permute.xlu0 %7369
        %7371 = vrot.lane.b32.xlu0 %v7352, 64
        %v7372 = vpop.permute.xlu0 %7371
        %7373 = vrot.lane.b32.xlu0 %v7354, 64
        %v7374 = vpop.permute.xlu0 %7373
        %7375 = vrot.lane.b32.xlu0 %v7356, 64
        %v7376 = vpop.permute.xlu0 %7375
        %7377 = vrot.lane.b32.xlu0 %v7358, 64
        %v7378 = vpop.permute.xlu0 %7377
        %7379 = vrot.lane.b32.xlu0 %v7360, 64
        %v7380 = vpop.permute.xlu0 %7379
        %7381 = vrot.lane.b32.xlu0 %v7362, 64
        %v7382 = vpop.permute.xlu0 %7381
        %7383 = vrot.lane.b32.xlu0 %v7364, 64
        %v7384 = vpop.permute.xlu0 %7383
        %7385 = vrot.lane.b32.xlu0 %v7366, 64
        %v7386 = vpop.permute.xlu0 %7385
        %v7397 = vadd.f32 %v7336, %v7368
        %v7398 = vadd.f32 %v7337, %v7370
        %v7399 = vadd.f32 %v7338, %v7372
        %v7400 = vadd.f32 %v7339, %v7374
        %v7401 = vadd.f32 %v7340, %v7376
        %v7402 = vadd.f32 %v7341, %v7378
        %v7403 = vadd.f32 %v7342, %v7380
        %v7404 = vadd.f32 %v7343, %v7382
        %v7405 = vadd.f32 %v7344, %v7384
        %v7406 = vadd.f32 %v7345, %v7386
        %v7407 = vrot.slane %v4694, 7
        %v7408 = vrot.slane %v4700, 7
        %v7409 = vsel %vm5256, %v7407, %v7408
        %v7410 = vrot.slane %v4706, 7
        %v7411 = vsel %vm5256, %v7408, %v7410
        %v7412 = vrot.slane %v4712, 7
        %v7413 = vsel %vm5256, %v7410, %v7412
        %v7414 = vrot.slane %v4718, 7
        %v7415 = vsel %vm5256, %v7412, %v7414
        %v7416 = vrot.slane %v4724, 7
        %v7417 = vsel %vm5256, %v7414, %v7416
        %v7418 = vrot.slane %v4730, 7
        %v7419 = vsel %vm5256, %v7416, %v7418
        %v7420 = vrot.slane %v4736, 7
        %v7421 = vsel %vm5256, %v7418, %v7420
        %v7422 = vrot.slane %v4742, 7
        %v7423 = vsel %vm5256, %v7420, %v7422
        %v7424 = vrot.slane %v4748, 7
        %v7425 = vsel %vm5256, %v7422, %v7424
        %v7426 = vrot.slane %v4753, 7
        %v7427 = vsel %vm5256, %v7424, %v7426
        %7428 = vrot.lane.b32.xlu0 %v7409, 32
        %v7429 = vpop.permute.xlu0 %7428
        %7430 = vrot.lane.b32.xlu0 %v7411, 32
        %v7431 = vpop.permute.xlu0 %7430
        %7432 = vrot.lane.b32.xlu0 %v7413, 32
        %v7433 = vpop.permute.xlu0 %7432
        %7434 = vrot.lane.b32.xlu0 %v7415, 32
        %v7435 = vpop.permute.xlu0 %7434
        %7436 = vrot.lane.b32.xlu0 %v7417, 32
        %v7437 = vpop.permute.xlu0 %7436
        %7438 = vrot.lane.b32.xlu0 %v7419, 32
        %v7439 = vpop.permute.xlu0 %7438
        %7440 = vrot.lane.b32.xlu0 %v7421, 32
        %v7441 = vpop.permute.xlu0 %7440
        %7442 = vrot.lane.b32.xlu0 %v7423, 32
        %v7443 = vpop.permute.xlu0 %7442
        %7444 = vrot.lane.b32.xlu0 %v7425, 32
        %v7445 = vpop.permute.xlu0 %7444
        %7446 = vrot.lane.b32.xlu0 %v7427, 32
        %v7447 = vpop.permute.xlu0 %7446
        %v7458 = vadd.f32 %v7397, %v7429
        %v7459 = vadd.f32 %v7398, %v7431
        %v7460 = vadd.f32 %v7399, %v7433
        %v7461 = vadd.f32 %v7400, %v7435
        %v7462 = vadd.f32 %v7401, %v7437
        %v7463 = vadd.f32 %v7402, %v7439
        %v7464 = vadd.f32 %v7403, %v7441
        %v7465 = vadd.f32 %v7404, %v7443
        %v7466 = vadd.f32 %v7405, %v7445
        %v7467 = vadd.f32 %v7406, %v7447
        %v7468 = vadd.f32 %v7458, %v4846
        %v7469 = vadd.f32 %v7459, %v4851
        %v7470 = vadd.f32 %v7460, %v4856
        %v7471 = vadd.f32 %v7461, %v4861
        %v7472 = vadd.f32 %v7462, %v4866
        %v7473 = vadd.f32 %v7463, %v4871
        %v7474 = vadd.f32 %v7464, %v4876
        %v7475 = vadd.f32 %v7465, %v4881
        %v7476 = vadd.f32 %v7466, %v4886
        %v7477 = vadd.f32 %v7467, %v4891
        %v7478 = vld [vmem:[%s4] sm:$0x1]
        %v7480 = vlaneseq
        %v7481 = vshrl.u32 %v7480, 7
        %v7482 = vsub.s32 0, %v7481
        %v7483 = vrot.slane %v7478, %v7482
        %v7485 = vadd.f32 %v7468, %v7483
        %v7486 = vadd.f32 %v7469, %v7483
        %v7487 = vadd.f32 %v7470, %v7483
        %v7488 = vadd.f32 %v7471, %v7483
        %v7489 = vadd.f32 %v7472, %v7483
        %v7490 = vadd.f32 %v7473, %v7483
        %v7491 = vadd.f32 %v7474, %v7483
        %v7492 = vadd.f32 %v7475, %v7483
        %v7493 = vadd.f32 %v7476, %v7483
        %v7494 = vadd.f32 %v7477, %v7483
        %v7495 = vmax.f32 %v7485, 0.0
        %v7496 = vmax.f32 %v7486, 0.0
        %v7497 = vmax.f32 %v7487, 0.0
        %v7498 = vmax.f32 %v7488, 0.0
        %v7499 = vmax.f32 %v7489, 0.0
        %v7500 = vmax.f32 %v7490, 0.0
        %v7501 = vmax.f32 %v7491, 0.0
        %v7502 = vmax.f32 %v7492, 0.0
        %v7503 = vmax.f32 %v7493, 0.0
        %v7504 = vmax.f32 %v7494, 0.0
        %v7515 = vrot.slane %v7495, 1
        %v7516 = vrot.slane %v7496, 1
        %v7517 = vsel %vm1136, %v7515, %v7516
        %v7518 = vrot.slane %v7497, 1
        %v7519 = vsel %vm1136, %v7516, %v7518
        %v7520 = vrot.slane %v7498, 1
        %v7521 = vsel %vm1136, %v7518, %v7520
        %v7522 = vrot.slane %v7499, 1
        %v7523 = vsel %vm1136, %v7520, %v7522
        %v7524 = vrot.slane %v7500, 1
        %v7525 = vsel %vm1136, %v7522, %v7524
        %v7526 = vrot.slane %v7501, 1
        %v7527 = vsel %vm1136, %v7524, %v7526
        %v7528 = vrot.slane %v7502, 1
        %v7529 = vsel %vm1136, %v7526, %v7528
        %v7530 = vrot.slane %v7503, 1
        %v7531 = vsel %vm1136, %v7528, %v7530
        %v7532 = vrot.slane %v7504, 1
        %v7533 = vsel %vm1136, %v7530, %v7532
        %v7544 = vmax.f32 %v7495, %v7517
        %v7545 = vmax.f32 %v7496, %v7519
        %v7546 = vmax.f32 %v7497, %v7521
        %v7547 = vmax.f32 %v7498, %v7523
        %v7548 = vmax.f32 %v7499, %v7525
        %v7549 = vmax.f32 %v7500, %v7527
        %v7550 = vmax.f32 %v7501, %v7529
        %v7551 = vmax.f32 %v7502, %v7531
        %v7552 = vmax.f32 %v7503, %v7533
        %v7553 = vmax.f32 %v7504, %v7532
        %v7554 = vmul.u32 %v3210, 2
        %v7555 = vmul.u32 %v3211, 2
        %v7556 = vmul.u32 %v3212, 2
        %v7557 = vmul.u32 %v3213, 2
        %v7558 = vmul.u32 %v3214, 2
        %vm7559 = vcmp.eq.s32.totalorder %v3227, %v7554
        %vm7560 = vcmp.eq.s32.totalorder %v3227, %v7555
        %vm7561 = vcmp.eq.s32.totalorder %v3227, %v7556
        %vm7562 = vcmp.eq.s32.totalorder %v3227, %v7557
        %vm7563 = vcmp.eq.s32.totalorder %v3227, %v7558
        %v7564 = vsel %vm7559, 1, 0
        %v7565 = vsel %vm7560, 1, 0
        %v7566 = vsel %vm7561, 1, 0
        %v7567 = vsel %vm7562, 1, 0
        %v7568 = vsel %vm7563, 1, 0
        %v7569 = vcvt.s32.f32 %v7564
        %v7570 = vcvt.s32.f32 %v7565
        %v7571 = vcvt.s32.f32 %v7566
        %v7572 = vcvt.s32.f32 %v7567
        %v7573 = vcvt.s32.f32 %v7568
        %vm7574 = vcmask 613376
        %v7576 = vsel %vm7574, %v7569, 0
        %v7579 = vsel %vm7574, %v7570, 0
        %v7582 = vsel %vm7574, %v7571, 0
        %v7585 = vsel %vm7574, %v7572, 0
        %v7588 = vsel %vm7574, %v7573, 0
        %v7591 = vsel %vm5132, %v7553, 0
        %7593 = vmatprep.subr.mxu0 0.0
        %7594 = vmatpush1.msra.mxu0 0.0
        %7595 = vmatprep.subr.mxu0 0.0
        %7596 = vmatpush1.msra.mxu0 0.0
        %7597 = vmatprep.subr.mxu0 0.0
        %7598 = vmatpush1.msra.mxu0 0.0
        %7599 = vmatprep.subr.mxu0 0.0
        %7600 = vmatpush1.msra.mxu0 0.0
        %7601 = vmatprep.subr.mxu0 0.0
        %7602 = vmatpush1.msra.mxu0 0.0
        %7603 = vmatprep.subr.mxu0 0.0
        %7604 = vmatpush1.msra.mxu0 0.0
        %7605 = vmatprep.subr.mxu0 0.0
        %7606 = vmatpush1.msra.mxu0 %v7591
        %7607 = vmatprep.subr.mxu0 0.0
        %7608 = vmatpush1.msra.mxu0 %v7552
        %7609 = vmatprep.subr.mxu0 0.0
        %7610 = vmatpush1.msra.mxu0 %v7551
        %7611 = vmatprep.subr.mxu0 0.0
        %7612 = vmatpush1.msra.mxu0 %v7550
        %7613 = vmatprep.subr.mxu0 0.0
        %7614 = vmatpush1.msra.mxu0 %v7549
        %7615 = vmatprep.subr.mxu0 0.0
        %7616 = vmatpush1.msra.mxu0 %v7548
        %7617 = vmatprep.subr.mxu0 0.0
        %7618 = vmatpush1.msra.mxu0 %v7547
        %7619 = vmatprep.subr.mxu0 0.0
        %7620 = vmatpush1.msra.mxu0 %v7546
        %7621 = vmatprep.subr.mxu0 0.0
        %7622 = vmatpush1.msra.mxu0 %v7545
        %7623 = vmatprep.subr.mxu0 0.0
        %7624 = vmatpush1.msra.mxu0 %v7544
        %7625 = vmatprep.subr.mxu0 0.0
        %7626 = vmatpush2.msra.mxu0 0.0
        %7627 = vmatprep.subr.mxu0 0.0
        %7628 = vmatpush2.msra.mxu0 0.0
        %7629 = vmatprep.subr.mxu0 0.0
        %7630 = vmatpush2.msra.mxu0 0.0
        %7631 = vmatprep.subr.mxu0 0.0
        %7632 = vmatpush2.msra.mxu0 0.0
        %7633 = vmatprep.subr.mxu0 0.0
        %7634 = vmatpush2.msra.mxu0 0.0
        %7635 = vmatprep.subr.mxu0 0.0
        %7636 = vmatpush2.msra.mxu0 0.0
        %7637 = vmatprep.subr.mxu0 0.0
        %7638 = vmatpush2.msra.mxu0 0.0
        %7639 = vmatprep.subr.mxu0 0.0
        %7640 = vmatpush2.msra.mxu0 0.0
        %7641 = vmatprep.subr.mxu0 0.0
        %7642 = vmatpush2.msra.mxu0 0.0
        %7643 = vmatprep.subr.mxu0 0.0
        %7644 = vmatpush2.msra.mxu0 0.0
        %7645 = vmatprep.subr.mxu0 0.0
        %7646 = vmatpush2.msra.mxu0 0.0
        %7647 = vmatprep.subr.mxu0 0.0
        %7648 = vmatpush2.msra.mxu0 0.0
        %7649 = vmatprep.subr.mxu0 0.0
        %7650 = vmatpush2.msra.mxu0 0.0
        %7651 = vmatprep.subr.mxu0 0.0
        %7652 = vmatpush2.msra.mxu0 0.0
        %7653 = vmatprep.subr.mxu0 0.0
        %7654 = vmatpush2.msra.mxu0 0.0
        %7655 = vmatprep.subr.mxu0 0.0
        %7656 = vmatpush2.msra.mxu0 0.0
        %7657 = vmatprep.mubr.f32.mxu0 0.0
        %7658 = vmatmul.mubr.f32.gmra.mxu0 %v7576
        %v7659 = vpop.f32.mrf.mxu0
        %v7660 = vadd.f32 0.0, %v7659
        %v7661 = vpop.f32.mrf.mxu0
        %7662 = vmatprep.mubr.f32.mxu0 0.0
        %7663 = vmatmul.mubr.f32.gmra.mxu0 %v7579
        %v7664 = vpop.f32.mrf.mxu0
        %v7665 = vadd.f32 0.0, %v7664
        %v7666 = vpop.f32.mrf.mxu0
        %7667 = vmatprep.mubr.f32.mxu0 0.0
        %7668 = vmatmul.mubr.f32.gmra.mxu0 %v7582
        %v7669 = vpop.f32.mrf.mxu0
        %v7670 = vadd.f32 0.0, %v7669
        %v7671 = vpop.f32.mrf.mxu0
        %7672 = vmatprep.mubr.f32.mxu0 0.0
        %7673 = vmatmul.mubr.f32.gmra.mxu0 %v7585
        %v7674 = vpop.f32.mrf.mxu0
        %v7675 = vadd.f32 0.0, %v7674
        %v7676 = vpop.f32.mrf.mxu0
        %7677 = vmatprep.mubr.f32.mxu0 0.0
        %7678 = vmatmul.mubr.f32.gmra.mxu0 %v7588
        %v7679 = vpop.f32.mrf.mxu0
        %v7680 = vadd.f32 0.0, %v7679
        %v7681 = vpop.f32.mrf.mxu0
        %7682 = vdwg.mxu0
        %v7683 = vld [vmem:[%s5] sm:$0xff]
        %v7684 = vld [vmem:[%s5 + $0x8] sm:$0xff]
        %v7685 = vld [vmem:[%s5 + $0x10] sm:$0xff]
        %v7686 = vld [vmem:[%s5 + $0x18] sm:$0xff]
        %v7687 = vld [vmem:[%s5 + $0x20] sm:$0xff]
        %v7688 = vld [vmem:[%s5 + $0x28] sm:$0xff]
        %v7689 = vld [vmem:[%s5 + $0x30] sm:$0xff]
        %v7690 = vld [vmem:[%s5 + $0x38] sm:$0xff]
        %v7691 = vld [vmem:[%s5 + $0x40] sm:$0xff]
        %v7692 = vld [vmem:[%s5 + $0x48] sm:$0xff]
        %v7693 = vld [vmem:[%s5 + $0x50] sm:$0xff]
        %v7694 = vld [vmem:[%s5 + $0x58] sm:$0xff]
        %v7695 = vld [vmem:[%s5 + $0x60] sm:$0xff]
        %v7696 = vld [vmem:[%s5 + $0x68] sm:$0xff]
        %v7697 = vld [vmem:[%s5 + $0x70] sm:$0xff]
        %v7698 = vld [vmem:[%s5 + $0x78] sm:$0xff]
        %vm7699 = vcmask 261120
        %v7701 = vsel %vm7699, %v7660, 0
        %v7704 = vsel %vm7699, %v7665, 0
        %v7707 = vsel %vm7699, %v7670, 0
        %v7710 = vsel %vm7699, %v7675, 0
        %v7713 = vsel %vm7699, %v7680, 0
        %7715 = vmatprep.subr.mxu0 0.0
        %7716 = vmatpush1.msra.mxu0 0.0
        %7717 = vmatprep.subr.mxu0 0.0
        %7718 = vmatpush1.msra.mxu0 0.0
        %7719 = vmatprep.subr.mxu0 0.0
        %7720 = vmatpush1.msra.mxu0 0.0
        %7721 = vmatprep.subr.mxu0 0.0
        %7722 = vmatpush1.msra.mxu0 0.0
        %7723 = vmatprep.subr.mxu0 0.0
        %7724 = vmatpush1.msra.mxu0 0.0
        %7725 = vmatprep.subr.mxu0 0.0
        %7726 = vmatpush1.msra.mxu0 0.0
        %7727 = vmatprep.subr.mxu0 0.0
        %7728 = vmatpush1.msra.mxu0 0.0
        %7729 = vmatprep.subr.mxu0 0.0
        %7730 = vmatpush1.msra.mxu0 0.0
        %7731 = vmatprep.subr.mxu0 0.0
        %7732 = vmatpush1.msra.mxu0 0.0
        %7733 = vmatprep.subr.mxu0 0.0
        %7734 = vmatpush1.msra.mxu0 0.0
        %7735 = vmatprep.subr.mxu0 0.0
        %7736 = vmatpush1.msra.mxu0 0.0
        %7737 = vmatprep.subr.mxu0 0.0
        %7738 = vmatpush1.msra.mxu0 0.0
        %7739 = vmatprep.subr.mxu0 %v7696
        %7740 = vmatpush1.msra.mxu0 %v7695
        %7741 = vmatprep.subr.mxu0 %v7692
        %7742 = vmatpush1.msra.mxu0 %v7691
        %7743 = vmatprep.subr.mxu0 %v7688
        %7744 = vmatpush1.msra.mxu0 %v7687
        %7745 = vmatprep.subr.mxu0 %v7684
        %7746 = vmatpush1.msra.mxu0 %v7683
        %7747 = vmatprep.subr.mxu0 0.0
        %7748 = vmatpush2.msra.mxu0 0.0
        %7749 = vmatprep.subr.mxu0 0.0
        %7750 = vmatpush2.msra.mxu0 0.0
        %7751 = vmatprep.subr.mxu0 0.0
        %7752 = vmatpush2.msra.mxu0 0.0
        %7753 = vmatprep.subr.mxu0 0.0
        %7754 = vmatpush2.msra.mxu0 0.0
        %7755 = vmatprep.subr.mxu0 0.0
        %7756 = vmatpush2.msra.mxu0 0.0
        %7757 = vmatprep.subr.mxu0 0.0
        %7758 = vmatpush2.msra.mxu0 0.0
        %7759 = vmatprep.subr.mxu0 0.0
        %7760 = vmatpush2.msra.mxu0 0.0
        %7761 = vmatprep.subr.mxu0 0.0
        %7762 = vmatpush2.msra.mxu0 0.0
        %7763 = vmatprep.subr.mxu0 0.0
        %7764 = vmatpush2.msra.mxu0 0.0
        %7765 = vmatprep.subr.mxu0 0.0
        %7766 = vmatpush2.msra.mxu0 0.0
        %7767 = vmatprep.subr.mxu0 0.0
        %7768 = vmatpush2.msra.mxu0 0.0
        %7769 = vmatprep.subr.mxu0 0.0
        %7770 = vmatpush2.msra.mxu0 0.0
        %7771 = vmatprep.subr.mxu0 0.0
        %7772 = vmatpush2.msra.mxu0 0.0
        %7773 = vmatprep.subr.mxu0 0.0
        %7774 = vmatpush2.msra.mxu0 0.0
        %7775 = vmatprep.subr.mxu0 0.0
        %7776 = vmatpush2.msra.mxu0 0.0
        %7777 = vmatprep.subr.mxu0 0.0
        %7778 = vmatpush2.msra.mxu0 0.0
        %7779 = vmatprep.mubr.f32.mxu0 0.0
        %7780 = vmatmul.mubr.f32.gmra.mxu0 %v7701
        %v7781 = vpop.f32.mrf.mxu0
        %v7782 = vadd.f32 0.0, %v7781
        %v7783 = vpop.f32.mrf.mxu0
        %v7784 = vadd.f32 0.0, %v7783
        %7785 = vmatprep.mubr.f32.mxu0 0.0
        %7786 = vmatmul.mubr.f32.gmra.mxu0 %v7704
        %v7787 = vpop.f32.mrf.mxu0
        %v7788 = vadd.f32 0.0, %v7787
        %v7789 = vpop.f32.mrf.mxu0
        %v7790 = vadd.f32 0.0, %v7789
        %7791 = vmatprep.mubr.f32.mxu0 0.0
        %7792 = vmatmul.mubr.f32.gmra.mxu0 %v7707
        %v7793 = vpop.f32.mrf.mxu0
        %v7794 = vadd.f32 0.0, %v7793
        %v7795 = vpop.f32.mrf.mxu0
        %v7796 = vadd.f32 0.0, %v7795
        %7797 = vmatprep.mubr.f32.mxu0 0.0
        %7798 = vmatmul.mubr.f32.gmra.mxu0 %v7710
        %v7799 = vpop.f32.mrf.mxu0
        %v7800 = vadd.f32 0.0, %v7799
        %v7801 = vpop.f32.mrf.mxu0
        %v7802 = vadd.f32 0.0, %v7801
        %7803 = vmatprep.mubr.f32.mxu0 0.0
        %7804 = vmatmul.mubr.f32.gmra.mxu0 %v7713
        %v7805 = vpop.f32.mrf.mxu0
        %v7806 = vadd.f32 0.0, %v7805
        %v7807 = vpop.f32.mrf.mxu0
        %v7808 = vadd.f32 0.0, %v7807
        %7809 = vdwg.mxu0
        %7810 = vmatprep.subr.mxu0 0.0
        %7811 = vmatpush1.msra.mxu0 0.0
        %7812 = vmatprep.subr.mxu0 0.0
        %7813 = vmatpush1.msra.mxu0 0.0
        %7814 = vmatprep.subr.mxu0 0.0
        %7815 = vmatpush1.msra.mxu0 0.0
        %7816 = vmatprep.subr.mxu0 0.0
        %7817 = vmatpush1.msra.mxu0 0.0
        %7818 = vmatprep.subr.mxu0 0.0
        %7819 = vmatpush1.msra.mxu0 0.0
        %7820 = vmatprep.subr.mxu0 0.0
        %7821 = vmatpush1.msra.mxu0 0.0
        %7822 = vmatprep.subr.mxu0 0.0
        %7823 = vmatpush1.msra.mxu0 0.0
        %7824 = vmatprep.subr.mxu0 0.0
        %7825 = vmatpush1.msra.mxu0 0.0
        %7826 = vmatprep.subr.mxu0 0.0
        %7827 = vmatpush1.msra.mxu0 0.0
        %7828 = vmatprep.subr.mxu0 0.0
        %7829 = vmatpush1.msra.mxu0 0.0
        %7830 = vmatprep.subr.mxu0 0.0
        %7831 = vmatpush1.msra.mxu0 0.0
        %7832 = vmatprep.subr.mxu0 0.0
        %7833 = vmatpush1.msra.mxu0 0.0
        %7834 = vmatprep.subr.mxu0 %v7698
        %7835 = vmatpush1.msra.mxu0 %v7697
        %7836 = vmatprep.subr.mxu0 %v7694
        %7837 = vmatpush1.msra.mxu0 %v7693
        %7838 = vmatprep.subr.mxu0 %v7690
        %7839 = vmatpush1.msra.mxu0 %v7689
        %7840 = vmatprep.subr.mxu0 %v7686
        %7841 = vmatpush1.msra.mxu0 %v7685
        %7842 = vmatprep.subr.mxu0 0.0
        %7843 = vmatpush2.msra.mxu0 0.0
        %7844 = vmatprep.subr.mxu0 0.0
        %7845 = vmatpush2.msra.mxu0 0.0
        %7846 = vmatprep.subr.mxu0 0.0
        %7847 = vmatpush2.msra.mxu0 0.0
        %7848 = vmatprep.subr.mxu0 0.0
        %7849 = vmatpush2.msra.mxu0 0.0
        %7850 = vmatprep.subr.mxu0 0.0
        %7851 = vmatpush2.msra.mxu0 0.0
        %7852 = vmatprep.subr.mxu0 0.0
        %7853 = vmatpush2.msra.mxu0 0.0
        %7854 = vmatprep.subr.mxu0 0.0
        %7855 = vmatpush2.msra.mxu0 0.0
        %7856 = vmatprep.subr.mxu0 0.0
        %7857 = vmatpush2.msra.mxu0 0.0
        %7858 = vmatprep.subr.mxu0 0.0
        %7859 = vmatpush2.msra.mxu0 0.0
        %7860 = vmatprep.subr.mxu0 0.0
        %7861 = vmatpush2.msra.mxu0 0.0
        %7862 = vmatprep.subr.mxu0 0.0
        %7863 = vmatpush2.msra.mxu0 0.0
        %7864 = vmatprep.subr.mxu0 0.0
        %7865 = vmatpush2.msra.mxu0 0.0
        %7866 = vmatprep.subr.mxu0 0.0
        %7867 = vmatpush2.msra.mxu0 0.0
        %7868 = vmatprep.subr.mxu0 0.0
        %7869 = vmatpush2.msra.mxu0 0.0
        %7870 = vmatprep.subr.mxu0 0.0
        %7871 = vmatpush2.msra.mxu0 0.0
        %7872 = vmatprep.subr.mxu0 0.0
        %7873 = vmatpush2.msra.mxu0 0.0
        %7874 = vmatprep.mubr.f32.mxu0 0.0
        %7875 = vmatmul.mubr.f32.gmra.mxu0 %v7701
        %v7876 = vpop.f32.mrf.mxu0
        %v7877 = vadd.f32 0.0, %v7876
        %v7878 = vpop.f32.mrf.mxu0
        %v7879 = vadd.f32 0.0, %v7878
        %7880 = vmatprep.mubr.f32.mxu0 0.0
        %7881 = vmatmul.mubr.f32.gmra.mxu0 %v7704
        %v7882 = vpop.f32.mrf.mxu0
        %v7883 = vadd.f32 0.0, %v7882
        %v7884 = vpop.f32.mrf.mxu0
        %v7885 = vadd.f32 0.0, %v7884
        %7886 = vmatprep.mubr.f32.mxu0 0.0
        %7887 = vmatmul.mubr.f32.gmra.mxu0 %v7707
        %v7888 = vpop.f32.mrf.mxu0
        %v7889 = vadd.f32 0.0, %v7888
        %v7890 = vpop.f32.mrf.mxu0
        %v7891 = vadd.f32 0.0, %v7890
        %7892 = vmatprep.mubr.f32.mxu0 0.0
        %7893 = vmatmul.mubr.f32.gmra.mxu0 %v7710
        %v7894 = vpop.f32.mrf.mxu0
        %v7895 = vadd.f32 0.0, %v7894
        %v7896 = vpop.f32.mrf.mxu0
        %v7897 = vadd.f32 0.0, %v7896
        %7898 = vmatprep.mubr.f32.mxu0 0.0
        %7899 = vmatmul.mubr.f32.gmra.mxu0 %v7713
        %v7900 = vpop.f32.mrf.mxu0
        %v7901 = vadd.f32 0.0, %v7900
        %v7902 = vpop.f32.mrf.mxu0
        %v7903 = vadd.f32 0.0, %v7902
        %7904 = vdwg.mxu0
        %v7910 = vrot.slane %v7782, 1
        %v7911 = vrot.slane %v7788, 1
        %v7912 = vsel %vm1136, %v7910, %v7911
        %v7913 = vrot.slane %v7794, 1
        %v7914 = vsel %vm1136, %v7911, %v7913
        %v7915 = vrot.slane %v7800, 1
        %v7916 = vsel %vm1136, %v7913, %v7915
        %v7917 = vrot.slane %v7806, 1
        %v7918 = vsel %vm1136, %v7915, %v7917
        %7919 = vrot.lane.b32.xlu0 %v7912, 64
        %v7920 = vpop.permute.xlu0 %7919
        %7921 = vrot.lane.b32.xlu0 %v7914, 64
        %v7922 = vpop.permute.xlu0 %7921
        %7923 = vrot.lane.b32.xlu0 %v7916, 64
        %v7924 = vpop.permute.xlu0 %7923
        %7925 = vrot.lane.b32.xlu0 %v7918, 64
        %v7926 = vpop.permute.xlu0 %7925
        %v7931 = vadd.f32 %v7782, %v7920
        %v7932 = vadd.f32 %v7788, %v7922
        %v7933 = vadd.f32 %v7794, %v7924
        %v7934 = vadd.f32 %v7800, %v7926
        %v7940 = vrot.slane %v7784, 2
        %v7941 = vrot.slane %v7790, 2
        %v7942 = vsel %vm1514, %v7940, %v7941
        %v7943 = vrot.slane %v7796, 2
        %v7944 = vsel %vm1514, %v7941, %v7943
        %v7945 = vrot.slane %v7802, 2
        %v7946 = vsel %vm1514, %v7943, %v7945
        %v7947 = vrot.slane %v7808, 2
        %v7948 = vsel %vm1514, %v7945, %v7947
        %v7953 = vadd.f32 %v7931, %v7942
        %v7954 = vadd.f32 %v7932, %v7944
        %v7955 = vadd.f32 %v7933, %v7946
        %v7956 = vadd.f32 %v7934, %v7948
        %v7957 = vrot.slane %v7784, 3
        %v7958 = vrot.slane %v7790, 3
        %v7959 = vsel %vm1892, %v7957, %v7958
        %v7960 = vrot.slane %v7796, 3
        %v7961 = vsel %vm1892, %v7958, %v7960
        %v7962 = vrot.slane %v7802, 3
        %v7963 = vsel %vm1892, %v7960, %v7962
        %v7964 = vrot.slane %v7808, 3
        %v7965 = vsel %vm1892, %v7962, %v7964
        %7966 = vrot.lane.b32.xlu0 %v7959, 64
        %v7967 = vpop.permute.xlu0 %7966
        %7968 = vrot.lane.b32.xlu0 %v7961, 64
        %v7969 = vpop.permute.xlu0 %7968
        %7970 = vrot.lane.b32.xlu0 %v7963, 64
        %v7971 = vpop.permute.xlu0 %7970
        %7972 = vrot.lane.b32.xlu0 %v7965, 64
        %v7973 = vpop.permute.xlu0 %7972
        %v7978 = vadd.f32 %v7953, %v7967
        %v7979 = vadd.f32 %v7954, %v7969
        %v7980 = vadd.f32 %v7955, %v7971
        %v7981 = vadd.f32 %v7956, %v7973
        %v7987 = vrot.slane %v7877, 4
        %v7988 = vrot.slane %v7883, 4
        %v7989 = vsel %vm5091, %v7987, %v7988
        %v7990 = vrot.slane %v7889, 4
        %v7991 = vsel %vm5091, %v7988, %v7990
        %v7992 = vrot.slane %v7895, 4
        %v7993 = vsel %vm5091, %v7990, %v7992
        %v7994 = vrot.slane %v7901, 4
        %v7995 = vsel %vm5091, %v7992, %v7994
        %v8000 = vadd.f32 %v7978, %v7989
        %v8001 = vadd.f32 %v7979, %v7991
        %v8002 = vadd.f32 %v7980, %v7993
        %v8003 = vadd.f32 %v7981, %v7995
        %v8004 = vrot.slane %v7877, 5
        %v8005 = vrot.slane %v7883, 5
        %v8006 = vsel %vm5132, %v8004, %v8005
        %v8007 = vrot.slane %v7889, 5
        %v8008 = vsel %vm5132, %v8005, %v8007
        %v8009 = vrot.slane %v7895, 5
        %v8010 = vsel %vm5132, %v8007, %v8009
        %v8011 = vrot.slane %v7901, 5
        %v8012 = vsel %vm5132, %v8009, %v8011
        %8013 = vrot.lane.b32.xlu0 %v8006, 64
        %v8014 = vpop.permute.xlu0 %8013
        %8015 = vrot.lane.b32.xlu0 %v8008, 64
        %v8016 = vpop.permute.xlu0 %8015
        %8017 = vrot.lane.b32.xlu0 %v8010, 64
        %v8018 = vpop.permute.xlu0 %8017
        %8019 = vrot.lane.b32.xlu0 %v8012, 64
        %v8020 = vpop.permute.xlu0 %8019
        %v8025 = vadd.f32 %v8000, %v8014
        %v8026 = vadd.f32 %v8001, %v8016
        %v8027 = vadd.f32 %v8002, %v8018
        %v8028 = vadd.f32 %v8003, %v8020
        %v8034 = vrot.slane %v7879, 6
        %v8035 = vrot.slane %v7885, 6
        %v8036 = vsel %vm5194, %v8034, %v8035
        %v8037 = vrot.slane %v7891, 6
        %v8038 = vsel %vm5194, %v8035, %v8037
        %v8039 = vrot.slane %v7897, 6
        %v8040 = vsel %vm5194, %v8037, %v8039
        %v8041 = vrot.slane %v7903, 6
        %v8042 = vsel %vm5194, %v8039, %v8041
        %v8047 = vadd.f32 %v8025, %v8036
        %v8048 = vadd.f32 %v8026, %v8038
        %v8049 = vadd.f32 %v8027, %v8040
        %v8050 = vadd.f32 %v8028, %v8042
        %v8051 = vld [vmem:[%s6] sm:$0x1]
        %v8053 = vlaneseq
        %v8054 = vshrl.u32 %v8053, 7
        %v8055 = vsub.s32 0, %v8054
        %v8056 = vrot.slane %v8051, %v8055
        %v8058 = vadd.f32 %v8047, %v8056
        %v8059 = vadd.f32 %v8048, %v8056
        %v8060 = vadd.f32 %v8049, %v8056
        %v8061 = vadd.f32 %v8050, %v8056
        %v8062 = vmax.f32 %v8058, 0.0
        %v8063 = vmax.f32 %v8059, 0.0
        %v8064 = vmax.f32 %v8060, 0.0
        %v8065 = vmax.f32 %v8061, 0.0
        %v8070 = vrot.slane %v8062, 1
        %v8071 = vrot.slane %v8063, 1
        %v8072 = vsel %vm1136, %v8070, %v8071
        %v8073 = vrot.slane %v8064, 1
        %v8074 = vsel %vm1136, %v8071, %v8073
        %v8075 = vrot.slane %v8065, 1
        %v8076 = vsel %vm1136, %v8073, %v8075
        %v8081 = vmax.f32 %v8062, %v8072
        %v8082 = vmax.f32 %v8063, %v8074
        %v8083 = vmax.f32 %v8064, %v8076
        %v8084 = vmax.f32 %v8065, %v8075
        %vm8085 = vcmask 252928
        %v8086 = vsel %vm8085, %v7569, 0
        %v8088 = vsel %vm8085, %v7570, 0
        %v8091 = vsel %vm1136, %v8084, 0
        %8093 = vmatprep.subr.mxu0 0.0
        %8094 = vmatpush1.msra.mxu0 0.0
        %8095 = vmatprep.subr.mxu0 0.0
        %8096 = vmatpush1.msra.mxu0 0.0
        %8097 = vmatprep.subr.mxu0 0.0
        %8098 = vmatpush1.msra.mxu0 0.0
        %8099 = vmatprep.subr.mxu0 0.0
        %8100 = vmatpush1.msra.mxu0 0.0
        %8101 = vmatprep.subr.mxu0 0.0
        %8102 = vmatpush1.msra.mxu0 0.0
        %8103 = vmatprep.subr.mxu0 0.0
        %8104 = vmatpush1.msra.mxu0 0.0
        %8105 = vmatprep.subr.mxu0 0.0
        %8106 = vmatpush1.msra.mxu0 0.0
        %8107 = vmatprep.subr.mxu0 0.0
        %8108 = vmatpush1.msra.mxu0 0.0
        %8109 = vmatprep.subr.mxu0 0.0
        %8110 = vmatpush1.msra.mxu0 0.0
        %8111 = vmatprep.subr.mxu0 0.0
        %8112 = vmatpush1.msra.mxu0 0.0
        %8113 = vmatprep.subr.mxu0 0.0
        %8114 = vmatpush1.msra.mxu0 0.0
        %8115 = vmatprep.subr.mxu0 0.0
        %8116 = vmatpush1.msra.mxu0 0.0
        %8117 = vmatprep.subr.mxu0 0.0
        %8118 = vmatpush1.msra.mxu0 %v8091
        %8119 = vmatprep.subr.mxu0 0.0
        %8120 = vmatpush1.msra.mxu0 %v8083
        %8121 = vmatprep.subr.mxu0 0.0
        %8122 = vmatpush1.msra.mxu0 %v8082
        %8123 = vmatprep.subr.mxu0 0.0
        %8124 = vmatpush1.msra.mxu0 %v8081
        %8125 = vmatprep.subr.mxu0 0.0
        %8126 = vmatpush2.msra.mxu0 0.0
        %8127 = vmatprep.subr.mxu0 0.0
        %8128 = vmatpush2.msra.mxu0 0.0
        %8129 = vmatprep.subr.mxu0 0.0
        %8130 = vmatpush2.msra.mxu0 0.0
        %8131 = vmatprep.subr.mxu0 0.0
        %8132 = vmatpush2.msra.mxu0 0.0
        %8133 = vmatprep.subr.mxu0 0.0
        %8134 = vmatpush2.msra.mxu0 0.0
        %8135 = vmatprep.subr.mxu0 0.0
        %8136 = vmatpush2.msra.mxu0 0.0
        %8137 = vmatprep.subr.mxu0 0.0
        %8138 = vmatpush2.msra.mxu0 0.0
        %8139 = vmatprep.subr.mxu0 0.0
        %8140 = vmatpush2.msra.mxu0 0.0
        %8141 = vmatprep.subr.mxu0 0.0
        %8142 = vmatpush2.msra.mxu0 0.0
        %8143 = vmatprep.subr.mxu0 0.0
        %8144 = vmatpush2.msra.mxu0 0.0
        %8145 = vmatprep.subr.mxu0 0.0
        %8146 = vmatpush2.msra.mxu0 0.0
        %8147 = vmatprep.subr.mxu0 0.0
        %8148 = vmatpush2.msra.mxu0 0.0
        %8149 = vmatprep.subr.mxu0 0.0
        %8150 = vmatpush2.msra.mxu0 0.0
        %8151 = vmatprep.subr.mxu0 0.0
        %8152 = vmatpush2.msra.mxu0 0.0
        %8153 = vmatprep.subr.mxu0 0.0
        %8154 = vmatpush2.msra.mxu0 0.0
        %8155 = vmatprep.subr.mxu0 0.0
        %8156 = vmatpush2.msra.mxu0 0.0
        %8157 = vmatprep.mubr.f32.mxu0 0.0
        %8158 = vmatmul.mubr.f32.gmra.mxu0 %v8086
        %v8159 = vpop.f32.mrf.mxu0
        %v8160 = vadd.f32 0.0, %v8159
        %v8161 = vpop.f32.mrf.mxu0
        %8162 = vmatprep.mubr.f32.mxu0 0.0
        %8163 = vmatmul.mubr.f32.gmra.mxu0 %v8088
        %v8164 = vpop.f32.mrf.mxu0
        %v8165 = vadd.f32 0.0, %v8164
        %v8166 = vpop.f32.mrf.mxu0
        %8167 = vdwg.mxu0
        %v8168 = vld [vmem:[%s7] sm:$0xff]
        %v8169 = vld [vmem:[%s7 + $0x8] sm:$0xff]
        %v8170 = vld [vmem:[%s7 + $0x10] sm:$0xff]
        %v8171 = vld [vmem:[%s7 + $0x18] sm:$0xff]
        %v8172 = vld [vmem:[%s7 + $0x20] sm:$0xff]
        %v8173 = vld [vmem:[%s7 + $0x28] sm:$0xff]
        %v8174 = vld [vmem:[%s7 + $0x30] sm:$0xff]
        %v8175 = vld [vmem:[%s7 + $0x38] sm:$0xff]
        %v8176 = vld [vmem:[%s7 + $0x40] sm:$0xff]
        %v8177 = vld [vmem:[%s7 + $0x48] sm:$0xff]
        %v8178 = vld [vmem:[%s7 + $0x50] sm:$0xff]
        %v8179 = vld [vmem:[%s7 + $0x58] sm:$0xff]
        %v8180 = vld [vmem:[%s7 + $0x60] sm:$0xff]
        %v8181 = vld [vmem:[%s7 + $0x68] sm:$0xff]
        %v8182 = vld [vmem:[%s7 + $0x70] sm:$0xff]
        %v8183 = vld [vmem:[%s7 + $0x78] sm:$0xff]
        %vm8184 = vcmask 523264
        %v8186 = vsel %vm8184, %v8160, 0
        %v8189 = vsel %vm8184, %v8165, 0
        %8191 = vmatprep.subr.mxu0 0.0
        %8192 = vmatpush1.msra.mxu0 0.0
        %8193 = vmatprep.subr.mxu0 0.0
        %8194 = vmatpush1.msra.mxu0 0.0
        %8195 = vmatprep.subr.mxu0 0.0
        %8196 = vmatpush1.msra.mxu0 0.0
        %8197 = vmatprep.subr.mxu0 0.0
        %8198 = vmatpush1.msra.mxu0 0.0
        %8199 = vmatprep.subr.mxu0 0.0
        %8200 = vmatpush1.msra.mxu0 0.0
        %8201 = vmatprep.subr.mxu0 0.0
        %8202 = vmatpush1.msra.mxu0 0.0
        %8203 = vmatprep.subr.mxu0 0.0
        %8204 = vmatpush1.msra.mxu0 0.0
        %8205 = vmatprep.subr.mxu0 0.0
        %8206 = vmatpush1.msra.mxu0 0.0
        %8207 = vmatprep.subr.mxu0 %v8183
        %8208 = vmatpush1.msra.mxu0 %v8182
        %8209 = vmatprep.subr.mxu0 %v8181
        %8210 = vmatpush1.msra.mxu0 %v8180
        %8211 = vmatprep.subr.mxu0 %v8179
        %8212 = vmatpush1.msra.mxu0 %v8178
        %8213 = vmatprep.subr.mxu0 %v8177
        %8214 = vmatpush1.msra.mxu0 %v8176
        %8215 = vmatprep.subr.mxu0 %v8175
        %8216 = vmatpush1.msra.mxu0 %v8174
        %8217 = vmatprep.subr.mxu0 %v8173
        %8218 = vmatpush1.msra.mxu0 %v8172
        %8219 = vmatprep.subr.mxu0 %v8171
        %8220 = vmatpush1.msra.mxu0 %v8170
        %8221 = vmatprep.subr.mxu0 %v8169
        %8222 = vmatpush1.msra.mxu0 %v8168
        %8223 = vmatprep.subr.mxu0 0.0
        %8224 = vmatpush2.msra.mxu0 0.0
        %8225 = vmatprep.subr.mxu0 0.0
        %8226 = vmatpush2.msra.mxu0 0.0
        %8227 = vmatprep.subr.mxu0 0.0
        %8228 = vmatpush2.msra.mxu0 0.0
        %8229 = vmatprep.subr.mxu0 0.0
        %8230 = vmatpush2.msra.mxu0 0.0
        %8231 = vmatprep.subr.mxu0 0.0
        %8232 = vmatpush2.msra.mxu0 0.0
        %8233 = vmatprep.subr.mxu0 0.0
        %8234 = vmatpush2.msra.mxu0 0.0
        %8235 = vmatprep.subr.mxu0 0.0
        %8236 = vmatpush2.msra.mxu0 0.0
        %8237 = vmatprep.subr.mxu0 0.0
        %8238 = vmatpush2.msra.mxu0 0.0
        %8239 = vmatprep.subr.mxu0 0.0
        %8240 = vmatpush2.msra.mxu0 0.0
        %8241 = vmatprep.subr.mxu0 0.0
        %8242 = vmatpush2.msra.mxu0 0.0
        %8243 = vmatprep.subr.mxu0 0.0
        %8244 = vmatpush2.msra.mxu0 0.0
        %8245 = vmatprep.subr.mxu0 0.0
        %8246 = vmatpush2.msra.mxu0 0.0
        %8247 = vmatprep.subr.mxu0 0.0
        %8248 = vmatpush2.msra.mxu0 0.0
        %8249 = vmatprep.subr.mxu0 0.0
        %8250 = vmatpush2.msra.mxu0 0.0
        %8251 = vmatprep.subr.mxu0 0.0
        %8252 = vmatpush2.msra.mxu0 0.0
        %8253 = vmatprep.subr.mxu0 0.0
        %8254 = vmatpush2.msra.mxu0 0.0
        %8255 = vmatprep.mubr.f32.mxu0 0.0
        %8256 = vmatmul.mubr.f32.gmra.mxu0 %v8186
        %v8257 = vpop.f32.mrf.mxu0
        %v8258 = vadd.f32 0.0, %v8257
        %v8259 = vpop.f32.mrf.mxu0
        %v8260 = vadd.f32 0.0, %v8259
        %8261 = vmatprep.mubr.f32.mxu0 0.0
        %8262 = vmatmul.mubr.f32.gmra.mxu0 %v8189
        %v8263 = vpop.f32.mrf.mxu0
        %v8264 = vadd.f32 0.0, %v8263
        %v8265 = vpop.f32.mrf.mxu0
        %v8266 = vadd.f32 0.0, %v8265
        %8267 = vdwg.mxu0
        %v8270 = vrot.slane %v8258, 1
        %v8271 = vrot.slane %v8264, 1
        %v8272 = vsel %vm1136, %v8270, %v8271
        %8273 = vrot.lane.b32.xlu0 %v8272, 96
        %v8274 = vpop.permute.xlu0 %8273
        %8275 = vrot.lane.b32.xlu0 %v8271, 96
        %v8276 = vpop.permute.xlu0 %8275
        %v8279 = vadd.f32 %v8258, %v8274
        %v8280 = vadd.f32 %v8264, %v8276
        %v8281 = vrot.slane %v8258, 2
        %v8282 = vrot.slane %v8264, 2
        %v8283 = vsel %vm1514, %v8281, %v8282
        %8284 = vrot.lane.b32.xlu0 %v8283, 64
        %v8285 = vpop.permute.xlu0 %8284
        %8286 = vrot.lane.b32.xlu0 %v8282, 64
        %v8287 = vpop.permute.xlu0 %8286
        %v8290 = vadd.f32 %v8279, %v8285
        %v8291 = vadd.f32 %v8280, %v8287
        %v8292 = vrot.slane %v8258, 3
        %v8293 = vrot.slane %v8264, 3
        %v8294 = vsel %vm1892, %v8292, %v8293
        %8295 = vrot.lane.b32.xlu0 %v8294, 32
        %v8296 = vpop.permute.xlu0 %8295
        %8297 = vrot.lane.b32.xlu0 %v8293, 32
        %v8298 = vpop.permute.xlu0 %8297
        %v8301 = vadd.f32 %v8290, %v8296
        %v8302 = vadd.f32 %v8291, %v8298
        %v8305 = vrot.slane %v8260, 4
        %v8306 = vrot.slane %v8266, 4
        %v8307 = vsel %vm5091, %v8305, %v8306
        %v8310 = vadd.f32 %v8301, %v8307
        %v8311 = vadd.f32 %v8302, %v8306
        %v8312 = vld [vmem:[%s8] sm:$0x1]
        %v8314 = vlaneseq
        %v8315 = vshrl.u32 %v8314, 7
        %v8316 = vsub.s32 0, %v8315
        %v8317 = vrot.slane %v8312, %v8316
        %v8319 = vadd.f32 %v8310, %v8317
        %v8320 = vadd.f32 %v8311, %v8317
        %v8321 = vmax.f32 %v8319, 0.0
        %v8322 = vmax.f32 %v8320, 0.0
        %v8325 = vrot.slane %v8321, 1
        %v8326 = vrot.slane %v8322, 1
        %v8327 = vsel %vm1136, %v8325, %v8326
        %v8330 = vmax.f32 %v8321, %v8327
        %v8331 = vmax.f32 %v8322, %v8326
        %vm8332 = vcmask 89088
        %v8333 = vsel %vm8332, %v7569, 0
        %v8336 = vsel %vm5132, %v8331, 0
        %8338 = vmatprep.subr.mxu0 0.0
        %8339 = vmatpush1.msra.mxu0 0.0
        %8340 = vmatprep.subr.mxu0 0.0
        %8341 = vmatpush1.msra.mxu0 0.0
        %8342 = vmatprep.subr.mxu0 0.0
        %8343 = vmatpush1.msra.mxu0 0.0
        %8344 = vmatprep.subr.mxu0 0.0
        %8345 = vmatpush1.msra.mxu0 0.0
        %8346 = vmatprep.subr.mxu0 0.0
        %8347 = vmatpush1.msra.mxu0 0.0
        %8348 = vmatprep.subr.mxu0 0.0
        %8349 = vmatpush1.msra.mxu0 0.0
        %8350 = vmatprep.subr.mxu0 0.0
        %8351 = vmatpush1.msra.mxu0 0.0
        %8352 = vmatprep.subr.mxu0 0.0
        %8353 = vmatpush1.msra.mxu0 0.0
        %8354 = vmatprep.subr.mxu0 0.0
        %8355 = vmatpush1.msra.mxu0 0.0
        %8356 = vmatprep.subr.mxu0 0.0
        %8357 = vmatpush1.msra.mxu0 0.0
        %8358 = vmatprep.subr.mxu0 0.0
        %8359 = vmatpush1.msra.mxu0 0.0
        %8360 = vmatprep.subr.mxu0 0.0
        %8361 = vmatpush1.msra.mxu0 0.0
        %8362 = vmatprep.subr.mxu0 0.0
        %8363 = vmatpush1.msra.mxu0 0.0
        %8364 = vmatprep.subr.mxu0 0.0
        %8365 = vmatpush1.msra.mxu0 0.0
        %8366 = vmatprep.subr.mxu0 0.0
        %8367 = vmatpush1.msra.mxu0 %v8336
        %8368 = vmatprep.subr.mxu0 0.0
        %8369 = vmatpush1.msra.mxu0 %v8330
        %8370 = vmatprep.subr.mxu0 0.0
        %8371 = vmatpush2.msra.mxu0 0.0
        %8372 = vmatprep.subr.mxu0 0.0
        %8373 = vmatpush2.msra.mxu0 0.0
        %8374 = vmatprep.subr.mxu0 0.0
        %8375 = vmatpush2.msra.mxu0 0.0
        %8376 = vmatprep.subr.mxu0 0.0
        %8377 = vmatpush2.msra.mxu0 0.0
        %8378 = vmatprep.subr.mxu0 0.0
        %8379 = vmatpush2.msra.mxu0 0.0
        %8380 = vmatprep.subr.mxu0 0.0
        %8381 = vmatpush2.msra.mxu0 0.0
        %8382 = vmatprep.subr.mxu0 0.0
        %8383 = vmatpush2.msra.mxu0 0.0
        %8384 = vmatprep.subr.mxu0 0.0
        %8385 = vmatpush2.msra.mxu0 0.0
        %8386 = vmatprep.subr.mxu0 0.0
        %8387 = vmatpush2.msra.mxu0 0.0
        %8388 = vmatprep.subr.mxu0 0.0
        %8389 = vmatpush2.msra.mxu0 0.0
        %8390 = vmatprep.subr.mxu0 0.0
        %8391 = vmatpush2.msra.mxu0 0.0
        %8392 = vmatprep.subr.mxu0 0.0
        %8393 = vmatpush2.msra.mxu0 0.0
        %8394 = vmatprep.subr.mxu0 0.0
        %8395 = vmatpush2.msra.mxu0 0.0
        %8396 = vmatprep.subr.mxu0 0.0
        %8397 = vmatpush2.msra.mxu0 0.0
        %8398 = vmatprep.subr.mxu0 0.0
        %8399 = vmatpush2.msra.mxu0 0.0
        %8400 = vmatprep.subr.mxu0 0.0
        %8401 = vmatpush2.msra.mxu0 0.0
        %8402 = vmatprep.mubr.f32.mxu0 0.0
        %8403 = vmatmul.mubr.f32.gmra.mxu0 %v8333
        %v8404 = vpop.f32.mrf.mxu0
        %v8405 = vadd.f32 0.0, %v8404
        %v8406 = vpop.f32.mrf.mxu0
        %8407 = vdwg.mxu0
        %v8408 = vld [vmem:[%s9] sm:$0xff]
        %v8409 = vld [vmem:[%s9 + $0x8] sm:$0xff]
        %v8410 = vld [vmem:[%s9 + $0x10] sm:$0xff]
        %v8411 = vld [vmem:[%s9 + $0x18] sm:$0xff]
        %v8413 = vsel %vm7699, %v8405, 0
        %8415 = vmatprep.subr.mxu0 0.0
        %8416 = vmatpush1.msra.mxu0 0.0
        %8417 = vmatprep.subr.mxu0 0.0
        %8418 = vmatpush1.msra.mxu0 0.0
        %8419 = vmatprep.subr.mxu0 0.0
        %8420 = vmatpush1.msra.mxu0 0.0
        %8421 = vmatprep.subr.mxu0 0.0
        %8422 = vmatpush1.msra.mxu0 0.0
        %8423 = vmatprep.subr.mxu0 0.0
        %8424 = vmatpush1.msra.mxu0 0.0
        %8425 = vmatprep.subr.mxu0 0.0
        %8426 = vmatpush1.msra.mxu0 0.0
        %8427 = vmatprep.subr.mxu0 0.0
        %8428 = vmatpush1.msra.mxu0 0.0
        %8429 = vmatprep.subr.mxu0 0.0
        %8430 = vmatpush1.msra.mxu0 0.0
        %8431 = vmatprep.subr.mxu0 0.0
        %8432 = vmatpush1.msra.mxu0 0.0
        %8433 = vmatprep.subr.mxu0 0.0
        %8434 = vmatpush1.msra.mxu0 0.0
        %8435 = vmatprep.subr.mxu0 0.0
        %8436 = vmatpush1.msra.mxu0 0.0
        %8437 = vmatprep.subr.mxu0 0.0
        %8438 = vmatpush1.msra.mxu0 0.0
        %8439 = vmatprep.subr.mxu0 0.0
        %8440 = vmatpush1.msra.mxu0 %v8411
        %8441 = vmatprep.subr.mxu0 0.0
        %8442 = vmatpush1.msra.mxu0 %v8410
        %8443 = vmatprep.subr.mxu0 0.0
        %8444 = vmatpush1.msra.mxu0 %v8409
        %8445 = vmatprep.subr.mxu0 0.0
        %8446 = vmatpush1.msra.mxu0 %v8408
        %8447 = vmatprep.subr.mxu0 0.0
        %8448 = vmatpush2.msra.mxu0 0.0
        %8449 = vmatprep.subr.mxu0 0.0
        %8450 = vmatpush2.msra.mxu0 0.0
        %8451 = vmatprep.subr.mxu0 0.0
        %8452 = vmatpush2.msra.mxu0 0.0
        %8453 = vmatprep.subr.mxu0 0.0
        %8454 = vmatpush2.msra.mxu0 0.0
        %8455 = vmatprep.subr.mxu0 0.0
        %8456 = vmatpush2.msra.mxu0 0.0
        %8457 = vmatprep.subr.mxu0 0.0
        %8458 = vmatpush2.msra.mxu0 0.0
        %8459 = vmatprep.subr.mxu0 0.0
        %8460 = vmatpush2.msra.mxu0 0.0
        %8461 = vmatprep.subr.mxu0 0.0
        %8462 = vmatpush2.msra.mxu0 0.0
        %8463 = vmatprep.subr.mxu0 0.0
        %8464 = vmatpush2.msra.mxu0 0.0
        %8465 = vmatprep.subr.mxu0 0.0
        %8466 = vmatpush2.msra.mxu0 0.0
        %8467 = vmatprep.subr.mxu0 0.0
        %8468 = vmatpush2.msra.mxu0 0.0
        %8469 = vmatprep.subr.mxu0 0.0
        %8470 = vmatpush2.msra.mxu0 0.0
        %8471 = vmatprep.subr.mxu0 0.0
        %8472 = vmatpush2.msra.mxu0 0.0
        %8473 = vmatprep.subr.mxu0 0.0
        %8474 = vmatpush2.msra.mxu0 0.0
        %8475 = vmatprep.subr.mxu0 0.0
        %8476 = vmatpush2.msra.mxu0 0.0
        %8477 = vmatprep.subr.mxu0 0.0
        %8478 = vmatpush2.msra.mxu0 0.0
        %8479 = vmatprep.mubr.f32.mxu0 0.0
        %8480 = vmatmul.mubr.f32.gmra.mxu0 %v8413
        %v8481 = vpop.f32.mrf.mxu0
        %v8482 = vadd.f32 0.0, %v8481
        %v8483 = vpop.f32.mrf.mxu0
        %8484 = vdwg.mxu0
        %v8486 = vrot.slane %v8482, 1
        %8487 = vrot.lane.b32.xlu0 %v8486, 112
        %v8488 = vpop.permute.xlu0 %8487
        %v8490 = vadd.f32 %v8482, %v8488
        %v8491 = vrot.slane %v8482, 2
        %8492 = vrot.lane.b32.xlu0 %v8491, 96
        %v8493 = vpop.permute.xlu0 %8492
        %v8495 = vadd.f32 %v8490, %v8493
        %v8496 = vld [vmem:[%s10] sm:$0x1]
        %v8498 = vlaneseq
        %v8499 = vshrl.u32 %v8498, 7
        %v8500 = vsub.s32 0, %v8499
        %v8501 = vrot.slane %v8496, %v8500
        %v8503 = vadd.f32 %v8495, %v8501
        %v8504 = vmax.f32 %v8503, 0.0
        %vm8505 = vcmask 125952
        %v8506 = vsel %vm8505, %v8504, 0.0
        %v8507 = vrot.slane %v8506, 4
        %v8508 = vadd.f32 %v8506, %v8507
        %v8509 = vrot.slane %v8508, 2
        %v8510 = vadd.f32 %v8508, %v8509
        %v8511 = vrot.slane %v8510, 1
        %v8512 = vadd.f32 %v8510, %v8511
        %v8513 = vrcp.pop 4.0
        %v8514 = vmul.f32 %v8512, %v8513
        %v8515 = vld [vmem:[%s11] sm:$0xff]
        %v8516 = vld [vmem:[%s11 + $0x8] sm:$0xff]
        %v8517 = vld [vmem:[%s12] sm:$0x1]
        %v8519 = vsel %vm503, %v8514, 0
        %8521 = vmatprep.subr.mxu0 0.0
        %8522 = vmatpush1.msra.mxu0 0.0
        %8523 = vmatprep.subr.mxu0 0.0
        %8524 = vmatpush1.msra.mxu0 0.0
        %8525 = vmatprep.subr.mxu0 0.0
        %8526 = vmatpush1.msra.mxu0 0.0
        %8527 = vmatprep.subr.mxu0 0.0
        %8528 = vmatpush1.msra.mxu0 0.0
        %8529 = vmatprep.subr.mxu0 0.0
        %8530 = vmatpush1.msra.mxu0 0.0
        %8531 = vmatprep.subr.mxu0 0.0
        %8532 = vmatpush1.msra.mxu0 0.0
        %8533 = vmatprep.subr.mxu0 0.0
        %8534 = vmatpush1.msra.mxu0 0.0
        %8535 = vmatprep.subr.mxu0 0.0
        %8536 = vmatpush1.msra.mxu0 0.0
        %8537 = vmatprep.subr.mxu0 0.0
        %8538 = vmatpush1.msra.mxu0 0.0
        %8539 = vmatprep.subr.mxu0 0.0
        %8540 = vmatpush1.msra.mxu0 0.0
        %8541 = vmatprep.subr.mxu0 0.0
        %8542 = vmatpush1.msra.mxu0 0.0
        %8543 = vmatprep.subr.mxu0 0.0
        %8544 = vmatpush1.msra.mxu0 0.0
        %8545 = vmatprep.subr.mxu0 0.0
        %8546 = vmatpush1.msra.mxu0 0.0
        %8547 = vmatprep.subr.mxu0 0.0
        %8548 = vmatpush1.msra.mxu0 0.0
        %8549 = vmatprep.subr.mxu0 0.0
        %8550 = vmatpush1.msra.mxu0 %v8516
        %8551 = vmatprep.subr.mxu0 0.0
        %8552 = vmatpush1.msra.mxu0 %v8515
        %8553 = vmatprep.subr.mxu0 0.0
        %8554 = vmatpush2.msra.mxu0 0.0
        %8555 = vmatprep.subr.mxu0 0.0
        %8556 = vmatpush2.msra.mxu0 0.0
        %8557 = vmatprep.subr.mxu0 0.0
        %8558 = vmatpush2.msra.mxu0 0.0
        %8559 = vmatprep.subr.mxu0 0.0
        %8560 = vmatpush2.msra.mxu0 0.0
        %8561 = vmatprep.subr.mxu0 0.0
        %8562 = vmatpush2.msra.mxu0 0.0
        %8563 = vmatprep.subr.mxu0 0.0
        %8564 = vmatpush2.msra.mxu0 0.0
        %8565 = vmatprep.subr.mxu0 0.0
        %8566 = vmatpush2.msra.mxu0 0.0
        %8567 = vmatprep.subr.mxu0 0.0
        %8568 = vmatpush2.msra.mxu0 0.0
        %8569 = vmatprep.subr.mxu0 0.0
        %8570 = vmatpush2.msra.mxu0 0.0
        %8571 = vmatprep.subr.mxu0 0.0
        %8572 = vmatpush2.msra.mxu0 0.0
        %8573 = vmatprep.subr.mxu0 0.0
        %8574 = vmatpush2.msra.mxu0 0.0
        %8575 = vmatprep.subr.mxu0 0.0
        %8576 = vmatpush2.msra.mxu0 0.0
        %8577 = vmatprep.subr.mxu0 0.0
        %8578 = vmatpush2.msra.mxu0 0.0
        %8579 = vmatprep.subr.mxu0 0.0
        %8580 = vmatpush2.msra.mxu0 0.0
        %8581 = vmatprep.subr.mxu0 0.0
        %8582 = vmatpush2.msra.mxu0 0.0
        %8583 = vmatprep.subr.mxu0 0.0
        %8584 = vmatpush2.msra.mxu0 0.0
        %8585 = vmatprep.mubr.f32.mxu0 0.0
        %8586 = vmatmul.mubr.f32.gmra.mxu0 %v8519
        %v8587 = vpop.f32.mrf.mxu0
        %v8588 = vadd.f32 %v8517, %v8587
        %v8589 = vpop.f32.mrf.mxu0
        %8590 = vdwg.mxu0
        %vm8591 = vcmask 8192
        %8592 = vst.msk [vmem:[%s432] sm:$0x1] %vm8591, %v8588
        %s8593 = sand.u32 %s313, 1
        %s8594 = scalar_lea.sflag [#allocation3], %s8593
        %s8595 = sand.u32 %s313, 1
        %s8596 = scalar_lea.vmem [#allocation2], %s8595
        // Predicated region
        $region73: #{m5_forward.1} parent=71 // pred_check
          %p8597 = pneg %p323
        $region74: #{m5_forward.1} parent=71 // pred_check_branch
          %8599 = sbr.rel (%p8597) target = $region76
        $region75: #{m5_forward.1} parent=71 // pred_region
          %s8601 = ssub.s32 16, 16
          %8602 = vsyncadd %s8594, %s8601
          %s8603 = smul.addr %s27, 16
          %s8604 = scalar_lea.hbm %s13, %s8603
          %s8606 = sshll.u32 %s8596, 4
          %s8607 = int_to_ptr.vmem [resolvable:$true] %s8606
          %8609 = dma.vmem_to_hbm [thread:$0]  %s8607, 16, %s8604, %s8594
        $region76: #{m5_forward.1} parent=71 // pred_fallthru
          _
      $region72: #{m5_forward.1} parent=5 // pred_fallthru
        _
      %p8610 = scmp.le.s32.totalorder 2, %s22
      // Predicated region
      $region77: #{m5_forward.1} parent=5 // pred_check
        %p8611 = pneg %p8610
      $region78: #{m5_forward.1} parent=5 // pred_check_branch
        %8613 = sbr.rel (%p8611) target = $region80
      $region79: #{m5_forward.1} parent=5 // pred_region
        %s8614 = ssub.s32 %s22, 2
        // Predicated region
        $region81: #{m5_forward.1} parent=79 // pred_check
          %p8615 = pneg %p329
        $region82: #{m5_forward.1} parent=79 // pred_check_branch
          %8617 = sbr.rel (%p8615) target = $region84
        $region83: #{m5_forward.1} parent=79 // pred_region
          %s8618 = sand.u32 %s314, 1
          %s8619 = scalar_lea.sflag [#allocation3], %s8618
          %s8620 = sand.u32 %s314, 1
          %s8621 = scalar_lea.vmem [#allocation2], %s8620
          %8622 = dma.done %s8619, 16
        $region84: #{m5_forward.1} parent=79 // pred_fallthru
          _
      $region80: #{m5_forward.1} parent=5 // pred_fallthru
        _
    $region6: #{m5_forward.1} parent=1 // loop_footer
      %s26 = sadd.s32 1, %s22
    $region7: #{m5_forward.1} parent=1 // loop_footer_branch
      %21 = sbr.rel target = $region3
    $region8: #{m5_forward.1} parent=1 // loop_exit
      _
    %8623 = vsyncpa [#allocation3], 1
    %s8624 = scalar_lea.sflag [#allocation3], 1
    %8625 = vsyncpa %s8624, 1

</llo_original>
